<compile_context>
chip_gen: v7x
topology: tpu7x:2x2x1
jax: 0.10.0
libtpu: 0.0.40
codegen_flags: <defaults>
</compile_context>

<pallas_src>
import functools
import numpy as np
import jax
import jax.numpy as jnp
from jax.experimental import pallas as pl
from jax.experimental.pallas import tpu as pltpu

K = 5  # conv kernel size, padding = 2 (SAME)


# ----------------------------------------------------------------------------
# Host-side constant builders
# ----------------------------------------------------------------------------
def _to_flat_w(w):
    """PyTorch conv weight (Cout, Cin, 5, 5) -> (25*Cin, Cout) bf16.

    Row index = (dy*5 + dx)*Cin + ci, matching the im2col column ordering.
    """
    cout, cin = w.shape[0], w.shape[1]
    return (jnp.transpose(w, (2, 3, 1, 0))          # (5, 5, Cin, Cout)
            .reshape(K * K * cin, cout)
            .astype(jnp.bfloat16))


def make_pool_select(Hc, Wc):
    """0/1 matrix selecting 2x2-maxpool corners from the pairwise-maxed flat map.

    The pairwise-maxed map has Hc*Wc - Wc - 1 rows; row i*Wc + j holds the max of
    the 2x2 block whose top-left corner is (i, j).  We select rows 2p*Wc + 2q.
    """
    H2, W2 = Hc // 2, Wc // 2
    n = Hc * Wc - Wc - 1
    S = np.zeros((H2 * W2, n), np.float32)
    for p in range(H2):
        for q in range(W2):
            S[p * W2 + q, 2 * p * Wc + 2 * q] = 1.0
    return S


def _adaptive_segments(in_size, out_size):
    mat = np.zeros((out_size, in_size), np.float32)
    for i in range(out_size):
        s = (i * in_size) // out_size
        e = -((-(i + 1) * in_size) // out_size)      # ceil
        mat[i, s:e] = 1.0 / (e - s)
    return mat


def make_adaptive_avgpool_matrix(Hc, Wc, out_size):
    """(out*out, Hc*Wc) matrix implementing nn.AdaptiveAvgPool2d((out, out))."""
    ph = _adaptive_segments(Hc, out_size)
    pw = _adaptive_segments(Wc, out_size)
    return np.einsum("ph,qw->pqhw", ph, pw).reshape(out_size * out_size, Hc * Wc)


def _im2col_host(x_nhwc):
    """Full 25-tap im2col of the network input, (B, H*W, 25*Cin) bf16."""
    B, H, W, Cin = x_nhwc.shape
    xp = jnp.pad(x_nhwc, ((0, 0), (2, 2), (2, 2), (0, 0)))
    cols = [xp[:, dy:dy + H, dx:dx + W, :] for dy in range(K) for dx in range(K)]
    xcol = jnp.concatenate(cols, axis=-1)            # (B, H, W, 25*Cin)
    return xcol.reshape(B, H * W, K * K * Cin).astype(jnp.bfloat16)


# ----------------------------------------------------------------------------
# In-kernel helpers (values only; everything lives in VMEM / vregs)
# ----------------------------------------------------------------------------
def _conv5x5_relu(y_flat, w_flat, b_row, Hc, Wc):
    """relu(conv5x5(y, SAME) + b); y_flat (Hc*Wc, C) f32 -> (Hc*Wc, C) f32.

    Cast to bf16 once, build the full 25-tap im2col (dx fold then dy fold),
    then contract all taps in a single K = 25*C MXU matmul (f32 accumulation).
    """
    C = y_flat.shape[-1]
    xb = y_flat.astype(jnp.bfloat16).reshape(Hc, Wc, C)
    zr = jnp.zeros((2, Wc, C), jnp.bfloat16)
    xb = jnp.concatenate([zr, xb, zr], axis=0)                         # (Hc+4, Wc, C)
    zc = jnp.zeros((Hc + 4, 2, C), jnp.bfloat16)
    xb = jnp.concatenate([zc, xb, zc], axis=1)                         # (Hc+4, Wc+4, C)
    xcol = jnp.concatenate([xb[:, dx:dx + Wc, :] for dx in range(K)], axis=-1)
    patch = jnp.concatenate([xcol[dy:dy + Hc] for dy in range(K)], axis=-1)
    patch = patch.reshape(Hc * Wc, K * K * C)                          # (Hc*Wc, 25C) bf16
    acc = jnp.dot(patch, w_flat, preferred_element_type=jnp.float32)
    return jnp.maximum(acc + b_row, 0.0)                               # bias + ReLU, f32


def _maxpool2(y_flat, Wc, sel_bf16):
    """2x2 stride-2 maxpool of a flat (Hc*Wc, C) map -> (Hc/2*Wc/2, C) f32.

    Pairwise maxes via shifted slices (VPU), stride-2 down-select via a
    host-precomputed bf16 0/1 matrix on the MXU.  Rows of the pairwise-maxed
    map that straddle image-row boundaries are garbage but never selected.
    """
    m = jnp.maximum(y_flat[:-1, :], y_flat[1:, :])      # pair over x
    m = jnp.maximum(m[:-Wc, :], m[Wc:, :])              # pair over y
    return jnp.dot(sel_bf16, m.astype(jnp.bfloat16),
                   preferred_element_type=jnp.float32)


def _rgb_encoder_kernel(H, W, Bt, x_ref, w1_ref, b1_ref, w2_ref, b2_ref,
                        w3_ref, b3_ref, s1_ref, s2_ref, pm_ref, o_ref):
    """Fused forward for Bt batch elements per grid step."""
    H2, W2, H3, W3 = H // 2, W // 2, H // 4, W // 4
    w1, w2, w3 = w1_ref[...], w2_ref[...], w3_ref[...]
    b1, b2, b3 = b1_ref[...], b2_ref[...], b3_ref[...]
    s1, s2, pm = s1_ref[...], s2_ref[...], pm_ref[...]

    for b in range(Bt):                                  # small static unroll
        # conv1: host-built im2col, single K = 25*Cin matmul
        y = jnp.dot(x_ref[b], w1, preferred_element_type=jnp.float32)
        y = jnp.maximum(y + b1, 0.0)                     # (H*W, C) f32
        y = _maxpool2(y, W, s1)                          # (H2*W2, C)
        y = _conv5x5_relu(y, w2, b2, H2, W2)             # conv2 + ReLU
        y = _maxpool2(y, W2, s2)                         # (H3*W3, C)
        y = _conv5x5_relu(y, w3, b3, H3, W3)             # conv3 + ReLU
        # fused AdaptiveAvgPool2d + view + permute: (P, H3*W3) @ (H3*W3, C)
        o_ref[b] = jnp.dot(pm, y.astype(jnp.bfloat16),
                           preferred_element_type=jnp.float32)


# ----------------------------------------------------------------------------
# Host wrapper
# ----------------------------------------------------------------------------
def _pick_block_b(B):
    """Images per grid step; keep grid length >= 2 so both v7x cores get work."""
    for bt in (4, 2):
        if B % bt == 0 and (B // bt) >= 2:
            return bt
    return 1


@functools.partial(jax.jit, static_argnames=("out_size",))
def rgb_encoder_forward(x_nchw, params, out_size=7):
    """Full RGBEncoder forward (eval mode). Returns (B, out_size**2, dim_feat)."""
    (w1, b1), (w2, b2), (w3, b3) = params
    B, Cin, H, W = x_nchw.shape
    C = w1.shape[0]
    P = out_size * out_size
    assert H % 4 == 0 and W % 4 == 0, "two 2x2 maxpools need H, W divisible by 4"
    H2, W2, H3, W3 = H // 2, W // 2, H // 4, W // 4
    Bt = _pick_block_b(B)

    x_col = _im2col_host(jnp.transpose(x_nchw, (0, 2, 3, 1)).astype(jnp.float32))
    w1f, w2f, w3f = _to_flat_w(w1), _to_flat_w(w2), _to_flat_w(w3)
    b1r = b1[None, :].astype(jnp.float32)
    b2r = b2[None, :].astype(jnp.float32)
    b3r = b3[None, :].astype(jnp.float32)
    # 0/1 and power-of-two pool weights are exact in bf16 at these sizes.
    s1 = jnp.asarray(make_pool_select(H, W), jnp.bfloat16)
    s2 = jnp.asarray(make_pool_select(H2, W2), jnp.bfloat16)
    pm = jnp.asarray(make_adaptive_avgpool_matrix(H3, W3, out_size), jnp.bfloat16)

    kernel = functools.partial(_rgb_encoder_kernel, H, W, Bt)
    return pl.pallas_call(
        kernel,
        out_shape=jax.ShapeDtypeStruct((B, P, C), jnp.float32),
        grid=(B // Bt,),
        in_specs=[
            pl.BlockSpec((Bt, H * W, K * K * Cin), lambda b: (b, 0, 0)),
            pl.BlockSpec((K * K * Cin, C), lambda b: (0, 0)),
            pl.BlockSpec((1, C), lambda b: (0, 0)),
            pl.BlockSpec((K * K * C, C), lambda b: (0, 0)),
            pl.BlockSpec((1, C), lambda b: (0, 0)),
            pl.BlockSpec((K * K * C, C), lambda b: (0, 0)),
            pl.BlockSpec((1, C), lambda b: (0, 0)),
            pl.BlockSpec((H2 * W2, H * W - W - 1), lambda b: (0, 0)),
            pl.BlockSpec((H3 * W3, H2 * W2 - W2 - 1), lambda b: (0, 0)),
            pl.BlockSpec((P, H3 * W3), lambda b: (0, 0)),
        ],
        out_specs=pl.BlockSpec((Bt, P, C), lambda b: (b, 0, 0)),
        compiler_params=pltpu.CompilerParams(
            dimension_semantics=("parallel",),
            vmem_limit_bytes=32 * 1024 * 1024,
        ),
    )(x_col, w1f, b1r, w2f, b2r, w3f, b3r, s1, s2, pm)


# ----------------------------------------------------------------------------
# Pure-JAX reference with the same precision policy (bf16 MXU operands,
# f32 accumulation, bf16 rounding of pooled activations).
# ----------------------------------------------------------------------------
def reference_forward(x_nchw, params, pool_M_f32):
    def conv(x, w, b):
        y = jax.lax.conv_general_dilated(
            x.astype(jnp.bfloat16),
            jnp.transpose(w, (2, 3, 1, 0)).astype(jnp.bfloat16),
            window_strides=(1, 1), padding=((2, 2), (2, 2)),
            dimension_numbers=("NHWC", "HWIO", "NHWC"),
            preferred_element_type=jnp.float32)
        return jax.nn.relu(y + b)

    def bf16_round(x):
        return x.astype(jnp.bfloat16).astype(jnp.float32)

    def maxpool2(x):
        B, H, W, C = x.shape
        return jnp.max(x.reshape(B, H // 2, 2, W // 2, 2, C), axis=(2, 4))

    (w1, b1), (w2, b2), (w3, b3) = params
    x = jnp.transpose(x_nchw, (0, 2, 3, 1)).astype(jnp.float32)
    x = maxpool2(bf16_round(conv(x, w1, b1)))
    x = maxpool2(bf16_round(conv(x, w2, b2)))
    x = bf16_round(conv(x, w3, b3))
    B, H3, W3, C = x.shape
    return jnp.einsum("pn,bnc->bpc", pool_M_f32, x.reshape(B, H3 * W3, C))


# ----------------------------------------------------------------------------
# Deterministic parameter init (PyTorch-Conv2d-style uniform bounds)
# ----------------------------------------------------------------------------
def init_conv_params(key, cin, cout):
    wk, bk = jax.random.split(key)
    bound = 1.0 / np.sqrt(cin * K * K)
    w = jax.random.uniform(wk, (cout, cin, K, K), jnp.float32, -bound, bound)
    b = jax.random.uniform(bk, (cout,), jnp.float32, -bound, bound)
    return w, b


if __name__ == "__main__":
    B, input_dim, dim_feat, H, W, out_size = 2, 3, 32, 32, 32, 7

    key = jax.random.PRNGKey(0)
    kx, k1, k2, k3 = jax.random.split(key, 4)
    x = jax.random.normal(kx, (B, input_dim, H, W), jnp.float32)
    params = (
        init_conv_params(k1, input_dim, dim_feat),
        init_conv_params(k2, dim_feat, dim_feat),
        init_conv_params(k3, dim_feat, dim_feat),
    )

    out = jax.block_until_ready(rgb_encoder_forward(x, params, out_size=out_size))
    assert out.shape == (B, out_size * out_size, dim_feat), out.shape

    pool_M = jnp.asarray(make_adaptive_avgpool_matrix(H // 4, W // 4, out_size))
    ref = jax.block_until_ready(reference_forward(x, params, pool_M))
    err = float(jnp.max(jnp.abs(out - ref)))
    assert bool(jnp.allclose(out, ref, atol=2e-3, rtol=2e-3)), (
        "Pallas != reference; max abs diff = %g" % err)

    print("KERNEL_OK")
</pallas_src>

<mosaic_0001>
module attributes {stable_mosaic.version = 11 : i64} {
  func.func @_rgb_encoder_kernel(%arg0: i32, %arg1: memref<1x1024x75xbf16, #tpu.memory_space<vmem>>, %arg2: memref<75x32xbf16, #tpu.memory_space<vmem>>, %arg3: memref<1x32xf32, #tpu.memory_space<vmem>>, %arg4: memref<800x32xbf16, #tpu.memory_space<vmem>>, %arg5: memref<1x32xf32, #tpu.memory_space<vmem>>, %arg6: memref<800x32xbf16, #tpu.memory_space<vmem>>, %arg7: memref<1x32xf32, #tpu.memory_space<vmem>>, %arg8: memref<256x991xbf16, #tpu.memory_space<vmem>>, %arg9: memref<64x239xbf16, #tpu.memory_space<vmem>>, %arg10: memref<49x64xbf16, #tpu.memory_space<vmem>>, %arg11: memref<1x49x32xf32, #tpu.memory_space<vmem>>) attributes {dimension_semantics = [#tpu.dimension_semantics<parallel>], iteration_bounds = array<i64: 2>, scalar_prefetch = 0 : i64, scratch_operands = 0 : i64, tpu.core_type = #tpu.core_type<tc>, window_params = [{transform_indices = @transform_0, window_bounds = array<i64: 1, 1024, 75>}, {pipeline_mode = #tpu.pipeline_mode<synchronous>, transform_indices = @transform_1, window_bounds = array<i64: 75, 32>}, {pipeline_mode = #tpu.pipeline_mode<synchronous>, transform_indices = @transform_2, window_bounds = array<i64: 1, 32>}, {pipeline_mode = #tpu.pipeline_mode<synchronous>, transform_indices = @transform_3, window_bounds = array<i64: 800, 32>}, {pipeline_mode = #tpu.pipeline_mode<synchronous>, transform_indices = @transform_4, window_bounds = array<i64: 1, 32>}, {pipeline_mode = #tpu.pipeline_mode<synchronous>, transform_indices = @transform_5, window_bounds = array<i64: 800, 32>}, {pipeline_mode = #tpu.pipeline_mode<synchronous>, transform_indices = @transform_6, window_bounds = array<i64: 1, 32>}, {pipeline_mode = #tpu.pipeline_mode<synchronous>, transform_indices = @transform_7, window_bounds = array<i64: 256, 991>}, {pipeline_mode = #tpu.pipeline_mode<synchronous>, transform_indices = @transform_8, window_bounds = array<i64: 64, 239>}, {pipeline_mode = #tpu.pipeline_mode<synchronous>, transform_indices = @transform_9, window_bounds = array<i64: 49, 64>}, {transform_indices = @transform_10, window_bounds = array<i64: 1, 49, 32>}]} {
    %c0 = arith.constant 0 : index
    %c0_0 = arith.constant 0 : index
    %0 = vector.load %arg2[%c0, %c0_0] : memref<75x32xbf16, #tpu.memory_space<vmem>>, vector<75x32xbf16>
    %c0_1 = arith.constant 0 : index
    %c0_2 = arith.constant 0 : index
    %1 = vector.load %arg4[%c0_1, %c0_2] : memref<800x32xbf16, #tpu.memory_space<vmem>>, vector<800x32xbf16>
    %c0_3 = arith.constant 0 : index
    %c0_4 = arith.constant 0 : index
    %2 = vector.load %arg6[%c0_3, %c0_4] : memref<800x32xbf16, #tpu.memory_space<vmem>>, vector<800x32xbf16>
    %c0_5 = arith.constant 0 : index
    %c0_6 = arith.constant 0 : index
    %3 = vector.load %arg3[%c0_5, %c0_6] : memref<1x32xf32, #tpu.memory_space<vmem>>, vector<1x32xf32>
    %c0_7 = arith.constant 0 : index
    %c0_8 = arith.constant 0 : index
    %4 = vector.load %arg5[%c0_7, %c0_8] : memref<1x32xf32, #tpu.memory_space<vmem>>, vector<1x32xf32>
    %c0_9 = arith.constant 0 : index
    %c0_10 = arith.constant 0 : index
    %5 = vector.load %arg7[%c0_9, %c0_10] : memref<1x32xf32, #tpu.memory_space<vmem>>, vector<1x32xf32>
    %c0_11 = arith.constant 0 : index
    %c0_12 = arith.constant 0 : index
    %6 = vector.load %arg8[%c0_11, %c0_12] : memref<256x991xbf16, #tpu.memory_space<vmem>>, vector<256x991xbf16>
    %c0_13 = arith.constant 0 : index
    %c0_14 = arith.constant 0 : index
    %7 = vector.load %arg9[%c0_13, %c0_14] : memref<64x239xbf16, #tpu.memory_space<vmem>>, vector<64x239xbf16>
    %c0_15 = arith.constant 0 : index
    %c0_16 = arith.constant 0 : index
    %8 = vector.load %arg10[%c0_15, %c0_16] : memref<49x64xbf16, #tpu.memory_space<vmem>>, vector<49x64xbf16>
    %c0_17 = arith.constant 0 : index
    %c0_18 = arith.constant 0 : index
    %c0_19 = arith.constant 0 : index
    %9 = vector.load %arg1[%c0_17, %c0_18, %c0_19] : memref<1x1024x75xbf16, #tpu.memory_space<vmem>>, vector<1x1024x75xbf16>
    %10 = vector.shape_cast %9 : vector<1x1024x75xbf16> to vector<1024x75xbf16>
    %cst = arith.constant dense<0.000000e+00> : vector<1024x32xf32>
    %11 = tpu.matmul %10, %0, %cst {dimension_numbers = #tpu.dot_dimension_numbers<[1], [0], [0], [1], [0, 0, 1, 1], [], []>} : vector<1024x75xbf16>, vector<75x32xbf16>, vector<1024x32xf32> -> vector<1024x32xf32>
    %12 = vector.broadcast %3 : vector<1x32xf32> to vector<1024x32xf32>
    %13 = arith.addf %11, %12 : vector<1024x32xf32>
    %cst_20 = arith.constant 0.000000e+00 : f32
    %14 = vector.broadcast %cst_20 : f32 to vector<1024x32xf32>
    %15 = arith.maximumf %13, %14 : vector<1024x32xf32>
    %16 = vector.extract_strided_slice %15 {offsets = [0, 0], sizes = [1023, 32], strides = [1, 1]} : vector<1024x32xf32> to vector<1023x32xf32>
    %17 = vector.extract_strided_slice %15 {offsets = [1, 0], sizes = [1023, 32], strides = [1, 1]} : vector<1024x32xf32> to vector<1023x32xf32>
    %18 = arith.maximumf %16, %17 : vector<1023x32xf32>
    %19 = vector.extract_strided_slice %18 {offsets = [0, 0], sizes = [991, 32], strides = [1, 1]} : vector<1023x32xf32> to vector<991x32xf32>
    %20 = vector.extract_strided_slice %18 {offsets = [32, 0], sizes = [991, 32], strides = [1, 1]} : vector<1023x32xf32> to vector<991x32xf32>
    %21 = arith.maximumf %19, %20 : vector<991x32xf32>
    %22 = arith.truncf %21 : vector<991x32xf32> to vector<991x32xbf16>
    %cst_21 = arith.constant dense<0.000000e+00> : vector<256x32xf32>
    %23 = tpu.matmul %6, %22, %cst_21 {dimension_numbers = #tpu.dot_dimension_numbers<[1], [0], [0], [1], [0, 0, 1, 1], [], []>} : vector<256x991xbf16>, vector<991x32xbf16>, vector<256x32xf32> -> vector<256x32xf32>
    %24 = arith.truncf %23 : vector<256x32xf32> to vector<256x32xbf16>
    %25 = vector.shape_cast %24 : vector<256x32xbf16> to vector<16x16x32xbf16>
    %cst_22 = arith.constant 0.000000e+00 : bf16
    %26 = vector.broadcast %cst_22 : bf16 to vector<2x16x32xbf16>
    %27 = tpu.concatenate %26, %25, %26 in 0 : vector<2x16x32xbf16>, vector<16x16x32xbf16>, vector<2x16x32xbf16> -> vector<20x16x32xbf16>
    %cst_23 = arith.constant 0.000000e+00 : bf16
    %28 = vector.broadcast %cst_23 : bf16 to vector<20x2x32xbf16>
    %29 = tpu.concatenate %28, %27, %28 in 1 : vector<20x2x32xbf16>, vector<20x16x32xbf16>, vector<20x2x32xbf16> -> vector<20x20x32xbf16>
    %30 = vector.extract_strided_slice %29 {offsets = [0, 0, 0], sizes = [20, 16, 32], strides = [1, 1, 1]} : vector<20x20x32xbf16> to vector<20x16x32xbf16>
    %31 = vector.extract_strided_slice %29 {offsets = [0, 1, 0], sizes = [20, 16, 32], strides = [1, 1, 1]} : vector<20x20x32xbf16> to vector<20x16x32xbf16>
    %32 = vector.extract_strided_slice %29 {offsets = [0, 2, 0], sizes = [20, 16, 32], strides = [1, 1, 1]} : vector<20x20x32xbf16> to vector<20x16x32xbf16>
    %33 = vector.extract_strided_slice %29 {offsets = [0, 3, 0], sizes = [20, 16, 32], strides = [1, 1, 1]} : vector<20x20x32xbf16> to vector<20x16x32xbf16>
    %34 = vector.extract_strided_slice %29 {offsets = [0, 4, 0], sizes = [20, 16, 32], strides = [1, 1, 1]} : vector<20x20x32xbf16> to vector<20x16x32xbf16>
    %35 = tpu.concatenate %30, %31, %32, %33, %34 in 2 : vector<20x16x32xbf16>, vector<20x16x32xbf16>, vector<20x16x32xbf16>, vector<20x16x32xbf16>, vector<20x16x32xbf16> -> vector<20x16x160xbf16>
    %36 = vector.extract_strided_slice %35 {offsets = [0, 0, 0], sizes = [16, 16, 160], strides = [1, 1, 1]} : vector<20x16x160xbf16> to vector<16x16x160xbf16>
    %37 = vector.extract_strided_slice %35 {offsets = [1, 0, 0], sizes = [16, 16, 160], strides = [1, 1, 1]} : vector<20x16x160xbf16> to vector<16x16x160xbf16>
    %38 = vector.extract_strided_slice %35 {offsets = [2, 0, 0], sizes = [16, 16, 160], strides = [1, 1, 1]} : vector<20x16x160xbf16> to vector<16x16x160xbf16>
    %39 = vector.extract_strided_slice %35 {offsets = [3, 0, 0], sizes = [16, 16, 160], strides = [1, 1, 1]} : vector<20x16x160xbf16> to vector<16x16x160xbf16>
    %40 = vector.extract_strided_slice %35 {offsets = [4, 0, 0], sizes = [16, 16, 160], strides = [1, 1, 1]} : vector<20x16x160xbf16> to vector<16x16x160xbf16>
    %41 = tpu.concatenate %36, %37, %38, %39, %40 in 2 : vector<16x16x160xbf16>, vector<16x16x160xbf16>, vector<16x16x160xbf16>, vector<16x16x160xbf16>, vector<16x16x160xbf16> -> vector<16x16x800xbf16>
    %42 = vector.shape_cast %41 : vector<16x16x800xbf16> to vector<256x800xbf16>
    %cst_24 = arith.constant dense<0.000000e+00> : vector<256x32xf32>
    %43 = tpu.matmul %42, %1, %cst_24 {dimension_numbers = #tpu.dot_dimension_numbers<[1], [0], [0], [1], [0, 0, 1, 1], [], []>} : vector<256x800xbf16>, vector<800x32xbf16>, vector<256x32xf32> -> vector<256x32xf32>
    %44 = vector.broadcast %4 : vector<1x32xf32> to vector<256x32xf32>
    %45 = arith.addf %43, %44 : vector<256x32xf32>
    %cst_25 = arith.constant 0.000000e+00 : f32
    %46 = vector.broadcast %cst_25 : f32 to vector<256x32xf32>
    %47 = arith.maximumf %45, %46 : vector<256x32xf32>
    %48 = vector.extract_strided_slice %47 {offsets = [0, 0], sizes = [255, 32], strides = [1, 1]} : vector<256x32xf32> to vector<255x32xf32>
    %49 = vector.extract_strided_slice %47 {offsets = [1, 0], sizes = [255, 32], strides = [1, 1]} : vector<256x32xf32> to vector<255x32xf32>
    %50 = arith.maximumf %48, %49 : vector<255x32xf32>
    %51 = vector.extract_strided_slice %50 {offsets = [0, 0], sizes = [239, 32], strides = [1, 1]} : vector<255x32xf32> to vector<239x32xf32>
    %52 = vector.extract_strided_slice %50 {offsets = [16, 0], sizes = [239, 32], strides = [1, 1]} : vector<255x32xf32> to vector<239x32xf32>
    %53 = arith.maximumf %51, %52 : vector<239x32xf32>
    %54 = arith.truncf %53 : vector<239x32xf32> to vector<239x32xbf16>
    %cst_26 = arith.constant dense<0.000000e+00> : vector<64x32xf32>
    %55 = tpu.matmul %7, %54, %cst_26 {dimension_numbers = #tpu.dot_dimension_numbers<[1], [0], [0], [1], [0, 0, 1, 1], [], []>} : vector<64x239xbf16>, vector<239x32xbf16>, vector<64x32xf32> -> vector<64x32xf32>
    %56 = arith.truncf %55 : vector<64x32xf32> to vector<64x32xbf16>
    %57 = vector.shape_cast %56 : vector<64x32xbf16> to vector<8x8x32xbf16>
    %cst_27 = arith.constant 0.000000e+00 : bf16
    %58 = vector.broadcast %cst_27 : bf16 to vector<2x8x32xbf16>
    %59 = tpu.concatenate %58, %57, %58 in 0 : vector<2x8x32xbf16>, vector<8x8x32xbf16>, vector<2x8x32xbf16> -> vector<12x8x32xbf16>
    %cst_28 = arith.constant 0.000000e+00 : bf16
    %60 = vector.broadcast %cst_28 : bf16 to vector<12x2x32xbf16>
    %61 = tpu.concatenate %60, %59, %60 in 1 : vector<12x2x32xbf16>, vector<12x8x32xbf16>, vector<12x2x32xbf16> -> vector<12x12x32xbf16>
    %62 = vector.extract_strided_slice %61 {offsets = [0, 0, 0], sizes = [12, 8, 32], strides = [1, 1, 1]} : vector<12x12x32xbf16> to vector<12x8x32xbf16>
    %63 = vector.extract_strided_slice %61 {offsets = [0, 1, 0], sizes = [12, 8, 32], strides = [1, 1, 1]} : vector<12x12x32xbf16> to vector<12x8x32xbf16>
    %64 = vector.extract_strided_slice %61 {offsets = [0, 2, 0], sizes = [12, 8, 32], strides = [1, 1, 1]} : vector<12x12x32xbf16> to vector<12x8x32xbf16>
    %65 = vector.extract_strided_slice %61 {offsets = [0, 3, 0], sizes = [12, 8, 32], strides = [1, 1, 1]} : vector<12x12x32xbf16> to vector<12x8x32xbf16>
    %66 = vector.extract_strided_slice %61 {offsets = [0, 4, 0], sizes = [12, 8, 32], strides = [1, 1, 1]} : vector<12x12x32xbf16> to vector<12x8x32xbf16>
    %67 = tpu.concatenate %62, %63, %64, %65, %66 in 2 : vector<12x8x32xbf16>, vector<12x8x32xbf16>, vector<12x8x32xbf16>, vector<12x8x32xbf16>, vector<12x8x32xbf16> -> vector<12x8x160xbf16>
    %68 = vector.extract_strided_slice %67 {offsets = [0, 0, 0], sizes = [8, 8, 160], strides = [1, 1, 1]} : vector<12x8x160xbf16> to vector<8x8x160xbf16>
    %69 = vector.extract_strided_slice %67 {offsets = [1, 0, 0], sizes = [8, 8, 160], strides = [1, 1, 1]} : vector<12x8x160xbf16> to vector<8x8x160xbf16>
    %70 = vector.extract_strided_slice %67 {offsets = [2, 0, 0], sizes = [8, 8, 160], strides = [1, 1, 1]} : vector<12x8x160xbf16> to vector<8x8x160xbf16>
    %71 = vector.extract_strided_slice %67 {offsets = [3, 0, 0], sizes = [8, 8, 160], strides = [1, 1, 1]} : vector<12x8x160xbf16> to vector<8x8x160xbf16>
    %72 = vector.extract_strided_slice %67 {offsets = [4, 0, 0], sizes = [8, 8, 160], strides = [1, 1, 1]} : vector<12x8x160xbf16> to vector<8x8x160xbf16>
    %73 = tpu.concatenate %68, %69, %70, %71, %72 in 2 : vector<8x8x160xbf16>, vector<8x8x160xbf16>, vector<8x8x160xbf16>, vector<8x8x160xbf16>, vector<8x8x160xbf16> -> vector<8x8x800xbf16>
    %74 = vector.shape_cast %73 : vector<8x8x800xbf16> to vector<64x800xbf16>
    %cst_29 = arith.constant dense<0.000000e+00> : vector<64x32xf32>
    %75 = tpu.matmul %74, %2, %cst_29 {dimension_numbers = #tpu.dot_dimension_numbers<[1], [0], [0], [1], [0, 0, 1, 1], [], []>} : vector<64x800xbf16>, vector<800x32xbf16>, vector<64x32xf32> -> vector<64x32xf32>
    %76 = vector.broadcast %5 : vector<1x32xf32> to vector<64x32xf32>
    %77 = arith.addf %75, %76 : vector<64x32xf32>
    %cst_30 = arith.constant 0.000000e+00 : f32
    %78 = vector.broadcast %cst_30 : f32 to vector<64x32xf32>
    %79 = arith.maximumf %77, %78 : vector<64x32xf32>
    %80 = arith.truncf %79 : vector<64x32xf32> to vector<64x32xbf16>
    %cst_31 = arith.constant dense<0.000000e+00> : vector<49x32xf32>
    %81 = tpu.matmul %8, %80, %cst_31 {dimension_numbers = #tpu.dot_dimension_numbers<[1], [0], [0], [1], [0, 0, 1, 1], [], []>} : vector<49x64xbf16>, vector<64x32xbf16>, vector<49x32xf32> -> vector<49x32xf32>
    %c0_32 = arith.constant 0 : index
    %c0_33 = arith.constant 0 : index
    %c0_34 = arith.constant 0 : index
    %82 = vector.load %arg11[%c0_32, %c0_33, %c0_34] : memref<1x49x32xf32, #tpu.memory_space<vmem>>, vector<1x49x32xf32>
    %83 = vector.shape_cast %82 : vector<1x49x32xf32> to vector<49x32xf32>
    %84 = vector.shape_cast %81 : vector<49x32xf32> to vector<1x49x32xf32>
    tpu.vector_store %arg11[%c0_32, %c0_33, %c0_34], %84 {strides = array<i32>} : memref<1x49x32xf32, #tpu.memory_space<vmem>>, vector<1x49x32xf32>,
    return
  }
  func.func @transform_0(%arg0: i32) -> (i32, i32, i32) {
    %c0_i32 = arith.constant 0 : i32
    %c0_i32_0 = arith.constant 0 : i32
    %c0_i32_1 = arith.constant 0 : i32
    return %arg0, %c0_i32, %c0_i32_0 : i32, i32, i32
  }
  func.func @transform_1(%arg0: i32) -> (i32, i32) {
    %c0_i32 = arith.constant 0 : i32
    %c0_i32_0 = arith.constant 0 : i32
    %c0_i32_1 = arith.constant 0 : i32
    return %c0_i32, %c0_i32_0 : i32, i32
  }
  func.func @transform_2(%arg0: i32) -> (i32, i32) {
    %c0_i32 = arith.constant 0 : i32
    %c0_i32_0 = arith.constant 0 : i32
    %c0_i32_1 = arith.constant 0 : i32
    return %c0_i32, %c0_i32_0 : i32, i32
  }
  func.func @transform_3(%arg0: i32) -> (i32, i32) {
    %c0_i32 = arith.constant 0 : i32
    %c0_i32_0 = arith.constant 0 : i32
    %c0_i32_1 = arith.constant 0 : i32
    return %c0_i32, %c0_i32_0 : i32, i32
  }
  func.func @transform_4(%arg0: i32) -> (i32, i32) {
    %c0_i32 = arith.constant 0 : i32
    %c0_i32_0 = arith.constant 0 : i32
    %c0_i32_1 = arith.constant 0 : i32
    return %c0_i32, %c0_i32_0 : i32, i32
  }
  func.func @transform_5(%arg0: i32) -> (i32, i32) {
    %c0_i32 = arith.constant 0 : i32
    %c0_i32_0 = arith.constant 0 : i32
    %c0_i32_1 = arith.constant 0 : i32
    return %c0_i32, %c0_i32_0 : i32, i32
  }
  func.func @transform_6(%arg0: i32) -> (i32, i32) {
    %c0_i32 = arith.constant 0 : i32
    %c0_i32_0 = arith.constant 0 : i32
    %c0_i32_1 = arith.constant 0 : i32
    return %c0_i32, %c0_i32_0 : i32, i32
  }
  func.func @transform_7(%arg0: i32) -> (i32, i32) {
    %c0_i32 = arith.constant 0 : i32
    %c0_i32_0 = arith.constant 0 : i32
    %c0_i32_1 = arith.constant 0 : i32
    return %c0_i32, %c0_i32_0 : i32, i32
  }
  func.func @transform_8(%arg0: i32) -> (i32, i32) {
    %c0_i32 = arith.constant 0 : i32
    %c0_i32_0 = arith.constant 0 : i32
    %c0_i32_1 = arith.constant 0 : i32
    return %c0_i32, %c0_i32_0 : i32, i32
  }
  func.func @transform_9(%arg0: i32) -> (i32, i32) {
    %c0_i32 = arith.constant 0 : i32
    %c0_i32_0 = arith.constant 0 : i32
    %c0_i32_1 = arith.constant 0 : i32
    return %c0_i32, %c0_i32_0 : i32, i32
  }
  func.func @transform_10(%arg0: i32) -> (i32, i32, i32) {
    %c0_i32 = arith.constant 0 : i32
    %c0_i32_0 = arith.constant 0 : i32
    %c0_i32_1 = arith.constant 0 : i32
    return %arg0, %c0_i32, %c0_i32_0 : i32, i32, i32
  }
}

</mosaic_0001>

<llo_original>
// kernel: rgb_encoder_forward.1
$region0: #{rgb_encoder_forward.1}
  #allocation0 [shape = 'u32[]', space=smem, size = 0x4, offset = 0x4, fixed_abs, tag = 'smem constant byte address 0x4 - core index']
  #allocation1 [shape = 'u32[144,128]{1,0:T(1,128)}', space=vmem, size = 0x12000, scoped, tag = 'internal scratch']
  %s0 = inlined_call_operand.vmem [shape: bf16[2,1024,75], index: 0, kind: input, shape index: {}]
  %s1 = inlined_call_operand.vmem [shape: bf16[75,32], index: 1, kind: input, shape index: {}]
  %s2 = inlined_call_operand.vmem [shape: f32[1,32], index: 2, kind: input, shape index: {}]
  %s3 = inlined_call_operand.vmem [shape: bf16[800,32], index: 3, kind: input, shape index: {}]
  %s4 = inlined_call_operand.vmem [shape: f32[1,32], index: 4, kind: input, shape index: {}]
  %s5 = inlined_call_operand.vmem [shape: bf16[800,32], index: 5, kind: input, shape index: {}]
  %s6 = inlined_call_operand.vmem [shape: f32[1,32], index: 6, kind: input, shape index: {}]
  %s7 = inlined_call_operand.vmem [shape: bf16[256,991], index: 7, kind: input, shape index: {}]
  %s8 = inlined_call_operand.vmem [shape: bf16[64,239], index: 8, kind: input, shape index: {}]
  %s9 = inlined_call_operand.vmem [shape: bf16[49,64], index: 9, kind: input, shape index: {}]
  %s10 = inlined_call_operand.vmem [shape: f32[2,49,32], index: 10, kind: output, shape index: {}]
  %s11 = sld [smem:[#allocation0]]
  $region73: #{rgb_encoder_forward.1} parent=0
    _
  %s13 = ssub.s32 1, %s11
  %s14 = scalar_select 0, %s13, %s11
  loop: start=0, step=1, limit=4
  $region2: #{rgb_encoder_forward.1} parent=0 // loop_pre_header
    _
  $region3: #{rgb_encoder_forward.1} parent=0 // loop_header
    %s16 = sphi 0, %s20
    %p17 = scmp.ge.s32.totalorder %s16, 4
    %s26 = sphi 0, %s28
    %s29 = sphi 0, %s26
    %s30 = sphi 0, %s29
    %s46 = sphi 0, %s30
    %s50 = sphi 0, %s50
    %s52 = sphi 0, %s50
    %s53 = sphi 0, %s52
    %s67 = sphi 0, %s53
    %s71 = sphi 0, %s71
    %s73 = sphi 0, %s71
    %s74 = sphi 0, %s73
    %s88 = sphi 0, %s74
    %s92 = sphi 0, %s92
    %s94 = sphi 0, %s92
    %s95 = sphi 0, %s94
    %s109 = sphi 0, %s95
    %s113 = sphi 0, %s113
    %s115 = sphi 0, %s113
    %s116 = sphi 0, %s115
    %s130 = sphi 0, %s116
    %s134 = sphi 0, %s134
    %s136 = sphi 0, %s134
    %s137 = sphi 0, %s136
    %s151 = sphi 0, %s137
    %s155 = sphi 0, %s155
    %s157 = sphi 0, %s155
    %s158 = sphi 0, %s157
    %s172 = sphi 0, %s158
    %s176 = sphi 0, %s176
    %s178 = sphi 0, %s176
    %s179 = sphi 0, %s178
    %s193 = sphi 0, %s179
    %s197 = sphi 0, %s197
    %s199 = sphi 0, %s197
    %s200 = sphi 0, %s199
    %s214 = sphi 0, %s200
    %s218 = sphi 0, %s218
    %s220 = sphi 0, %s218
    %s221 = sphi 0, %s220
    %s235 = sphi 0, %s221
    %s241 = sphi 0, %s243
    %s244 = sphi 0, %s241
    %s245 = sphi 0, %s244
    %s261 = sphi 0, %s245
  $region4: #{rgb_encoder_forward.1} parent=0 // loop_header_branch
    %19 = sbr.rel (%p17) target = $region8
  $region5: #{rgb_encoder_forward.1} parent=0 // loop_body
    %s21 = ssub.s32 %s16, 1
    %s22 = ssub.s32 %s16, 2
    %s23 = sadd.s32 %s16, 1
    %s24 = ssub.s32 %s16, %s23
    %p25 = scmp.eq.s32.totalorder %s24, 0
    %s27 = sadd.s32 %s26, 1
    %s28 = scalar_select %p25, %s26, %s27
    %p31 = pneg %p25
    %p32 = scmp.eq.s32.totalorder %s16, 1
    %p33 = por %p31, %p32
    %p34 = scmp.ne.s32.totalorder %s26, %s29
    %p35 = scmp.eq.s32.totalorder %s16, 0
    %p36 = por %p34, %p35
    %p37 = scmp.ne.s32.totalorder %s26, %s29
    %p38 = scmp.eq.s32.totalorder %s21, 1
    %p39 = por %p37, %p38
    %p40 = scmp.ne.s32.totalorder %s29, %s30
    %p41 = scmp.eq.s32.totalorder %s21, 0
    %p42 = por %p40, %p41
    %p43 = scmp.ne.s32.totalorder %s29, %s30
    %p44 = scmp.eq.s32.totalorder %s22, 1
    %p45 = por %p43, %p44
    %p47 = scmp.ne.s32.totalorder %s30, %s46
    %p48 = scmp.eq.s32.totalorder %s22, 0
    %p49 = por %p47, %p48
    %s51 = sadd.s32 %s50, 1
    %p54 = scmp.eq.s32.totalorder %s16, 1
    %p55 = scmp.ne.s32.totalorder %s50, %s52
    %p56 = scmp.eq.s32.totalorder %s16, 0
    %p57 = por %p55, %p56
    %p58 = scmp.ne.s32.totalorder %s50, %s52
    %p59 = scmp.eq.s32.totalorder %s21, 1
    %p60 = por %p58, %p59
    %p61 = scmp.ne.s32.totalorder %s52, %s53
    %p62 = scmp.eq.s32.totalorder %s21, 0
    %p63 = por %p61, %p62
    %p64 = scmp.ne.s32.totalorder %s52, %s53
    %p65 = scmp.eq.s32.totalorder %s22, 1
    %p66 = por %p64, %p65
    %p68 = scmp.ne.s32.totalorder %s53, %s67
    %p69 = scmp.eq.s32.totalorder %s22, 0
    %p70 = por %p68, %p69
    %s72 = sadd.s32 %s71, 1
    %p75 = scmp.eq.s32.totalorder %s16, 1
    %p76 = scmp.ne.s32.totalorder %s71, %s73
    %p77 = scmp.eq.s32.totalorder %s16, 0
    %p78 = por %p76, %p77
    %p79 = scmp.ne.s32.totalorder %s71, %s73
    %p80 = scmp.eq.s32.totalorder %s21, 1
    %p81 = por %p79, %p80
    %p82 = scmp.ne.s32.totalorder %s73, %s74
    %p83 = scmp.eq.s32.totalorder %s21, 0
    %p84 = por %p82, %p83
    %p85 = scmp.ne.s32.totalorder %s73, %s74
    %p86 = scmp.eq.s32.totalorder %s22, 1
    %p87 = por %p85, %p86
    %p89 = scmp.ne.s32.totalorder %s74, %s88
    %p90 = scmp.eq.s32.totalorder %s22, 0
    %p91 = por %p89, %p90
    %s93 = sadd.s32 %s92, 1
    %p96 = scmp.eq.s32.totalorder %s16, 1
    %p97 = scmp.ne.s32.totalorder %s92, %s94
    %p98 = scmp.eq.s32.totalorder %s16, 0
    %p99 = por %p97, %p98
    %p100 = scmp.ne.s32.totalorder %s92, %s94
    %p101 = scmp.eq.s32.totalorder %s21, 1
    %p102 = por %p100, %p101
    %p103 = scmp.ne.s32.totalorder %s94, %s95
    %p104 = scmp.eq.s32.totalorder %s21, 0
    %p105 = por %p103, %p104
    %p106 = scmp.ne.s32.totalorder %s94, %s95
    %p107 = scmp.eq.s32.totalorder %s22, 1
    %p108 = por %p106, %p107
    %p110 = scmp.ne.s32.totalorder %s95, %s109
    %p111 = scmp.eq.s32.totalorder %s22, 0
    %p112 = por %p110, %p111
    %s114 = sadd.s32 %s113, 1
    %p117 = scmp.eq.s32.totalorder %s16, 1
    %p118 = scmp.ne.s32.totalorder %s113, %s115
    %p119 = scmp.eq.s32.totalorder %s16, 0
    %p120 = por %p118, %p119
    %p121 = scmp.ne.s32.totalorder %s113, %s115
    %p122 = scmp.eq.s32.totalorder %s21, 1
    %p123 = por %p121, %p122
    %p124 = scmp.ne.s32.totalorder %s115, %s116
    %p125 = scmp.eq.s32.totalorder %s21, 0
    %p126 = por %p124, %p125
    %p127 = scmp.ne.s32.totalorder %s115, %s116
    %p128 = scmp.eq.s32.totalorder %s22, 1
    %p129 = por %p127, %p128
    %p131 = scmp.ne.s32.totalorder %s116, %s130
    %p132 = scmp.eq.s32.totalorder %s22, 0
    %p133 = por %p131, %p132
    %s135 = sadd.s32 %s134, 1
    %p138 = scmp.eq.s32.totalorder %s16, 1
    %p139 = scmp.ne.s32.totalorder %s134, %s136
    %p140 = scmp.eq.s32.totalorder %s16, 0
    %p141 = por %p139, %p140
    %p142 = scmp.ne.s32.totalorder %s134, %s136
    %p143 = scmp.eq.s32.totalorder %s21, 1
    %p144 = por %p142, %p143
    %p145 = scmp.ne.s32.totalorder %s136, %s137
    %p146 = scmp.eq.s32.totalorder %s21, 0
    %p147 = por %p145, %p146
    %p148 = scmp.ne.s32.totalorder %s136, %s137
    %p149 = scmp.eq.s32.totalorder %s22, 1
    %p150 = por %p148, %p149
    %p152 = scmp.ne.s32.totalorder %s137, %s151
    %p153 = scmp.eq.s32.totalorder %s22, 0
    %p154 = por %p152, %p153
    %s156 = sadd.s32 %s155, 1
    %p159 = scmp.eq.s32.totalorder %s16, 1
    %p160 = scmp.ne.s32.totalorder %s155, %s157
    %p161 = scmp.eq.s32.totalorder %s16, 0
    %p162 = por %p160, %p161
    %p163 = scmp.ne.s32.totalorder %s155, %s157
    %p164 = scmp.eq.s32.totalorder %s21, 1
    %p165 = por %p163, %p164
    %p166 = scmp.ne.s32.totalorder %s157, %s158
    %p167 = scmp.eq.s32.totalorder %s21, 0
    %p168 = por %p166, %p167
    %p169 = scmp.ne.s32.totalorder %s157, %s158
    %p170 = scmp.eq.s32.totalorder %s22, 1
    %p171 = por %p169, %p170
    %p173 = scmp.ne.s32.totalorder %s158, %s172
    %p174 = scmp.eq.s32.totalorder %s22, 0
    %p175 = por %p173, %p174
    %s177 = sadd.s32 %s176, 1
    %p180 = scmp.eq.s32.totalorder %s16, 1
    %p181 = scmp.ne.s32.totalorder %s176, %s178
    %p182 = scmp.eq.s32.totalorder %s16, 0
    %p183 = por %p181, %p182
    %p184 = scmp.ne.s32.totalorder %s176, %s178
    %p185 = scmp.eq.s32.totalorder %s21, 1
    %p186 = por %p184, %p185
    %p187 = scmp.ne.s32.totalorder %s178, %s179
    %p188 = scmp.eq.s32.totalorder %s21, 0
    %p189 = por %p187, %p188
    %p190 = scmp.ne.s32.totalorder %s178, %s179
    %p191 = scmp.eq.s32.totalorder %s22, 1
    %p192 = por %p190, %p191
    %p194 = scmp.ne.s32.totalorder %s179, %s193
    %p195 = scmp.eq.s32.totalorder %s22, 0
    %p196 = por %p194, %p195
    %s198 = sadd.s32 %s197, 1
    %p201 = scmp.eq.s32.totalorder %s16, 1
    %p202 = scmp.ne.s32.totalorder %s197, %s199
    %p203 = scmp.eq.s32.totalorder %s16, 0
    %p204 = por %p202, %p203
    %p205 = scmp.ne.s32.totalorder %s197, %s199
    %p206 = scmp.eq.s32.totalorder %s21, 1
    %p207 = por %p205, %p206
    %p208 = scmp.ne.s32.totalorder %s199, %s200
    %p209 = scmp.eq.s32.totalorder %s21, 0
    %p210 = por %p208, %p209
    %p211 = scmp.ne.s32.totalorder %s199, %s200
    %p212 = scmp.eq.s32.totalorder %s22, 1
    %p213 = por %p211, %p212
    %p215 = scmp.ne.s32.totalorder %s200, %s214
    %p216 = scmp.eq.s32.totalorder %s22, 0
    %p217 = por %p215, %p216
    %s219 = sadd.s32 %s218, 1
    %p222 = scmp.eq.s32.totalorder %s16, 1
    %p223 = scmp.ne.s32.totalorder %s218, %s220
    %p224 = scmp.eq.s32.totalorder %s16, 0
    %p225 = por %p223, %p224
    %p226 = scmp.ne.s32.totalorder %s218, %s220
    %p227 = scmp.eq.s32.totalorder %s21, 1
    %p228 = por %p226, %p227
    %p229 = scmp.ne.s32.totalorder %s220, %s221
    %p230 = scmp.eq.s32.totalorder %s21, 0
    %p231 = por %p229, %p230
    %p232 = scmp.ne.s32.totalorder %s220, %s221
    %p233 = scmp.eq.s32.totalorder %s22, 1
    %p234 = por %p232, %p233
    %p236 = scmp.ne.s32.totalorder %s221, %s235
    %p237 = scmp.eq.s32.totalorder %s22, 0
    %p238 = por %p236, %p237
    %s239 = ssub.s32 %s16, %s23
    %p240 = scmp.eq.s32.totalorder %s239, 0
    %s242 = sadd.s32 %s241, 1
    %s243 = scalar_select %p240, %s241, %s242
    %p246 = pneg %p240
    %p247 = scmp.eq.s32.totalorder %s16, 1
    %p248 = por %p246, %p247
    %p249 = scmp.ne.s32.totalorder %s241, %s244
    %p250 = scmp.eq.s32.totalorder %s16, 0
    %p251 = por %p249, %p250
    %p252 = scmp.ne.s32.totalorder %s241, %s244
    %p253 = scmp.eq.s32.totalorder %s21, 1
    %p254 = por %p252, %p253
    %p255 = scmp.ne.s32.totalorder %s244, %s245
    %p256 = scmp.eq.s32.totalorder %s21, 0
    %p257 = por %p255, %p256
    %p258 = scmp.ne.s32.totalorder %s244, %s245
    %p259 = scmp.eq.s32.totalorder %s22, 1
    %p260 = por %p258, %p259
    %p262 = scmp.ne.s32.totalorder %s245, %s261
    %p263 = scmp.eq.s32.totalorder %s22, 0
    %p264 = por %p262, %p263
    %p265 = scmp.le.s32.totalorder 1, %s16
    %p266 = scmp.lt.s32.totalorder %s16, 3
    %p267 = pnand %p265, %p266
    %p268 = pneg %p267
    // Predicated region
    $region9: #{rgb_encoder_forward.1} parent=5 // pred_check
      _
    $region10: #{rgb_encoder_forward.1} parent=5 // pred_check_branch
      %270 = sbr.rel (%p267) target = $region12
    $region11: #{rgb_encoder_forward.1} parent=5 // pred_region
      %s271 = ssub.s32 %s16, 1
      // Predicated region
      $region13: #{rgb_encoder_forward.1} parent=11 // pred_check
        %p272 = pneg %p63
      $region14: #{rgb_encoder_forward.1} parent=11 // pred_check_branch
        %274 = sbr.rel (%p272) target = $region16
      $region15: #{rgb_encoder_forward.1} parent=11 // pred_region
        _
      $region16: #{rgb_encoder_forward.1} parent=11 // pred_fallthru
        _
      // Predicated region
      $region17: #{rgb_encoder_forward.1} parent=11 // pred_check
        %p275 = pneg %p84
      $region18: #{rgb_encoder_forward.1} parent=11 // pred_check_branch
        %277 = sbr.rel (%p275) target = $region20
      $region19: #{rgb_encoder_forward.1} parent=11 // pred_region
        _
      $region20: #{rgb_encoder_forward.1} parent=11 // pred_fallthru
        _
      // Predicated region
      $region21: #{rgb_encoder_forward.1} parent=11 // pred_check
        %p278 = pneg %p105
      $region22: #{rgb_encoder_forward.1} parent=11 // pred_check_branch
        %280 = sbr.rel (%p278) target = $region24
      $region23: #{rgb_encoder_forward.1} parent=11 // pred_region
        _
      $region24: #{rgb_encoder_forward.1} parent=11 // pred_fallthru
        _
      // Predicated region
      $region25: #{rgb_encoder_forward.1} parent=11 // pred_check
        %p281 = pneg %p126
      $region26: #{rgb_encoder_forward.1} parent=11 // pred_check_branch
        %283 = sbr.rel (%p281) target = $region28
      $region27: #{rgb_encoder_forward.1} parent=11 // pred_region
        _
      $region28: #{rgb_encoder_forward.1} parent=11 // pred_fallthru
        _
      // Predicated region
      $region29: #{rgb_encoder_forward.1} parent=11 // pred_check
        %p284 = pneg %p147
      $region30: #{rgb_encoder_forward.1} parent=11 // pred_check_branch
        %286 = sbr.rel (%p284) target = $region32
      $region31: #{rgb_encoder_forward.1} parent=11 // pred_region
        _
      $region32: #{rgb_encoder_forward.1} parent=11 // pred_fallthru
        _
      // Predicated region
      $region33: #{rgb_encoder_forward.1} parent=11 // pred_check
        %p287 = pneg %p168
      $region34: #{rgb_encoder_forward.1} parent=11 // pred_check_branch
        %289 = sbr.rel (%p287) target = $region36
      $region35: #{rgb_encoder_forward.1} parent=11 // pred_region
        _
      $region36: #{rgb_encoder_forward.1} parent=11 // pred_fallthru
        _
      // Predicated region
      $region37: #{rgb_encoder_forward.1} parent=11 // pred_check
        %p290 = pneg %p189
      $region38: #{rgb_encoder_forward.1} parent=11 // pred_check_branch
        %292 = sbr.rel (%p290) target = $region40
      $region39: #{rgb_encoder_forward.1} parent=11 // pred_region
        _
      $region40: #{rgb_encoder_forward.1} parent=11 // pred_fallthru
        _
      // Predicated region
      $region41: #{rgb_encoder_forward.1} parent=11 // pred_check
        %p293 = pneg %p210
      $region42: #{rgb_encoder_forward.1} parent=11 // pred_check_branch
        %295 = sbr.rel (%p293) target = $region44
      $region43: #{rgb_encoder_forward.1} parent=11 // pred_region
        _
      $region44: #{rgb_encoder_forward.1} parent=11 // pred_fallthru
        _
      // Predicated region
      $region45: #{rgb_encoder_forward.1} parent=11 // pred_check
        %p296 = pneg %p231
      $region46: #{rgb_encoder_forward.1} parent=11 // pred_check_branch
        %298 = sbr.rel (%p296) target = $region48
      $region47: #{rgb_encoder_forward.1} parent=11 // pred_region
        _
      $region48: #{rgb_encoder_forward.1} parent=11 // pred_fallthru
        _
    $region12: #{rgb_encoder_forward.1} parent=5 // pred_fallthru
      _
    %p299 = scmp.lt.s32.totalorder %s16, 2
    // Predicated region
    $region49: #{rgb_encoder_forward.1} parent=5 // pred_check
      %p300 = pneg %p299
    $region50: #{rgb_encoder_forward.1} parent=5 // pred_check_branch
      %302 = sbr.rel (%p300) target = $region52
    $region51: #{rgb_encoder_forward.1} parent=5 // pred_region
      // Predicated region
      $region53: #{rgb_encoder_forward.1} parent=51 // pred_check
        %p303 = pneg %p36
      $region54: #{rgb_encoder_forward.1} parent=51 // pred_check_branch
        %305 = sbr.rel (%p303) target = $region56
      $region55: #{rgb_encoder_forward.1} parent=51 // pred_region
        %p306 = scmp.lt.s32.totalorder %s16, 1
        %s307 = scalar_select %p306, %s16, 1
        %s308 = smul.addr %s307, 128
        %s309 = smul.addr %s308, 4
        %s310 = scalar_lea.vmem %s0, %s309
      $region56: #{rgb_encoder_forward.1} parent=51 // pred_fallthru
        _
    $region52: #{rgb_encoder_forward.1} parent=5 // pred_fallthru
      _
    %p311 = scmp.le.s32.totalorder 1, %s16
    %p312 = scmp.lt.s32.totalorder %s16, 3
    %p313 = pnand %p311, %p312
    %p314 = pneg %p313
    // Predicated region
    $region57: #{rgb_encoder_forward.1} parent=5 // pred_check
      _
    $region58: #{rgb_encoder_forward.1} parent=5 // pred_check_branch
      %316 = sbr.rel (%p313) target = $region60
    $region59: #{rgb_encoder_forward.1} parent=5 // pred_region
      %s317 = ssub.s32 %s16, 1
      %p318 = scmp.lt.s32.totalorder %s21, 1
      %s319 = scalar_select %p318, %s21, 1
      %s320 = smul.addr %s319, 128
      %s321 = smul.addr %s320, 4
      %s322 = scalar_lea.vmem %s0, %s321
      %p323 = pneg %p42
      %p324 = pneg %p39
      %p325 = pneg %p63
      %p326 = pneg %p60
      %p327 = pneg %p84
      %p328 = pneg %p81
      %p329 = pneg %p105
      %p330 = pneg %p102
      %p331 = pneg %p126
      %p332 = pneg %p123
      %p333 = pneg %p147
      %p334 = pneg %p144
      %p335 = pneg %p168
      %p336 = pneg %p165
      %p337 = pneg %p189
      %p338 = pneg %p186
      %p339 = pneg %p210
      %p340 = pneg %p207
      %p341 = pneg %p231
      %p342 = pneg %p228
      %p343 = pneg %p257
      %p344 = pneg %p254
      %p345 = scmp.lt.s32.totalorder %s21, 1
      %s346 = scalar_select %p345, %s21, 1
      %s347 = smul.addr %s346, 7
      %s348 = smul.addr %s347, 8
      %s349 = scalar_lea.vmem %s10, %s348
      %p350 = scmp.lt.s32.totalorder %s21, 1
      %s351 = scalar_select %p350, %s21, 1
      %s352 = smul.addr %s351, 128
      %s353 = smul.addr %s352, 4
      %s354 = scalar_lea.vmem %s0, %s353
      %p355 = scmp.lt.s32.totalorder %s21, 1
      %s356 = scalar_select %p355, %s21, 1
      %s357 = smul.addr %s356, 7
      %s358 = smul.addr %s357, 8
      %s359 = scalar_lea.vmem %s10, %s358
      %v361 = vld [vmem:[%s1] sm:$0xf]
      %v362 = vld [vmem:[%s1 + $0x4] sm:$0xf]
      %v363 = vld [vmem:[%s1 + $0x8] sm:$0xf]
      %v364 = vld [vmem:[%s1 + $0xc] sm:$0xf]
      %v365 = vld [vmem:[%s1 + $0x10] sm:$0xf]
      %v366 = vld [vmem:[%s1 + $0x14] sm:$0xf]
      %v367 = vld [vmem:[%s1 + $0x18] sm:$0xf]
      %v368 = vld [vmem:[%s1 + $0x1c] sm:$0xf]
      %v369 = vld [vmem:[%s1 + $0x20] sm:$0xf]
      %v370 = vld [vmem:[%s1 + $0x24] sm:$0x3]
      %v371 = vld [vmem:[%s3] sm:$0xf]
      %v372 = vld [vmem:[%s3 + $0x4] sm:$0xf]
      %v373 = vld [vmem:[%s3 + $0x8] sm:$0xf]
      %v374 = vld [vmem:[%s3 + $0xc] sm:$0xf]
      %v375 = vld [vmem:[%s3 + $0x10] sm:$0xf]
      %v376 = vld [vmem:[%s3 + $0x14] sm:$0xf]
      %v377 = vld [vmem:[%s3 + $0x18] sm:$0xf]
      %v378 = vld [vmem:[%s3 + $0x1c] sm:$0xf]
      %v379 = vld [vmem:[%s3 + $0x20] sm:$0xf]
      %v380 = vld [vmem:[%s3 + $0x24] sm:$0xf]
      %v381 = vld [vmem:[%s3 + $0x28] sm:$0xf]
      %v382 = vld [vmem:[%s3 + $0x2c] sm:$0xf]
      %v383 = vld [vmem:[%s3 + $0x30] sm:$0xf]
      %v384 = vld [vmem:[%s3 + $0x34] sm:$0xf]
      %v385 = vld [vmem:[%s3 + $0x38] sm:$0xf]
      %v386 = vld [vmem:[%s3 + $0x3c] sm:$0xf]
      %v387 = vld [vmem:[%s3 + $0x40] sm:$0xf]
      %v388 = vld [vmem:[%s3 + $0x44] sm:$0xf]
      %v389 = vld [vmem:[%s3 + $0x48] sm:$0xf]
      %v390 = vld [vmem:[%s3 + $0x4c] sm:$0xf]
      %v391 = vld [vmem:[%s3 + $0x50] sm:$0xf]
      %v392 = vld [vmem:[%s3 + $0x54] sm:$0xf]
      %v393 = vld [vmem:[%s3 + $0x58] sm:$0xf]
      %v394 = vld [vmem:[%s3 + $0x5c] sm:$0xf]
      %v395 = vld [vmem:[%s3 + $0x60] sm:$0xf]
      %v396 = vld [vmem:[%s3 + $0x64] sm:$0xf]
      %v397 = vld [vmem:[%s3 + $0x68] sm:$0xf]
      %v398 = vld [vmem:[%s3 + $0x6c] sm:$0xf]
      %v399 = vld [vmem:[%s3 + $0x70] sm:$0xf]
      %v400 = vld [vmem:[%s3 + $0x74] sm:$0xf]
      %v401 = vld [vmem:[%s3 + $0x78] sm:$0xf]
      %v402 = vld [vmem:[%s3 + $0x7c] sm:$0xf]
      %v403 = vld [vmem:[%s3 + $0x80] sm:$0xf]
      %v404 = vld [vmem:[%s3 + $0x84] sm:$0xf]
      %v405 = vld [vmem:[%s3 + $0x88] sm:$0xf]
      %v406 = vld [vmem:[%s3 + $0x8c] sm:$0xf]
      %v407 = vld [vmem:[%s3 + $0x90] sm:$0xf]
      %v408 = vld [vmem:[%s3 + $0x94] sm:$0xf]
      %v409 = vld [vmem:[%s3 + $0x98] sm:$0xf]
      %v410 = vld [vmem:[%s3 + $0x9c] sm:$0xf]
      %v411 = vld [vmem:[%s3 + $0xa0] sm:$0xf]
      %v412 = vld [vmem:[%s3 + $0xa4] sm:$0xf]
      %v413 = vld [vmem:[%s3 + $0xa8] sm:$0xf]
      %v414 = vld [vmem:[%s3 + $0xac] sm:$0xf]
      %v415 = vld [vmem:[%s3 + $0xb0] sm:$0xf]
      %v416 = vld [vmem:[%s3 + $0xb4] sm:$0xf]
      %v417 = vld [vmem:[%s3 + $0xb8] sm:$0xf]
      %v418 = vld [vmem:[%s3 + $0xbc] sm:$0xf]
      %v419 = vld [vmem:[%s3 + $0xc0] sm:$0xf]
      %v420 = vld [vmem:[%s3 + $0xc4] sm:$0xf]
      %v421 = vld [vmem:[%s3 + $0xc8] sm:$0xf]
      %v422 = vld [vmem:[%s3 + $0xcc] sm:$0xf]
      %v423 = vld [vmem:[%s3 + $0xd0] sm:$0xf]
      %v424 = vld [vmem:[%s3 + $0xd4] sm:$0xf]
      %v425 = vld [vmem:[%s3 + $0xd8] sm:$0xf]
      %v426 = vld [vmem:[%s3 + $0xdc] sm:$0xf]
      %v427 = vld [vmem:[%s3 + $0xe0] sm:$0xf]
      %v428 = vld [vmem:[%s3 + $0xe4] sm:$0xf]
      %v429 = vld [vmem:[%s3 + $0xe8] sm:$0xf]
      %v430 = vld [vmem:[%s3 + $0xec] sm:$0xf]
      %v431 = vld [vmem:[%s3 + $0xf0] sm:$0xf]
      %v432 = vld [vmem:[%s3 + $0xf4] sm:$0xf]
      %v433 = vld [vmem:[%s3 + $0xf8] sm:$0xf]
      %v434 = vld [vmem:[%s3 + $0xfc] sm:$0xf]
      %v435 = vld [vmem:[%s3 + $0x100] sm:$0xf]
      %v436 = vld [vmem:[%s3 + $0x104] sm:$0xf]
      %v437 = vld [vmem:[%s3 + $0x108] sm:$0xf]
      %v438 = vld [vmem:[%s3 + $0x10c] sm:$0xf]
      %v439 = vld [vmem:[%s3 + $0x110] sm:$0xf]
      %v440 = vld [vmem:[%s3 + $0x114] sm:$0xf]
      %v441 = vld [vmem:[%s3 + $0x118] sm:$0xf]
      %v442 = vld [vmem:[%s3 + $0x11c] sm:$0xf]
      %v443 = vld [vmem:[%s3 + $0x120] sm:$0xf]
      %v444 = vld [vmem:[%s3 + $0x124] sm:$0xf]
      %v445 = vld [vmem:[%s3 + $0x128] sm:$0xf]
      %v446 = vld [vmem:[%s3 + $0x12c] sm:$0xf]
      %v447 = vld [vmem:[%s3 + $0x130] sm:$0xf]
      %v448 = vld [vmem:[%s3 + $0x134] sm:$0xf]
      %v449 = vld [vmem:[%s3 + $0x138] sm:$0xf]
      %v450 = vld [vmem:[%s3 + $0x13c] sm:$0xf]
      %v451 = vld [vmem:[%s3 + $0x140] sm:$0xf]
      %v452 = vld [vmem:[%s3 + $0x144] sm:$0xf]
      %v453 = vld [vmem:[%s3 + $0x148] sm:$0xf]
      %v454 = vld [vmem:[%s3 + $0x14c] sm:$0xf]
      %v455 = vld [vmem:[%s3 + $0x150] sm:$0xf]
      %v456 = vld [vmem:[%s3 + $0x154] sm:$0xf]
      %v457 = vld [vmem:[%s3 + $0x158] sm:$0xf]
      %v458 = vld [vmem:[%s3 + $0x15c] sm:$0xf]
      %v459 = vld [vmem:[%s3 + $0x160] sm:$0xf]
      %v460 = vld [vmem:[%s3 + $0x164] sm:$0xf]
      %v461 = vld [vmem:[%s3 + $0x168] sm:$0xf]
      %v462 = vld [vmem:[%s3 + $0x16c] sm:$0xf]
      %v463 = vld [vmem:[%s3 + $0x170] sm:$0xf]
      %v464 = vld [vmem:[%s3 + $0x174] sm:$0xf]
      %v465 = vld [vmem:[%s3 + $0x178] sm:$0xf]
      %v466 = vld [vmem:[%s3 + $0x17c] sm:$0xf]
      %v467 = vld [vmem:[%s3 + $0x180] sm:$0xf]
      %v468 = vld [vmem:[%s3 + $0x184] sm:$0xf]
      %v469 = vld [vmem:[%s3 + $0x188] sm:$0xf]
      %v470 = vld [vmem:[%s3 + $0x18c] sm:$0xf]
      %v471 = vld [vmem:[%s5] sm:$0xf]
      %v472 = vld [vmem:[%s5 + $0x4] sm:$0xf]
      %v473 = vld [vmem:[%s5 + $0x8] sm:$0xf]
      %v474 = vld [vmem:[%s5 + $0xc] sm:$0xf]
      %v475 = vld [vmem:[%s5 + $0x10] sm:$0xf]
      %v476 = vld [vmem:[%s5 + $0x14] sm:$0xf]
      %v477 = vld [vmem:[%s5 + $0x18] sm:$0xf]
      %v478 = vld [vmem:[%s5 + $0x1c] sm:$0xf]
      %v479 = vld [vmem:[%s5 + $0x20] sm:$0xf]
      %v480 = vld [vmem:[%s5 + $0x24] sm:$0xf]
      %v481 = vld [vmem:[%s5 + $0x28] sm:$0xf]
      %v482 = vld [vmem:[%s5 + $0x2c] sm:$0xf]
      %v483 = vld [vmem:[%s5 + $0x30] sm:$0xf]
      %v484 = vld [vmem:[%s5 + $0x34] sm:$0xf]
      %v485 = vld [vmem:[%s5 + $0x38] sm:$0xf]
      %v486 = vld [vmem:[%s5 + $0x3c] sm:$0xf]
      %v487 = vld [vmem:[%s5 + $0x40] sm:$0xf]
      %v488 = vld [vmem:[%s5 + $0x44] sm:$0xf]
      %v489 = vld [vmem:[%s5 + $0x48] sm:$0xf]
      %v490 = vld [vmem:[%s5 + $0x4c] sm:$0xf]
      %v491 = vld [vmem:[%s5 + $0x50] sm:$0xf]
      %v492 = vld [vmem:[%s5 + $0x54] sm:$0xf]
      %v493 = vld [vmem:[%s5 + $0x58] sm:$0xf]
      %v494 = vld [vmem:[%s5 + $0x5c] sm:$0xf]
      %v495 = vld [vmem:[%s5 + $0x60] sm:$0xf]
      %v496 = vld [vmem:[%s5 + $0x64] sm:$0xf]
      %v497 = vld [vmem:[%s5 + $0x68] sm:$0xf]
      %v498 = vld [vmem:[%s5 + $0x6c] sm:$0xf]
      %v499 = vld [vmem:[%s5 + $0x70] sm:$0xf]
      %v500 = vld [vmem:[%s5 + $0x74] sm:$0xf]
      %v501 = vld [vmem:[%s5 + $0x78] sm:$0xf]
      %v502 = vld [vmem:[%s5 + $0x7c] sm:$0xf]
      %v503 = vld [vmem:[%s5 + $0x80] sm:$0xf]
      %v504 = vld [vmem:[%s5 + $0x84] sm:$0xf]
      %v505 = vld [vmem:[%s5 + $0x88] sm:$0xf]
      %v506 = vld [vmem:[%s5 + $0x8c] sm:$0xf]
      %v507 = vld [vmem:[%s5 + $0x90] sm:$0xf]
      %v508 = vld [vmem:[%s5 + $0x94] sm:$0xf]
      %v509 = vld [vmem:[%s5 + $0x98] sm:$0xf]
      %v510 = vld [vmem:[%s5 + $0x9c] sm:$0xf]
      %v511 = vld [vmem:[%s5 + $0xa0] sm:$0xf]
      %v512 = vld [vmem:[%s5 + $0xa4] sm:$0xf]
      %v513 = vld [vmem:[%s5 + $0xa8] sm:$0xf]
      %v514 = vld [vmem:[%s5 + $0xac] sm:$0xf]
      %v515 = vld [vmem:[%s5 + $0xb0] sm:$0xf]
      %v516 = vld [vmem:[%s5 + $0xb4] sm:$0xf]
      %v517 = vld [vmem:[%s5 + $0xb8] sm:$0xf]
      %v518 = vld [vmem:[%s5 + $0xbc] sm:$0xf]
      %v519 = vld [vmem:[%s5 + $0xc0] sm:$0xf]
      %v520 = vld [vmem:[%s5 + $0xc4] sm:$0xf]
      %v521 = vld [vmem:[%s5 + $0xc8] sm:$0xf]
      %v522 = vld [vmem:[%s5 + $0xcc] sm:$0xf]
      %v523 = vld [vmem:[%s5 + $0xd0] sm:$0xf]
      %v524 = vld [vmem:[%s5 + $0xd4] sm:$0xf]
      %v525 = vld [vmem:[%s5 + $0xd8] sm:$0xf]
      %v526 = vld [vmem:[%s5 + $0xdc] sm:$0xf]
      %v527 = vld [vmem:[%s5 + $0xe0] sm:$0xf]
      %v528 = vld [vmem:[%s5 + $0xe4] sm:$0xf]
      %v529 = vld [vmem:[%s5 + $0xe8] sm:$0xf]
      %v530 = vld [vmem:[%s5 + $0xec] sm:$0xf]
      %v531 = vld [vmem:[%s5 + $0xf0] sm:$0xf]
      %v532 = vld [vmem:[%s5 + $0xf4] sm:$0xf]
      %v533 = vld [vmem:[%s5 + $0xf8] sm:$0xf]
      %v534 = vld [vmem:[%s5 + $0xfc] sm:$0xf]
      %v535 = vld [vmem:[%s5 + $0x100] sm:$0xf]
      %v536 = vld [vmem:[%s5 + $0x104] sm:$0xf]
      %v537 = vld [vmem:[%s5 + $0x108] sm:$0xf]
      %v538 = vld [vmem:[%s5 + $0x10c] sm:$0xf]
      %v539 = vld [vmem:[%s5 + $0x110] sm:$0xf]
      %v540 = vld [vmem:[%s5 + $0x114] sm:$0xf]
      %v541 = vld [vmem:[%s5 + $0x118] sm:$0xf]
      %v542 = vld [vmem:[%s5 + $0x11c] sm:$0xf]
      %v543 = vld [vmem:[%s5 + $0x120] sm:$0xf]
      %v544 = vld [vmem:[%s5 + $0x124] sm:$0xf]
      %v545 = vld [vmem:[%s5 + $0x128] sm:$0xf]
      %v546 = vld [vmem:[%s5 + $0x12c] sm:$0xf]
      %v547 = vld [vmem:[%s5 + $0x130] sm:$0xf]
      %v548 = vld [vmem:[%s5 + $0x134] sm:$0xf]
      %v549 = vld [vmem:[%s5 + $0x138] sm:$0xf]
      %v550 = vld [vmem:[%s5 + $0x13c] sm:$0xf]
      %v551 = vld [vmem:[%s5 + $0x140] sm:$0xf]
      %v552 = vld [vmem:[%s5 + $0x144] sm:$0xf]
      %v553 = vld [vmem:[%s5 + $0x148] sm:$0xf]
      %v554 = vld [vmem:[%s5 + $0x14c] sm:$0xf]
      %v555 = vld [vmem:[%s5 + $0x150] sm:$0xf]
      %v556 = vld [vmem:[%s5 + $0x154] sm:$0xf]
      %v557 = vld [vmem:[%s5 + $0x158] sm:$0xf]
      %v558 = vld [vmem:[%s5 + $0x15c] sm:$0xf]
      %v559 = vld [vmem:[%s5 + $0x160] sm:$0xf]
      %v560 = vld [vmem:[%s5 + $0x164] sm:$0xf]
      %v561 = vld [vmem:[%s5 + $0x168] sm:$0xf]
      %v562 = vld [vmem:[%s5 + $0x16c] sm:$0xf]
      %v563 = vld [vmem:[%s5 + $0x170] sm:$0xf]
      %v564 = vld [vmem:[%s5 + $0x174] sm:$0xf]
      %v565 = vld [vmem:[%s5 + $0x178] sm:$0xf]
      %v566 = vld [vmem:[%s5 + $0x17c] sm:$0xf]
      %v567 = vld [vmem:[%s5 + $0x180] sm:$0xf]
      %v568 = vld [vmem:[%s5 + $0x184] sm:$0xf]
      %v569 = vld [vmem:[%s5 + $0x188] sm:$0xf]
      %v570 = vld [vmem:[%s5 + $0x18c] sm:$0xf]
      %v571 = vld [vmem:[%s2] sm:$0x1]
      %v572 = vld [vmem:[%s4] sm:$0x1]
      %v573 = vld [vmem:[%s6] sm:$0x1]
      %v574 = vld [vmem:[%s7] sm:$0xff]
      %v575 = vld [vmem:[%s7 + $0x8] sm:$0xff]
      %v576 = vld [vmem:[%s7 + $0x10] sm:$0xff]
      %v577 = vld [vmem:[%s7 + $0x18] sm:$0xff]
      %v578 = vld [vmem:[%s7 + $0x20] sm:$0xff]
      %v579 = vld [vmem:[%s7 + $0x28] sm:$0xff]
      %v580 = vld [vmem:[%s7 + $0x30] sm:$0xff]
      %v581 = vld [vmem:[%s7 + $0x38] sm:$0xff]
      %v582 = vld [vmem:[%s7 + $0x40] sm:$0xff]
      %v583 = vld [vmem:[%s7 + $0x48] sm:$0xff]
      %v584 = vld [vmem:[%s7 + $0x50] sm:$0xff]
      %v585 = vld [vmem:[%s7 + $0x58] sm:$0xff]
      %v586 = vld [vmem:[%s7 + $0x60] sm:$0xff]
      %v587 = vld [vmem:[%s7 + $0x68] sm:$0xff]
      %v588 = vld [vmem:[%s7 + $0x70] sm:$0xff]
      %v589 = vld [vmem:[%s7 + $0x78] sm:$0xff]
      %v590 = vld [vmem:[%s7 + $0x80] sm:$0xff]
      %v591 = vld [vmem:[%s7 + $0x88] sm:$0xff]
      %v592 = vld [vmem:[%s7 + $0x90] sm:$0xff]
      %v593 = vld [vmem:[%s7 + $0x98] sm:$0xff]
      %v594 = vld [vmem:[%s7 + $0xa0] sm:$0xff]
      %v595 = vld [vmem:[%s7 + $0xa8] sm:$0xff]
      %v596 = vld [vmem:[%s7 + $0xb0] sm:$0xff]
      %v597 = vld [vmem:[%s7 + $0xb8] sm:$0xff]
      %v598 = vld [vmem:[%s7 + $0xc0] sm:$0xff]
      %v599 = vld [vmem:[%s7 + $0xc8] sm:$0xff]
      %v600 = vld [vmem:[%s7 + $0xd0] sm:$0xff]
      %v601 = vld [vmem:[%s7 + $0xd8] sm:$0xff]
      %v602 = vld [vmem:[%s7 + $0xe0] sm:$0xff]
      %v603 = vld [vmem:[%s7 + $0xe8] sm:$0xff]
      %v604 = vld [vmem:[%s7 + $0xf0] sm:$0xff]
      %v605 = vld [vmem:[%s7 + $0xf8] sm:$0xff]
      %v606 = vld [vmem:[%s7 + $0x100] sm:$0xff]
      %v607 = vld [vmem:[%s7 + $0x108] sm:$0xff]
      %v608 = vld [vmem:[%s7 + $0x110] sm:$0xff]
      %v609 = vld [vmem:[%s7 + $0x118] sm:$0xff]
      %v610 = vld [vmem:[%s7 + $0x120] sm:$0xff]
      %v611 = vld [vmem:[%s7 + $0x128] sm:$0xff]
      %v612 = vld [vmem:[%s7 + $0x130] sm:$0xff]
      %v613 = vld [vmem:[%s7 + $0x138] sm:$0xff]
      %v614 = vld [vmem:[%s7 + $0x140] sm:$0xff]
      %v615 = vld [vmem:[%s7 + $0x148] sm:$0xff]
      %v616 = vld [vmem:[%s7 + $0x150] sm:$0xff]
      %v617 = vld [vmem:[%s7 + $0x158] sm:$0xff]
      %v618 = vld [vmem:[%s7 + $0x160] sm:$0xff]
      %v619 = vld [vmem:[%s7 + $0x168] sm:$0xff]
      %v620 = vld [vmem:[%s7 + $0x170] sm:$0xff]
      %v621 = vld [vmem:[%s7 + $0x178] sm:$0xff]
      %v622 = vld [vmem:[%s7 + $0x180] sm:$0xff]
      %v623 = vld [vmem:[%s7 + $0x188] sm:$0xff]
      %v624 = vld [vmem:[%s7 + $0x190] sm:$0xff]
      %v625 = vld [vmem:[%s7 + $0x198] sm:$0xff]
      %v626 = vld [vmem:[%s7 + $0x1a0] sm:$0xff]
      %v627 = vld [vmem:[%s7 + $0x1a8] sm:$0xff]
      %v628 = vld [vmem:[%s7 + $0x1b0] sm:$0xff]
      %v629 = vld [vmem:[%s7 + $0x1b8] sm:$0xff]
      %v630 = vld [vmem:[%s7 + $0x1c0] sm:$0xff]
      %v631 = vld [vmem:[%s7 + $0x1c8] sm:$0xff]
      %v632 = vld [vmem:[%s7 + $0x1d0] sm:$0xff]
      %v633 = vld [vmem:[%s7 + $0x1d8] sm:$0xff]
      %v634 = vld [vmem:[%s7 + $0x1e0] sm:$0xff]
      %v635 = vld [vmem:[%s7 + $0x1e8] sm:$0xff]
      %v636 = vld [vmem:[%s7 + $0x1f0] sm:$0xff]
      %v637 = vld [vmem:[%s7 + $0x1f8] sm:$0xff]
      %v638 = vld [vmem:[%s7 + $0x200] sm:$0xff]
      %v639 = vld [vmem:[%s7 + $0x208] sm:$0xff]
      %v640 = vld [vmem:[%s7 + $0x210] sm:$0xff]
      %v641 = vld [vmem:[%s7 + $0x218] sm:$0xff]
      %v642 = vld [vmem:[%s7 + $0x220] sm:$0xff]
      %v643 = vld [vmem:[%s7 + $0x228] sm:$0xff]
      %v644 = vld [vmem:[%s7 + $0x230] sm:$0xff]
      %v645 = vld [vmem:[%s7 + $0x238] sm:$0xff]
      %v646 = vld [vmem:[%s7 + $0x240] sm:$0xff]
      %v647 = vld [vmem:[%s7 + $0x248] sm:$0xff]
      %v648 = vld [vmem:[%s7 + $0x250] sm:$0xff]
      %v649 = vld [vmem:[%s7 + $0x258] sm:$0xff]
      %v650 = vld [vmem:[%s7 + $0x260] sm:$0xff]
      %v651 = vld [vmem:[%s7 + $0x268] sm:$0xff]
      %v652 = vld [vmem:[%s7 + $0x270] sm:$0xff]
      %v653 = vld [vmem:[%s7 + $0x278] sm:$0xff]
      %v654 = vld [vmem:[%s7 + $0x280] sm:$0xff]
      %v655 = vld [vmem:[%s7 + $0x288] sm:$0xff]
      %v656 = vld [vmem:[%s7 + $0x290] sm:$0xff]
      %v657 = vld [vmem:[%s7 + $0x298] sm:$0xff]
      %v658 = vld [vmem:[%s7 + $0x2a0] sm:$0xff]
      %v659 = vld [vmem:[%s7 + $0x2a8] sm:$0xff]
      %v660 = vld [vmem:[%s7 + $0x2b0] sm:$0xff]
      %v661 = vld [vmem:[%s7 + $0x2b8] sm:$0xff]
      %v662 = vld [vmem:[%s7 + $0x2c0] sm:$0xff]
      %v663 = vld [vmem:[%s7 + $0x2c8] sm:$0xff]
      %v664 = vld [vmem:[%s7 + $0x2d0] sm:$0xff]
      %v665 = vld [vmem:[%s7 + $0x2d8] sm:$0xff]
      %v666 = vld [vmem:[%s7 + $0x2e0] sm:$0xff]
      %v667 = vld [vmem:[%s7 + $0x2e8] sm:$0xff]
      %v668 = vld [vmem:[%s7 + $0x2f0] sm:$0xff]
      %v669 = vld [vmem:[%s7 + $0x2f8] sm:$0xff]
      %v670 = vld [vmem:[%s7 + $0x300] sm:$0xff]
      %v671 = vld [vmem:[%s7 + $0x308] sm:$0xff]
      %v672 = vld [vmem:[%s7 + $0x310] sm:$0xff]
      %v673 = vld [vmem:[%s7 + $0x318] sm:$0xff]
      %v674 = vld [vmem:[%s7 + $0x320] sm:$0xff]
      %v675 = vld [vmem:[%s7 + $0x328] sm:$0xff]
      %v676 = vld [vmem:[%s7 + $0x330] sm:$0xff]
      %v677 = vld [vmem:[%s7 + $0x338] sm:$0xff]
      %v678 = vld [vmem:[%s7 + $0x340] sm:$0xff]
      %v679 = vld [vmem:[%s7 + $0x348] sm:$0xff]
      %v680 = vld [vmem:[%s7 + $0x350] sm:$0xff]
      %v681 = vld [vmem:[%s7 + $0x358] sm:$0xff]
      %v682 = vld [vmem:[%s7 + $0x360] sm:$0xff]
      %v683 = vld [vmem:[%s7 + $0x368] sm:$0xff]
      %v684 = vld [vmem:[%s7 + $0x370] sm:$0xff]
      %v685 = vld [vmem:[%s7 + $0x378] sm:$0xff]
      %v686 = vld [vmem:[%s7 + $0x380] sm:$0xff]
      %v687 = vld [vmem:[%s7 + $0x388] sm:$0xff]
      %v688 = vld [vmem:[%s7 + $0x390] sm:$0xff]
      %v689 = vld [vmem:[%s7 + $0x398] sm:$0xff]
      %v690 = vld [vmem:[%s7 + $0x3a0] sm:$0xff]
      %v691 = vld [vmem:[%s7 + $0x3a8] sm:$0xff]
      %v692 = vld [vmem:[%s7 + $0x3b0] sm:$0xff]
      %v693 = vld [vmem:[%s7 + $0x3b8] sm:$0xff]
      %v694 = vld [vmem:[%s7 + $0x3c0] sm:$0xff]
      %v695 = vld [vmem:[%s7 + $0x3c8] sm:$0xff]
      %v696 = vld [vmem:[%s7 + $0x3d0] sm:$0xff]
      %v697 = vld [vmem:[%s7 + $0x3d8] sm:$0xff]
      %v698 = vld [vmem:[%s7 + $0x3e0] sm:$0xff]
      %v699 = vld [vmem:[%s7 + $0x3e8] sm:$0xff]
      %v700 = vld [vmem:[%s7 + $0x3f0] sm:$0xff]
      %v701 = vld [vmem:[%s7 + $0x3f8] sm:$0xff]
      %v702 = vld [vmem:[%s8] sm:$0xff]
      %v703 = vld [vmem:[%s8 + $0x8] sm:$0xff]
      %v704 = vld [vmem:[%s8 + $0x10] sm:$0xff]
      %v705 = vld [vmem:[%s8 + $0x18] sm:$0xff]
      %v706 = vld [vmem:[%s8 + $0x20] sm:$0xff]
      %v707 = vld [vmem:[%s8 + $0x28] sm:$0xff]
      %v708 = vld [vmem:[%s8 + $0x30] sm:$0xff]
      %v709 = vld [vmem:[%s8 + $0x38] sm:$0xff]
      %v710 = vld [vmem:[%s9] sm:$0xf]
      %v711 = vld [vmem:[%s9 + $0x4] sm:$0xf]
      %v712 = vld [vmem:[%s9 + $0x8] sm:$0xf]
      %v713 = vld [vmem:[%s9 + $0xc] sm:$0xf]
      %v714 = vld [vmem:[%s9 + $0x10] sm:$0xf]
      %v715 = vld [vmem:[%s9 + $0x14] sm:$0xf]
      %v716 = vld [vmem:[%s9 + $0x18] sm:$0x1]
      %v717 = vld [vmem:[%s354] sm:$0xf]
      %v718 = vld [vmem:[%s354 + $0x4] sm:$0xf]
      %v719 = vld [vmem:[%s354 + $0x8] sm:$0xf]
      %v720 = vld [vmem:[%s354 + $0xc] sm:$0xf]
      %v721 = vld [vmem:[%s354 + $0x10] sm:$0xf]
      %v722 = vld [vmem:[%s354 + $0x14] sm:$0xf]
      %v723 = vld [vmem:[%s354 + $0x18] sm:$0xf]
      %v724 = vld [vmem:[%s354 + $0x1c] sm:$0xf]
      %v725 = vld [vmem:[%s354 + $0x20] sm:$0xf]
      %v726 = vld [vmem:[%s354 + $0x24] sm:$0xf]
      %v727 = vld [vmem:[%s354 + $0x28] sm:$0xf]
      %v728 = vld [vmem:[%s354 + $0x2c] sm:$0xf]
      %v729 = vld [vmem:[%s354 + $0x30] sm:$0xf]
      %v730 = vld [vmem:[%s354 + $0x34] sm:$0xf]
      %v731 = vld [vmem:[%s354 + $0x38] sm:$0xf]
      %v732 = vld [vmem:[%s354 + $0x3c] sm:$0xf]
      %v733 = vld [vmem:[%s354 + $0x40] sm:$0xf]
      %v734 = vld [vmem:[%s354 + $0x44] sm:$0xf]
      %v735 = vld [vmem:[%s354 + $0x48] sm:$0xf]
      %v736 = vld [vmem:[%s354 + $0x4c] sm:$0xf]
      %v737 = vld [vmem:[%s354 + $0x50] sm:$0xf]
      %v738 = vld [vmem:[%s354 + $0x54] sm:$0xf]
      %v739 = vld [vmem:[%s354 + $0x58] sm:$0xf]
      %v740 = vld [vmem:[%s354 + $0x5c] sm:$0xf]
      %v741 = vld [vmem:[%s354 + $0x60] sm:$0xf]
      %v742 = vld [vmem:[%s354 + $0x64] sm:$0xf]
      %v743 = vld [vmem:[%s354 + $0x68] sm:$0xf]
      %v744 = vld [vmem:[%s354 + $0x6c] sm:$0xf]
      %v745 = vld [vmem:[%s354 + $0x70] sm:$0xf]
      %v746 = vld [vmem:[%s354 + $0x74] sm:$0xf]
      %v747 = vld [vmem:[%s354 + $0x78] sm:$0xf]
      %v748 = vld [vmem:[%s354 + $0x7c] sm:$0xf]
      %v749 = vld [vmem:[%s354 + $0x80] sm:$0xf]
      %v750 = vld [vmem:[%s354 + $0x84] sm:$0xf]
      %v751 = vld [vmem:[%s354 + $0x88] sm:$0xf]
      %v752 = vld [vmem:[%s354 + $0x8c] sm:$0xf]
      %v753 = vld [vmem:[%s354 + $0x90] sm:$0xf]
      %v754 = vld [vmem:[%s354 + $0x94] sm:$0xf]
      %v755 = vld [vmem:[%s354 + $0x98] sm:$0xf]
      %v756 = vld [vmem:[%s354 + $0x9c] sm:$0xf]
      %v757 = vld [vmem:[%s354 + $0xa0] sm:$0xf]
      %v758 = vld [vmem:[%s354 + $0xa4] sm:$0xf]
      %v759 = vld [vmem:[%s354 + $0xa8] sm:$0xf]
      %v760 = vld [vmem:[%s354 + $0xac] sm:$0xf]
      %v761 = vld [vmem:[%s354 + $0xb0] sm:$0xf]
      %v762 = vld [vmem:[%s354 + $0xb4] sm:$0xf]
      %v763 = vld [vmem:[%s354 + $0xb8] sm:$0xf]
      %v764 = vld [vmem:[%s354 + $0xbc] sm:$0xf]
      %v765 = vld [vmem:[%s354 + $0xc0] sm:$0xf]
      %v766 = vld [vmem:[%s354 + $0xc4] sm:$0xf]
      %v767 = vld [vmem:[%s354 + $0xc8] sm:$0xf]
      %v768 = vld [vmem:[%s354 + $0xcc] sm:$0xf]
      %v769 = vld [vmem:[%s354 + $0xd0] sm:$0xf]
      %v770 = vld [vmem:[%s354 + $0xd4] sm:$0xf]
      %v771 = vld [vmem:[%s354 + $0xd8] sm:$0xf]
      %v772 = vld [vmem:[%s354 + $0xdc] sm:$0xf]
      %v773 = vld [vmem:[%s354 + $0xe0] sm:$0xf]
      %v774 = vld [vmem:[%s354 + $0xe4] sm:$0xf]
      %v775 = vld [vmem:[%s354 + $0xe8] sm:$0xf]
      %v776 = vld [vmem:[%s354 + $0xec] sm:$0xf]
      %v777 = vld [vmem:[%s354 + $0xf0] sm:$0xf]
      %v778 = vld [vmem:[%s354 + $0xf4] sm:$0xf]
      %v779 = vld [vmem:[%s354 + $0xf8] sm:$0xf]
      %v780 = vld [vmem:[%s354 + $0xfc] sm:$0xf]
      %v781 = vld [vmem:[%s354 + $0x100] sm:$0xf]
      %v782 = vld [vmem:[%s354 + $0x104] sm:$0xf]
      %v783 = vld [vmem:[%s354 + $0x108] sm:$0xf]
      %v784 = vld [vmem:[%s354 + $0x10c] sm:$0xf]
      %v785 = vld [vmem:[%s354 + $0x110] sm:$0xf]
      %v786 = vld [vmem:[%s354 + $0x114] sm:$0xf]
      %v787 = vld [vmem:[%s354 + $0x118] sm:$0xf]
      %v788 = vld [vmem:[%s354 + $0x11c] sm:$0xf]
      %v789 = vld [vmem:[%s354 + $0x120] sm:$0xf]
      %v790 = vld [vmem:[%s354 + $0x124] sm:$0xf]
      %v791 = vld [vmem:[%s354 + $0x128] sm:$0xf]
      %v792 = vld [vmem:[%s354 + $0x12c] sm:$0xf]
      %v793 = vld [vmem:[%s354 + $0x130] sm:$0xf]
      %v794 = vld [vmem:[%s354 + $0x134] sm:$0xf]
      %v795 = vld [vmem:[%s354 + $0x138] sm:$0xf]
      %v796 = vld [vmem:[%s354 + $0x13c] sm:$0xf]
      %v797 = vld [vmem:[%s354 + $0x140] sm:$0xf]
      %v798 = vld [vmem:[%s354 + $0x144] sm:$0xf]
      %v799 = vld [vmem:[%s354 + $0x148] sm:$0xf]
      %v800 = vld [vmem:[%s354 + $0x14c] sm:$0xf]
      %v801 = vld [vmem:[%s354 + $0x150] sm:$0xf]
      %v802 = vld [vmem:[%s354 + $0x154] sm:$0xf]
      %v803 = vld [vmem:[%s354 + $0x158] sm:$0xf]
      %v804 = vld [vmem:[%s354 + $0x15c] sm:$0xf]
      %v805 = vld [vmem:[%s354 + $0x160] sm:$0xf]
      %v806 = vld [vmem:[%s354 + $0x164] sm:$0xf]
      %v807 = vld [vmem:[%s354 + $0x168] sm:$0xf]
      %v808 = vld [vmem:[%s354 + $0x16c] sm:$0xf]
      %v809 = vld [vmem:[%s354 + $0x170] sm:$0xf]
      %v810 = vld [vmem:[%s354 + $0x174] sm:$0xf]
      %v811 = vld [vmem:[%s354 + $0x178] sm:$0xf]
      %v812 = vld [vmem:[%s354 + $0x17c] sm:$0xf]
      %v813 = vld [vmem:[%s354 + $0x180] sm:$0xf]
      %v814 = vld [vmem:[%s354 + $0x184] sm:$0xf]
      %v815 = vld [vmem:[%s354 + $0x188] sm:$0xf]
      %v816 = vld [vmem:[%s354 + $0x18c] sm:$0xf]
      %v817 = vld [vmem:[%s354 + $0x190] sm:$0xf]
      %v818 = vld [vmem:[%s354 + $0x194] sm:$0xf]
      %v819 = vld [vmem:[%s354 + $0x198] sm:$0xf]
      %v820 = vld [vmem:[%s354 + $0x19c] sm:$0xf]
      %v821 = vld [vmem:[%s354 + $0x1a0] sm:$0xf]
      %v822 = vld [vmem:[%s354 + $0x1a4] sm:$0xf]
      %v823 = vld [vmem:[%s354 + $0x1a8] sm:$0xf]
      %v824 = vld [vmem:[%s354 + $0x1ac] sm:$0xf]
      %v825 = vld [vmem:[%s354 + $0x1b0] sm:$0xf]
      %v826 = vld [vmem:[%s354 + $0x1b4] sm:$0xf]
      %v827 = vld [vmem:[%s354 + $0x1b8] sm:$0xf]
      %v828 = vld [vmem:[%s354 + $0x1bc] sm:$0xf]
      %v829 = vld [vmem:[%s354 + $0x1c0] sm:$0xf]
      %v830 = vld [vmem:[%s354 + $0x1c4] sm:$0xf]
      %v831 = vld [vmem:[%s354 + $0x1c8] sm:$0xf]
      %v832 = vld [vmem:[%s354 + $0x1cc] sm:$0xf]
      %v833 = vld [vmem:[%s354 + $0x1d0] sm:$0xf]
      %v834 = vld [vmem:[%s354 + $0x1d4] sm:$0xf]
      %v835 = vld [vmem:[%s354 + $0x1d8] sm:$0xf]
      %v836 = vld [vmem:[%s354 + $0x1dc] sm:$0xf]
      %v837 = vld [vmem:[%s354 + $0x1e0] sm:$0xf]
      %v838 = vld [vmem:[%s354 + $0x1e4] sm:$0xf]
      %v839 = vld [vmem:[%s354 + $0x1e8] sm:$0xf]
      %v840 = vld [vmem:[%s354 + $0x1ec] sm:$0xf]
      %v841 = vld [vmem:[%s354 + $0x1f0] sm:$0xf]
      %v842 = vld [vmem:[%s354 + $0x1f4] sm:$0xf]
      %v843 = vld [vmem:[%s354 + $0x1f8] sm:$0xf]
      %v844 = vld [vmem:[%s354 + $0x1fc] sm:$0xf]
      %v846 = vlaneseq
      %v847 = vshrl.u32 %v846, 7
      %v848 = vsub.s32 0, %v847
      %v849 = vrot.slane %v571, %v848
      %v979 = vunpack.c.l.b16 %v717
      %v980 = vunpack.c.l.b16 %v718
      %v981 = vunpack.c.l.b16 %v719
      %v982 = vunpack.c.l.b16 %v720
      %v983 = vunpack.c.l.b16 %v721
      %v984 = vunpack.c.l.b16 %v722
      %v985 = vunpack.c.l.b16 %v723
      %v986 = vunpack.c.l.b16 %v724
      %v987 = vunpack.c.l.b16 %v725
      %v988 = vunpack.c.l.b16 %v726
      %v989 = vunpack.c.l.b16 %v727
      %v990 = vunpack.c.l.b16 %v728
      %v991 = vunpack.c.l.b16 %v729
      %v992 = vunpack.c.l.b16 %v730
      %v993 = vunpack.c.l.b16 %v731
      %v994 = vunpack.c.l.b16 %v732
      %v995 = vunpack.c.l.b16 %v733
      %v996 = vunpack.c.l.b16 %v734
      %v997 = vunpack.c.l.b16 %v735
      %v998 = vunpack.c.l.b16 %v736
      %v999 = vunpack.c.l.b16 %v737
      %v1000 = vunpack.c.l.b16 %v738
      %v1001 = vunpack.c.l.b16 %v739
      %v1002 = vunpack.c.l.b16 %v740
      %v1003 = vunpack.c.l.b16 %v741
      %v1004 = vunpack.c.l.b16 %v742
      %v1005 = vunpack.c.l.b16 %v743
      %v1006 = vunpack.c.l.b16 %v744
      %v1007 = vunpack.c.l.b16 %v745
      %v1008 = vunpack.c.l.b16 %v746
      %v1009 = vunpack.c.l.b16 %v747
      %v1010 = vunpack.c.l.b16 %v748
      %v1011 = vunpack.c.l.b16 %v749
      %v1012 = vunpack.c.l.b16 %v750
      %v1013 = vunpack.c.l.b16 %v751
      %v1014 = vunpack.c.l.b16 %v752
      %v1015 = vunpack.c.l.b16 %v753
      %v1016 = vunpack.c.l.b16 %v754
      %v1017 = vunpack.c.l.b16 %v755
      %v1018 = vunpack.c.l.b16 %v756
      %v1019 = vunpack.c.l.b16 %v757
      %v1020 = vunpack.c.l.b16 %v758
      %v1021 = vunpack.c.l.b16 %v759
      %v1022 = vunpack.c.l.b16 %v760
      %v1023 = vunpack.c.l.b16 %v761
      %v1024 = vunpack.c.l.b16 %v762
      %v1025 = vunpack.c.l.b16 %v763
      %v1026 = vunpack.c.l.b16 %v764
      %v1027 = vunpack.c.l.b16 %v765
      %v1028 = vunpack.c.l.b16 %v766
      %v1029 = vunpack.c.l.b16 %v767
      %v1030 = vunpack.c.l.b16 %v768
      %v1031 = vunpack.c.l.b16 %v769
      %v1032 = vunpack.c.l.b16 %v770
      %v1033 = vunpack.c.l.b16 %v771
      %v1034 = vunpack.c.l.b16 %v772
      %v1035 = vunpack.c.l.b16 %v773
      %v1036 = vunpack.c.l.b16 %v774
      %v1037 = vunpack.c.l.b16 %v775
      %v1038 = vunpack.c.l.b16 %v776
      %v1039 = vunpack.c.l.b16 %v777
      %v1040 = vunpack.c.l.b16 %v778
      %v1041 = vunpack.c.l.b16 %v779
      %v1042 = vunpack.c.l.b16 %v780
      %v1043 = vunpack.c.l.b16 %v781
      %v1044 = vunpack.c.l.b16 %v782
      %v1045 = vunpack.c.l.b16 %v783
      %v1046 = vunpack.c.l.b16 %v784
      %v1047 = vunpack.c.l.b16 %v785
      %v1048 = vunpack.c.l.b16 %v786
      %v1049 = vunpack.c.l.b16 %v787
      %v1050 = vunpack.c.l.b16 %v788
      %v1051 = vunpack.c.l.b16 %v789
      %v1052 = vunpack.c.l.b16 %v790
      %v1053 = vunpack.c.l.b16 %v791
      %v1054 = vunpack.c.l.b16 %v792
      %v1055 = vunpack.c.l.b16 %v793
      %v1056 = vunpack.c.l.b16 %v794
      %v1057 = vunpack.c.l.b16 %v795
      %v1058 = vunpack.c.l.b16 %v796
      %v1059 = vunpack.c.l.b16 %v797
      %v1060 = vunpack.c.l.b16 %v798
      %v1061 = vunpack.c.l.b16 %v799
      %v1062 = vunpack.c.l.b16 %v800
      %v1063 = vunpack.c.l.b16 %v801
      %v1064 = vunpack.c.l.b16 %v802
      %v1065 = vunpack.c.l.b16 %v803
      %v1066 = vunpack.c.l.b16 %v804
      %v1067 = vunpack.c.l.b16 %v805
      %v1068 = vunpack.c.l.b16 %v806
      %v1069 = vunpack.c.l.b16 %v807
      %v1070 = vunpack.c.l.b16 %v808
      %v1071 = vunpack.c.l.b16 %v809
      %v1072 = vunpack.c.l.b16 %v810
      %v1073 = vunpack.c.l.b16 %v811
      %v1074 = vunpack.c.l.b16 %v812
      %v1075 = vunpack.c.l.b16 %v813
      %v1076 = vunpack.c.l.b16 %v814
      %v1077 = vunpack.c.l.b16 %v815
      %v1078 = vunpack.c.l.b16 %v816
      %v1079 = vunpack.c.l.b16 %v817
      %v1080 = vunpack.c.l.b16 %v818
      %v1081 = vunpack.c.l.b16 %v819
      %v1082 = vunpack.c.l.b16 %v820
      %v1083 = vunpack.c.l.b16 %v821
      %v1084 = vunpack.c.l.b16 %v822
      %v1085 = vunpack.c.l.b16 %v823
      %v1086 = vunpack.c.l.b16 %v824
      %v1087 = vunpack.c.l.b16 %v825
      %v1088 = vunpack.c.l.b16 %v826
      %v1089 = vunpack.c.l.b16 %v827
      %v1090 = vunpack.c.l.b16 %v828
      %v1091 = vunpack.c.l.b16 %v829
      %v1092 = vunpack.c.l.b16 %v830
      %v1093 = vunpack.c.l.b16 %v831
      %v1094 = vunpack.c.l.b16 %v832
      %v1095 = vunpack.c.l.b16 %v833
      %v1096 = vunpack.c.l.b16 %v834
      %v1097 = vunpack.c.l.b16 %v835
      %v1098 = vunpack.c.l.b16 %v836
      %v1099 = vunpack.c.l.b16 %v837
      %v1100 = vunpack.c.l.b16 %v838
      %v1101 = vunpack.c.l.b16 %v839
      %v1102 = vunpack.c.l.b16 %v840
      %v1103 = vunpack.c.l.b16 %v841
      %v1104 = vunpack.c.l.b16 %v842
      %v1105 = vunpack.c.l.b16 %v843
      %v1106 = vunpack.c.l.b16 %v844
      %v1107 = vpack.c.b16 %v980, %v979
      %v1108 = vpack.c.b16 %v982, %v981
      %v1109 = vpack.c.b16 %v984, %v983
      %v1110 = vpack.c.b16 %v986, %v985
      %v1111 = vpack.c.b16 %v988, %v987
      %v1112 = vpack.c.b16 %v990, %v989
      %v1113 = vpack.c.b16 %v992, %v991
      %v1114 = vpack.c.b16 %v994, %v993
      %v1115 = vpack.c.b16 %v996, %v995
      %v1116 = vpack.c.b16 %v998, %v997
      %v1117 = vpack.c.b16 %v1000, %v999
      %v1118 = vpack.c.b16 %v1002, %v1001
      %v1119 = vpack.c.b16 %v1004, %v1003
      %v1120 = vpack.c.b16 %v1006, %v1005
      %v1121 = vpack.c.b16 %v1008, %v1007
      %v1122 = vpack.c.b16 %v1010, %v1009
      %v1123 = vpack.c.b16 %v1012, %v1011
      %v1124 = vpack.c.b16 %v1014, %v1013
      %v1125 = vpack.c.b16 %v1016, %v1015
      %v1126 = vpack.c.b16 %v1018, %v1017
      %v1127 = vpack.c.b16 %v1020, %v1019
      %v1128 = vpack.c.b16 %v1022, %v1021
      %v1129 = vpack.c.b16 %v1024, %v1023
      %v1130 = vpack.c.b16 %v1026, %v1025
      %v1131 = vpack.c.b16 %v1028, %v1027
      %v1132 = vpack.c.b16 %v1030, %v1029
      %v1133 = vpack.c.b16 %v1032, %v1031
      %v1134 = vpack.c.b16 %v1034, %v1033
      %v1135 = vpack.c.b16 %v1036, %v1035
      %v1136 = vpack.c.b16 %v1038, %v1037
      %v1137 = vpack.c.b16 %v1040, %v1039
      %v1138 = vpack.c.b16 %v1042, %v1041
      %v1139 = vpack.c.b16 %v1044, %v1043
      %v1140 = vpack.c.b16 %v1046, %v1045
      %v1141 = vpack.c.b16 %v1048, %v1047
      %v1142 = vpack.c.b16 %v1050, %v1049
      %v1143 = vpack.c.b16 %v1052, %v1051
      %v1144 = vpack.c.b16 %v1054, %v1053
      %v1145 = vpack.c.b16 %v1056, %v1055
      %v1146 = vpack.c.b16 %v1058, %v1057
      %v1147 = vpack.c.b16 %v1060, %v1059
      %v1148 = vpack.c.b16 %v1062, %v1061
      %v1149 = vpack.c.b16 %v1064, %v1063
      %v1150 = vpack.c.b16 %v1066, %v1065
      %v1151 = vpack.c.b16 %v1068, %v1067
      %v1152 = vpack.c.b16 %v1070, %v1069
      %v1153 = vpack.c.b16 %v1072, %v1071
      %v1154 = vpack.c.b16 %v1074, %v1073
      %v1155 = vpack.c.b16 %v1076, %v1075
      %v1156 = vpack.c.b16 %v1078, %v1077
      %v1157 = vpack.c.b16 %v1080, %v1079
      %v1158 = vpack.c.b16 %v1082, %v1081
      %v1159 = vpack.c.b16 %v1084, %v1083
      %v1160 = vpack.c.b16 %v1086, %v1085
      %v1161 = vpack.c.b16 %v1088, %v1087
      %v1162 = vpack.c.b16 %v1090, %v1089
      %v1163 = vpack.c.b16 %v1092, %v1091
      %v1164 = vpack.c.b16 %v1094, %v1093
      %v1165 = vpack.c.b16 %v1096, %v1095
      %v1166 = vpack.c.b16 %v1098, %v1097
      %v1167 = vpack.c.b16 %v1100, %v1099
      %v1168 = vpack.c.b16 %v1102, %v1101
      %v1169 = vpack.c.b16 %v1104, %v1103
      %v1170 = vpack.c.b16 %v1106, %v1105
      %v1181 = vunpack.c.l.b16 %v361
      %v1182 = vunpack.c.l.b16 %v362
      %v1183 = vunpack.c.l.b16 %v363
      %v1184 = vunpack.c.l.b16 %v364
      %v1185 = vunpack.c.l.b16 %v365
      %v1186 = vunpack.c.l.b16 %v366
      %v1187 = vunpack.c.l.b16 %v367
      %v1188 = vunpack.c.l.b16 %v368
      %v1189 = vunpack.c.l.b16 %v369
      %v1190 = vunpack.c.l.b16 %v370
      %v1191 = vpack.c.b16 %v1182, %v1181
      %v1192 = vpack.c.b16 %v1184, %v1183
      %v1193 = vpack.c.b16 %v1186, %v1185
      %v1194 = vpack.c.b16 %v1188, %v1187
      %v1195 = vpack.c.b16 %v1190, %v1189
      %vm1200 = vcmask 613376
      %v1202 = vsel %vm1200, %v1107, 0
      %v1205 = vsel %vm1200, %v1108, 0
      %v1208 = vsel %vm1200, %v1109, 0
      %v1211 = vsel %vm1200, %v1110, 0
      %v1214 = vsel %vm1200, %v1111, 0
      %v1217 = vsel %vm1200, %v1112, 0
      %v1220 = vsel %vm1200, %v1113, 0
      %v1223 = vsel %vm1200, %v1114, 0
      %v1226 = vsel %vm1200, %v1115, 0
      %v1229 = vsel %vm1200, %v1116, 0
      %v1232 = vsel %vm1200, %v1117, 0
      %v1235 = vsel %vm1200, %v1118, 0
      %v1238 = vsel %vm1200, %v1119, 0
      %v1241 = vsel %vm1200, %v1120, 0
      %v1244 = vsel %vm1200, %v1121, 0
      %v1247 = vsel %vm1200, %v1122, 0
      %v1250 = vsel %vm1200, %v1123, 0
      %v1253 = vsel %vm1200, %v1124, 0
      %v1256 = vsel %vm1200, %v1125, 0
      %v1259 = vsel %vm1200, %v1126, 0
      %v1262 = vsel %vm1200, %v1127, 0
      %v1265 = vsel %vm1200, %v1128, 0
      %v1268 = vsel %vm1200, %v1129, 0
      %v1271 = vsel %vm1200, %v1130, 0
      %v1274 = vsel %vm1200, %v1131, 0
      %v1277 = vsel %vm1200, %v1132, 0
      %v1280 = vsel %vm1200, %v1133, 0
      %v1283 = vsel %vm1200, %v1134, 0
      %v1286 = vsel %vm1200, %v1135, 0
      %v1289 = vsel %vm1200, %v1136, 0
      %v1292 = vsel %vm1200, %v1137, 0
      %v1295 = vsel %vm1200, %v1138, 0
      %v1298 = vsel %vm1200, %v1139, 0
      %v1301 = vsel %vm1200, %v1140, 0
      %v1304 = vsel %vm1200, %v1141, 0
      %v1307 = vsel %vm1200, %v1142, 0
      %v1310 = vsel %vm1200, %v1143, 0
      %v1313 = vsel %vm1200, %v1144, 0
      %v1316 = vsel %vm1200, %v1145, 0
      %v1319 = vsel %vm1200, %v1146, 0
      %v1322 = vsel %vm1200, %v1147, 0
      %v1325 = vsel %vm1200, %v1148, 0
      %v1328 = vsel %vm1200, %v1149, 0
      %v1331 = vsel %vm1200, %v1150, 0
      %v1334 = vsel %vm1200, %v1151, 0
      %v1337 = vsel %vm1200, %v1152, 0
      %v1340 = vsel %vm1200, %v1153, 0
      %v1343 = vsel %vm1200, %v1154, 0
      %v1346 = vsel %vm1200, %v1155, 0
      %v1349 = vsel %vm1200, %v1156, 0
      %v1352 = vsel %vm1200, %v1157, 0
      %v1355 = vsel %vm1200, %v1158, 0
      %v1358 = vsel %vm1200, %v1159, 0
      %v1361 = vsel %vm1200, %v1160, 0
      %v1364 = vsel %vm1200, %v1161, 0
      %v1367 = vsel %vm1200, %v1162, 0
      %v1370 = vsel %vm1200, %v1163, 0
      %v1373 = vsel %vm1200, %v1164, 0
      %v1376 = vsel %vm1200, %v1165, 0
      %v1379 = vsel %vm1200, %v1166, 0
      %v1382 = vsel %vm1200, %v1167, 0
      %v1385 = vsel %vm1200, %v1168, 0
      %v1388 = vsel %vm1200, %v1169, 0
      %v1391 = vsel %vm1200, %v1170, 0
      %vm1393 = vcmask 1044480
      %vm1394 = vcmask 1045504
      %v1395 = vsel %vm1393, 4294967295, 65535
      %v1396 = vsel %vm1394, %v1395, 0
      %v1398 = vand.u32 %v1195, %v1396
      %1400 = vmatprep.subr.bf16.mxu0 0
      %1401 = vmatpush1.bf16.msra.mxu0 %v1191
      %1402 = vmatprep.subr.bf16.mxu0 0
      %1403 = vmatpush1.bf16.msra.mxu0 %v1192
      %1404 = vmatprep.subr.bf16.mxu0 0
      %1405 = vmatpush1.bf16.msra.mxu0 %v1193
      %1406 = vmatprep.subr.bf16.mxu0 0
      %1407 = vmatpush1.bf16.msra.mxu0 %v1194
      %1408 = vmatprep.subr.bf16.mxu0 0
      %1409 = vmatpush1.bf16.msra.mxu0 %v1398
      %1410 = vmatprep.subr.bf16.mxu0 0
      %1411 = vmatpush1.bf16.msra.mxu0 0
      %1412 = vmatprep.subr.bf16.mxu0 0
      %1413 = vmatpush1.bf16.msra.mxu0 0
      %1414 = vmatprep.subr.bf16.mxu0 0
      %1415 = vmatpush1.bf16.msra.mxu0 0
      %1416 = vmatprep.subr.bf16.mxu0 0
      %1417 = vmatpush1.bf16.msra.mxu0 0
      %1418 = vmatprep.subr.bf16.mxu0 0
      %1419 = vmatpush1.bf16.msra.mxu0 0
      %1420 = vmatprep.subr.bf16.mxu0 0
      %1421 = vmatpush1.bf16.msra.mxu0 0
      %1422 = vmatprep.subr.bf16.mxu0 0
      %1423 = vmatpush1.bf16.msra.mxu0 0
      %1424 = vmatprep.subr.bf16.mxu0 0
      %1425 = vmatpush1.bf16.msra.mxu0 0
      %1426 = vmatprep.subr.bf16.mxu0 0
      %1427 = vmatpush1.bf16.msra.mxu0 0
      %1428 = vmatprep.subr.bf16.mxu0 0
      %1429 = vmatpush1.bf16.msra.mxu0 0
      %1430 = vmatprep.subr.bf16.mxu0 0
      %1431 = vmatpush1.bf16.msra.mxu0 0
      %1432 = vmatprep.mubr.bf16.mxu0 0
      %1433 = vmatmul.mubr.bf16.gmra.mrb[0].mxu0 %v1202
      %v1434 = vpop.f32.mrb[0].mxu0
      %v1435 = vadd.f32 %v849, %v1434
      %v1436 = vpop.f32.mrb[0].mxu0
      %v1437 = vpop.f32.mrb[0].mxu0
      %v1438 = vadd.f32 %v849, %v1437
      %v1439 = vpop.f32.mrb[0].mxu0
      %1440 = vmatprep.mubr.bf16.mxu0 0
      %1441 = vmatmul.mubr.bf16.gmra.mrb[0].mxu0 %v1205
      %v1442 = vpop.f32.mrb[0].mxu0
      %v1443 = vadd.f32 %v849, %v1442
      %v1444 = vpop.f32.mrb[0].mxu0
      %v1445 = vpop.f32.mrb[0].mxu0
      %v1446 = vadd.f32 %v849, %v1445
      %v1447 = vpop.f32.mrb[0].mxu0
      %1448 = vmatprep.mubr.bf16.mxu0 0
      %1449 = vmatmul.mubr.bf16.gmra.mrb[0].mxu0 %v1208
      %v1450 = vpop.f32.mrb[0].mxu0
      %v1451 = vadd.f32 %v849, %v1450
      %v1452 = vpop.f32.mrb[0].mxu0
      %v1453 = vpop.f32.mrb[0].mxu0
      %v1454 = vadd.f32 %v849, %v1453
      %v1455 = vpop.f32.mrb[0].mxu0
      %1456 = vmatprep.mubr.bf16.mxu0 0
      %1457 = vmatmul.mubr.bf16.gmra.mrb[0].mxu0 %v1211
      %v1458 = vpop.f32.mrb[0].mxu0
      %v1459 = vadd.f32 %v849, %v1458
      %v1460 = vpop.f32.mrb[0].mxu0
      %v1461 = vpop.f32.mrb[0].mxu0
      %v1462 = vadd.f32 %v849, %v1461
      %v1463 = vpop.f32.mrb[0].mxu0
      %1464 = vmatprep.mubr.bf16.mxu0 0
      %1465 = vmatmul.mubr.bf16.gmra.mrb[0].mxu0 %v1214
      %v1466 = vpop.f32.mrb[0].mxu0
      %v1467 = vadd.f32 %v849, %v1466
      %v1468 = vpop.f32.mrb[0].mxu0
      %v1469 = vpop.f32.mrb[0].mxu0
      %v1470 = vadd.f32 %v849, %v1469
      %v1471 = vpop.f32.mrb[0].mxu0
      %1472 = vmatprep.mubr.bf16.mxu0 0
      %1473 = vmatmul.mubr.bf16.gmra.mrb[0].mxu0 %v1217
      %v1474 = vpop.f32.mrb[0].mxu0
      %v1475 = vadd.f32 %v849, %v1474
      %v1476 = vpop.f32.mrb[0].mxu0
      %v1477 = vpop.f32.mrb[0].mxu0
      %v1478 = vadd.f32 %v849, %v1477
      %v1479 = vpop.f32.mrb[0].mxu0
      %1480 = vmatprep.mubr.bf16.mxu0 0
      %1481 = vmatmul.mubr.bf16.gmra.mrb[0].mxu0 %v1220
      %v1482 = vpop.f32.mrb[0].mxu0
      %v1483 = vadd.f32 %v849, %v1482
      %v1484 = vpop.f32.mrb[0].mxu0
      %v1485 = vpop.f32.mrb[0].mxu0
      %v1486 = vadd.f32 %v849, %v1485
      %v1487 = vpop.f32.mrb[0].mxu0
      %1488 = vmatprep.mubr.bf16.mxu0 0
      %1489 = vmatmul.mubr.bf16.gmra.mrb[0].mxu0 %v1223
      %v1490 = vpop.f32.mrb[0].mxu0
      %v1491 = vadd.f32 %v849, %v1490
      %v1492 = vpop.f32.mrb[0].mxu0
      %v1493 = vpop.f32.mrb[0].mxu0
      %v1494 = vadd.f32 %v849, %v1493
      %v1495 = vpop.f32.mrb[0].mxu0
      %1496 = vmatprep.mubr.bf16.mxu0 0
      %1497 = vmatmul.mubr.bf16.gmra.mrb[0].mxu0 %v1226
      %v1498 = vpop.f32.mrb[0].mxu0
      %v1499 = vadd.f32 %v849, %v1498
      %v1500 = vpop.f32.mrb[0].mxu0
      %v1501 = vpop.f32.mrb[0].mxu0
      %v1502 = vadd.f32 %v849, %v1501
      %v1503 = vpop.f32.mrb[0].mxu0
      %1504 = vmatprep.mubr.bf16.mxu0 0
      %1505 = vmatmul.mubr.bf16.gmra.mrb[0].mxu0 %v1229
      %v1506 = vpop.f32.mrb[0].mxu0
      %v1507 = vadd.f32 %v849, %v1506
      %v1508 = vpop.f32.mrb[0].mxu0
      %v1509 = vpop.f32.mrb[0].mxu0
      %v1510 = vadd.f32 %v849, %v1509
      %v1511 = vpop.f32.mrb[0].mxu0
      %1512 = vmatprep.mubr.bf16.mxu0 0
      %1513 = vmatmul.mubr.bf16.gmra.mrb[0].mxu0 %v1232
      %v1514 = vpop.f32.mrb[0].mxu0
      %v1515 = vadd.f32 %v849, %v1514
      %v1516 = vpop.f32.mrb[0].mxu0
      %v1517 = vpop.f32.mrb[0].mxu0
      %v1518 = vadd.f32 %v849, %v1517
      %v1519 = vpop.f32.mrb[0].mxu0
      %1520 = vmatprep.mubr.bf16.mxu0 0
      %1521 = vmatmul.mubr.bf16.gmra.mrb[0].mxu0 %v1235
      %v1522 = vpop.f32.mrb[0].mxu0
      %v1523 = vadd.f32 %v849, %v1522
      %v1524 = vpop.f32.mrb[0].mxu0
      %v1525 = vpop.f32.mrb[0].mxu0
      %v1526 = vadd.f32 %v849, %v1525
      %v1527 = vpop.f32.mrb[0].mxu0
      %1528 = vmatprep.mubr.bf16.mxu0 0
      %1529 = vmatmul.mubr.bf16.gmra.mrb[0].mxu0 %v1238
      %v1530 = vpop.f32.mrb[0].mxu0
      %v1531 = vadd.f32 %v849, %v1530
      %v1532 = vpop.f32.mrb[0].mxu0
      %v1533 = vpop.f32.mrb[0].mxu0
      %v1534 = vadd.f32 %v849, %v1533
      %v1535 = vpop.f32.mrb[0].mxu0
      %1536 = vmatprep.mubr.bf16.mxu0 0
      %1537 = vmatmul.mubr.bf16.gmra.mrb[0].mxu0 %v1241
      %v1538 = vpop.f32.mrb[0].mxu0
      %v1539 = vadd.f32 %v849, %v1538
      %v1540 = vpop.f32.mrb[0].mxu0
      %v1541 = vpop.f32.mrb[0].mxu0
      %v1542 = vadd.f32 %v849, %v1541
      %v1543 = vpop.f32.mrb[0].mxu0
      %1544 = vmatprep.mubr.bf16.mxu0 0
      %1545 = vmatmul.mubr.bf16.gmra.mrb[0].mxu0 %v1244
      %v1546 = vpop.f32.mrb[0].mxu0
      %v1547 = vadd.f32 %v849, %v1546
      %v1548 = vpop.f32.mrb[0].mxu0
      %v1549 = vpop.f32.mrb[0].mxu0
      %v1550 = vadd.f32 %v849, %v1549
      %v1551 = vpop.f32.mrb[0].mxu0
      %1552 = vmatprep.mubr.bf16.mxu0 0
      %1553 = vmatmul.mubr.bf16.gmra.mrb[0].mxu0 %v1247
      %v1554 = vpop.f32.mrb[0].mxu0
      %v1555 = vadd.f32 %v849, %v1554
      %v1556 = vpop.f32.mrb[0].mxu0
      %v1557 = vpop.f32.mrb[0].mxu0
      %v1558 = vadd.f32 %v849, %v1557
      %v1559 = vpop.f32.mrb[0].mxu0
      %1560 = vmatprep.mubr.bf16.mxu0 0
      %1561 = vmatmul.mubr.bf16.gmra.mrb[0].mxu0 %v1250
      %v1562 = vpop.f32.mrb[0].mxu0
      %v1563 = vadd.f32 %v849, %v1562
      %v1564 = vpop.f32.mrb[0].mxu0
      %v1565 = vpop.f32.mrb[0].mxu0
      %v1566 = vadd.f32 %v849, %v1565
      %v1567 = vpop.f32.mrb[0].mxu0
      %1568 = vmatprep.mubr.bf16.mxu0 0
      %1569 = vmatmul.mubr.bf16.gmra.mrb[0].mxu0 %v1253
      %v1570 = vpop.f32.mrb[0].mxu0
      %v1571 = vadd.f32 %v849, %v1570
      %v1572 = vpop.f32.mrb[0].mxu0
      %v1573 = vpop.f32.mrb[0].mxu0
      %v1574 = vadd.f32 %v849, %v1573
      %v1575 = vpop.f32.mrb[0].mxu0
      %1576 = vmatprep.mubr.bf16.mxu0 0
      %1577 = vmatmul.mubr.bf16.gmra.mrb[0].mxu0 %v1256
      %v1578 = vpop.f32.mrb[0].mxu0
      %v1579 = vadd.f32 %v849, %v1578
      %v1580 = vpop.f32.mrb[0].mxu0
      %v1581 = vpop.f32.mrb[0].mxu0
      %v1582 = vadd.f32 %v849, %v1581
      %v1583 = vpop.f32.mrb[0].mxu0
      %1584 = vmatprep.mubr.bf16.mxu0 0
      %1585 = vmatmul.mubr.bf16.gmra.mrb[0].mxu0 %v1259
      %v1586 = vpop.f32.mrb[0].mxu0
      %v1587 = vadd.f32 %v849, %v1586
      %v1588 = vpop.f32.mrb[0].mxu0
      %v1589 = vpop.f32.mrb[0].mxu0
      %v1590 = vadd.f32 %v849, %v1589
      %v1591 = vpop.f32.mrb[0].mxu0
      %1592 = vmatprep.mubr.bf16.mxu0 0
      %1593 = vmatmul.mubr.bf16.gmra.mrb[0].mxu0 %v1262
      %v1594 = vpop.f32.mrb[0].mxu0
      %v1595 = vadd.f32 %v849, %v1594
      %v1596 = vpop.f32.mrb[0].mxu0
      %v1597 = vpop.f32.mrb[0].mxu0
      %v1598 = vadd.f32 %v849, %v1597
      %v1599 = vpop.f32.mrb[0].mxu0
      %1600 = vmatprep.mubr.bf16.mxu0 0
      %1601 = vmatmul.mubr.bf16.gmra.mrb[0].mxu0 %v1265
      %v1602 = vpop.f32.mrb[0].mxu0
      %v1603 = vadd.f32 %v849, %v1602
      %v1604 = vpop.f32.mrb[0].mxu0
      %v1605 = vpop.f32.mrb[0].mxu0
      %v1606 = vadd.f32 %v849, %v1605
      %v1607 = vpop.f32.mrb[0].mxu0
      %1608 = vmatprep.mubr.bf16.mxu0 0
      %1609 = vmatmul.mubr.bf16.gmra.mrb[0].mxu0 %v1268
      %v1610 = vpop.f32.mrb[0].mxu0
      %v1611 = vadd.f32 %v849, %v1610
      %v1612 = vpop.f32.mrb[0].mxu0
      %v1613 = vpop.f32.mrb[0].mxu0
      %v1614 = vadd.f32 %v849, %v1613
      %v1615 = vpop.f32.mrb[0].mxu0
      %1616 = vmatprep.mubr.bf16.mxu0 0
      %1617 = vmatmul.mubr.bf16.gmra.mrb[0].mxu0 %v1271
      %v1618 = vpop.f32.mrb[0].mxu0
      %v1619 = vadd.f32 %v849, %v1618
      %v1620 = vpop.f32.mrb[0].mxu0
      %v1621 = vpop.f32.mrb[0].mxu0
      %v1622 = vadd.f32 %v849, %v1621
      %v1623 = vpop.f32.mrb[0].mxu0
      %1624 = vmatprep.mubr.bf16.mxu0 0
      %1625 = vmatmul.mubr.bf16.gmra.mrb[0].mxu0 %v1274
      %v1626 = vpop.f32.mrb[0].mxu0
      %v1627 = vadd.f32 %v849, %v1626
      %v1628 = vpop.f32.mrb[0].mxu0
      %v1629 = vpop.f32.mrb[0].mxu0
      %v1630 = vadd.f32 %v849, %v1629
      %v1631 = vpop.f32.mrb[0].mxu0
      %1632 = vmatprep.mubr.bf16.mxu0 0
      %1633 = vmatmul.mubr.bf16.gmra.mrb[0].mxu0 %v1277
      %v1634 = vpop.f32.mrb[0].mxu0
      %v1635 = vadd.f32 %v849, %v1634
      %v1636 = vpop.f32.mrb[0].mxu0
      %v1637 = vpop.f32.mrb[0].mxu0
      %v1638 = vadd.f32 %v849, %v1637
      %v1639 = vpop.f32.mrb[0].mxu0
      %1640 = vmatprep.mubr.bf16.mxu0 0
      %1641 = vmatmul.mubr.bf16.gmra.mrb[0].mxu0 %v1280
      %v1642 = vpop.f32.mrb[0].mxu0
      %v1643 = vadd.f32 %v849, %v1642
      %v1644 = vpop.f32.mrb[0].mxu0
      %v1645 = vpop.f32.mrb[0].mxu0
      %v1646 = vadd.f32 %v849, %v1645
      %v1647 = vpop.f32.mrb[0].mxu0
      %1648 = vmatprep.mubr.bf16.mxu0 0
      %1649 = vmatmul.mubr.bf16.gmra.mrb[0].mxu0 %v1283
      %v1650 = vpop.f32.mrb[0].mxu0
      %v1651 = vadd.f32 %v849, %v1650
      %v1652 = vpop.f32.mrb[0].mxu0
      %v1653 = vpop.f32.mrb[0].mxu0
      %v1654 = vadd.f32 %v849, %v1653
      %v1655 = vpop.f32.mrb[0].mxu0
      %1656 = vmatprep.mubr.bf16.mxu0 0
      %1657 = vmatmul.mubr.bf16.gmra.mrb[0].mxu0 %v1286
      %v1658 = vpop.f32.mrb[0].mxu0
      %v1659 = vadd.f32 %v849, %v1658
      %v1660 = vpop.f32.mrb[0].mxu0
      %v1661 = vpop.f32.mrb[0].mxu0
      %v1662 = vadd.f32 %v849, %v1661
      %v1663 = vpop.f32.mrb[0].mxu0
      %1664 = vmatprep.mubr.bf16.mxu0 0
      %1665 = vmatmul.mubr.bf16.gmra.mrb[0].mxu0 %v1289
      %v1666 = vpop.f32.mrb[0].mxu0
      %v1667 = vadd.f32 %v849, %v1666
      %v1668 = vpop.f32.mrb[0].mxu0
      %v1669 = vpop.f32.mrb[0].mxu0
      %v1670 = vadd.f32 %v849, %v1669
      %v1671 = vpop.f32.mrb[0].mxu0
      %1672 = vmatprep.mubr.bf16.mxu0 0
      %1673 = vmatmul.mubr.bf16.gmra.mrb[0].mxu0 %v1292
      %v1674 = vpop.f32.mrb[0].mxu0
      %v1675 = vadd.f32 %v849, %v1674
      %v1676 = vpop.f32.mrb[0].mxu0
      %v1677 = vpop.f32.mrb[0].mxu0
      %v1678 = vadd.f32 %v849, %v1677
      %v1679 = vpop.f32.mrb[0].mxu0
      %1680 = vmatprep.mubr.bf16.mxu0 0
      %1681 = vmatmul.mubr.bf16.gmra.mrb[0].mxu0 %v1295
      %v1682 = vpop.f32.mrb[0].mxu0
      %v1683 = vadd.f32 %v849, %v1682
      %v1684 = vpop.f32.mrb[0].mxu0
      %v1685 = vpop.f32.mrb[0].mxu0
      %v1686 = vadd.f32 %v849, %v1685
      %v1687 = vpop.f32.mrb[0].mxu0
      %1688 = vmatprep.mubr.bf16.mxu0 0
      %1689 = vmatmul.mubr.bf16.gmra.mrb[0].mxu0 %v1298
      %v1690 = vpop.f32.mrb[0].mxu0
      %v1691 = vadd.f32 %v849, %v1690
      %v1692 = vpop.f32.mrb[0].mxu0
      %v1693 = vpop.f32.mrb[0].mxu0
      %v1694 = vadd.f32 %v849, %v1693
      %v1695 = vpop.f32.mrb[0].mxu0
      %1696 = vmatprep.mubr.bf16.mxu0 0
      %1697 = vmatmul.mubr.bf16.gmra.mrb[0].mxu0 %v1301
      %v1698 = vpop.f32.mrb[0].mxu0
      %v1699 = vadd.f32 %v849, %v1698
      %v1700 = vpop.f32.mrb[0].mxu0
      %v1701 = vpop.f32.mrb[0].mxu0
      %v1702 = vadd.f32 %v849, %v1701
      %v1703 = vpop.f32.mrb[0].mxu0
      %1704 = vmatprep.mubr.bf16.mxu0 0
      %1705 = vmatmul.mubr.bf16.gmra.mrb[0].mxu0 %v1304
      %v1706 = vpop.f32.mrb[0].mxu0
      %v1707 = vadd.f32 %v849, %v1706
      %v1708 = vpop.f32.mrb[0].mxu0
      %v1709 = vpop.f32.mrb[0].mxu0
      %v1710 = vadd.f32 %v849, %v1709
      %v1711 = vpop.f32.mrb[0].mxu0
      %1712 = vmatprep.mubr.bf16.mxu0 0
      %1713 = vmatmul.mubr.bf16.gmra.mrb[0].mxu0 %v1307
      %v1714 = vpop.f32.mrb[0].mxu0
      %v1715 = vadd.f32 %v849, %v1714
      %v1716 = vpop.f32.mrb[0].mxu0
      %v1717 = vpop.f32.mrb[0].mxu0
      %v1718 = vadd.f32 %v849, %v1717
      %v1719 = vpop.f32.mrb[0].mxu0
      %1720 = vmatprep.mubr.bf16.mxu0 0
      %1721 = vmatmul.mubr.bf16.gmra.mrb[0].mxu0 %v1310
      %v1722 = vpop.f32.mrb[0].mxu0
      %v1723 = vadd.f32 %v849, %v1722
      %v1724 = vpop.f32.mrb[0].mxu0
      %v1725 = vpop.f32.mrb[0].mxu0
      %v1726 = vadd.f32 %v849, %v1725
      %v1727 = vpop.f32.mrb[0].mxu0
      %1728 = vmatprep.mubr.bf16.mxu0 0
      %1729 = vmatmul.mubr.bf16.gmra.mrb[0].mxu0 %v1313
      %v1730 = vpop.f32.mrb[0].mxu0
      %v1731 = vadd.f32 %v849, %v1730
      %v1732 = vpop.f32.mrb[0].mxu0
      %v1733 = vpop.f32.mrb[0].mxu0
      %v1734 = vadd.f32 %v849, %v1733
      %v1735 = vpop.f32.mrb[0].mxu0
      %1736 = vmatprep.mubr.bf16.mxu0 0
      %1737 = vmatmul.mubr.bf16.gmra.mrb[0].mxu0 %v1316
      %v1738 = vpop.f32.mrb[0].mxu0
      %v1739 = vadd.f32 %v849, %v1738
      %v1740 = vpop.f32.mrb[0].mxu0
      %v1741 = vpop.f32.mrb[0].mxu0
      %v1742 = vadd.f32 %v849, %v1741
      %v1743 = vpop.f32.mrb[0].mxu0
      %1744 = vmatprep.mubr.bf16.mxu0 0
      %1745 = vmatmul.mubr.bf16.gmra.mrb[0].mxu0 %v1319
      %v1746 = vpop.f32.mrb[0].mxu0
      %v1747 = vadd.f32 %v849, %v1746
      %v1748 = vpop.f32.mrb[0].mxu0
      %v1749 = vpop.f32.mrb[0].mxu0
      %v1750 = vadd.f32 %v849, %v1749
      %v1751 = vpop.f32.mrb[0].mxu0
      %1752 = vmatprep.mubr.bf16.mxu0 0
      %1753 = vmatmul.mubr.bf16.gmra.mrb[0].mxu0 %v1322
      %v1754 = vpop.f32.mrb[0].mxu0
      %v1755 = vadd.f32 %v849, %v1754
      %v1756 = vpop.f32.mrb[0].mxu0
      %v1757 = vpop.f32.mrb[0].mxu0
      %v1758 = vadd.f32 %v849, %v1757
      %v1759 = vpop.f32.mrb[0].mxu0
      %1760 = vmatprep.mubr.bf16.mxu0 0
      %1761 = vmatmul.mubr.bf16.gmra.mrb[0].mxu0 %v1325
      %v1762 = vpop.f32.mrb[0].mxu0
      %v1763 = vadd.f32 %v849, %v1762
      %v1764 = vpop.f32.mrb[0].mxu0
      %v1765 = vpop.f32.mrb[0].mxu0
      %v1766 = vadd.f32 %v849, %v1765
      %v1767 = vpop.f32.mrb[0].mxu0
      %1768 = vmatprep.mubr.bf16.mxu0 0
      %1769 = vmatmul.mubr.bf16.gmra.mrb[0].mxu0 %v1328
      %v1770 = vpop.f32.mrb[0].mxu0
      %v1771 = vadd.f32 %v849, %v1770
      %v1772 = vpop.f32.mrb[0].mxu0
      %v1773 = vpop.f32.mrb[0].mxu0
      %v1774 = vadd.f32 %v849, %v1773
      %v1775 = vpop.f32.mrb[0].mxu0
      %1776 = vmatprep.mubr.bf16.mxu0 0
      %1777 = vmatmul.mubr.bf16.gmra.mrb[0].mxu0 %v1331
      %v1778 = vpop.f32.mrb[0].mxu0
      %v1779 = vadd.f32 %v849, %v1778
      %v1780 = vpop.f32.mrb[0].mxu0
      %v1781 = vpop.f32.mrb[0].mxu0
      %v1782 = vadd.f32 %v849, %v1781
      %v1783 = vpop.f32.mrb[0].mxu0
      %1784 = vmatprep.mubr.bf16.mxu0 0
      %1785 = vmatmul.mubr.bf16.gmra.mrb[0].mxu0 %v1334
      %v1786 = vpop.f32.mrb[0].mxu0
      %v1787 = vadd.f32 %v849, %v1786
      %v1788 = vpop.f32.mrb[0].mxu0
      %v1789 = vpop.f32.mrb[0].mxu0
      %v1790 = vadd.f32 %v849, %v1789
      %v1791 = vpop.f32.mrb[0].mxu0
      %1792 = vmatprep.mubr.bf16.mxu0 0
      %1793 = vmatmul.mubr.bf16.gmra.mrb[0].mxu0 %v1337
      %v1794 = vpop.f32.mrb[0].mxu0
      %v1795 = vadd.f32 %v849, %v1794
      %v1796 = vpop.f32.mrb[0].mxu0
      %v1797 = vpop.f32.mrb[0].mxu0
      %v1798 = vadd.f32 %v849, %v1797
      %v1799 = vpop.f32.mrb[0].mxu0
      %1800 = vmatprep.mubr.bf16.mxu0 0
      %1801 = vmatmul.mubr.bf16.gmra.mrb[0].mxu0 %v1340
      %v1802 = vpop.f32.mrb[0].mxu0
      %v1803 = vadd.f32 %v849, %v1802
      %v1804 = vpop.f32.mrb[0].mxu0
      %v1805 = vpop.f32.mrb[0].mxu0
      %v1806 = vadd.f32 %v849, %v1805
      %v1807 = vpop.f32.mrb[0].mxu0
      %1808 = vmatprep.mubr.bf16.mxu0 0
      %1809 = vmatmul.mubr.bf16.gmra.mrb[0].mxu0 %v1343
      %v1810 = vpop.f32.mrb[0].mxu0
      %v1811 = vadd.f32 %v849, %v1810
      %v1812 = vpop.f32.mrb[0].mxu0
      %v1813 = vpop.f32.mrb[0].mxu0
      %v1814 = vadd.f32 %v849, %v1813
      %v1815 = vpop.f32.mrb[0].mxu0
      %1816 = vmatprep.mubr.bf16.mxu0 0
      %1817 = vmatmul.mubr.bf16.gmra.mrb[0].mxu0 %v1346
      %v1818 = vpop.f32.mrb[0].mxu0
      %v1819 = vadd.f32 %v849, %v1818
      %v1820 = vpop.f32.mrb[0].mxu0
      %v1821 = vpop.f32.mrb[0].mxu0
      %v1822 = vadd.f32 %v849, %v1821
      %v1823 = vpop.f32.mrb[0].mxu0
      %1824 = vmatprep.mubr.bf16.mxu0 0
      %1825 = vmatmul.mubr.bf16.gmra.mrb[0].mxu0 %v1349
      %v1826 = vpop.f32.mrb[0].mxu0
      %v1827 = vadd.f32 %v849, %v1826
      %v1828 = vpop.f32.mrb[0].mxu0
      %v1829 = vpop.f32.mrb[0].mxu0
      %v1830 = vadd.f32 %v849, %v1829
      %v1831 = vpop.f32.mrb[0].mxu0
      %1832 = vmatprep.mubr.bf16.mxu0 0
      %1833 = vmatmul.mubr.bf16.gmra.mrb[0].mxu0 %v1352
      %v1834 = vpop.f32.mrb[0].mxu0
      %v1835 = vadd.f32 %v849, %v1834
      %v1836 = vpop.f32.mrb[0].mxu0
      %v1837 = vpop.f32.mrb[0].mxu0
      %v1838 = vadd.f32 %v849, %v1837
      %v1839 = vpop.f32.mrb[0].mxu0
      %1840 = vmatprep.mubr.bf16.mxu0 0
      %1841 = vmatmul.mubr.bf16.gmra.mrb[0].mxu0 %v1355
      %v1842 = vpop.f32.mrb[0].mxu0
      %v1843 = vadd.f32 %v849, %v1842
      %v1844 = vpop.f32.mrb[0].mxu0
      %v1845 = vpop.f32.mrb[0].mxu0
      %v1846 = vadd.f32 %v849, %v1845
      %v1847 = vpop.f32.mrb[0].mxu0
      %1848 = vmatprep.mubr.bf16.mxu0 0
      %1849 = vmatmul.mubr.bf16.gmra.mrb[0].mxu0 %v1358
      %v1850 = vpop.f32.mrb[0].mxu0
      %v1851 = vadd.f32 %v849, %v1850
      %v1852 = vpop.f32.mrb[0].mxu0
      %v1853 = vpop.f32.mrb[0].mxu0
      %v1854 = vadd.f32 %v849, %v1853
      %v1855 = vpop.f32.mrb[0].mxu0
      %1856 = vmatprep.mubr.bf16.mxu0 0
      %1857 = vmatmul.mubr.bf16.gmra.mrb[0].mxu0 %v1361
      %v1858 = vpop.f32.mrb[0].mxu0
      %v1859 = vadd.f32 %v849, %v1858
      %v1860 = vpop.f32.mrb[0].mxu0
      %v1861 = vpop.f32.mrb[0].mxu0
      %v1862 = vadd.f32 %v849, %v1861
      %v1863 = vpop.f32.mrb[0].mxu0
      %1864 = vmatprep.mubr.bf16.mxu0 0
      %1865 = vmatmul.mubr.bf16.gmra.mrb[0].mxu0 %v1364
      %v1866 = vpop.f32.mrb[0].mxu0
      %v1867 = vadd.f32 %v849, %v1866
      %v1868 = vpop.f32.mrb[0].mxu0
      %v1869 = vpop.f32.mrb[0].mxu0
      %v1870 = vadd.f32 %v849, %v1869
      %v1871 = vpop.f32.mrb[0].mxu0
      %1872 = vmatprep.mubr.bf16.mxu0 0
      %1873 = vmatmul.mubr.bf16.gmra.mrb[0].mxu0 %v1367
      %v1874 = vpop.f32.mrb[0].mxu0
      %v1875 = vadd.f32 %v849, %v1874
      %v1876 = vpop.f32.mrb[0].mxu0
      %v1877 = vpop.f32.mrb[0].mxu0
      %v1878 = vadd.f32 %v849, %v1877
      %v1879 = vpop.f32.mrb[0].mxu0
      %1880 = vmatprep.mubr.bf16.mxu0 0
      %1881 = vmatmul.mubr.bf16.gmra.mrb[0].mxu0 %v1370
      %v1882 = vpop.f32.mrb[0].mxu0
      %v1883 = vadd.f32 %v849, %v1882
      %v1884 = vpop.f32.mrb[0].mxu0
      %v1885 = vpop.f32.mrb[0].mxu0
      %v1886 = vadd.f32 %v849, %v1885
      %v1887 = vpop.f32.mrb[0].mxu0
      %1888 = vmatprep.mubr.bf16.mxu0 0
      %1889 = vmatmul.mubr.bf16.gmra.mrb[0].mxu0 %v1373
      %v1890 = vpop.f32.mrb[0].mxu0
      %v1891 = vadd.f32 %v849, %v1890
      %v1892 = vpop.f32.mrb[0].mxu0
      %v1893 = vpop.f32.mrb[0].mxu0
      %v1894 = vadd.f32 %v849, %v1893
      %v1895 = vpop.f32.mrb[0].mxu0
      %1896 = vmatprep.mubr.bf16.mxu0 0
      %1897 = vmatmul.mubr.bf16.gmra.mrb[0].mxu0 %v1376
      %v1898 = vpop.f32.mrb[0].mxu0
      %v1899 = vadd.f32 %v849, %v1898
      %v1900 = vpop.f32.mrb[0].mxu0
      %v1901 = vpop.f32.mrb[0].mxu0
      %v1902 = vadd.f32 %v849, %v1901
      %v1903 = vpop.f32.mrb[0].mxu0
      %1904 = vmatprep.mubr.bf16.mxu0 0
      %1905 = vmatmul.mubr.bf16.gmra.mrb[0].mxu0 %v1379
      %v1906 = vpop.f32.mrb[0].mxu0
      %v1907 = vadd.f32 %v849, %v1906
      %v1908 = vpop.f32.mrb[0].mxu0
      %v1909 = vpop.f32.mrb[0].mxu0
      %v1910 = vadd.f32 %v849, %v1909
      %v1911 = vpop.f32.mrb[0].mxu0
      %1912 = vmatprep.mubr.bf16.mxu0 0
      %1913 = vmatmul.mubr.bf16.gmra.mrb[0].mxu0 %v1382
      %v1914 = vpop.f32.mrb[0].mxu0
      %v1915 = vadd.f32 %v849, %v1914
      %v1916 = vpop.f32.mrb[0].mxu0
      %v1917 = vpop.f32.mrb[0].mxu0
      %v1918 = vadd.f32 %v849, %v1917
      %v1919 = vpop.f32.mrb[0].mxu0
      %1920 = vmatprep.mubr.bf16.mxu0 0
      %1921 = vmatmul.mubr.bf16.gmra.mrb[0].mxu0 %v1385
      %v1922 = vpop.f32.mrb[0].mxu0
      %v1923 = vadd.f32 %v849, %v1922
      %v1924 = vpop.f32.mrb[0].mxu0
      %v1925 = vpop.f32.mrb[0].mxu0
      %v1926 = vadd.f32 %v849, %v1925
      %v1927 = vpop.f32.mrb[0].mxu0
      %1928 = vmatprep.mubr.bf16.mxu0 0
      %1929 = vmatmul.mubr.bf16.gmra.mrb[0].mxu0 %v1388
      %v1930 = vpop.f32.mrb[0].mxu0
      %v1931 = vadd.f32 %v849, %v1930
      %v1932 = vpop.f32.mrb[0].mxu0
      %v1933 = vpop.f32.mrb[0].mxu0
      %v1934 = vadd.f32 %v849, %v1933
      %v1935 = vpop.f32.mrb[0].mxu0
      %1936 = vmatprep.mubr.bf16.mxu0 0
      %1937 = vmatmul.mubr.bf16.gmra.mrb[0].mxu0 %v1391
      %v1938 = vpop.f32.mrb[0].mxu0
      %v1939 = vadd.f32 %v849, %v1938
      %v1940 = vpop.f32.mrb[0].mxu0
      %v1941 = vpop.f32.mrb[0].mxu0
      %v1942 = vadd.f32 %v849, %v1941
      %v1943 = vpop.f32.mrb[0].mxu0
      %1944 = vdwg.mxu0
      %v1945 = vmax.f32 %v1435, 0.0
      %v1946 = vmax.f32 %v1438, 0.0
      %v1947 = vmax.f32 %v1443, 0.0
      %v1948 = vmax.f32 %v1446, 0.0
      %v1949 = vmax.f32 %v1451, 0.0
      %v1950 = vmax.f32 %v1454, 0.0
      %v1951 = vmax.f32 %v1459, 0.0
      %v1952 = vmax.f32 %v1462, 0.0
      %v1953 = vmax.f32 %v1467, 0.0
      %v1954 = vmax.f32 %v1470, 0.0
      %v1955 = vmax.f32 %v1475, 0.0
      %v1956 = vmax.f32 %v1478, 0.0
      %v1957 = vmax.f32 %v1483, 0.0
      %v1958 = vmax.f32 %v1486, 0.0
      %v1959 = vmax.f32 %v1491, 0.0
      %v1960 = vmax.f32 %v1494, 0.0
      %v1961 = vmax.f32 %v1499, 0.0
      %v1962 = vmax.f32 %v1502, 0.0
      %v1963 = vmax.f32 %v1507, 0.0
      %v1964 = vmax.f32 %v1510, 0.0
      %v1965 = vmax.f32 %v1515, 0.0
      %v1966 = vmax.f32 %v1518, 0.0
      %v1967 = vmax.f32 %v1523, 0.0
      %v1968 = vmax.f32 %v1526, 0.0
      %v1969 = vmax.f32 %v1531, 0.0
      %v1970 = vmax.f32 %v1534, 0.0
      %v1971 = vmax.f32 %v1539, 0.0
      %v1972 = vmax.f32 %v1542, 0.0
      %v1973 = vmax.f32 %v1547, 0.0
      %v1974 = vmax.f32 %v1550, 0.0
      %v1975 = vmax.f32 %v1555, 0.0
      %v1976 = vmax.f32 %v1558, 0.0
      %v1977 = vmax.f32 %v1563, 0.0
      %v1978 = vmax.f32 %v1566, 0.0
      %v1979 = vmax.f32 %v1571, 0.0
      %v1980 = vmax.f32 %v1574, 0.0
      %v1981 = vmax.f32 %v1579, 0.0
      %v1982 = vmax.f32 %v1582, 0.0
      %v1983 = vmax.f32 %v1587, 0.0
      %v1984 = vmax.f32 %v1590, 0.0
      %v1985 = vmax.f32 %v1595, 0.0
      %v1986 = vmax.f32 %v1598, 0.0
      %v1987 = vmax.f32 %v1603, 0.0
      %v1988 = vmax.f32 %v1606, 0.0
      %v1989 = vmax.f32 %v1611, 0.0
      %v1990 = vmax.f32 %v1614, 0.0
      %v1991 = vmax.f32 %v1619, 0.0
      %v1992 = vmax.f32 %v1622, 0.0
      %v1993 = vmax.f32 %v1627, 0.0
      %v1994 = vmax.f32 %v1630, 0.0
      %v1995 = vmax.f32 %v1635, 0.0
      %v1996 = vmax.f32 %v1638, 0.0
      %v1997 = vmax.f32 %v1643, 0.0
      %v1998 = vmax.f32 %v1646, 0.0
      %v1999 = vmax.f32 %v1651, 0.0
      %v2000 = vmax.f32 %v1654, 0.0
      %v2001 = vmax.f32 %v1659, 0.0
      %v2002 = vmax.f32 %v1662, 0.0
      %v2003 = vmax.f32 %v1667, 0.0
      %v2004 = vmax.f32 %v1670, 0.0
      %v2005 = vmax.f32 %v1675, 0.0
      %v2006 = vmax.f32 %v1678, 0.0
      %v2007 = vmax.f32 %v1683, 0.0
      %v2008 = vmax.f32 %v1686, 0.0
      %v2009 = vmax.f32 %v1691, 0.0
      %v2010 = vmax.f32 %v1694, 0.0
      %v2011 = vmax.f32 %v1699, 0.0
      %v2012 = vmax.f32 %v1702, 0.0
      %v2013 = vmax.f32 %v1707, 0.0
      %v2014 = vmax.f32 %v1710, 0.0
      %v2015 = vmax.f32 %v1715, 0.0
      %v2016 = vmax.f32 %v1718, 0.0
      %v2017 = vmax.f32 %v1723, 0.0
      %v2018 = vmax.f32 %v1726, 0.0
      %v2019 = vmax.f32 %v1731, 0.0
      %v2020 = vmax.f32 %v1734, 0.0
      %v2021 = vmax.f32 %v1739, 0.0
      %v2022 = vmax.f32 %v1742, 0.0
      %v2023 = vmax.f32 %v1747, 0.0
      %v2024 = vmax.f32 %v1750, 0.0
      %v2025 = vmax.f32 %v1755, 0.0
      %v2026 = vmax.f32 %v1758, 0.0
      %v2027 = vmax.f32 %v1763, 0.0
      %v2028 = vmax.f32 %v1766, 0.0
      %v2029 = vmax.f32 %v1771, 0.0
      %v2030 = vmax.f32 %v1774, 0.0
      %v2031 = vmax.f32 %v1779, 0.0
      %v2032 = vmax.f32 %v1782, 0.0
      %v2033 = vmax.f32 %v1787, 0.0
      %v2034 = vmax.f32 %v1790, 0.0
      %v2035 = vmax.f32 %v1795, 0.0
      %v2036 = vmax.f32 %v1798, 0.0
      %v2037 = vmax.f32 %v1803, 0.0
      %v2038 = vmax.f32 %v1806, 0.0
      %v2039 = vmax.f32 %v1811, 0.0
      %v2040 = vmax.f32 %v1814, 0.0
      %v2041 = vmax.f32 %v1819, 0.0
      %v2042 = vmax.f32 %v1822, 0.0
      %v2043 = vmax.f32 %v1827, 0.0
      %v2044 = vmax.f32 %v1830, 0.0
      %v2045 = vmax.f32 %v1835, 0.0
      %v2046 = vmax.f32 %v1838, 0.0
      %v2047 = vmax.f32 %v1843, 0.0
      %v2048 = vmax.f32 %v1846, 0.0
      %v2049 = vmax.f32 %v1851, 0.0
      %v2050 = vmax.f32 %v1854, 0.0
      %v2051 = vmax.f32 %v1859, 0.0
      %v2052 = vmax.f32 %v1862, 0.0
      %v2053 = vmax.f32 %v1867, 0.0
      %v2054 = vmax.f32 %v1870, 0.0
      %v2055 = vmax.f32 %v1875, 0.0
      %v2056 = vmax.f32 %v1878, 0.0
      %v2057 = vmax.f32 %v1883, 0.0
      %v2058 = vmax.f32 %v1886, 0.0
      %v2059 = vmax.f32 %v1891, 0.0
      %v2060 = vmax.f32 %v1894, 0.0
      %v2061 = vmax.f32 %v1899, 0.0
      %v2062 = vmax.f32 %v1902, 0.0
      %v2063 = vmax.f32 %v1907, 0.0
      %v2064 = vmax.f32 %v1910, 0.0
      %v2065 = vmax.f32 %v1915, 0.0
      %v2066 = vmax.f32 %v1918, 0.0
      %v2067 = vmax.f32 %v1923, 0.0
      %v2068 = vmax.f32 %v1926, 0.0
      %v2069 = vmax.f32 %v1931, 0.0
      %v2070 = vmax.f32 %v1934, 0.0
      %v2071 = vmax.f32 %v1939, 0.0
      %v2072 = vmax.f32 %v1942, 0.0
      %vm2201 = vcmask 1046528
      %v2202 = vrot.slane %v1945, 1
      %v2203 = vrot.slane %v1946, 1
      %v2204 = vsel %vm2201, %v2202, %v2203
      %v2205 = vrot.slane %v1947, 1
      %v2206 = vsel %vm2201, %v2203, %v2205
      %v2207 = vrot.slane %v1948, 1
      %v2208 = vsel %vm2201, %v2205, %v2207
      %v2209 = vrot.slane %v1949, 1
      %v2210 = vsel %vm2201, %v2207, %v2209
      %v2211 = vrot.slane %v1950, 1
      %v2212 = vsel %vm2201, %v2209, %v2211
      %v2213 = vrot.slane %v1951, 1
      %v2214 = vsel %vm2201, %v2211, %v2213
      %v2215 = vrot.slane %v1952, 1
      %v2216 = vsel %vm2201, %v2213, %v2215
      %v2217 = vrot.slane %v1953, 1
      %v2218 = vsel %vm2201, %v2215, %v2217
      %v2219 = vrot.slane %v1954, 1
      %v2220 = vsel %vm2201, %v2217, %v2219
      %v2221 = vrot.slane %v1955, 1
      %v2222 = vsel %vm2201, %v2219, %v2221
      %v2223 = vrot.slane %v1956, 1
      %v2224 = vsel %vm2201, %v2221, %v2223
      %v2225 = vrot.slane %v1957, 1
      %v2226 = vsel %vm2201, %v2223, %v2225
      %v2227 = vrot.slane %v1958, 1
      %v2228 = vsel %vm2201, %v2225, %v2227
      %v2229 = vrot.slane %v1959, 1
      %v2230 = vsel %vm2201, %v2227, %v2229
      %v2231 = vrot.slane %v1960, 1
      %v2232 = vsel %vm2201, %v2229, %v2231
      %v2233 = vrot.slane %v1961, 1
      %v2234 = vsel %vm2201, %v2231, %v2233
      %v2235 = vrot.slane %v1962, 1
      %v2236 = vsel %vm2201, %v2233, %v2235
      %v2237 = vrot.slane %v1963, 1
      %v2238 = vsel %vm2201, %v2235, %v2237
      %v2239 = vrot.slane %v1964, 1
      %v2240 = vsel %vm2201, %v2237, %v2239
      %v2241 = vrot.slane %v1965, 1
      %v2242 = vsel %vm2201, %v2239, %v2241
      %v2243 = vrot.slane %v1966, 1
      %v2244 = vsel %vm2201, %v2241, %v2243
      %v2245 = vrot.slane %v1967, 1
      %v2246 = vsel %vm2201, %v2243, %v2245
      %v2247 = vrot.slane %v1968, 1
      %v2248 = vsel %vm2201, %v2245, %v2247
      %v2249 = vrot.slane %v1969, 1
      %v2250 = vsel %vm2201, %v2247, %v2249
      %v2251 = vrot.slane %v1970, 1
      %v2252 = vsel %vm2201, %v2249, %v2251
      %v2253 = vrot.slane %v1971, 1
      %v2254 = vsel %vm2201, %v2251, %v2253
      %v2255 = vrot.slane %v1972, 1
      %v2256 = vsel %vm2201, %v2253, %v2255
      %v2257 = vrot.slane %v1973, 1
      %v2258 = vsel %vm2201, %v2255, %v2257
      %v2259 = vrot.slane %v1974, 1
      %v2260 = vsel %vm2201, %v2257, %v2259
      %v2261 = vrot.slane %v1975, 1
      %v2262 = vsel %vm2201, %v2259, %v2261
      %v2263 = vrot.slane %v1976, 1
      %v2264 = vsel %vm2201, %v2261, %v2263
      %v2265 = vrot.slane %v1977, 1
      %v2266 = vsel %vm2201, %v2263, %v2265
      %v2267 = vrot.slane %v1978, 1
      %v2268 = vsel %vm2201, %v2265, %v2267
      %v2269 = vrot.slane %v1979, 1
      %v2270 = vsel %vm2201, %v2267, %v2269
      %v2271 = vrot.slane %v1980, 1
      %v2272 = vsel %vm2201, %v2269, %v2271
      %v2273 = vrot.slane %v1981, 1
      %v2274 = vsel %vm2201, %v2271, %v2273
      %v2275 = vrot.slane %v1982, 1
      %v2276 = vsel %vm2201, %v2273, %v2275
      %v2277 = vrot.slane %v1983, 1
      %v2278 = vsel %vm2201, %v2275, %v2277
      %v2279 = vrot.slane %v1984, 1
      %v2280 = vsel %vm2201, %v2277, %v2279
      %v2281 = vrot.slane %v1985, 1
      %v2282 = vsel %vm2201, %v2279, %v2281
      %v2283 = vrot.slane %v1986, 1
      %v2284 = vsel %vm2201, %v2281, %v2283
      %v2285 = vrot.slane %v1987, 1
      %v2286 = vsel %vm2201, %v2283, %v2285
      %v2287 = vrot.slane %v1988, 1
      %v2288 = vsel %vm2201, %v2285, %v2287
      %v2289 = vrot.slane %v1989, 1
      %v2290 = vsel %vm2201, %v2287, %v2289
      %v2291 = vrot.slane %v1990, 1
      %v2292 = vsel %vm2201, %v2289, %v2291
      %v2293 = vrot.slane %v1991, 1
      %v2294 = vsel %vm2201, %v2291, %v2293
      %v2295 = vrot.slane %v1992, 1
      %v2296 = vsel %vm2201, %v2293, %v2295
      %v2297 = vrot.slane %v1993, 1
      %v2298 = vsel %vm2201, %v2295, %v2297
      %v2299 = vrot.slane %v1994, 1
      %v2300 = vsel %vm2201, %v2297, %v2299
      %v2301 = vrot.slane %v1995, 1
      %v2302 = vsel %vm2201, %v2299, %v2301
      %v2303 = vrot.slane %v1996, 1
      %v2304 = vsel %vm2201, %v2301, %v2303
      %v2305 = vrot.slane %v1997, 1
      %v2306 = vsel %vm2201, %v2303, %v2305
      %v2307 = vrot.slane %v1998, 1
      %v2308 = vsel %vm2201, %v2305, %v2307
      %v2309 = vrot.slane %v1999, 1
      %v2310 = vsel %vm2201, %v2307, %v2309
      %v2311 = vrot.slane %v2000, 1
      %v2312 = vsel %vm2201, %v2309, %v2311
      %v2313 = vrot.slane %v2001, 1
      %v2314 = vsel %vm2201, %v2311, %v2313
      %v2315 = vrot.slane %v2002, 1
      %v2316 = vsel %vm2201, %v2313, %v2315
      %v2317 = vrot.slane %v2003, 1
      %v2318 = vsel %vm2201, %v2315, %v2317
      %v2319 = vrot.slane %v2004, 1
      %v2320 = vsel %vm2201, %v2317, %v2319
      %v2321 = vrot.slane %v2005, 1
      %v2322 = vsel %vm2201, %v2319, %v2321
      %v2323 = vrot.slane %v2006, 1
      %v2324 = vsel %vm2201, %v2321, %v2323
      %v2325 = vrot.slane %v2007, 1
      %v2326 = vsel %vm2201, %v2323, %v2325
      %v2327 = vrot.slane %v2008, 1
      %v2328 = vsel %vm2201, %v2325, %v2327
      %v2329 = vrot.slane %v2009, 1
      %v2330 = vsel %vm2201, %v2327, %v2329
      %v2331 = vrot.slane %v2010, 1
      %v2332 = vsel %vm2201, %v2329, %v2331
      %v2333 = vrot.slane %v2011, 1
      %v2334 = vsel %vm2201, %v2331, %v2333
      %v2335 = vrot.slane %v2012, 1
      %v2336 = vsel %vm2201, %v2333, %v2335
      %v2337 = vrot.slane %v2013, 1
      %v2338 = vsel %vm2201, %v2335, %v2337
      %v2339 = vrot.slane %v2014, 1
      %v2340 = vsel %vm2201, %v2337, %v2339
      %v2341 = vrot.slane %v2015, 1
      %v2342 = vsel %vm2201, %v2339, %v2341
      %v2343 = vrot.slane %v2016, 1
      %v2344 = vsel %vm2201, %v2341, %v2343
      %v2345 = vrot.slane %v2017, 1
      %v2346 = vsel %vm2201, %v2343, %v2345
      %v2347 = vrot.slane %v2018, 1
      %v2348 = vsel %vm2201, %v2345, %v2347
      %v2349 = vrot.slane %v2019, 1
      %v2350 = vsel %vm2201, %v2347, %v2349
      %v2351 = vrot.slane %v2020, 1
      %v2352 = vsel %vm2201, %v2349, %v2351
      %v2353 = vrot.slane %v2021, 1
      %v2354 = vsel %vm2201, %v2351, %v2353
      %v2355 = vrot.slane %v2022, 1
      %v2356 = vsel %vm2201, %v2353, %v2355
      %v2357 = vrot.slane %v2023, 1
      %v2358 = vsel %vm2201, %v2355, %v2357
      %v2359 = vrot.slane %v2024, 1
      %v2360 = vsel %vm2201, %v2357, %v2359
      %v2361 = vrot.slane %v2025, 1
      %v2362 = vsel %vm2201, %v2359, %v2361
      %v2363 = vrot.slane %v2026, 1
      %v2364 = vsel %vm2201, %v2361, %v2363
      %v2365 = vrot.slane %v2027, 1
      %v2366 = vsel %vm2201, %v2363, %v2365
      %v2367 = vrot.slane %v2028, 1
      %v2368 = vsel %vm2201, %v2365, %v2367
      %v2369 = vrot.slane %v2029, 1
      %v2370 = vsel %vm2201, %v2367, %v2369
      %v2371 = vrot.slane %v2030, 1
      %v2372 = vsel %vm2201, %v2369, %v2371
      %v2373 = vrot.slane %v2031, 1
      %v2374 = vsel %vm2201, %v2371, %v2373
      %v2375 = vrot.slane %v2032, 1
      %v2376 = vsel %vm2201, %v2373, %v2375
      %v2377 = vrot.slane %v2033, 1
      %v2378 = vsel %vm2201, %v2375, %v2377
      %v2379 = vrot.slane %v2034, 1
      %v2380 = vsel %vm2201, %v2377, %v2379
      %v2381 = vrot.slane %v2035, 1
      %v2382 = vsel %vm2201, %v2379, %v2381
      %v2383 = vrot.slane %v2036, 1
      %v2384 = vsel %vm2201, %v2381, %v2383
      %v2385 = vrot.slane %v2037, 1
      %v2386 = vsel %vm2201, %v2383, %v2385
      %v2387 = vrot.slane %v2038, 1
      %v2388 = vsel %vm2201, %v2385, %v2387
      %v2389 = vrot.slane %v2039, 1
      %v2390 = vsel %vm2201, %v2387, %v2389
      %v2391 = vrot.slane %v2040, 1
      %v2392 = vsel %vm2201, %v2389, %v2391
      %v2393 = vrot.slane %v2041, 1
      %v2394 = vsel %vm2201, %v2391, %v2393
      %v2395 = vrot.slane %v2042, 1
      %v2396 = vsel %vm2201, %v2393, %v2395
      %v2397 = vrot.slane %v2043, 1
      %v2398 = vsel %vm2201, %v2395, %v2397
      %v2399 = vrot.slane %v2044, 1
      %v2400 = vsel %vm2201, %v2397, %v2399
      %v2401 = vrot.slane %v2045, 1
      %v2402 = vsel %vm2201, %v2399, %v2401
      %v2403 = vrot.slane %v2046, 1
      %v2404 = vsel %vm2201, %v2401, %v2403
      %v2405 = vrot.slane %v2047, 1
      %v2406 = vsel %vm2201, %v2403, %v2405
      %v2407 = vrot.slane %v2048, 1
      %v2408 = vsel %vm2201, %v2405, %v2407
      %v2409 = vrot.slane %v2049, 1
      %v2410 = vsel %vm2201, %v2407, %v2409
      %v2411 = vrot.slane %v2050, 1
      %v2412 = vsel %vm2201, %v2409, %v2411
      %v2413 = vrot.slane %v2051, 1
      %v2414 = vsel %vm2201, %v2411, %v2413
      %v2415 = vrot.slane %v2052, 1
      %v2416 = vsel %vm2201, %v2413, %v2415
      %v2417 = vrot.slane %v2053, 1
      %v2418 = vsel %vm2201, %v2415, %v2417
      %v2419 = vrot.slane %v2054, 1
      %v2420 = vsel %vm2201, %v2417, %v2419
      %v2421 = vrot.slane %v2055, 1
      %v2422 = vsel %vm2201, %v2419, %v2421
      %v2423 = vrot.slane %v2056, 1
      %v2424 = vsel %vm2201, %v2421, %v2423
      %v2425 = vrot.slane %v2057, 1
      %v2426 = vsel %vm2201, %v2423, %v2425
      %v2427 = vrot.slane %v2058, 1
      %v2428 = vsel %vm2201, %v2425, %v2427
      %v2429 = vrot.slane %v2059, 1
      %v2430 = vsel %vm2201, %v2427, %v2429
      %v2431 = vrot.slane %v2060, 1
      %v2432 = vsel %vm2201, %v2429, %v2431
      %v2433 = vrot.slane %v2061, 1
      %v2434 = vsel %vm2201, %v2431, %v2433
      %v2435 = vrot.slane %v2062, 1
      %v2436 = vsel %vm2201, %v2433, %v2435
      %v2437 = vrot.slane %v2063, 1
      %v2438 = vsel %vm2201, %v2435, %v2437
      %v2439 = vrot.slane %v2064, 1
      %v2440 = vsel %vm2201, %v2437, %v2439
      %v2441 = vrot.slane %v2065, 1
      %v2442 = vsel %vm2201, %v2439, %v2441
      %v2443 = vrot.slane %v2066, 1
      %v2444 = vsel %vm2201, %v2441, %v2443
      %v2445 = vrot.slane %v2067, 1
      %v2446 = vsel %vm2201, %v2443, %v2445
      %v2447 = vrot.slane %v2068, 1
      %v2448 = vsel %vm2201, %v2445, %v2447
      %v2449 = vrot.slane %v2069, 1
      %v2450 = vsel %vm2201, %v2447, %v2449
      %v2451 = vrot.slane %v2070, 1
      %v2452 = vsel %vm2201, %v2449, %v2451
      %v2453 = vrot.slane %v2071, 1
      %v2454 = vsel %vm2201, %v2451, %v2453
      %v2455 = vrot.slane %v2072, 1
      %v2456 = vsel %vm2201, %v2453, %v2455
      %v2585 = vmax.f32 %v1945, %v2204
      %v2586 = vmax.f32 %v1946, %v2206
      %v2587 = vmax.f32 %v1947, %v2208
      %v2588 = vmax.f32 %v1948, %v2210
      %v2589 = vmax.f32 %v1949, %v2212
      %v2590 = vmax.f32 %v1950, %v2214
      %v2591 = vmax.f32 %v1951, %v2216
      %v2592 = vmax.f32 %v1952, %v2218
      %v2593 = vmax.f32 %v1953, %v2220
      %v2594 = vmax.f32 %v1954, %v2222
      %v2595 = vmax.f32 %v1955, %v2224
      %v2596 = vmax.f32 %v1956, %v2226
      %v2597 = vmax.f32 %v1957, %v2228
      %v2598 = vmax.f32 %v1958, %v2230
      %v2599 = vmax.f32 %v1959, %v2232
      %v2600 = vmax.f32 %v1960, %v2234
      %v2601 = vmax.f32 %v1961, %v2236
      %v2602 = vmax.f32 %v1962, %v2238
      %v2603 = vmax.f32 %v1963, %v2240
      %v2604 = vmax.f32 %v1964, %v2242
      %v2605 = vmax.f32 %v1965, %v2244
      %v2606 = vmax.f32 %v1966, %v2246
      %v2607 = vmax.f32 %v1967, %v2248
      %v2608 = vmax.f32 %v1968, %v2250
      %v2609 = vmax.f32 %v1969, %v2252
      %v2610 = vmax.f32 %v1970, %v2254
      %v2611 = vmax.f32 %v1971, %v2256
      %v2612 = vmax.f32 %v1972, %v2258
      %v2613 = vmax.f32 %v1973, %v2260
      %v2614 = vmax.f32 %v1974, %v2262
      %v2615 = vmax.f32 %v1975, %v2264
      %v2616 = vmax.f32 %v1976, %v2266
      %v2617 = vmax.f32 %v1977, %v2268
      %v2618 = vmax.f32 %v1978, %v2270
      %v2619 = vmax.f32 %v1979, %v2272
      %v2620 = vmax.f32 %v1980, %v2274
      %v2621 = vmax.f32 %v1981, %v2276
      %v2622 = vmax.f32 %v1982, %v2278
      %v2623 = vmax.f32 %v1983, %v2280
      %v2624 = vmax.f32 %v1984, %v2282
      %v2625 = vmax.f32 %v1985, %v2284
      %v2626 = vmax.f32 %v1986, %v2286
      %v2627 = vmax.f32 %v1987, %v2288
      %v2628 = vmax.f32 %v1988, %v2290
      %v2629 = vmax.f32 %v1989, %v2292
      %v2630 = vmax.f32 %v1990, %v2294
      %v2631 = vmax.f32 %v1991, %v2296
      %v2632 = vmax.f32 %v1992, %v2298
      %v2633 = vmax.f32 %v1993, %v2300
      %v2634 = vmax.f32 %v1994, %v2302
      %v2635 = vmax.f32 %v1995, %v2304
      %v2636 = vmax.f32 %v1996, %v2306
      %v2637 = vmax.f32 %v1997, %v2308
      %v2638 = vmax.f32 %v1998, %v2310
      %v2639 = vmax.f32 %v1999, %v2312
      %v2640 = vmax.f32 %v2000, %v2314
      %v2641 = vmax.f32 %v2001, %v2316
      %v2642 = vmax.f32 %v2002, %v2318
      %v2643 = vmax.f32 %v2003, %v2320
      %v2644 = vmax.f32 %v2004, %v2322
      %v2645 = vmax.f32 %v2005, %v2324
      %v2646 = vmax.f32 %v2006, %v2326
      %v2647 = vmax.f32 %v2007, %v2328
      %v2648 = vmax.f32 %v2008, %v2330
      %v2649 = vmax.f32 %v2009, %v2332
      %v2650 = vmax.f32 %v2010, %v2334
      %v2651 = vmax.f32 %v2011, %v2336
      %v2652 = vmax.f32 %v2012, %v2338
      %v2653 = vmax.f32 %v2013, %v2340
      %v2654 = vmax.f32 %v2014, %v2342
      %v2655 = vmax.f32 %v2015, %v2344
      %v2656 = vmax.f32 %v2016, %v2346
      %v2657 = vmax.f32 %v2017, %v2348
      %v2658 = vmax.f32 %v2018, %v2350
      %v2659 = vmax.f32 %v2019, %v2352
      %v2660 = vmax.f32 %v2020, %v2354
      %v2661 = vmax.f32 %v2021, %v2356
      %v2662 = vmax.f32 %v2022, %v2358
      %v2663 = vmax.f32 %v2023, %v2360
      %v2664 = vmax.f32 %v2024, %v2362
      %v2665 = vmax.f32 %v2025, %v2364
      %v2666 = vmax.f32 %v2026, %v2366
      %v2667 = vmax.f32 %v2027, %v2368
      %v2668 = vmax.f32 %v2028, %v2370
      %v2669 = vmax.f32 %v2029, %v2372
      %v2670 = vmax.f32 %v2030, %v2374
      %v2671 = vmax.f32 %v2031, %v2376
      %v2672 = vmax.f32 %v2032, %v2378
      %v2673 = vmax.f32 %v2033, %v2380
      %v2674 = vmax.f32 %v2034, %v2382
      %v2675 = vmax.f32 %v2035, %v2384
      %v2676 = vmax.f32 %v2036, %v2386
      %v2677 = vmax.f32 %v2037, %v2388
      %v2678 = vmax.f32 %v2038, %v2390
      %v2679 = vmax.f32 %v2039, %v2392
      %v2680 = vmax.f32 %v2040, %v2394
      %v2681 = vmax.f32 %v2041, %v2396
      %v2682 = vmax.f32 %v2042, %v2398
      %v2683 = vmax.f32 %v2043, %v2400
      %v2684 = vmax.f32 %v2044, %v2402
      %v2685 = vmax.f32 %v2045, %v2404
      %v2686 = vmax.f32 %v2046, %v2406
      %v2687 = vmax.f32 %v2047, %v2408
      %v2688 = vmax.f32 %v2048, %v2410
      %v2689 = vmax.f32 %v2049, %v2412
      %v2690 = vmax.f32 %v2050, %v2414
      %v2691 = vmax.f32 %v2051, %v2416
      %v2692 = vmax.f32 %v2052, %v2418
      %v2693 = vmax.f32 %v2053, %v2420
      %v2694 = vmax.f32 %v2054, %v2422
      %v2695 = vmax.f32 %v2055, %v2424
      %v2696 = vmax.f32 %v2056, %v2426
      %v2697 = vmax.f32 %v2057, %v2428
      %v2698 = vmax.f32 %v2058, %v2430
      %v2699 = vmax.f32 %v2059, %v2432
      %v2700 = vmax.f32 %v2060, %v2434
      %v2701 = vmax.f32 %v2061, %v2436
      %v2702 = vmax.f32 %v2062, %v2438
      %v2703 = vmax.f32 %v2063, %v2440
      %v2704 = vmax.f32 %v2064, %v2442
      %v2705 = vmax.f32 %v2065, %v2444
      %v2706 = vmax.f32 %v2066, %v2446
      %v2707 = vmax.f32 %v2067, %v2448
      %v2708 = vmax.f32 %v2068, %v2450
      %v2709 = vmax.f32 %v2069, %v2452
      %v2710 = vmax.f32 %v2070, %v2454
      %v2711 = vmax.f32 %v2071, %v2456
      %v2712 = vmax.f32 %v2072, %v2455
      %v2713 = vmax.f32 %v2585, %v2589
      %v2714 = vmax.f32 %v2586, %v2590
      %v2715 = vmax.f32 %v2587, %v2591
      %v2716 = vmax.f32 %v2588, %v2592
      %v2717 = vmax.f32 %v2589, %v2593
      %v2718 = vmax.f32 %v2590, %v2594
      %v2719 = vmax.f32 %v2591, %v2595
      %v2720 = vmax.f32 %v2592, %v2596
      %v2721 = vmax.f32 %v2593, %v2597
      %v2722 = vmax.f32 %v2594, %v2598
      %v2723 = vmax.f32 %v2595, %v2599
      %v2724 = vmax.f32 %v2596, %v2600
      %v2725 = vmax.f32 %v2597, %v2601
      %v2726 = vmax.f32 %v2598, %v2602
      %v2727 = vmax.f32 %v2599, %v2603
      %v2728 = vmax.f32 %v2600, %v2604
      %v2729 = vmax.f32 %v2601, %v2605
      %v2730 = vmax.f32 %v2602, %v2606
      %v2731 = vmax.f32 %v2603, %v2607
      %v2732 = vmax.f32 %v2604, %v2608
      %v2733 = vmax.f32 %v2605, %v2609
      %v2734 = vmax.f32 %v2606, %v2610
      %v2735 = vmax.f32 %v2607, %v2611
      %v2736 = vmax.f32 %v2608, %v2612
      %v2737 = vmax.f32 %v2609, %v2613
      %v2738 = vmax.f32 %v2610, %v2614
      %v2739 = vmax.f32 %v2611, %v2615
      %v2740 = vmax.f32 %v2612, %v2616
      %v2741 = vmax.f32 %v2613, %v2617
      %v2742 = vmax.f32 %v2614, %v2618
      %v2743 = vmax.f32 %v2615, %v2619
      %v2744 = vmax.f32 %v2616, %v2620
      %v2745 = vmax.f32 %v2617, %v2621
      %v2746 = vmax.f32 %v2618, %v2622
      %v2747 = vmax.f32 %v2619, %v2623
      %v2748 = vmax.f32 %v2620, %v2624
      %v2749 = vmax.f32 %v2621, %v2625
      %v2750 = vmax.f32 %v2622, %v2626
      %v2751 = vmax.f32 %v2623, %v2627
      %v2752 = vmax.f32 %v2624, %v2628
      %v2753 = vmax.f32 %v2625, %v2629
      %v2754 = vmax.f32 %v2626, %v2630
      %v2755 = vmax.f32 %v2627, %v2631
      %v2756 = vmax.f32 %v2628, %v2632
      %v2757 = vmax.f32 %v2629, %v2633
      %v2758 = vmax.f32 %v2630, %v2634
      %v2759 = vmax.f32 %v2631, %v2635
      %v2760 = vmax.f32 %v2632, %v2636
      %v2761 = vmax.f32 %v2633, %v2637
      %v2762 = vmax.f32 %v2634, %v2638
      %v2763 = vmax.f32 %v2635, %v2639
      %v2764 = vmax.f32 %v2636, %v2640
      %v2765 = vmax.f32 %v2637, %v2641
      %v2766 = vmax.f32 %v2638, %v2642
      %v2767 = vmax.f32 %v2639, %v2643
      %v2768 = vmax.f32 %v2640, %v2644
      %v2769 = vmax.f32 %v2641, %v2645
      %v2770 = vmax.f32 %v2642, %v2646
      %v2771 = vmax.f32 %v2643, %v2647
      %v2772 = vmax.f32 %v2644, %v2648
      %v2773 = vmax.f32 %v2645, %v2649
      %v2774 = vmax.f32 %v2646, %v2650
      %v2775 = vmax.f32 %v2647, %v2651
      %v2776 = vmax.f32 %v2648, %v2652
      %v2777 = vmax.f32 %v2649, %v2653
      %v2778 = vmax.f32 %v2650, %v2654
      %v2779 = vmax.f32 %v2651, %v2655
      %v2780 = vmax.f32 %v2652, %v2656
      %v2781 = vmax.f32 %v2653, %v2657
      %v2782 = vmax.f32 %v2654, %v2658
      %v2783 = vmax.f32 %v2655, %v2659
      %v2784 = vmax.f32 %v2656, %v2660
      %v2785 = vmax.f32 %v2657, %v2661
      %v2786 = vmax.f32 %v2658, %v2662
      %v2787 = vmax.f32 %v2659, %v2663
      %v2788 = vmax.f32 %v2660, %v2664
      %v2789 = vmax.f32 %v2661, %v2665
      %v2790 = vmax.f32 %v2662, %v2666
      %v2791 = vmax.f32 %v2663, %v2667
      %v2792 = vmax.f32 %v2664, %v2668
      %v2793 = vmax.f32 %v2665, %v2669
      %v2794 = vmax.f32 %v2666, %v2670
      %v2795 = vmax.f32 %v2667, %v2671
      %v2796 = vmax.f32 %v2668, %v2672
      %v2797 = vmax.f32 %v2669, %v2673
      %v2798 = vmax.f32 %v2670, %v2674
      %v2799 = vmax.f32 %v2671, %v2675
      %v2800 = vmax.f32 %v2672, %v2676
      %v2801 = vmax.f32 %v2673, %v2677
      %v2802 = vmax.f32 %v2674, %v2678
      %v2803 = vmax.f32 %v2675, %v2679
      %v2804 = vmax.f32 %v2676, %v2680
      %v2805 = vmax.f32 %v2677, %v2681
      %v2806 = vmax.f32 %v2678, %v2682
      %v2807 = vmax.f32 %v2679, %v2683
      %v2808 = vmax.f32 %v2680, %v2684
      %v2809 = vmax.f32 %v2681, %v2685
      %v2810 = vmax.f32 %v2682, %v2686
      %v2811 = vmax.f32 %v2683, %v2687
      %v2812 = vmax.f32 %v2684, %v2688
      %v2813 = vmax.f32 %v2685, %v2689
      %v2814 = vmax.f32 %v2686, %v2690
      %v2815 = vmax.f32 %v2687, %v2691
      %v2816 = vmax.f32 %v2688, %v2692
      %v2817 = vmax.f32 %v2689, %v2693
      %v2818 = vmax.f32 %v2690, %v2694
      %v2819 = vmax.f32 %v2691, %v2695
      %v2820 = vmax.f32 %v2692, %v2696
      %v2821 = vmax.f32 %v2693, %v2697
      %v2822 = vmax.f32 %v2694, %v2698
      %v2823 = vmax.f32 %v2695, %v2699
      %v2824 = vmax.f32 %v2696, %v2700
      %v2825 = vmax.f32 %v2697, %v2701
      %v2826 = vmax.f32 %v2698, %v2702
      %v2827 = vmax.f32 %v2699, %v2703
      %v2828 = vmax.f32 %v2700, %v2704
      %v2829 = vmax.f32 %v2701, %v2705
      %v2830 = vmax.f32 %v2702, %v2706
      %v2831 = vmax.f32 %v2703, %v2707
      %v2832 = vmax.f32 %v2704, %v2708
      %v2833 = vmax.f32 %v2705, %v2709
      %v2834 = vmax.f32 %v2706, %v2710
      %v2835 = vmax.f32 %v2707, %v2711
      %v2836 = vmax.f32 %v2708, %v2712
      %v2837 = vpack.c.bf16 %v2714, %v2713
      %v2838 = vpack.c.bf16 %v2716, %v2715
      %v2839 = vpack.c.bf16 %v2718, %v2717
      %v2840 = vpack.c.bf16 %v2720, %v2719
      %v2841 = vpack.c.bf16 %v2722, %v2721
      %v2842 = vpack.c.bf16 %v2724, %v2723
      %v2843 = vpack.c.bf16 %v2726, %v2725
      %v2844 = vpack.c.bf16 %v2728, %v2727
      %v2845 = vpack.c.bf16 %v2730, %v2729
      %v2846 = vpack.c.bf16 %v2732, %v2731
      %v2847 = vpack.c.bf16 %v2734, %v2733
      %v2848 = vpack.c.bf16 %v2736, %v2735
      %v2849 = vpack.c.bf16 %v2738, %v2737
      %v2850 = vpack.c.bf16 %v2740, %v2739
      %v2851 = vpack.c.bf16 %v2742, %v2741
      %v2852 = vpack.c.bf16 %v2744, %v2743
      %v2853 = vpack.c.bf16 %v2746, %v2745
      %v2854 = vpack.c.bf16 %v2748, %v2747
      %v2855 = vpack.c.bf16 %v2750, %v2749
      %v2856 = vpack.c.bf16 %v2752, %v2751
      %v2857 = vpack.c.bf16 %v2754, %v2753
      %v2858 = vpack.c.bf16 %v2756, %v2755
      %v2859 = vpack.c.bf16 %v2758, %v2757
      %v2860 = vpack.c.bf16 %v2760, %v2759
      %v2861 = vpack.c.bf16 %v2762, %v2761
      %v2862 = vpack.c.bf16 %v2764, %v2763
      %v2863 = vpack.c.bf16 %v2766, %v2765
      %v2864 = vpack.c.bf16 %v2768, %v2767
      %v2865 = vpack.c.bf16 %v2770, %v2769
      %v2866 = vpack.c.bf16 %v2772, %v2771
      %v2867 = vpack.c.bf16 %v2774, %v2773
      %v2868 = vpack.c.bf16 %v2776, %v2775
      %v2869 = vpack.c.bf16 %v2778, %v2777
      %v2870 = vpack.c.bf16 %v2780, %v2779
      %v2871 = vpack.c.bf16 %v2782, %v2781
      %v2872 = vpack.c.bf16 %v2784, %v2783
      %v2873 = vpack.c.bf16 %v2786, %v2785
      %v2874 = vpack.c.bf16 %v2788, %v2787
      %v2875 = vpack.c.bf16 %v2790, %v2789
      %v2876 = vpack.c.bf16 %v2792, %v2791
      %v2877 = vpack.c.bf16 %v2794, %v2793
      %v2878 = vpack.c.bf16 %v2796, %v2795
      %v2879 = vpack.c.bf16 %v2798, %v2797
      %v2880 = vpack.c.bf16 %v2800, %v2799
      %v2881 = vpack.c.bf16 %v2802, %v2801
      %v2882 = vpack.c.bf16 %v2804, %v2803
      %v2883 = vpack.c.bf16 %v2806, %v2805
      %v2884 = vpack.c.bf16 %v2808, %v2807
      %v2885 = vpack.c.bf16 %v2810, %v2809
      %v2886 = vpack.c.bf16 %v2812, %v2811
      %v2887 = vpack.c.bf16 %v2814, %v2813
      %v2888 = vpack.c.bf16 %v2816, %v2815
      %v2889 = vpack.c.bf16 %v2818, %v2817
      %v2890 = vpack.c.bf16 %v2820, %v2819
      %v2891 = vpack.c.bf16 %v2822, %v2821
      %v2892 = vpack.c.bf16 %v2824, %v2823
      %v2893 = vpack.c.bf16 %v2826, %v2825
      %v2894 = vpack.c.bf16 %v2828, %v2827
      %v2895 = vpack.c.bf16 %v2830, %v2829
      %v2896 = vpack.c.bf16 %v2832, %v2831
      %v2897 = vpack.c.bf16 %v2834, %v2833
      %v2898 = vpack.c.bf16 %v2836, %v2835
      %v3027 = vunpack.c.l.b16 %v574
      %v3028 = vunpack.c.h.b16 %v574
      %v3029 = vunpack.c.l.b16 %v575
      %v3030 = vunpack.c.h.b16 %v575
      %v3031 = vunpack.c.l.b16 %v576
      %v3032 = vunpack.c.h.b16 %v576
      %v3033 = vunpack.c.l.b16 %v577
      %v3034 = vunpack.c.h.b16 %v577
      %v3035 = vunpack.c.l.b16 %v578
      %v3036 = vunpack.c.h.b16 %v578
      %v3037 = vunpack.c.l.b16 %v579
      %v3038 = vunpack.c.h.b16 %v579
      %v3039 = vunpack.c.l.b16 %v580
      %v3040 = vunpack.c.h.b16 %v580
      %v3041 = vunpack.c.l.b16 %v581
      %v3042 = vunpack.c.h.b16 %v581
      %v3043 = vunpack.c.l.b16 %v582
      %v3044 = vunpack.c.h.b16 %v582
      %v3045 = vunpack.c.l.b16 %v583
      %v3046 = vunpack.c.h.b16 %v583
      %v3047 = vunpack.c.l.b16 %v584
      %v3048 = vunpack.c.h.b16 %v584
      %v3049 = vunpack.c.l.b16 %v585
      %v3050 = vunpack.c.h.b16 %v585
      %v3051 = vunpack.c.l.b16 %v586
      %v3052 = vunpack.c.h.b16 %v586
      %v3053 = vunpack.c.l.b16 %v587
      %v3054 = vunpack.c.h.b16 %v587
      %v3055 = vunpack.c.l.b16 %v588
      %v3056 = vunpack.c.h.b16 %v588
      %v3057 = vunpack.c.l.b16 %v589
      %v3058 = vunpack.c.h.b16 %v589
      %v3059 = vunpack.c.l.b16 %v590
      %v3060 = vunpack.c.h.b16 %v590
      %v3061 = vunpack.c.l.b16 %v591
      %v3062 = vunpack.c.h.b16 %v591
      %v3063 = vunpack.c.l.b16 %v592
      %v3064 = vunpack.c.h.b16 %v592
      %v3065 = vunpack.c.l.b16 %v593
      %v3066 = vunpack.c.h.b16 %v593
      %v3067 = vunpack.c.l.b16 %v594
      %v3068 = vunpack.c.h.b16 %v594
      %v3069 = vunpack.c.l.b16 %v595
      %v3070 = vunpack.c.h.b16 %v595
      %v3071 = vunpack.c.l.b16 %v596
      %v3072 = vunpack.c.h.b16 %v596
      %v3073 = vunpack.c.l.b16 %v597
      %v3074 = vunpack.c.h.b16 %v597
      %v3075 = vunpack.c.l.b16 %v598
      %v3076 = vunpack.c.h.b16 %v598
      %v3077 = vunpack.c.l.b16 %v599
      %v3078 = vunpack.c.h.b16 %v599
      %v3079 = vunpack.c.l.b16 %v600
      %v3080 = vunpack.c.h.b16 %v600
      %v3081 = vunpack.c.l.b16 %v601
      %v3082 = vunpack.c.h.b16 %v601
      %v3083 = vunpack.c.l.b16 %v602
      %v3084 = vunpack.c.h.b16 %v602
      %v3085 = vunpack.c.l.b16 %v603
      %v3086 = vunpack.c.h.b16 %v603
      %v3087 = vunpack.c.l.b16 %v604
      %v3088 = vunpack.c.h.b16 %v604
      %v3089 = vunpack.c.l.b16 %v605
      %v3090 = vunpack.c.h.b16 %v605
      %v3091 = vunpack.c.l.b16 %v606
      %v3092 = vunpack.c.h.b16 %v606
      %v3093 = vunpack.c.l.b16 %v607
      %v3094 = vunpack.c.h.b16 %v607
      %v3095 = vunpack.c.l.b16 %v608
      %v3096 = vunpack.c.h.b16 %v608
      %v3097 = vunpack.c.l.b16 %v609
      %v3098 = vunpack.c.h.b16 %v609
      %v3099 = vunpack.c.l.b16 %v610
      %v3100 = vunpack.c.h.b16 %v610
      %v3101 = vunpack.c.l.b16 %v611
      %v3102 = vunpack.c.h.b16 %v611
      %v3103 = vunpack.c.l.b16 %v612
      %v3104 = vunpack.c.h.b16 %v612
      %v3105 = vunpack.c.l.b16 %v613
      %v3106 = vunpack.c.h.b16 %v613
      %v3107 = vunpack.c.l.b16 %v614
      %v3108 = vunpack.c.h.b16 %v614
      %v3109 = vunpack.c.l.b16 %v615
      %v3110 = vunpack.c.h.b16 %v615
      %v3111 = vunpack.c.l.b16 %v616
      %v3112 = vunpack.c.h.b16 %v616
      %v3113 = vunpack.c.l.b16 %v617
      %v3114 = vunpack.c.h.b16 %v617
      %v3115 = vunpack.c.l.b16 %v618
      %v3116 = vunpack.c.h.b16 %v618
      %v3117 = vunpack.c.l.b16 %v619
      %v3118 = vunpack.c.h.b16 %v619
      %v3119 = vunpack.c.l.b16 %v620
      %v3120 = vunpack.c.h.b16 %v620
      %v3121 = vunpack.c.l.b16 %v621
      %v3122 = vunpack.c.h.b16 %v621
      %v3123 = vunpack.c.l.b16 %v622
      %v3124 = vunpack.c.h.b16 %v622
      %v3125 = vunpack.c.l.b16 %v623
      %v3126 = vunpack.c.h.b16 %v623
      %v3127 = vunpack.c.l.b16 %v624
      %v3128 = vunpack.c.h.b16 %v624
      %v3129 = vunpack.c.l.b16 %v625
      %v3130 = vunpack.c.h.b16 %v625
      %v3131 = vunpack.c.l.b16 %v626
      %v3132 = vunpack.c.h.b16 %v626
      %v3133 = vunpack.c.l.b16 %v627
      %v3134 = vunpack.c.h.b16 %v627
      %v3135 = vunpack.c.l.b16 %v628
      %v3136 = vunpack.c.h.b16 %v628
      %v3137 = vunpack.c.l.b16 %v629
      %v3138 = vunpack.c.h.b16 %v629
      %v3139 = vunpack.c.l.b16 %v630
      %v3140 = vunpack.c.h.b16 %v630
      %v3141 = vunpack.c.l.b16 %v631
      %v3142 = vunpack.c.h.b16 %v631
      %v3143 = vunpack.c.l.b16 %v632
      %v3144 = vunpack.c.h.b16 %v632
      %v3145 = vunpack.c.l.b16 %v633
      %v3146 = vunpack.c.h.b16 %v633
      %v3147 = vunpack.c.l.b16 %v634
      %v3148 = vunpack.c.h.b16 %v634
      %v3149 = vunpack.c.l.b16 %v635
      %v3150 = vunpack.c.h.b16 %v635
      %v3151 = vunpack.c.l.b16 %v636
      %v3152 = vunpack.c.h.b16 %v636
      %v3153 = vunpack.c.l.b16 %v637
      %v3154 = vunpack.c.h.b16 %v637
      %v3155 = vunpack.c.l.b16 %v638
      %v3156 = vunpack.c.h.b16 %v638
      %v3157 = vunpack.c.l.b16 %v639
      %v3158 = vunpack.c.h.b16 %v639
      %v3159 = vunpack.c.l.b16 %v640
      %v3160 = vunpack.c.h.b16 %v640
      %v3161 = vunpack.c.l.b16 %v641
      %v3162 = vunpack.c.h.b16 %v641
      %v3163 = vunpack.c.l.b16 %v642
      %v3164 = vunpack.c.h.b16 %v642
      %v3165 = vunpack.c.l.b16 %v643
      %v3166 = vunpack.c.h.b16 %v643
      %v3167 = vunpack.c.l.b16 %v644
      %v3168 = vunpack.c.h.b16 %v644
      %v3169 = vunpack.c.l.b16 %v645
      %v3170 = vunpack.c.h.b16 %v645
      %v3171 = vunpack.c.l.b16 %v646
      %v3172 = vunpack.c.h.b16 %v646
      %v3173 = vunpack.c.l.b16 %v647
      %v3174 = vunpack.c.h.b16 %v647
      %v3175 = vunpack.c.l.b16 %v648
      %v3176 = vunpack.c.h.b16 %v648
      %v3177 = vunpack.c.l.b16 %v649
      %v3178 = vunpack.c.h.b16 %v649
      %v3179 = vunpack.c.l.b16 %v650
      %v3180 = vunpack.c.h.b16 %v650
      %v3181 = vunpack.c.l.b16 %v651
      %v3182 = vunpack.c.h.b16 %v651
      %v3183 = vunpack.c.l.b16 %v652
      %v3184 = vunpack.c.h.b16 %v652
      %v3185 = vunpack.c.l.b16 %v653
      %v3186 = vunpack.c.h.b16 %v653
      %v3187 = vunpack.c.l.b16 %v654
      %v3188 = vunpack.c.h.b16 %v654
      %v3189 = vunpack.c.l.b16 %v655
      %v3190 = vunpack.c.h.b16 %v655
      %v3191 = vunpack.c.l.b16 %v656
      %v3192 = vunpack.c.h.b16 %v656
      %v3193 = vunpack.c.l.b16 %v657
      %v3194 = vunpack.c.h.b16 %v657
      %v3195 = vunpack.c.l.b16 %v658
      %v3196 = vunpack.c.h.b16 %v658
      %v3197 = vunpack.c.l.b16 %v659
      %v3198 = vunpack.c.h.b16 %v659
      %v3199 = vunpack.c.l.b16 %v660
      %v3200 = vunpack.c.h.b16 %v660
      %v3201 = vunpack.c.l.b16 %v661
      %v3202 = vunpack.c.h.b16 %v661
      %v3203 = vunpack.c.l.b16 %v662
      %v3204 = vunpack.c.h.b16 %v662
      %v3205 = vunpack.c.l.b16 %v663
      %v3206 = vunpack.c.h.b16 %v663
      %v3207 = vunpack.c.l.b16 %v664
      %v3208 = vunpack.c.h.b16 %v664
      %v3209 = vunpack.c.l.b16 %v665
      %v3210 = vunpack.c.h.b16 %v665
      %v3211 = vunpack.c.l.b16 %v666
      %v3212 = vunpack.c.h.b16 %v666
      %v3213 = vunpack.c.l.b16 %v667
      %v3214 = vunpack.c.h.b16 %v667
      %v3215 = vunpack.c.l.b16 %v668
      %v3216 = vunpack.c.h.b16 %v668
      %v3217 = vunpack.c.l.b16 %v669
      %v3218 = vunpack.c.h.b16 %v669
      %v3219 = vunpack.c.l.b16 %v670
      %v3220 = vunpack.c.h.b16 %v670
      %v3221 = vunpack.c.l.b16 %v671
      %v3222 = vunpack.c.h.b16 %v671
      %v3223 = vunpack.c.l.b16 %v672
      %v3224 = vunpack.c.h.b16 %v672
      %v3225 = vunpack.c.l.b16 %v673
      %v3226 = vunpack.c.h.b16 %v673
      %v3227 = vunpack.c.l.b16 %v674
      %v3228 = vunpack.c.h.b16 %v674
      %v3229 = vunpack.c.l.b16 %v675
      %v3230 = vunpack.c.h.b16 %v675
      %v3231 = vunpack.c.l.b16 %v676
      %v3232 = vunpack.c.h.b16 %v676
      %v3233 = vunpack.c.l.b16 %v677
      %v3234 = vunpack.c.h.b16 %v677
      %v3235 = vunpack.c.l.b16 %v678
      %v3236 = vunpack.c.h.b16 %v678
      %v3237 = vunpack.c.l.b16 %v679
      %v3238 = vunpack.c.h.b16 %v679
      %v3239 = vunpack.c.l.b16 %v680
      %v3240 = vunpack.c.h.b16 %v680
      %v3241 = vunpack.c.l.b16 %v681
      %v3242 = vunpack.c.h.b16 %v681
      %v3243 = vunpack.c.l.b16 %v682
      %v3244 = vunpack.c.h.b16 %v682
      %v3245 = vunpack.c.l.b16 %v683
      %v3246 = vunpack.c.h.b16 %v683
      %v3247 = vunpack.c.l.b16 %v684
      %v3248 = vunpack.c.h.b16 %v684
      %v3249 = vunpack.c.l.b16 %v685
      %v3250 = vunpack.c.h.b16 %v685
      %v3251 = vunpack.c.l.b16 %v686
      %v3252 = vunpack.c.h.b16 %v686
      %v3253 = vunpack.c.l.b16 %v687
      %v3254 = vunpack.c.h.b16 %v687
      %v3255 = vunpack.c.l.b16 %v688
      %v3256 = vunpack.c.h.b16 %v688
      %v3257 = vunpack.c.l.b16 %v689
      %v3258 = vunpack.c.h.b16 %v689
      %v3259 = vunpack.c.l.b16 %v690
      %v3260 = vunpack.c.h.b16 %v690
      %v3261 = vunpack.c.l.b16 %v691
      %v3262 = vunpack.c.h.b16 %v691
      %v3263 = vunpack.c.l.b16 %v692
      %v3264 = vunpack.c.h.b16 %v692
      %v3265 = vunpack.c.l.b16 %v693
      %v3266 = vunpack.c.h.b16 %v693
      %v3267 = vunpack.c.l.b16 %v694
      %v3268 = vunpack.c.h.b16 %v694
      %v3269 = vunpack.c.l.b16 %v695
      %v3270 = vunpack.c.h.b16 %v695
      %v3271 = vunpack.c.l.b16 %v696
      %v3272 = vunpack.c.h.b16 %v696
      %v3273 = vunpack.c.l.b16 %v697
      %v3274 = vunpack.c.h.b16 %v697
      %v3275 = vunpack.c.l.b16 %v698
      %v3276 = vunpack.c.h.b16 %v698
      %v3277 = vunpack.c.l.b16 %v699
      %v3278 = vunpack.c.h.b16 %v699
      %v3279 = vunpack.c.l.b16 %v700
      %v3280 = vunpack.c.h.b16 %v700
      %v3281 = vunpack.c.l.b16 %v701
      %v3282 = vunpack.c.h.b16 %v701
      %v3283 = vpack.c.b16 %v3035, %v3027
      %v3284 = vpack.c.b16 %v3036, %v3028
      %v3285 = vpack.c.b16 %v3037, %v3029
      %v3286 = vpack.c.b16 %v3038, %v3030
      %v3287 = vpack.c.b16 %v3039, %v3031
      %v3288 = vpack.c.b16 %v3040, %v3032
      %v3289 = vpack.c.b16 %v3041, %v3033
      %v3290 = vpack.c.b16 %v3042, %v3034
      %v3291 = vpack.c.b16 %v3051, %v3043
      %v3292 = vpack.c.b16 %v3052, %v3044
      %v3293 = vpack.c.b16 %v3053, %v3045
      %v3294 = vpack.c.b16 %v3054, %v3046
      %v3295 = vpack.c.b16 %v3055, %v3047
      %v3296 = vpack.c.b16 %v3056, %v3048
      %v3297 = vpack.c.b16 %v3057, %v3049
      %v3298 = vpack.c.b16 %v3058, %v3050
      %v3299 = vpack.c.b16 %v3067, %v3059
      %v3300 = vpack.c.b16 %v3068, %v3060
      %v3301 = vpack.c.b16 %v3069, %v3061
      %v3302 = vpack.c.b16 %v3070, %v3062
      %v3303 = vpack.c.b16 %v3071, %v3063
      %v3304 = vpack.c.b16 %v3072, %v3064
      %v3305 = vpack.c.b16 %v3073, %v3065
      %v3306 = vpack.c.b16 %v3074, %v3066
      %v3307 = vpack.c.b16 %v3083, %v3075
      %v3308 = vpack.c.b16 %v3084, %v3076
      %v3309 = vpack.c.b16 %v3085, %v3077
      %v3310 = vpack.c.b16 %v3086, %v3078
      %v3311 = vpack.c.b16 %v3087, %v3079
      %v3312 = vpack.c.b16 %v3088, %v3080
      %v3313 = vpack.c.b16 %v3089, %v3081
      %v3314 = vpack.c.b16 %v3090, %v3082
      %v3315 = vpack.c.b16 %v3099, %v3091
      %v3316 = vpack.c.b16 %v3100, %v3092
      %v3317 = vpack.c.b16 %v3101, %v3093
      %v3318 = vpack.c.b16 %v3102, %v3094
      %v3319 = vpack.c.b16 %v3103, %v3095
      %v3320 = vpack.c.b16 %v3104, %v3096
      %v3321 = vpack.c.b16 %v3105, %v3097
      %v3322 = vpack.c.b16 %v3106, %v3098
      %v3323 = vpack.c.b16 %v3115, %v3107
      %v3324 = vpack.c.b16 %v3116, %v3108
      %v3325 = vpack.c.b16 %v3117, %v3109
      %v3326 = vpack.c.b16 %v3118, %v3110
      %v3327 = vpack.c.b16 %v3119, %v3111
      %v3328 = vpack.c.b16 %v3120, %v3112
      %v3329 = vpack.c.b16 %v3121, %v3113
      %v3330 = vpack.c.b16 %v3122, %v3114
      %v3331 = vpack.c.b16 %v3131, %v3123
      %v3332 = vpack.c.b16 %v3132, %v3124
      %v3333 = vpack.c.b16 %v3133, %v3125
      %v3334 = vpack.c.b16 %v3134, %v3126
      %v3335 = vpack.c.b16 %v3135, %v3127
      %v3336 = vpack.c.b16 %v3136, %v3128
      %v3337 = vpack.c.b16 %v3137, %v3129
      %v3338 = vpack.c.b16 %v3138, %v3130
      %v3339 = vpack.c.b16 %v3147, %v3139
      %v3340 = vpack.c.b16 %v3148, %v3140
      %v3341 = vpack.c.b16 %v3149, %v3141
      %v3342 = vpack.c.b16 %v3150, %v3142
      %v3343 = vpack.c.b16 %v3151, %v3143
      %v3344 = vpack.c.b16 %v3152, %v3144
      %v3345 = vpack.c.b16 %v3153, %v3145
      %v3346 = vpack.c.b16 %v3154, %v3146
      %v3347 = vpack.c.b16 %v3163, %v3155
      %v3348 = vpack.c.b16 %v3164, %v3156
      %v3349 = vpack.c.b16 %v3165, %v3157
      %v3350 = vpack.c.b16 %v3166, %v3158
      %v3351 = vpack.c.b16 %v3167, %v3159
      %v3352 = vpack.c.b16 %v3168, %v3160
      %v3353 = vpack.c.b16 %v3169, %v3161
      %v3354 = vpack.c.b16 %v3170, %v3162
      %v3355 = vpack.c.b16 %v3179, %v3171
      %v3356 = vpack.c.b16 %v3180, %v3172
      %v3357 = vpack.c.b16 %v3181, %v3173
      %v3358 = vpack.c.b16 %v3182, %v3174
      %v3359 = vpack.c.b16 %v3183, %v3175
      %v3360 = vpack.c.b16 %v3184, %v3176
      %v3361 = vpack.c.b16 %v3185, %v3177
      %v3362 = vpack.c.b16 %v3186, %v3178
      %v3363 = vpack.c.b16 %v3195, %v3187
      %v3364 = vpack.c.b16 %v3196, %v3188
      %v3365 = vpack.c.b16 %v3197, %v3189
      %v3366 = vpack.c.b16 %v3198, %v3190
      %v3367 = vpack.c.b16 %v3199, %v3191
      %v3368 = vpack.c.b16 %v3200, %v3192
      %v3369 = vpack.c.b16 %v3201, %v3193
      %v3370 = vpack.c.b16 %v3202, %v3194
      %v3371 = vpack.c.b16 %v3211, %v3203
      %v3372 = vpack.c.b16 %v3212, %v3204
      %v3373 = vpack.c.b16 %v3213, %v3205
      %v3374 = vpack.c.b16 %v3214, %v3206
      %v3375 = vpack.c.b16 %v3215, %v3207
      %v3376 = vpack.c.b16 %v3216, %v3208
      %v3377 = vpack.c.b16 %v3217, %v3209
      %v3378 = vpack.c.b16 %v3218, %v3210
      %v3379 = vpack.c.b16 %v3227, %v3219
      %v3380 = vpack.c.b16 %v3228, %v3220
      %v3381 = vpack.c.b16 %v3229, %v3221
      %v3382 = vpack.c.b16 %v3230, %v3222
      %v3383 = vpack.c.b16 %v3231, %v3223
      %v3384 = vpack.c.b16 %v3232, %v3224
      %v3385 = vpack.c.b16 %v3233, %v3225
      %v3386 = vpack.c.b16 %v3234, %v3226
      %v3387 = vpack.c.b16 %v3243, %v3235
      %v3388 = vpack.c.b16 %v3244, %v3236
      %v3389 = vpack.c.b16 %v3245, %v3237
      %v3390 = vpack.c.b16 %v3246, %v3238
      %v3391 = vpack.c.b16 %v3247, %v3239
      %v3392 = vpack.c.b16 %v3248, %v3240
      %v3393 = vpack.c.b16 %v3249, %v3241
      %v3394 = vpack.c.b16 %v3250, %v3242
      %v3395 = vpack.c.b16 %v3259, %v3251
      %v3396 = vpack.c.b16 %v3260, %v3252
      %v3397 = vpack.c.b16 %v3261, %v3253
      %v3398 = vpack.c.b16 %v3262, %v3254
      %v3399 = vpack.c.b16 %v3263, %v3255
      %v3400 = vpack.c.b16 %v3264, %v3256
      %v3401 = vpack.c.b16 %v3265, %v3257
      %v3402 = vpack.c.b16 %v3266, %v3258
      %v3403 = vpack.c.b16 %v3275, %v3267
      %v3404 = vpack.c.b16 %v3276, %v3268
      %v3405 = vpack.c.b16 %v3277, %v3269
      %v3406 = vpack.c.b16 %v3278, %v3270
      %v3407 = vpack.c.b16 %v3279, %v3271
      %v3408 = vpack.c.b16 %v3280, %v3272
      %v3409 = vpack.c.b16 %v3281, %v3273
      %v3410 = vpack.c.b16 %v3282, %v3274
      %vm3523 = vcmask 777216
      %v3525 = vsel %vm3523, %v3290, 0
      %v3528 = vsel %vm3523, %v3298, 0
      %v3531 = vsel %vm3523, %v3306, 0
      %v3534 = vsel %vm3523, %v3314, 0
      %v3537 = vsel %vm3523, %v3322, 0
      %v3540 = vsel %vm3523, %v3330, 0
      %v3543 = vsel %vm3523, %v3338, 0
      %v3546 = vsel %vm3523, %v3346, 0
      %v3549 = vsel %vm3523, %v3354, 0
      %v3552 = vsel %vm3523, %v3362, 0
      %v3555 = vsel %vm3523, %v3370, 0
      %v3558 = vsel %vm3523, %v3378, 0
      %v3561 = vsel %vm3523, %v3386, 0
      %v3564 = vsel %vm3523, %v3394, 0
      %v3567 = vsel %vm3523, %v3402, 0
      %v3570 = vsel %vm3523, %v3410, 0
      %vm3572 = vcmask 1047552
      %v3573 = vsel %vm2201, 4294967295, 65535
      %v3574 = vsel %vm3572, %v3573, 0
      %v3576 = vand.u32 %v2898, %v3574
      %3578 = vmatprep.subr.bf16.mxu0 0
      %3579 = vmatpush1.bf16.msra.mxu0 %v2837
      %3580 = vmatprep.subr.bf16.mxu0 0
      %3581 = vmatpush1.bf16.msra.mxu0 %v2838
      %3582 = vmatprep.subr.bf16.mxu0 0
      %3583 = vmatpush1.bf16.msra.mxu0 %v2839
      %3584 = vmatprep.subr.bf16.mxu0 0
      %3585 = vmatpush1.bf16.msra.mxu0 %v2840
      %3586 = vmatprep.subr.bf16.mxu0 0
      %3587 = vmatpush1.bf16.msra.mxu0 %v2841
      %3588 = vmatprep.subr.bf16.mxu0 0
      %3589 = vmatpush1.bf16.msra.mxu0 %v2842
      %3590 = vmatprep.subr.bf16.mxu0 0
      %3591 = vmatpush1.bf16.msra.mxu0 %v2843
      %3592 = vmatprep.subr.bf16.mxu0 0
      %3593 = vmatpush1.bf16.msra.mxu0 %v2844
      %3594 = vmatprep.subr.bf16.mxu0 0
      %3595 = vmatpush1.bf16.msra.mxu0 %v2845
      %3596 = vmatprep.subr.bf16.mxu0 0
      %3597 = vmatpush1.bf16.msra.mxu0 %v2846
      %3598 = vmatprep.subr.bf16.mxu0 0
      %3599 = vmatpush1.bf16.msra.mxu0 %v2847
      %3600 = vmatprep.subr.bf16.mxu0 0
      %3601 = vmatpush1.bf16.msra.mxu0 %v2848
      %3602 = vmatprep.subr.bf16.mxu0 0
      %3603 = vmatpush1.bf16.msra.mxu0 %v2849
      %3604 = vmatprep.subr.bf16.mxu0 0
      %3605 = vmatpush1.bf16.msra.mxu0 %v2850
      %3606 = vmatprep.subr.bf16.mxu0 0
      %3607 = vmatpush1.bf16.msra.mxu0 %v2851
      %3608 = vmatprep.subr.bf16.mxu0 0
      %3609 = vmatpush1.bf16.msra.mxu0 %v2852
      %3610 = vmatprep.mubr.bf16.mxu0 %v3284
      %3611 = vmatmul.mubr.bf16.gmra.mrb[0].mxu0 %v3283
      %v3612 = vpop.f32.mrb[0].mxu0
      %v3613 = vadd.f32 0.0, %v3612
      %v3614 = vpop.f32.mrb[0].mxu0
      %v3615 = vpop.f32.mrb[0].mxu0
      %v3616 = vadd.f32 0.0, %v3615
      %v3617 = vpop.f32.mrb[0].mxu0
      %3618 = vmatprep.mubr.bf16.mxu0 %v3292
      %3619 = vmatmul.mubr.bf16.gmra.mrb[0].mxu0 %v3291
      %v3620 = vpop.f32.mrb[0].mxu0
      %v3621 = vadd.f32 0.0, %v3620
      %v3622 = vpop.f32.mrb[0].mxu0
      %v3623 = vpop.f32.mrb[0].mxu0
      %v3624 = vadd.f32 0.0, %v3623
      %v3625 = vpop.f32.mrb[0].mxu0
      %3626 = vmatprep.mubr.bf16.mxu0 %v3300
      %3627 = vmatmul.mubr.bf16.gmra.mrb[0].mxu0 %v3299
      %v3628 = vpop.f32.mrb[0].mxu0
      %v3629 = vadd.f32 0.0, %v3628
      %v3630 = vpop.f32.mrb[0].mxu0
      %v3631 = vpop.f32.mrb[0].mxu0
      %v3632 = vadd.f32 0.0, %v3631
      %v3633 = vpop.f32.mrb[0].mxu0
      %3634 = vmatprep.mubr.bf16.mxu0 %v3308
      %3635 = vmatmul.mubr.bf16.gmra.mrb[0].mxu0 %v3307
      %v3636 = vpop.f32.mrb[0].mxu0
      %v3637 = vadd.f32 0.0, %v3636
      %v3638 = vpop.f32.mrb[0].mxu0
      %v3639 = vpop.f32.mrb[0].mxu0
      %v3640 = vadd.f32 0.0, %v3639
      %v3641 = vpop.f32.mrb[0].mxu0
      %3642 = vmatprep.mubr.bf16.mxu0 %v3316
      %3643 = vmatmul.mubr.bf16.gmra.mrb[0].mxu0 %v3315
      %v3644 = vpop.f32.mrb[0].mxu0
      %v3645 = vadd.f32 0.0, %v3644
      %v3646 = vpop.f32.mrb[0].mxu0
      %v3647 = vpop.f32.mrb[0].mxu0
      %v3648 = vadd.f32 0.0, %v3647
      %v3649 = vpop.f32.mrb[0].mxu0
      %3650 = vmatprep.mubr.bf16.mxu0 %v3324
      %3651 = vmatmul.mubr.bf16.gmra.mrb[0].mxu0 %v3323
      %v3652 = vpop.f32.mrb[0].mxu0
      %v3653 = vadd.f32 0.0, %v3652
      %v3654 = vpop.f32.mrb[0].mxu0
      %v3655 = vpop.f32.mrb[0].mxu0
      %v3656 = vadd.f32 0.0, %v3655
      %v3657 = vpop.f32.mrb[0].mxu0
      %3658 = vmatprep.mubr.bf16.mxu0 %v3332
      %3659 = vmatmul.mubr.bf16.gmra.mrb[0].mxu0 %v3331
      %v3660 = vpop.f32.mrb[0].mxu0
      %v3661 = vadd.f32 0.0, %v3660
      %v3662 = vpop.f32.mrb[0].mxu0
      %v3663 = vpop.f32.mrb[0].mxu0
      %v3664 = vadd.f32 0.0, %v3663
      %v3665 = vpop.f32.mrb[0].mxu0
      %3666 = vmatprep.mubr.bf16.mxu0 %v3340
      %3667 = vmatmul.mubr.bf16.gmra.mrb[0].mxu0 %v3339
      %v3668 = vpop.f32.mrb[0].mxu0
      %v3669 = vadd.f32 0.0, %v3668
      %v3670 = vpop.f32.mrb[0].mxu0
      %v3671 = vpop.f32.mrb[0].mxu0
      %v3672 = vadd.f32 0.0, %v3671
      %v3673 = vpop.f32.mrb[0].mxu0
      %3674 = vmatprep.mubr.bf16.mxu0 %v3348
      %3675 = vmatmul.mubr.bf16.gmra.mrb[0].mxu0 %v3347
      %v3676 = vpop.f32.mrb[0].mxu0
      %v3677 = vadd.f32 0.0, %v3676
      %v3678 = vpop.f32.mrb[0].mxu0
      %v3679 = vpop.f32.mrb[0].mxu0
      %v3680 = vadd.f32 0.0, %v3679
      %v3681 = vpop.f32.mrb[0].mxu0
      %3682 = vmatprep.mubr.bf16.mxu0 %v3356
      %3683 = vmatmul.mubr.bf16.gmra.mrb[0].mxu0 %v3355
      %v3684 = vpop.f32.mrb[0].mxu0
      %v3685 = vadd.f32 0.0, %v3684
      %v3686 = vpop.f32.mrb[0].mxu0
      %v3687 = vpop.f32.mrb[0].mxu0
      %v3688 = vadd.f32 0.0, %v3687
      %v3689 = vpop.f32.mrb[0].mxu0
      %3690 = vmatprep.mubr.bf16.mxu0 %v3364
      %3691 = vmatmul.mubr.bf16.gmra.mrb[0].mxu0 %v3363
      %v3692 = vpop.f32.mrb[0].mxu0
      %v3693 = vadd.f32 0.0, %v3692
      %v3694 = vpop.f32.mrb[0].mxu0
      %v3695 = vpop.f32.mrb[0].mxu0
      %v3696 = vadd.f32 0.0, %v3695
      %v3697 = vpop.f32.mrb[0].mxu0
      %3698 = vmatprep.mubr.bf16.mxu0 %v3372
      %3699 = vmatmul.mubr.bf16.gmra.mrb[0].mxu0 %v3371
      %v3700 = vpop.f32.mrb[0].mxu0
      %v3701 = vadd.f32 0.0, %v3700
      %v3702 = vpop.f32.mrb[0].mxu0
      %v3703 = vpop.f32.mrb[0].mxu0
      %v3704 = vadd.f32 0.0, %v3703
      %v3705 = vpop.f32.mrb[0].mxu0
      %3706 = vmatprep.mubr.bf16.mxu0 %v3380
      %3707 = vmatmul.mubr.bf16.gmra.mrb[0].mxu0 %v3379
      %v3708 = vpop.f32.mrb[0].mxu0
      %v3709 = vadd.f32 0.0, %v3708
      %v3710 = vpop.f32.mrb[0].mxu0
      %v3711 = vpop.f32.mrb[0].mxu0
      %v3712 = vadd.f32 0.0, %v3711
      %v3713 = vpop.f32.mrb[0].mxu0
      %3714 = vmatprep.mubr.bf16.mxu0 %v3388
      %3715 = vmatmul.mubr.bf16.gmra.mrb[0].mxu0 %v3387
      %v3716 = vpop.f32.mrb[0].mxu0
      %v3717 = vadd.f32 0.0, %v3716
      %v3718 = vpop.f32.mrb[0].mxu0
      %v3719 = vpop.f32.mrb[0].mxu0
      %v3720 = vadd.f32 0.0, %v3719
      %v3721 = vpop.f32.mrb[0].mxu0
      %3722 = vmatprep.mubr.bf16.mxu0 %v3396
      %3723 = vmatmul.mubr.bf16.gmra.mrb[0].mxu0 %v3395
      %v3724 = vpop.f32.mrb[0].mxu0
      %v3725 = vadd.f32 0.0, %v3724
      %v3726 = vpop.f32.mrb[0].mxu0
      %v3727 = vpop.f32.mrb[0].mxu0
      %v3728 = vadd.f32 0.0, %v3727
      %v3729 = vpop.f32.mrb[0].mxu0
      %3730 = vmatprep.mubr.bf16.mxu0 %v3404
      %3731 = vmatmul.mubr.bf16.gmra.mrb[0].mxu0 %v3403
      %v3732 = vpop.f32.mrb[0].mxu0
      %v3733 = vadd.f32 0.0, %v3732
      %v3734 = vpop.f32.mrb[0].mxu0
      %v3735 = vpop.f32.mrb[0].mxu0
      %v3736 = vadd.f32 0.0, %v3735
      %v3737 = vpop.f32.mrb[0].mxu0
      %3738 = vdwg.mxu0
      %3739 = vmatprep.subr.bf16.mxu0 0
      %3740 = vmatpush1.bf16.msra.mxu0 %v2853
      %3741 = vmatprep.subr.bf16.mxu0 0
      %3742 = vmatpush1.bf16.msra.mxu0 %v2854
      %3743 = vmatprep.subr.bf16.mxu0 0
      %3744 = vmatpush1.bf16.msra.mxu0 %v2855
      %3745 = vmatprep.subr.bf16.mxu0 0
      %3746 = vmatpush1.bf16.msra.mxu0 %v2856
      %3747 = vmatprep.subr.bf16.mxu0 0
      %3748 = vmatpush1.bf16.msra.mxu0 %v2857
      %3749 = vmatprep.subr.bf16.mxu0 0
      %3750 = vmatpush1.bf16.msra.mxu0 %v2858
      %3751 = vmatprep.subr.bf16.mxu0 0
      %3752 = vmatpush1.bf16.msra.mxu0 %v2859
      %3753 = vmatprep.subr.bf16.mxu0 0
      %3754 = vmatpush1.bf16.msra.mxu0 %v2860
      %3755 = vmatprep.subr.bf16.mxu0 0
      %3756 = vmatpush1.bf16.msra.mxu0 %v2861
      %3757 = vmatprep.subr.bf16.mxu0 0
      %3758 = vmatpush1.bf16.msra.mxu0 %v2862
      %3759 = vmatprep.subr.bf16.mxu0 0
      %3760 = vmatpush1.bf16.msra.mxu0 %v2863
      %3761 = vmatprep.subr.bf16.mxu0 0
      %3762 = vmatpush1.bf16.msra.mxu0 %v2864
      %3763 = vmatprep.subr.bf16.mxu0 0
      %3764 = vmatpush1.bf16.msra.mxu0 %v2865
      %3765 = vmatprep.subr.bf16.mxu0 0
      %3766 = vmatpush1.bf16.msra.mxu0 %v2866
      %3767 = vmatprep.subr.bf16.mxu0 0
      %3768 = vmatpush1.bf16.msra.mxu0 %v2867
      %3769 = vmatprep.subr.bf16.mxu0 0
      %3770 = vmatpush1.bf16.msra.mxu0 %v2868
      %3771 = vmatprep.mubr.bf16.mxu0 %v3286
      %3772 = vmatmul.mubr.bf16.gmra.mrb[0].mxu0 %v3285
      %v3773 = vpop.f32.mrb[0].mxu0
      %v3774 = vadd.f32 %v3613, %v3773
      %v3775 = vpop.f32.mrb[0].mxu0
      %v3776 = vpop.f32.mrb[0].mxu0
      %v3777 = vadd.f32 %v3616, %v3776
      %v3778 = vpop.f32.mrb[0].mxu0
      %3779 = vmatprep.mubr.bf16.mxu0 %v3294
      %3780 = vmatmul.mubr.bf16.gmra.mrb[0].mxu0 %v3293
      %v3781 = vpop.f32.mrb[0].mxu0
      %v3782 = vadd.f32 %v3621, %v3781
      %v3783 = vpop.f32.mrb[0].mxu0
      %v3784 = vpop.f32.mrb[0].mxu0
      %v3785 = vadd.f32 %v3624, %v3784
      %v3786 = vpop.f32.mrb[0].mxu0
      %3787 = vmatprep.mubr.bf16.mxu0 %v3302
      %3788 = vmatmul.mubr.bf16.gmra.mrb[0].mxu0 %v3301
      %v3789 = vpop.f32.mrb[0].mxu0
      %v3790 = vadd.f32 %v3629, %v3789
      %v3791 = vpop.f32.mrb[0].mxu0
      %v3792 = vpop.f32.mrb[0].mxu0
      %v3793 = vadd.f32 %v3632, %v3792
      %v3794 = vpop.f32.mrb[0].mxu0
      %3795 = vmatprep.mubr.bf16.mxu0 %v3310
      %3796 = vmatmul.mubr.bf16.gmra.mrb[0].mxu0 %v3309
      %v3797 = vpop.f32.mrb[0].mxu0
      %v3798 = vadd.f32 %v3637, %v3797
      %v3799 = vpop.f32.mrb[0].mxu0
      %v3800 = vpop.f32.mrb[0].mxu0
      %v3801 = vadd.f32 %v3640, %v3800
      %v3802 = vpop.f32.mrb[0].mxu0
      %3803 = vmatprep.mubr.bf16.mxu0 %v3318
      %3804 = vmatmul.mubr.bf16.gmra.mrb[0].mxu0 %v3317
      %v3805 = vpop.f32.mrb[0].mxu0
      %v3806 = vadd.f32 %v3645, %v3805
      %v3807 = vpop.f32.mrb[0].mxu0
      %v3808 = vpop.f32.mrb[0].mxu0
      %v3809 = vadd.f32 %v3648, %v3808
      %v3810 = vpop.f32.mrb[0].mxu0
      %3811 = vmatprep.mubr.bf16.mxu0 %v3326
      %3812 = vmatmul.mubr.bf16.gmra.mrb[0].mxu0 %v3325
      %v3813 = vpop.f32.mrb[0].mxu0
      %v3814 = vadd.f32 %v3653, %v3813
      %v3815 = vpop.f32.mrb[0].mxu0
      %v3816 = vpop.f32.mrb[0].mxu0
      %v3817 = vadd.f32 %v3656, %v3816
      %v3818 = vpop.f32.mrb[0].mxu0
      %3819 = vmatprep.mubr.bf16.mxu0 %v3334
      %3820 = vmatmul.mubr.bf16.gmra.mrb[0].mxu0 %v3333
      %v3821 = vpop.f32.mrb[0].mxu0
      %v3822 = vadd.f32 %v3661, %v3821
      %v3823 = vpop.f32.mrb[0].mxu0
      %v3824 = vpop.f32.mrb[0].mxu0
      %v3825 = vadd.f32 %v3664, %v3824
      %v3826 = vpop.f32.mrb[0].mxu0
      %3827 = vmatprep.mubr.bf16.mxu0 %v3342
      %3828 = vmatmul.mubr.bf16.gmra.mrb[0].mxu0 %v3341
      %v3829 = vpop.f32.mrb[0].mxu0
      %v3830 = vadd.f32 %v3669, %v3829
      %v3831 = vpop.f32.mrb[0].mxu0
      %v3832 = vpop.f32.mrb[0].mxu0
      %v3833 = vadd.f32 %v3672, %v3832
      %v3834 = vpop.f32.mrb[0].mxu0
      %3835 = vmatprep.mubr.bf16.mxu0 %v3350
      %3836 = vmatmul.mubr.bf16.gmra.mrb[0].mxu0 %v3349
      %v3837 = vpop.f32.mrb[0].mxu0
      %v3838 = vadd.f32 %v3677, %v3837
      %v3839 = vpop.f32.mrb[0].mxu0
      %v3840 = vpop.f32.mrb[0].mxu0
      %v3841 = vadd.f32 %v3680, %v3840
      %v3842 = vpop.f32.mrb[0].mxu0
      %3843 = vmatprep.mubr.bf16.mxu0 %v3358
      %3844 = vmatmul.mubr.bf16.gmra.mrb[0].mxu0 %v3357
      %v3845 = vpop.f32.mrb[0].mxu0
      %v3846 = vadd.f32 %v3685, %v3845
      %v3847 = vpop.f32.mrb[0].mxu0
      %v3848 = vpop.f32.mrb[0].mxu0
      %v3849 = vadd.f32 %v3688, %v3848
      %v3850 = vpop.f32.mrb[0].mxu0
      %3851 = vmatprep.mubr.bf16.mxu0 %v3366
      %3852 = vmatmul.mubr.bf16.gmra.mrb[0].mxu0 %v3365
      %v3853 = vpop.f32.mrb[0].mxu0
      %v3854 = vadd.f32 %v3693, %v3853
      %v3855 = vpop.f32.mrb[0].mxu0
      %v3856 = vpop.f32.mrb[0].mxu0
      %v3857 = vadd.f32 %v3696, %v3856
      %v3858 = vpop.f32.mrb[0].mxu0
      %3859 = vmatprep.mubr.bf16.mxu0 %v3374
      %3860 = vmatmul.mubr.bf16.gmra.mrb[0].mxu0 %v3373
      %v3861 = vpop.f32.mrb[0].mxu0
      %v3862 = vadd.f32 %v3701, %v3861
      %v3863 = vpop.f32.mrb[0].mxu0
      %v3864 = vpop.f32.mrb[0].mxu0
      %v3865 = vadd.f32 %v3704, %v3864
      %v3866 = vpop.f32.mrb[0].mxu0
      %3867 = vmatprep.mubr.bf16.mxu0 %v3382
      %3868 = vmatmul.mubr.bf16.gmra.mrb[0].mxu0 %v3381
      %v3869 = vpop.f32.mrb[0].mxu0
      %v3870 = vadd.f32 %v3709, %v3869
      %v3871 = vpop.f32.mrb[0].mxu0
      %v3872 = vpop.f32.mrb[0].mxu0
      %v3873 = vadd.f32 %v3712, %v3872
      %v3874 = vpop.f32.mrb[0].mxu0
      %3875 = vmatprep.mubr.bf16.mxu0 %v3390
      %3876 = vmatmul.mubr.bf16.gmra.mrb[0].mxu0 %v3389
      %v3877 = vpop.f32.mrb[0].mxu0
      %v3878 = vadd.f32 %v3717, %v3877
      %v3879 = vpop.f32.mrb[0].mxu0
      %v3880 = vpop.f32.mrb[0].mxu0
      %v3881 = vadd.f32 %v3720, %v3880
      %v3882 = vpop.f32.mrb[0].mxu0
      %3883 = vmatprep.mubr.bf16.mxu0 %v3398
      %3884 = vmatmul.mubr.bf16.gmra.mrb[0].mxu0 %v3397
      %v3885 = vpop.f32.mrb[0].mxu0
      %v3886 = vadd.f32 %v3725, %v3885
      %v3887 = vpop.f32.mrb[0].mxu0
      %v3888 = vpop.f32.mrb[0].mxu0
      %v3889 = vadd.f32 %v3728, %v3888
      %v3890 = vpop.f32.mrb[0].mxu0
      %3891 = vmatprep.mubr.bf16.mxu0 %v3406
      %3892 = vmatmul.mubr.bf16.gmra.mrb[0].mxu0 %v3405
      %v3893 = vpop.f32.mrb[0].mxu0
      %v3894 = vadd.f32 %v3733, %v3893
      %v3895 = vpop.f32.mrb[0].mxu0
      %v3896 = vpop.f32.mrb[0].mxu0
      %v3897 = vadd.f32 %v3736, %v3896
      %v3898 = vpop.f32.mrb[0].mxu0
      %3899 = vdwg.mxu0
      %3900 = vmatprep.subr.bf16.mxu0 0
      %3901 = vmatpush1.bf16.msra.mxu0 %v2869
      %3902 = vmatprep.subr.bf16.mxu0 0
      %3903 = vmatpush1.bf16.msra.mxu0 %v2870
      %3904 = vmatprep.subr.bf16.mxu0 0
      %3905 = vmatpush1.bf16.msra.mxu0 %v2871
      %3906 = vmatprep.subr.bf16.mxu0 0
      %3907 = vmatpush1.bf16.msra.mxu0 %v2872
      %3908 = vmatprep.subr.bf16.mxu0 0
      %3909 = vmatpush1.bf16.msra.mxu0 %v2873
      %3910 = vmatprep.subr.bf16.mxu0 0
      %3911 = vmatpush1.bf16.msra.mxu0 %v2874
      %3912 = vmatprep.subr.bf16.mxu0 0
      %3913 = vmatpush1.bf16.msra.mxu0 %v2875
      %3914 = vmatprep.subr.bf16.mxu0 0
      %3915 = vmatpush1.bf16.msra.mxu0 %v2876
      %3916 = vmatprep.subr.bf16.mxu0 0
      %3917 = vmatpush1.bf16.msra.mxu0 %v2877
      %3918 = vmatprep.subr.bf16.mxu0 0
      %3919 = vmatpush1.bf16.msra.mxu0 %v2878
      %3920 = vmatprep.subr.bf16.mxu0 0
      %3921 = vmatpush1.bf16.msra.mxu0 %v2879
      %3922 = vmatprep.subr.bf16.mxu0 0
      %3923 = vmatpush1.bf16.msra.mxu0 %v2880
      %3924 = vmatprep.subr.bf16.mxu0 0
      %3925 = vmatpush1.bf16.msra.mxu0 %v2881
      %3926 = vmatprep.subr.bf16.mxu0 0
      %3927 = vmatpush1.bf16.msra.mxu0 %v2882
      %3928 = vmatprep.subr.bf16.mxu0 0
      %3929 = vmatpush1.bf16.msra.mxu0 %v2883
      %3930 = vmatprep.subr.bf16.mxu0 0
      %3931 = vmatpush1.bf16.msra.mxu0 %v2884
      %3932 = vmatprep.mubr.bf16.mxu0 %v3288
      %3933 = vmatmul.mubr.bf16.gmra.mrb[0].mxu0 %v3287
      %v3934 = vpop.f32.mrb[0].mxu0
      %v3935 = vadd.f32 %v3774, %v3934
      %v3936 = vpop.f32.mrb[0].mxu0
      %v3937 = vpop.f32.mrb[0].mxu0
      %v3938 = vadd.f32 %v3777, %v3937
      %v3939 = vpop.f32.mrb[0].mxu0
      %3940 = vmatprep.mubr.bf16.mxu0 %v3296
      %3941 = vmatmul.mubr.bf16.gmra.mrb[0].mxu0 %v3295
      %v3942 = vpop.f32.mrb[0].mxu0
      %v3943 = vadd.f32 %v3782, %v3942
      %v3944 = vpop.f32.mrb[0].mxu0
      %v3945 = vpop.f32.mrb[0].mxu0
      %v3946 = vadd.f32 %v3785, %v3945
      %v3947 = vpop.f32.mrb[0].mxu0
      %3948 = vmatprep.mubr.bf16.mxu0 %v3304
      %3949 = vmatmul.mubr.bf16.gmra.mrb[0].mxu0 %v3303
      %v3950 = vpop.f32.mrb[0].mxu0
      %v3951 = vadd.f32 %v3790, %v3950
      %v3952 = vpop.f32.mrb[0].mxu0
      %v3953 = vpop.f32.mrb[0].mxu0
      %v3954 = vadd.f32 %v3793, %v3953
      %v3955 = vpop.f32.mrb[0].mxu0
      %3956 = vmatprep.mubr.bf16.mxu0 %v3312
      %3957 = vmatmul.mubr.bf16.gmra.mrb[0].mxu0 %v3311
      %v3958 = vpop.f32.mrb[0].mxu0
      %v3959 = vadd.f32 %v3798, %v3958
      %v3960 = vpop.f32.mrb[0].mxu0
      %v3961 = vpop.f32.mrb[0].mxu0
      %v3962 = vadd.f32 %v3801, %v3961
      %v3963 = vpop.f32.mrb[0].mxu0
      %3964 = vmatprep.mubr.bf16.mxu0 %v3320
      %3965 = vmatmul.mubr.bf16.gmra.mrb[0].mxu0 %v3319
      %v3966 = vpop.f32.mrb[0].mxu0
      %v3967 = vadd.f32 %v3806, %v3966
      %v3968 = vpop.f32.mrb[0].mxu0
      %v3969 = vpop.f32.mrb[0].mxu0
      %v3970 = vadd.f32 %v3809, %v3969
      %v3971 = vpop.f32.mrb[0].mxu0
      %3972 = vmatprep.mubr.bf16.mxu0 %v3328
      %3973 = vmatmul.mubr.bf16.gmra.mrb[0].mxu0 %v3327
      %v3974 = vpop.f32.mrb[0].mxu0
      %v3975 = vadd.f32 %v3814, %v3974
      %v3976 = vpop.f32.mrb[0].mxu0
      %v3977 = vpop.f32.mrb[0].mxu0
      %v3978 = vadd.f32 %v3817, %v3977
      %v3979 = vpop.f32.mrb[0].mxu0
      %3980 = vmatprep.mubr.bf16.mxu0 %v3336
      %3981 = vmatmul.mubr.bf16.gmra.mrb[0].mxu0 %v3335
      %v3982 = vpop.f32.mrb[0].mxu0
      %v3983 = vadd.f32 %v3822, %v3982
      %v3984 = vpop.f32.mrb[0].mxu0
      %v3985 = vpop.f32.mrb[0].mxu0
      %v3986 = vadd.f32 %v3825, %v3985
      %v3987 = vpop.f32.mrb[0].mxu0
      %3988 = vmatprep.mubr.bf16.mxu0 %v3344
      %3989 = vmatmul.mubr.bf16.gmra.mrb[0].mxu0 %v3343
      %v3990 = vpop.f32.mrb[0].mxu0
      %v3991 = vadd.f32 %v3830, %v3990
      %v3992 = vpop.f32.mrb[0].mxu0
      %v3993 = vpop.f32.mrb[0].mxu0
      %v3994 = vadd.f32 %v3833, %v3993
      %v3995 = vpop.f32.mrb[0].mxu0
      %3996 = vmatprep.mubr.bf16.mxu0 %v3352
      %3997 = vmatmul.mubr.bf16.gmra.mrb[0].mxu0 %v3351
      %v3998 = vpop.f32.mrb[0].mxu0
      %v3999 = vadd.f32 %v3838, %v3998
      %v4000 = vpop.f32.mrb[0].mxu0
      %v4001 = vpop.f32.mrb[0].mxu0
      %v4002 = vadd.f32 %v3841, %v4001
      %v4003 = vpop.f32.mrb[0].mxu0
      %4004 = vmatprep.mubr.bf16.mxu0 %v3360
      %4005 = vmatmul.mubr.bf16.gmra.mrb[0].mxu0 %v3359
      %v4006 = vpop.f32.mrb[0].mxu0
      %v4007 = vadd.f32 %v3846, %v4006
      %v4008 = vpop.f32.mrb[0].mxu0
      %v4009 = vpop.f32.mrb[0].mxu0
      %v4010 = vadd.f32 %v3849, %v4009
      %v4011 = vpop.f32.mrb[0].mxu0
      %4012 = vmatprep.mubr.bf16.mxu0 %v3368
      %4013 = vmatmul.mubr.bf16.gmra.mrb[0].mxu0 %v3367
      %v4014 = vpop.f32.mrb[0].mxu0
      %v4015 = vadd.f32 %v3854, %v4014
      %v4016 = vpop.f32.mrb[0].mxu0
      %v4017 = vpop.f32.mrb[0].mxu0
      %v4018 = vadd.f32 %v3857, %v4017
      %v4019 = vpop.f32.mrb[0].mxu0
      %4020 = vmatprep.mubr.bf16.mxu0 %v3376
      %4021 = vmatmul.mubr.bf16.gmra.mrb[0].mxu0 %v3375
      %v4022 = vpop.f32.mrb[0].mxu0
      %v4023 = vadd.f32 %v3862, %v4022
      %v4024 = vpop.f32.mrb[0].mxu0
      %v4025 = vpop.f32.mrb[0].mxu0
      %v4026 = vadd.f32 %v3865, %v4025
      %v4027 = vpop.f32.mrb[0].mxu0
      %4028 = vmatprep.mubr.bf16.mxu0 %v3384
      %4029 = vmatmul.mubr.bf16.gmra.mrb[0].mxu0 %v3383
      %v4030 = vpop.f32.mrb[0].mxu0
      %v4031 = vadd.f32 %v3870, %v4030
      %v4032 = vpop.f32.mrb[0].mxu0
      %v4033 = vpop.f32.mrb[0].mxu0
      %v4034 = vadd.f32 %v3873, %v4033
      %v4035 = vpop.f32.mrb[0].mxu0
      %4036 = vmatprep.mubr.bf16.mxu0 %v3392
      %4037 = vmatmul.mubr.bf16.gmra.mrb[0].mxu0 %v3391
      %v4038 = vpop.f32.mrb[0].mxu0
      %v4039 = vadd.f32 %v3878, %v4038
      %v4040 = vpop.f32.mrb[0].mxu0
      %v4041 = vpop.f32.mrb[0].mxu0
      %v4042 = vadd.f32 %v3881, %v4041
      %v4043 = vpop.f32.mrb[0].mxu0
      %4044 = vmatprep.mubr.bf16.mxu0 %v3400
      %4045 = vmatmul.mubr.bf16.gmra.mrb[0].mxu0 %v3399
      %v4046 = vpop.f32.mrb[0].mxu0
      %v4047 = vadd.f32 %v3886, %v4046
      %v4048 = vpop.f32.mrb[0].mxu0
      %v4049 = vpop.f32.mrb[0].mxu0
      %v4050 = vadd.f32 %v3889, %v4049
      %v4051 = vpop.f32.mrb[0].mxu0
      %4052 = vmatprep.mubr.bf16.mxu0 %v3408
      %4053 = vmatmul.mubr.bf16.gmra.mrb[0].mxu0 %v3407
      %v4054 = vpop.f32.mrb[0].mxu0
      %v4055 = vadd.f32 %v3894, %v4054
      %v4056 = vpop.f32.mrb[0].mxu0
      %v4057 = vpop.f32.mrb[0].mxu0
      %v4058 = vadd.f32 %v3897, %v4057
      %v4059 = vpop.f32.mrb[0].mxu0
      %4060 = vdwg.mxu0
      %4061 = vmatprep.subr.bf16.mxu0 0
      %4062 = vmatpush1.bf16.msra.mxu0 %v2885
      %4063 = vmatprep.subr.bf16.mxu0 0
      %4064 = vmatpush1.bf16.msra.mxu0 %v2886
      %4065 = vmatprep.subr.bf16.mxu0 0
      %4066 = vmatpush1.bf16.msra.mxu0 %v2887
      %4067 = vmatprep.subr.bf16.mxu0 0
      %4068 = vmatpush1.bf16.msra.mxu0 %v2888
      %4069 = vmatprep.subr.bf16.mxu0 0
      %4070 = vmatpush1.bf16.msra.mxu0 %v2889
      %4071 = vmatprep.subr.bf16.mxu0 0
      %4072 = vmatpush1.bf16.msra.mxu0 %v2890
      %4073 = vmatprep.subr.bf16.mxu0 0
      %4074 = vmatpush1.bf16.msra.mxu0 %v2891
      %4075 = vmatprep.subr.bf16.mxu0 0
      %4076 = vmatpush1.bf16.msra.mxu0 %v2892
      %4077 = vmatprep.subr.bf16.mxu0 0
      %4078 = vmatpush1.bf16.msra.mxu0 %v2893
      %4079 = vmatprep.subr.bf16.mxu0 0
      %4080 = vmatpush1.bf16.msra.mxu0 %v2894
      %4081 = vmatprep.subr.bf16.mxu0 0
      %4082 = vmatpush1.bf16.msra.mxu0 %v2895
      %4083 = vmatprep.subr.bf16.mxu0 0
      %4084 = vmatpush1.bf16.msra.mxu0 %v2896
      %4085 = vmatprep.subr.bf16.mxu0 0
      %4086 = vmatpush1.bf16.msra.mxu0 %v2897
      %4087 = vmatprep.subr.bf16.mxu0 0
      %4088 = vmatpush1.bf16.msra.mxu0 %v3576
      %4089 = vmatprep.subr.bf16.mxu0 0
      %4090 = vmatpush1.bf16.msra.mxu0 0
      %4091 = vmatprep.subr.bf16.mxu0 0
      %4092 = vmatpush1.bf16.msra.mxu0 0
      %4093 = vmatprep.mubr.bf16.mxu0 %v3525
      %4094 = vmatmul.mubr.bf16.gmra.mrb[0].mxu0 %v3289
      %v4095 = vpop.f32.mrb[0].mxu0
      %v4096 = vadd.f32 %v3935, %v4095
      %v4097 = vpop.f32.mrb[0].mxu0
      %v4098 = vpop.f32.mrb[0].mxu0
      %v4099 = vadd.f32 %v3938, %v4098
      %v4100 = vpop.f32.mrb[0].mxu0
      %4101 = vmatprep.mubr.bf16.mxu0 %v3528
      %4102 = vmatmul.mubr.bf16.gmra.mrb[0].mxu0 %v3297
      %v4103 = vpop.f32.mrb[0].mxu0
      %v4104 = vadd.f32 %v3943, %v4103
      %v4105 = vpop.f32.mrb[0].mxu0
      %v4106 = vpop.f32.mrb[0].mxu0
      %v4107 = vadd.f32 %v3946, %v4106
      %v4108 = vpop.f32.mrb[0].mxu0
      %4109 = vmatprep.mubr.bf16.mxu0 %v3531
      %4110 = vmatmul.mubr.bf16.gmra.mrb[0].mxu0 %v3305
      %v4111 = vpop.f32.mrb[0].mxu0
      %v4112 = vadd.f32 %v3951, %v4111
      %v4113 = vpop.f32.mrb[0].mxu0
      %v4114 = vpop.f32.mrb[0].mxu0
      %v4115 = vadd.f32 %v3954, %v4114
      %v4116 = vpop.f32.mrb[0].mxu0
      %4117 = vmatprep.mubr.bf16.mxu0 %v3534
      %4118 = vmatmul.mubr.bf16.gmra.mrb[0].mxu0 %v3313
      %v4119 = vpop.f32.mrb[0].mxu0
      %v4120 = vadd.f32 %v3959, %v4119
      %v4121 = vpop.f32.mrb[0].mxu0
      %v4122 = vpop.f32.mrb[0].mxu0
      %v4123 = vadd.f32 %v3962, %v4122
      %v4124 = vpop.f32.mrb[0].mxu0
      %4125 = vmatprep.mubr.bf16.mxu0 %v3537
      %4126 = vmatmul.mubr.bf16.gmra.mrb[0].mxu0 %v3321
      %v4127 = vpop.f32.mrb[0].mxu0
      %v4128 = vadd.f32 %v3967, %v4127
      %v4129 = vpop.f32.mrb[0].mxu0
      %v4130 = vpop.f32.mrb[0].mxu0
      %v4131 = vadd.f32 %v3970, %v4130
      %v4132 = vpop.f32.mrb[0].mxu0
      %4133 = vmatprep.mubr.bf16.mxu0 %v3540
      %4134 = vmatmul.mubr.bf16.gmra.mrb[0].mxu0 %v3329
      %v4135 = vpop.f32.mrb[0].mxu0
      %v4136 = vadd.f32 %v3975, %v4135
      %v4137 = vpop.f32.mrb[0].mxu0
      %v4138 = vpop.f32.mrb[0].mxu0
      %v4139 = vadd.f32 %v3978, %v4138
      %v4140 = vpop.f32.mrb[0].mxu0
      %4141 = vmatprep.mubr.bf16.mxu0 %v3543
      %4142 = vmatmul.mubr.bf16.gmra.mrb[0].mxu0 %v3337
      %v4143 = vpop.f32.mrb[0].mxu0
      %v4144 = vadd.f32 %v3983, %v4143
      %v4145 = vpop.f32.mrb[0].mxu0
      %v4146 = vpop.f32.mrb[0].mxu0
      %v4147 = vadd.f32 %v3986, %v4146
      %v4148 = vpop.f32.mrb[0].mxu0
      %4149 = vmatprep.mubr.bf16.mxu0 %v3546
      %4150 = vmatmul.mubr.bf16.gmra.mrb[0].mxu0 %v3345
      %v4151 = vpop.f32.mrb[0].mxu0
      %v4152 = vadd.f32 %v3991, %v4151
      %v4153 = vpop.f32.mrb[0].mxu0
      %v4154 = vpop.f32.mrb[0].mxu0
      %v4155 = vadd.f32 %v3994, %v4154
      %v4156 = vpop.f32.mrb[0].mxu0
      %4157 = vmatprep.mubr.bf16.mxu0 %v3549
      %4158 = vmatmul.mubr.bf16.gmra.mrb[0].mxu0 %v3353
      %v4159 = vpop.f32.mrb[0].mxu0
      %v4160 = vadd.f32 %v3999, %v4159
      %v4161 = vpop.f32.mrb[0].mxu0
      %v4162 = vpop.f32.mrb[0].mxu0
      %v4163 = vadd.f32 %v4002, %v4162
      %v4164 = vpop.f32.mrb[0].mxu0
      %4165 = vmatprep.mubr.bf16.mxu0 %v3552
      %4166 = vmatmul.mubr.bf16.gmra.mrb[0].mxu0 %v3361
      %v4167 = vpop.f32.mrb[0].mxu0
      %v4168 = vadd.f32 %v4007, %v4167
      %v4169 = vpop.f32.mrb[0].mxu0
      %v4170 = vpop.f32.mrb[0].mxu0
      %v4171 = vadd.f32 %v4010, %v4170
      %v4172 = vpop.f32.mrb[0].mxu0
      %4173 = vmatprep.mubr.bf16.mxu0 %v3555
      %4174 = vmatmul.mubr.bf16.gmra.mrb[0].mxu0 %v3369
      %v4175 = vpop.f32.mrb[0].mxu0
      %v4176 = vadd.f32 %v4015, %v4175
      %v4177 = vpop.f32.mrb[0].mxu0
      %v4178 = vpop.f32.mrb[0].mxu0
      %v4179 = vadd.f32 %v4018, %v4178
      %v4180 = vpop.f32.mrb[0].mxu0
      %4181 = vmatprep.mubr.bf16.mxu0 %v3558
      %4182 = vmatmul.mubr.bf16.gmra.mrb[0].mxu0 %v3377
      %v4183 = vpop.f32.mrb[0].mxu0
      %v4184 = vadd.f32 %v4023, %v4183
      %v4185 = vpop.f32.mrb[0].mxu0
      %v4186 = vpop.f32.mrb[0].mxu0
      %v4187 = vadd.f32 %v4026, %v4186
      %v4188 = vpop.f32.mrb[0].mxu0
      %4189 = vmatprep.mubr.bf16.mxu0 %v3561
      %4190 = vmatmul.mubr.bf16.gmra.mrb[0].mxu0 %v3385
      %v4191 = vpop.f32.mrb[0].mxu0
      %v4192 = vadd.f32 %v4031, %v4191
      %v4193 = vpop.f32.mrb[0].mxu0
      %v4194 = vpop.f32.mrb[0].mxu0
      %v4195 = vadd.f32 %v4034, %v4194
      %v4196 = vpop.f32.mrb[0].mxu0
      %4197 = vmatprep.mubr.bf16.mxu0 %v3564
      %4198 = vmatmul.mubr.bf16.gmra.mrb[0].mxu0 %v3393
      %v4199 = vpop.f32.mrb[0].mxu0
      %v4200 = vadd.f32 %v4039, %v4199
      %v4201 = vpop.f32.mrb[0].mxu0
      %v4202 = vpop.f32.mrb[0].mxu0
      %v4203 = vadd.f32 %v4042, %v4202
      %v4204 = vpop.f32.mrb[0].mxu0
      %4205 = vmatprep.mubr.bf16.mxu0 %v3567
      %4206 = vmatmul.mubr.bf16.gmra.mrb[0].mxu0 %v3401
      %v4207 = vpop.f32.mrb[0].mxu0
      %v4208 = vadd.f32 %v4047, %v4207
      %v4209 = vpop.f32.mrb[0].mxu0
      %v4210 = vpop.f32.mrb[0].mxu0
      %v4211 = vadd.f32 %v4050, %v4210
      %v4212 = vpop.f32.mrb[0].mxu0
      %4213 = vmatprep.mubr.bf16.mxu0 %v3570
      %4214 = vmatmul.mubr.bf16.gmra.mrb[0].mxu0 %v3409
      %v4215 = vpop.f32.mrb[0].mxu0
      %v4216 = vadd.f32 %v4055, %v4215
      %v4217 = vpop.f32.mrb[0].mxu0
      %v4218 = vpop.f32.mrb[0].mxu0
      %v4219 = vadd.f32 %v4058, %v4218
      %v4220 = vpop.f32.mrb[0].mxu0
      %4221 = vdwg.mxu0
      %v4222 = vpack.c.bf16 %v4099, %v4096
      %v4223 = vpack.c.bf16 %v4107, %v4104
      %v4224 = vpack.c.bf16 %v4115, %v4112
      %v4225 = vpack.c.bf16 %v4123, %v4120
      %v4226 = vpack.c.bf16 %v4131, %v4128
      %v4227 = vpack.c.bf16 %v4139, %v4136
      %v4228 = vpack.c.bf16 %v4147, %v4144
      %v4229 = vpack.c.bf16 %v4155, %v4152
      %v4230 = vpack.c.bf16 %v4163, %v4160
      %v4231 = vpack.c.bf16 %v4171, %v4168
      %v4232 = vpack.c.bf16 %v4179, %v4176
      %v4233 = vpack.c.bf16 %v4187, %v4184
      %v4234 = vpack.c.bf16 %v4195, %v4192
      %v4235 = vpack.c.bf16 %v4203, %v4200
      %v4236 = vpack.c.bf16 %v4211, %v4208
      %v4237 = vpack.c.bf16 %v4219, %v4216
      %v4255 = vrot.slane 0, 7
      %v4256 = vrot.slane %v4222, 7
      %v4257 = vrot.slane %v4223, 7
      %v4258 = vrot.slane %v4224, 7
      %v4259 = vrot.slane %v4225, 7
      %v4260 = vrot.slane %v4226, 7
      %v4261 = vrot.slane %v4227, 7
      %v4262 = vrot.slane %v4228, 7
      %v4263 = vrot.slane %v4229, 7
      %v4264 = vrot.slane %v4230, 7
      %v4265 = vrot.slane %v4231, 7
      %v4266 = vrot.slane %v4232, 7
      %v4267 = vrot.slane %v4233, 7
      %v4268 = vrot.slane %v4234, 7
      %v4269 = vrot.slane %v4235, 7
      %v4270 = vrot.slane %v4236, 7
      %v4271 = vrot.slane %v4237, 7
      %vm4272 = vcmask 1040384
      %v4275 = vsel %vm4272, 0, %v4255
      %v4277 = vsel %vm4272, 0, %v4256
      %v4279 = vsel %vm4272, 0, %v4257
      %v4281 = vsel %vm4272, 0, %v4258
      %v4283 = vsel %vm4272, 0, %v4259
      %v4285 = vsel %vm4272, 0, %v4260
      %v4287 = vsel %vm4272, 0, %v4261
      %v4289 = vsel %vm4272, 0, %v4262
      %v4291 = vsel %vm4272, 0, %v4263
      %v4293 = vsel %vm4272, 0, %v4264
      %v4295 = vsel %vm4272, 0, %v4265
      %v4297 = vsel %vm4272, 0, %v4266
      %v4299 = vsel %vm4272, 0, %v4267
      %v4301 = vsel %vm4272, 0, %v4268
      %v4303 = vsel %vm4272, 0, %v4269
      %v4305 = vsel %vm4272, 0, %v4270
      %v4307 = vsel %vm4272, 0, %v4271
      %v4308 = vsel %vm4272, %v4255, 0
      %v4309 = vsel %vm4272, %v4256, 0
      %v4310 = vsel %vm4272, %v4257, 0
      %v4311 = vsel %vm4272, %v4258, 0
      %v4312 = vsel %vm4272, %v4259, 0
      %v4313 = vsel %vm4272, %v4260, 0
      %v4314 = vsel %vm4272, %v4261, 0
      %v4315 = vsel %vm4272, %v4262, 0
      %v4316 = vsel %vm4272, %v4263, 0
      %v4317 = vsel %vm4272, %v4264, 0
      %v4318 = vsel %vm4272, %v4265, 0
      %v4319 = vsel %vm4272, %v4266, 0
      %v4320 = vsel %vm4272, %v4267, 0
      %v4321 = vsel %vm4272, %v4268, 0
      %v4322 = vsel %vm4272, %v4269, 0
      %v4323 = vsel %vm4272, %v4270, 0
      %v4324 = vsel %vm4272, %v4271, 0
      %vm4325 = vsmask.f32 7424
      %v4326 = vshrl.u32 %v4275, 16
      %v4328 = vshll.u32 %v4275, 16
      %v4330 = vrot.slane %v4328, 1
      %v4331 = vor.u32 %v4326, %v4330
      %v4332 = vshll.u32 %v4308, 16
      %v4334 = vrot.slane %v4332, 1
      %v4335 = vsel %vm4325, %v4331, %v4334
      %v4336 = vshrl.u32 %v4277, 16
      %v4338 = vshll.u32 %v4277, 16
      %v4340 = vrot.slane %v4338, 1
      %v4341 = vor.u32 %v4336, %v4340
      %v4342 = vshll.u32 %v4309, 16
      %v4344 = vrot.slane %v4342, 1
      %v4345 = vsel %vm4325, %v4341, %v4344
      %v4346 = vshrl.u32 %v4279, 16
      %v4348 = vshll.u32 %v4279, 16
      %v4350 = vrot.slane %v4348, 1
      %v4351 = vor.u32 %v4346, %v4350
      %v4352 = vshll.u32 %v4310, 16
      %v4354 = vrot.slane %v4352, 1
      %v4355 = vsel %vm4325, %v4351, %v4354
      %v4356 = vshrl.u32 %v4281, 16
      %v4358 = vshll.u32 %v4281, 16
      %v4360 = vrot.slane %v4358, 1
      %v4361 = vor.u32 %v4356, %v4360
      %v4362 = vshll.u32 %v4311, 16
      %v4364 = vrot.slane %v4362, 1
      %v4365 = vsel %vm4325, %v4361, %v4364
      %v4366 = vshrl.u32 %v4283, 16
      %v4368 = vshll.u32 %v4283, 16
      %v4370 = vrot.slane %v4368, 1
      %v4371 = vor.u32 %v4366, %v4370
      %v4372 = vshll.u32 %v4312, 16
      %v4374 = vrot.slane %v4372, 1
      %v4375 = vsel %vm4325, %v4371, %v4374
      %v4376 = vshrl.u32 %v4285, 16
      %v4378 = vshll.u32 %v4285, 16
      %v4380 = vrot.slane %v4378, 1
      %v4381 = vor.u32 %v4376, %v4380
      %v4382 = vshll.u32 %v4313, 16
      %v4384 = vrot.slane %v4382, 1
      %v4385 = vsel %vm4325, %v4381, %v4384
      %v4386 = vshrl.u32 %v4287, 16
      %v4388 = vshll.u32 %v4287, 16
      %v4390 = vrot.slane %v4388, 1
      %v4391 = vor.u32 %v4386, %v4390
      %v4392 = vshll.u32 %v4314, 16
      %v4394 = vrot.slane %v4392, 1
      %v4395 = vsel %vm4325, %v4391, %v4394
      %v4396 = vshrl.u32 %v4289, 16
      %v4398 = vshll.u32 %v4289, 16
      %v4400 = vrot.slane %v4398, 1
      %v4401 = vor.u32 %v4396, %v4400
      %v4402 = vshll.u32 %v4315, 16
      %v4404 = vrot.slane %v4402, 1
      %v4405 = vsel %vm4325, %v4401, %v4404
      %v4406 = vshrl.u32 %v4291, 16
      %v4408 = vshll.u32 %v4291, 16
      %v4410 = vrot.slane %v4408, 1
      %v4411 = vor.u32 %v4406, %v4410
      %v4412 = vshll.u32 %v4316, 16
      %v4414 = vrot.slane %v4412, 1
      %v4415 = vsel %vm4325, %v4411, %v4414
      %v4416 = vshrl.u32 %v4293, 16
      %v4418 = vshll.u32 %v4293, 16
      %v4420 = vrot.slane %v4418, 1
      %v4421 = vor.u32 %v4416, %v4420
      %v4422 = vshll.u32 %v4317, 16
      %v4424 = vrot.slane %v4422, 1
      %v4425 = vsel %vm4325, %v4421, %v4424
      %v4426 = vshrl.u32 %v4295, 16
      %v4428 = vshll.u32 %v4295, 16
      %v4430 = vrot.slane %v4428, 1
      %v4431 = vor.u32 %v4426, %v4430
      %v4432 = vshll.u32 %v4318, 16
      %v4434 = vrot.slane %v4432, 1
      %v4435 = vsel %vm4325, %v4431, %v4434
      %v4436 = vshrl.u32 %v4297, 16
      %v4438 = vshll.u32 %v4297, 16
      %v4440 = vrot.slane %v4438, 1
      %v4441 = vor.u32 %v4436, %v4440
      %v4442 = vshll.u32 %v4319, 16
      %v4444 = vrot.slane %v4442, 1
      %v4445 = vsel %vm4325, %v4441, %v4444
      %v4446 = vshrl.u32 %v4299, 16
      %v4448 = vshll.u32 %v4299, 16
      %v4450 = vrot.slane %v4448, 1
      %v4451 = vor.u32 %v4446, %v4450
      %v4452 = vshll.u32 %v4320, 16
      %v4454 = vrot.slane %v4452, 1
      %v4455 = vsel %vm4325, %v4451, %v4454
      %v4456 = vshrl.u32 %v4301, 16
      %v4458 = vshll.u32 %v4301, 16
      %v4460 = vrot.slane %v4458, 1
      %v4461 = vor.u32 %v4456, %v4460
      %v4462 = vshll.u32 %v4321, 16
      %v4464 = vrot.slane %v4462, 1
      %v4465 = vsel %vm4325, %v4461, %v4464
      %v4466 = vshrl.u32 %v4303, 16
      %v4468 = vshll.u32 %v4303, 16
      %v4470 = vrot.slane %v4468, 1
      %v4471 = vor.u32 %v4466, %v4470
      %v4472 = vshll.u32 %v4322, 16
      %v4474 = vrot.slane %v4472, 1
      %v4475 = vsel %vm4325, %v4471, %v4474
      %v4476 = vshrl.u32 %v4305, 16
      %v4478 = vshll.u32 %v4305, 16
      %v4480 = vrot.slane %v4478, 1
      %v4481 = vor.u32 %v4476, %v4480
      %v4482 = vshll.u32 %v4323, 16
      %v4484 = vrot.slane %v4482, 1
      %v4485 = vsel %vm4325, %v4481, %v4484
      %v4486 = vshrl.u32 %v4307, 16
      %v4488 = vshll.u32 %v4307, 16
      %v4490 = vrot.slane %v4488, 1
      %v4491 = vor.u32 %v4486, %v4490
      %v4492 = vshll.u32 %v4324, 16
      %v4494 = vrot.slane %v4492, 1
      %v4495 = vsel %vm4325, %v4491, %v4494
      %4496 = vrot.lane.b32.xlu0 %v4335, 32
      %v4497 = vpop.permute.xlu0 %4496
      %4498 = vrot.lane.b32.xlu0 %v4345, 32
      %v4499 = vpop.permute.xlu0 %4498
      %4500 = vrot.lane.b32.xlu0 %v4355, 32
      %v4501 = vpop.permute.xlu0 %4500
      %4502 = vrot.lane.b32.xlu0 %v4365, 32
      %v4503 = vpop.permute.xlu0 %4502
      %4504 = vrot.lane.b32.xlu0 %v4375, 32
      %v4505 = vpop.permute.xlu0 %4504
      %4506 = vrot.lane.b32.xlu0 %v4385, 32
      %v4507 = vpop.permute.xlu0 %4506
      %4508 = vrot.lane.b32.xlu0 %v4395, 32
      %v4509 = vpop.permute.xlu0 %4508
      %4510 = vrot.lane.b32.xlu0 %v4405, 32
      %v4511 = vpop.permute.xlu0 %4510
      %4512 = vrot.lane.b32.xlu0 %v4415, 32
      %v4513 = vpop.permute.xlu0 %4512
      %4514 = vrot.lane.b32.xlu0 %v4425, 32
      %v4515 = vpop.permute.xlu0 %4514
      %4516 = vrot.lane.b32.xlu0 %v4435, 32
      %v4517 = vpop.permute.xlu0 %4516
      %4518 = vrot.lane.b32.xlu0 %v4445, 32
      %v4519 = vpop.permute.xlu0 %4518
      %4520 = vrot.lane.b32.xlu0 %v4455, 32
      %v4521 = vpop.permute.xlu0 %4520
      %4522 = vrot.lane.b32.xlu0 %v4465, 32
      %v4523 = vpop.permute.xlu0 %4522
      %4524 = vrot.lane.b32.xlu0 %v4475, 32
      %v4525 = vpop.permute.xlu0 %4524
      %4526 = vrot.lane.b32.xlu0 %v4485, 32
      %v4527 = vpop.permute.xlu0 %4526
      %4528 = vrot.lane.b32.xlu0 %v4495, 32
      %v4529 = vpop.permute.xlu0 %4528
      %vm4564 = vcmask 1046528
      %v4565 = vrot.slane %v4275, 1
      %v4566 = vrot.slane %v4308, 1
      %v4567 = vsel %vm4564, %v4565, %v4566
      %v4568 = vrot.slane %v4277, 1
      %v4569 = vrot.slane %v4309, 1
      %v4570 = vsel %vm4564, %v4568, %v4569
      %v4571 = vrot.slane %v4279, 1
      %v4572 = vrot.slane %v4310, 1
      %v4573 = vsel %vm4564, %v4571, %v4572
      %v4574 = vrot.slane %v4281, 1
      %v4575 = vrot.slane %v4311, 1
      %v4576 = vsel %vm4564, %v4574, %v4575
      %v4577 = vrot.slane %v4283, 1
      %v4578 = vrot.slane %v4312, 1
      %v4579 = vsel %vm4564, %v4577, %v4578
      %v4580 = vrot.slane %v4285, 1
      %v4581 = vrot.slane %v4313, 1
      %v4582 = vsel %vm4564, %v4580, %v4581
      %v4583 = vrot.slane %v4287, 1
      %v4584 = vrot.slane %v4314, 1
      %v4585 = vsel %vm4564, %v4583, %v4584
      %v4586 = vrot.slane %v4289, 1
      %v4587 = vrot.slane %v4315, 1
      %v4588 = vsel %vm4564, %v4586, %v4587
      %v4589 = vrot.slane %v4291, 1
      %v4590 = vrot.slane %v4316, 1
      %v4591 = vsel %vm4564, %v4589, %v4590
      %v4592 = vrot.slane %v4293, 1
      %v4593 = vrot.slane %v4317, 1
      %v4594 = vsel %vm4564, %v4592, %v4593
      %v4595 = vrot.slane %v4295, 1
      %v4596 = vrot.slane %v4318, 1
      %v4597 = vsel %vm4564, %v4595, %v4596
      %v4598 = vrot.slane %v4297, 1
      %v4599 = vrot.slane %v4319, 1
      %v4600 = vsel %vm4564, %v4598, %v4599
      %v4601 = vrot.slane %v4299, 1
      %v4602 = vrot.slane %v4320, 1
      %v4603 = vsel %vm4564, %v4601, %v4602
      %v4604 = vrot.slane %v4301, 1
      %v4605 = vrot.slane %v4321, 1
      %v4606 = vsel %vm4564, %v4604, %v4605
      %v4607 = vrot.slane %v4303, 1
      %v4608 = vrot.slane %v4322, 1
      %v4609 = vsel %vm4564, %v4607, %v4608
      %v4610 = vrot.slane %v4305, 1
      %v4611 = vrot.slane %v4323, 1
      %v4612 = vsel %vm4564, %v4610, %v4611
      %v4613 = vrot.slane %v4307, 1
      %v4614 = vrot.slane %v4324, 1
      %v4615 = vsel %vm4564, %v4613, %v4614
      %4616 = vrot.lane.b32.xlu0 %v4567, 64
      %v4617 = vpop.permute.xlu0 %4616
      %4618 = vrot.lane.b32.xlu0 %v4570, 64
      %v4619 = vpop.permute.xlu0 %4618
      %4620 = vrot.lane.b32.xlu0 %v4573, 64
      %v4621 = vpop.permute.xlu0 %4620
      %4622 = vrot.lane.b32.xlu0 %v4576, 64
      %v4623 = vpop.permute.xlu0 %4622
      %4624 = vrot.lane.b32.xlu0 %v4579, 64
      %v4625 = vpop.permute.xlu0 %4624
      %4626 = vrot.lane.b32.xlu0 %v4582, 64
      %v4627 = vpop.permute.xlu0 %4626
      %4628 = vrot.lane.b32.xlu0 %v4585, 64
      %v4629 = vpop.permute.xlu0 %4628
      %4630 = vrot.lane.b32.xlu0 %v4588, 64
      %v4631 = vpop.permute.xlu0 %4630
      %4632 = vrot.lane.b32.xlu0 %v4591, 64
      %v4633 = vpop.permute.xlu0 %4632
      %4634 = vrot.lane.b32.xlu0 %v4594, 64
      %v4635 = vpop.permute.xlu0 %4634
      %4636 = vrot.lane.b32.xlu0 %v4597, 64
      %v4637 = vpop.permute.xlu0 %4636
      %4638 = vrot.lane.b32.xlu0 %v4600, 64
      %v4639 = vpop.permute.xlu0 %4638
      %4640 = vrot.lane.b32.xlu0 %v4603, 64
      %v4641 = vpop.permute.xlu0 %4640
      %4642 = vrot.lane.b32.xlu0 %v4606, 64
      %v4643 = vpop.permute.xlu0 %4642
      %4644 = vrot.lane.b32.xlu0 %v4609, 64
      %v4645 = vpop.permute.xlu0 %4644
      %4646 = vrot.lane.b32.xlu0 %v4612, 64
      %v4647 = vpop.permute.xlu0 %4646
      %4648 = vrot.lane.b32.xlu0 %v4615, 64
      %v4649 = vpop.permute.xlu0 %4648
      %vm4650 = vsmask.f32 6400
      %v4651 = vrot.slane %v4326, 1
      %v4652 = vrot.slane %v4328, 2
      %v4653 = vor.u32 %v4651, %v4652
      %v4654 = vshrl.u32 %v4308, 16
      %v4656 = vrot.slane %v4654, 1
      %v4657 = vrot.slane %v4332, 2
      %v4658 = vor.u32 %v4656, %v4657
      %v4659 = vsel %vm4650, %v4653, %v4658
      %v4660 = vrot.slane %v4336, 1
      %v4661 = vrot.slane %v4338, 2
      %v4662 = vor.u32 %v4660, %v4661
      %v4663 = vshrl.u32 %v4309, 16
      %v4665 = vrot.slane %v4663, 1
      %v4666 = vrot.slane %v4342, 2
      %v4667 = vor.u32 %v4665, %v4666
      %v4668 = vsel %vm4650, %v4662, %v4667
      %v4669 = vrot.slane %v4346, 1
      %v4670 = vrot.slane %v4348, 2
      %v4671 = vor.u32 %v4669, %v4670
      %v4672 = vshrl.u32 %v4310, 16
      %v4674 = vrot.slane %v4672, 1
      %v4675 = vrot.slane %v4352, 2
      %v4676 = vor.u32 %v4674, %v4675
      %v4677 = vsel %vm4650, %v4671, %v4676
      %v4678 = vrot.slane %v4356, 1
      %v4679 = vrot.slane %v4358, 2
      %v4680 = vor.u32 %v4678, %v4679
      %v4681 = vshrl.u32 %v4311, 16
      %v4683 = vrot.slane %v4681, 1
      %v4684 = vrot.slane %v4362, 2
      %v4685 = vor.u32 %v4683, %v4684
      %v4686 = vsel %vm4650, %v4680, %v4685
      %v4687 = vrot.slane %v4366, 1
      %v4688 = vrot.slane %v4368, 2
      %v4689 = vor.u32 %v4687, %v4688
      %v4690 = vshrl.u32 %v4312, 16
      %v4692 = vrot.slane %v4690, 1
      %v4693 = vrot.slane %v4372, 2
      %v4694 = vor.u32 %v4692, %v4693
      %v4695 = vsel %vm4650, %v4689, %v4694
      %v4696 = vrot.slane %v4376, 1
      %v4697 = vrot.slane %v4378, 2
      %v4698 = vor.u32 %v4696, %v4697
      %v4699 = vshrl.u32 %v4313, 16
      %v4701 = vrot.slane %v4699, 1
      %v4702 = vrot.slane %v4382, 2
      %v4703 = vor.u32 %v4701, %v4702
      %v4704 = vsel %vm4650, %v4698, %v4703
      %v4705 = vrot.slane %v4386, 1
      %v4706 = vrot.slane %v4388, 2
      %v4707 = vor.u32 %v4705, %v4706
      %v4708 = vshrl.u32 %v4314, 16
      %v4710 = vrot.slane %v4708, 1
      %v4711 = vrot.slane %v4392, 2
      %v4712 = vor.u32 %v4710, %v4711
      %v4713 = vsel %vm4650, %v4707, %v4712
      %v4714 = vrot.slane %v4396, 1
      %v4715 = vrot.slane %v4398, 2
      %v4716 = vor.u32 %v4714, %v4715
      %v4717 = vshrl.u32 %v4315, 16
      %v4719 = vrot.slane %v4717, 1
      %v4720 = vrot.slane %v4402, 2
      %v4721 = vor.u32 %v4719, %v4720
      %v4722 = vsel %vm4650, %v4716, %v4721
      %v4723 = vrot.slane %v4406, 1
      %v4724 = vrot.slane %v4408, 2
      %v4725 = vor.u32 %v4723, %v4724
      %v4726 = vshrl.u32 %v4316, 16
      %v4728 = vrot.slane %v4726, 1
      %v4729 = vrot.slane %v4412, 2
      %v4730 = vor.u32 %v4728, %v4729
      %v4731 = vsel %vm4650, %v4725, %v4730
      %v4732 = vrot.slane %v4416, 1
      %v4733 = vrot.slane %v4418, 2
      %v4734 = vor.u32 %v4732, %v4733
      %v4735 = vshrl.u32 %v4317, 16
      %v4737 = vrot.slane %v4735, 1
      %v4738 = vrot.slane %v4422, 2
      %v4739 = vor.u32 %v4737, %v4738
      %v4740 = vsel %vm4650, %v4734, %v4739
      %v4741 = vrot.slane %v4426, 1
      %v4742 = vrot.slane %v4428, 2
      %v4743 = vor.u32 %v4741, %v4742
      %v4744 = vshrl.u32 %v4318, 16
      %v4746 = vrot.slane %v4744, 1
      %v4747 = vrot.slane %v4432, 2
      %v4748 = vor.u32 %v4746, %v4747
      %v4749 = vsel %vm4650, %v4743, %v4748
      %v4750 = vrot.slane %v4436, 1
      %v4751 = vrot.slane %v4438, 2
      %v4752 = vor.u32 %v4750, %v4751
      %v4753 = vshrl.u32 %v4319, 16
      %v4755 = vrot.slane %v4753, 1
      %v4756 = vrot.slane %v4442, 2
      %v4757 = vor.u32 %v4755, %v4756
      %v4758 = vsel %vm4650, %v4752, %v4757
      %v4759 = vrot.slane %v4446, 1
      %v4760 = vrot.slane %v4448, 2
      %v4761 = vor.u32 %v4759, %v4760
      %v4762 = vshrl.u32 %v4320, 16
      %v4764 = vrot.slane %v4762, 1
      %v4765 = vrot.slane %v4452, 2
      %v4766 = vor.u32 %v4764, %v4765
      %v4767 = vsel %vm4650, %v4761, %v4766
      %v4768 = vrot.slane %v4456, 1
      %v4769 = vrot.slane %v4458, 2
      %v4770 = vor.u32 %v4768, %v4769
      %v4771 = vshrl.u32 %v4321, 16
      %v4773 = vrot.slane %v4771, 1
      %v4774 = vrot.slane %v4462, 2
      %v4775 = vor.u32 %v4773, %v4774
      %v4776 = vsel %vm4650, %v4770, %v4775
      %v4777 = vrot.slane %v4466, 1
      %v4778 = vrot.slane %v4468, 2
      %v4779 = vor.u32 %v4777, %v4778
      %v4780 = vshrl.u32 %v4322, 16
      %v4782 = vrot.slane %v4780, 1
      %v4783 = vrot.slane %v4472, 2
      %v4784 = vor.u32 %v4782, %v4783
      %v4785 = vsel %vm4650, %v4779, %v4784
      %v4786 = vrot.slane %v4476, 1
      %v4787 = vrot.slane %v4478, 2
      %v4788 = vor.u32 %v4786, %v4787
      %v4789 = vshrl.u32 %v4323, 16
      %v4791 = vrot.slane %v4789, 1
      %v4792 = vrot.slane %v4482, 2
      %v4793 = vor.u32 %v4791, %v4792
      %v4794 = vsel %vm4650, %v4788, %v4793
      %v4795 = vrot.slane %v4486, 1
      %v4796 = vrot.slane %v4488, 2
      %v4797 = vor.u32 %v4795, %v4796
      %v4798 = vshrl.u32 %v4324, 16
      %v4800 = vrot.slane %v4798, 1
      %v4801 = vrot.slane %v4492, 2
      %v4802 = vor.u32 %v4800, %v4801
      %v4803 = vsel %vm4650, %v4797, %v4802
      %4804 = vrot.lane.b32.xlu0 %v4659, 96
      %v4805 = vpop.permute.xlu0 %4804
      %4806 = vrot.lane.b32.xlu0 %v4668, 96
      %v4807 = vpop.permute.xlu0 %4806
      %4808 = vrot.lane.b32.xlu0 %v4677, 96
      %v4809 = vpop.permute.xlu0 %4808
      %4810 = vrot.lane.b32.xlu0 %v4686, 96
      %v4811 = vpop.permute.xlu0 %4810
      %4812 = vrot.lane.b32.xlu0 %v4695, 96
      %v4813 = vpop.permute.xlu0 %4812
      %4814 = vrot.lane.b32.xlu0 %v4704, 96
      %v4815 = vpop.permute.xlu0 %4814
      %4816 = vrot.lane.b32.xlu0 %v4713, 96
      %v4817 = vpop.permute.xlu0 %4816
      %4818 = vrot.lane.b32.xlu0 %v4722, 96
      %v4819 = vpop.permute.xlu0 %4818
      %4820 = vrot.lane.b32.xlu0 %v4731, 96
      %v4821 = vpop.permute.xlu0 %4820
      %4822 = vrot.lane.b32.xlu0 %v4740, 96
      %v4823 = vpop.permute.xlu0 %4822
      %4824 = vrot.lane.b32.xlu0 %v4749, 96
      %v4825 = vpop.permute.xlu0 %4824
      %4826 = vrot.lane.b32.xlu0 %v4758, 96
      %v4827 = vpop.permute.xlu0 %4826
      %4828 = vrot.lane.b32.xlu0 %v4767, 96
      %v4829 = vpop.permute.xlu0 %4828
      %4830 = vrot.lane.b32.xlu0 %v4776, 96
      %v4831 = vpop.permute.xlu0 %4830
      %4832 = vrot.lane.b32.xlu0 %v4785, 96
      %v4833 = vpop.permute.xlu0 %4832
      %4834 = vrot.lane.b32.xlu0 %v4794, 96
      %v4835 = vpop.permute.xlu0 %4834
      %4836 = vrot.lane.b32.xlu0 %v4803, 96
      %v4837 = vpop.permute.xlu0 %4836
      %vm4838 = vcmask 1045504
      %v4839 = vrot.slane %v4275, 2
      %v4840 = vrot.slane %v4308, 2
      %v4841 = vsel %vm4838, %v4839, %v4840
      %v4842 = vrot.slane %v4277, 2
      %v4843 = vrot.slane %v4309, 2
      %v4844 = vsel %vm4838, %v4842, %v4843
      %v4845 = vrot.slane %v4279, 2
      %v4846 = vrot.slane %v4310, 2
      %v4847 = vsel %vm4838, %v4845, %v4846
      %v4848 = vrot.slane %v4281, 2
      %v4849 = vrot.slane %v4311, 2
      %v4850 = vsel %vm4838, %v4848, %v4849
      %v4851 = vrot.slane %v4283, 2
      %v4852 = vrot.slane %v4312, 2
      %v4853 = vsel %vm4838, %v4851, %v4852
      %v4854 = vrot.slane %v4285, 2
      %v4855 = vrot.slane %v4313, 2
      %v4856 = vsel %vm4838, %v4854, %v4855
      %v4857 = vrot.slane %v4287, 2
      %v4858 = vrot.slane %v4314, 2
      %v4859 = vsel %vm4838, %v4857, %v4858
      %v4860 = vrot.slane %v4289, 2
      %v4861 = vrot.slane %v4315, 2
      %v4862 = vsel %vm4838, %v4860, %v4861
      %v4863 = vrot.slane %v4291, 2
      %v4864 = vrot.slane %v4316, 2
      %v4865 = vsel %vm4838, %v4863, %v4864
      %v4866 = vrot.slane %v4293, 2
      %v4867 = vrot.slane %v4317, 2
      %v4868 = vsel %vm4838, %v4866, %v4867
      %v4869 = vrot.slane %v4295, 2
      %v4870 = vrot.slane %v4318, 2
      %v4871 = vsel %vm4838, %v4869, %v4870
      %v4872 = vrot.slane %v4297, 2
      %v4873 = vrot.slane %v4319, 2
      %v4874 = vsel %vm4838, %v4872, %v4873
      %v4875 = vrot.slane %v4299, 2
      %v4876 = vrot.slane %v4320, 2
      %v4877 = vsel %vm4838, %v4875, %v4876
      %v4878 = vrot.slane %v4301, 2
      %v4879 = vrot.slane %v4321, 2
      %v4880 = vsel %vm4838, %v4878, %v4879
      %v4881 = vrot.slane %v4303, 2
      %v4882 = vrot.slane %v4322, 2
      %v4883 = vsel %vm4838, %v4881, %v4882
      %v4884 = vrot.slane %v4305, 2
      %v4885 = vrot.slane %v4323, 2
      %v4886 = vsel %vm4838, %v4884, %v4885
      %v4887 = vrot.slane %v4307, 2
      %v4888 = vrot.slane %v4324, 2
      %v4889 = vsel %vm4838, %v4887, %v4888
      %vm4890 = vcmask 261120
      %v4892 = vsel %vm4890, %v4275, %v4497
      %v4894 = vsel %vm4890, %v4277, %v4499
      %v4896 = vsel %vm4890, %v4279, %v4501
      %v4898 = vsel %vm4890, %v4281, %v4503
      %v4900 = vsel %vm4890, %v4283, %v4505
      %v4902 = vsel %vm4890, %v4285, %v4507
      %v4904 = vsel %vm4890, %v4287, %v4509
      %v4906 = vsel %vm4890, %v4289, %v4511
      %v4908 = vsel %vm4890, %v4291, %v4513
      %v4910 = vsel %vm4890, %v4293, %v4515
      %v4912 = vsel %vm4890, %v4295, %v4517
      %v4914 = vsel %vm4890, %v4297, %v4519
      %v4916 = vsel %vm4890, %v4299, %v4521
      %v4918 = vsel %vm4890, %v4301, %v4523
      %v4920 = vsel %vm4890, %v4303, %v4525
      %v4922 = vsel %vm4890, %v4305, %v4527
      %v4924 = vsel %vm4890, %v4307, %v4529
      %vm4925 = vcmask 523264
      %v4927 = vsel %vm4925, %v4892, %v4617
      %v4929 = vsel %vm4925, %v4894, %v4619
      %v4931 = vsel %vm4925, %v4896, %v4621
      %v4933 = vsel %vm4925, %v4898, %v4623
      %v4935 = vsel %vm4925, %v4900, %v4625
      %v4937 = vsel %vm4925, %v4902, %v4627
      %v4939 = vsel %vm4925, %v4904, %v4629
      %v4941 = vsel %vm4925, %v4906, %v4631
      %v4943 = vsel %vm4925, %v4908, %v4633
      %v4945 = vsel %vm4925, %v4910, %v4635
      %v4947 = vsel %vm4925, %v4912, %v4637
      %v4949 = vsel %vm4925, %v4914, %v4639
      %v4951 = vsel %vm4925, %v4916, %v4641
      %v4953 = vsel %vm4925, %v4918, %v4643
      %v4955 = vsel %vm4925, %v4920, %v4645
      %v4957 = vsel %vm4925, %v4922, %v4647
      %v4959 = vsel %vm4925, %v4924, %v4649
      %vm4960 = vcmask 785408
      %v4962 = vsel %vm4960, %v4927, %v4805
      %v4965 = vsel %vm4960, %v4929, %v4807
      %v4968 = vsel %vm4960, %v4931, %v4809
      %v4971 = vsel %vm4960, %v4933, %v4811
      %v4974 = vsel %vm4960, %v4935, %v4813
      %v4977 = vsel %vm4960, %v4937, %v4815
      %v4980 = vsel %vm4960, %v4939, %v4817
      %v4983 = vsel %vm4960, %v4941, %v4819
      %v4986 = vsel %vm4960, %v4943, %v4821
      %v4989 = vsel %vm4960, %v4945, %v4823
      %v4992 = vsel %vm4960, %v4947, %v4825
      %v4995 = vsel %vm4960, %v4949, %v4827
      %v4998 = vsel %vm4960, %v4951, %v4829
      %v5001 = vsel %vm4960, %v4953, %v4831
      %v5004 = vsel %vm4960, %v4955, %v4833
      %v5007 = vsel %vm4960, %v4957, %v4835
      %v5010 = vsel %vm4960, %v4959, %v4837
      %5028 = vrot.lane.b32.xlu0 %v4962, 32
      %v5029 = vpop.permute.xlu0 %5028
      %5030 = vrot.lane.b32.xlu0 %v4841, 32
      %v5031 = vpop.permute.xlu0 %5030
      %5032 = vrot.lane.b32.xlu0 %v4965, 32
      %v5033 = vpop.permute.xlu0 %5032
      %5034 = vrot.lane.b32.xlu0 %v4844, 32
      %v5035 = vpop.permute.xlu0 %5034
      %5036 = vrot.lane.b32.xlu0 %v4968, 32
      %v5037 = vpop.permute.xlu0 %5036
      %5038 = vrot.lane.b32.xlu0 %v4847, 32
      %v5039 = vpop.permute.xlu0 %5038
      %5040 = vrot.lane.b32.xlu0 %v4971, 32
      %v5041 = vpop.permute.xlu0 %5040
      %5042 = vrot.lane.b32.xlu0 %v4850, 32
      %v5043 = vpop.permute.xlu0 %5042
      %5044 = vrot.lane.b32.xlu0 %v4974, 32
      %v5045 = vpop.permute.xlu0 %5044
      %5046 = vrot.lane.b32.xlu0 %v4853, 32
      %v5047 = vpop.permute.xlu0 %5046
      %5048 = vrot.lane.b32.xlu0 %v4977, 32
      %v5049 = vpop.permute.xlu0 %5048
      %5050 = vrot.lane.b32.xlu0 %v4856, 32
      %v5051 = vpop.permute.xlu0 %5050
      %5052 = vrot.lane.b32.xlu0 %v4980, 32
      %v5053 = vpop.permute.xlu0 %5052
      %5054 = vrot.lane.b32.xlu0 %v4859, 32
      %v5055 = vpop.permute.xlu0 %5054
      %5056 = vrot.lane.b32.xlu0 %v4983, 32
      %v5057 = vpop.permute.xlu0 %5056
      %5058 = vrot.lane.b32.xlu0 %v4862, 32
      %v5059 = vpop.permute.xlu0 %5058
      %5060 = vrot.lane.b32.xlu0 %v4986, 32
      %v5061 = vpop.permute.xlu0 %5060
      %5062 = vrot.lane.b32.xlu0 %v4865, 32
      %v5063 = vpop.permute.xlu0 %5062
      %5064 = vrot.lane.b32.xlu0 %v4989, 32
      %v5065 = vpop.permute.xlu0 %5064
      %5066 = vrot.lane.b32.xlu0 %v4868, 32
      %v5067 = vpop.permute.xlu0 %5066
      %5068 = vrot.lane.b32.xlu0 %v4992, 32
      %v5069 = vpop.permute.xlu0 %5068
      %5070 = vrot.lane.b32.xlu0 %v4871, 32
      %v5071 = vpop.permute.xlu0 %5070
      %5072 = vrot.lane.b32.xlu0 %v4995, 32
      %v5073 = vpop.permute.xlu0 %5072
      %5074 = vrot.lane.b32.xlu0 %v4874, 32
      %v5075 = vpop.permute.xlu0 %5074
      %5076 = vrot.lane.b32.xlu0 %v4998, 32
      %v5077 = vpop.permute.xlu0 %5076
      %5078 = vrot.lane.b32.xlu0 %v4877, 32
      %v5079 = vpop.permute.xlu0 %5078
      %5080 = vrot.lane.b32.xlu0 %v5001, 32
      %v5081 = vpop.permute.xlu0 %5080
      %5082 = vrot.lane.b32.xlu0 %v4880, 32
      %v5083 = vpop.permute.xlu0 %5082
      %5084 = vrot.lane.b32.xlu0 %v5004, 32
      %v5085 = vpop.permute.xlu0 %5084
      %5086 = vrot.lane.b32.xlu0 %v4883, 32
      %v5087 = vpop.permute.xlu0 %5086
      %5088 = vrot.lane.b32.xlu0 %v5007, 32
      %v5089 = vpop.permute.xlu0 %5088
      %5090 = vrot.lane.b32.xlu0 %v4886, 32
      %v5091 = vpop.permute.xlu0 %5090
      %vm5092 = vcmask 261120
      %v5093 = vsel %vm5092, %v5029, %v5031
      %v5094 = vsel %vm5092, %v5033, %v5035
      %v5095 = vsel %vm5092, %v5037, %v5039
      %v5096 = vsel %vm5092, %v5041, %v5043
      %v5097 = vsel %vm5092, %v5045, %v5047
      %v5098 = vsel %vm5092, %v5049, %v5051
      %v5099 = vsel %vm5092, %v5053, %v5055
      %v5100 = vsel %vm5092, %v5057, %v5059
      %v5101 = vsel %vm5092, %v5061, %v5063
      %v5102 = vsel %vm5092, %v5065, %v5067
      %v5103 = vsel %vm5092, %v5069, %v5071
      %v5104 = vsel %vm5092, %v5073, %v5075
      %v5105 = vsel %vm5092, %v5077, %v5079
      %v5106 = vsel %vm5092, %v5081, %v5083
      %v5107 = vsel %vm5092, %v5085, %v5087
      %v5108 = vsel %vm5092, %v5089, %v5091
      %5110 = vrot.lane.b32.xlu0 %v4965, 64
      %v5111 = vpop.permute.xlu0 %5110
      %5112 = vrot.lane.b32.xlu0 %v4844, 64
      %v5113 = vpop.permute.xlu0 %5112
      %5114 = vrot.lane.b32.xlu0 %v4968, 64
      %v5115 = vpop.permute.xlu0 %5114
      %5116 = vrot.lane.b32.xlu0 %v4847, 64
      %v5117 = vpop.permute.xlu0 %5116
      %5118 = vrot.lane.b32.xlu0 %v4971, 64
      %v5119 = vpop.permute.xlu0 %5118
      %5120 = vrot.lane.b32.xlu0 %v4850, 64
      %v5121 = vpop.permute.xlu0 %5120
      %5122 = vrot.lane.b32.xlu0 %v4974, 64
      %v5123 = vpop.permute.xlu0 %5122
      %5124 = vrot.lane.b32.xlu0 %v4853, 64
      %v5125 = vpop.permute.xlu0 %5124
      %5126 = vrot.lane.b32.xlu0 %v4977, 64
      %v5127 = vpop.permute.xlu0 %5126
      %5128 = vrot.lane.b32.xlu0 %v4856, 64
      %v5129 = vpop.permute.xlu0 %5128
      %5130 = vrot.lane.b32.xlu0 %v4980, 64
      %v5131 = vpop.permute.xlu0 %5130
      %5132 = vrot.lane.b32.xlu0 %v4859, 64
      %v5133 = vpop.permute.xlu0 %5132
      %5134 = vrot.lane.b32.xlu0 %v4983, 64
      %v5135 = vpop.permute.xlu0 %5134
      %5136 = vrot.lane.b32.xlu0 %v4862, 64
      %v5137 = vpop.permute.xlu0 %5136
      %5138 = vrot.lane.b32.xlu0 %v4986, 64
      %v5139 = vpop.permute.xlu0 %5138
      %5140 = vrot.lane.b32.xlu0 %v4865, 64
      %v5141 = vpop.permute.xlu0 %5140
      %5142 = vrot.lane.b32.xlu0 %v4989, 64
      %v5143 = vpop.permute.xlu0 %5142
      %5144 = vrot.lane.b32.xlu0 %v4868, 64
      %v5145 = vpop.permute.xlu0 %5144
      %5146 = vrot.lane.b32.xlu0 %v4992, 64
      %v5147 = vpop.permute.xlu0 %5146
      %5148 = vrot.lane.b32.xlu0 %v4871, 64
      %v5149 = vpop.permute.xlu0 %5148
      %5150 = vrot.lane.b32.xlu0 %v4995, 64
      %v5151 = vpop.permute.xlu0 %5150
      %5152 = vrot.lane.b32.xlu0 %v4874, 64
      %v5153 = vpop.permute.xlu0 %5152
      %5154 = vrot.lane.b32.xlu0 %v4998, 64
      %v5155 = vpop.permute.xlu0 %5154
      %5156 = vrot.lane.b32.xlu0 %v4877, 64
      %v5157 = vpop.permute.xlu0 %5156
      %5158 = vrot.lane.b32.xlu0 %v5001, 64
      %v5159 = vpop.permute.xlu0 %5158
      %5160 = vrot.lane.b32.xlu0 %v4880, 64
      %v5161 = vpop.permute.xlu0 %5160
      %5162 = vrot.lane.b32.xlu0 %v5004, 64
      %v5163 = vpop.permute.xlu0 %5162
      %5164 = vrot.lane.b32.xlu0 %v4883, 64
      %v5165 = vpop.permute.xlu0 %5164
      %5166 = vrot.lane.b32.xlu0 %v5007, 64
      %v5167 = vpop.permute.xlu0 %5166
      %5168 = vrot.lane.b32.xlu0 %v4886, 64
      %v5169 = vpop.permute.xlu0 %5168
      %5170 = vrot.lane.b32.xlu0 %v5010, 64
      %v5171 = vpop.permute.xlu0 %5170
      %5172 = vrot.lane.b32.xlu0 %v4889, 64
      %v5173 = vpop.permute.xlu0 %5172
      %vm5174 = vcmask 523264
      %v5175 = vsel %vm5174, %v5111, %v5113
      %v5176 = vsel %vm5174, %v5115, %v5117
      %v5177 = vsel %vm5174, %v5119, %v5121
      %v5178 = vsel %vm5174, %v5123, %v5125
      %v5179 = vsel %vm5174, %v5127, %v5129
      %v5180 = vsel %vm5174, %v5131, %v5133
      %v5181 = vsel %vm5174, %v5135, %v5137
      %v5182 = vsel %vm5174, %v5139, %v5141
      %v5183 = vsel %vm5174, %v5143, %v5145
      %v5184 = vsel %vm5174, %v5147, %v5149
      %v5185 = vsel %vm5174, %v5151, %v5153
      %v5186 = vsel %vm5174, %v5155, %v5157
      %v5187 = vsel %vm5174, %v5159, %v5161
      %v5188 = vsel %vm5174, %v5163, %v5165
      %v5189 = vsel %vm5174, %v5167, %v5169
      %v5190 = vsel %vm5174, %v5171, %v5173
      %5191 = vrot.lane.b32.xlu0 %v4968, 96
      %v5192 = vpop.permute.xlu0 %5191
      %5193 = vrot.lane.b32.xlu0 %v4847, 96
      %v5194 = vpop.permute.xlu0 %5193
      %5195 = vrot.lane.b32.xlu0 %v4971, 96
      %v5196 = vpop.permute.xlu0 %5195
      %5197 = vrot.lane.b32.xlu0 %v4850, 96
      %v5198 = vpop.permute.xlu0 %5197
      %5199 = vrot.lane.b32.xlu0 %v4974, 96
      %v5200 = vpop.permute.xlu0 %5199
      %5201 = vrot.lane.b32.xlu0 %v4853, 96
      %v5202 = vpop.permute.xlu0 %5201
      %5203 = vrot.lane.b32.xlu0 %v4977, 96
      %v5204 = vpop.permute.xlu0 %5203
      %5205 = vrot.lane.b32.xlu0 %v4856, 96
      %v5206 = vpop.permute.xlu0 %5205
      %5207 = vrot.lane.b32.xlu0 %v4980, 96
      %v5208 = vpop.permute.xlu0 %5207
      %5209 = vrot.lane.b32.xlu0 %v4859, 96
      %v5210 = vpop.permute.xlu0 %5209
      %5211 = vrot.lane.b32.xlu0 %v4983, 96
      %v5212 = vpop.permute.xlu0 %5211
      %5213 = vrot.lane.b32.xlu0 %v4862, 96
      %v5214 = vpop.permute.xlu0 %5213
      %5215 = vrot.lane.b32.xlu0 %v4986, 96
      %v5216 = vpop.permute.xlu0 %5215
      %5217 = vrot.lane.b32.xlu0 %v4865, 96
      %v5218 = vpop.permute.xlu0 %5217
      %5219 = vrot.lane.b32.xlu0 %v4989, 96
      %v5220 = vpop.permute.xlu0 %5219
      %5221 = vrot.lane.b32.xlu0 %v4868, 96
      %v5222 = vpop.permute.xlu0 %5221
      %5223 = vrot.lane.b32.xlu0 %v4992, 96
      %v5224 = vpop.permute.xlu0 %5223
      %5225 = vrot.lane.b32.xlu0 %v4871, 96
      %v5226 = vpop.permute.xlu0 %5225
      %5227 = vrot.lane.b32.xlu0 %v4995, 96
      %v5228 = vpop.permute.xlu0 %5227
      %5229 = vrot.lane.b32.xlu0 %v4874, 96
      %v5230 = vpop.permute.xlu0 %5229
      %5231 = vrot.lane.b32.xlu0 %v4998, 96
      %v5232 = vpop.permute.xlu0 %5231
      %5233 = vrot.lane.b32.xlu0 %v4877, 96
      %v5234 = vpop.permute.xlu0 %5233
      %5235 = vrot.lane.b32.xlu0 %v5001, 96
      %v5236 = vpop.permute.xlu0 %5235
      %5237 = vrot.lane.b32.xlu0 %v4880, 96
      %v5238 = vpop.permute.xlu0 %5237
      %5239 = vrot.lane.b32.xlu0 %v5004, 96
      %v5240 = vpop.permute.xlu0 %5239
      %5241 = vrot.lane.b32.xlu0 %v4883, 96
      %v5242 = vpop.permute.xlu0 %5241
      %5243 = vrot.lane.b32.xlu0 %v5007, 96
      %v5244 = vpop.permute.xlu0 %5243
      %5245 = vrot.lane.b32.xlu0 %v4886, 96
      %v5246 = vpop.permute.xlu0 %5245
      %5247 = vrot.lane.b32.xlu0 %v5010, 96
      %v5248 = vpop.permute.xlu0 %5247
      %5249 = vrot.lane.b32.xlu0 %v4889, 96
      %v5250 = vpop.permute.xlu0 %5249
      %5251 = vrot.lane.b32.xlu0 %v4962, 96
      %v5252 = vpop.permute.xlu0 %5251
      %5253 = vrot.lane.b32.xlu0 %v4841, 96
      %v5254 = vpop.permute.xlu0 %5253
      %vm5255 = vcmask 785408
      %v5256 = vsel %vm5255, %v5192, %v5194
      %v5257 = vsel %vm5255, %v5196, %v5198
      %v5258 = vsel %vm5255, %v5200, %v5202
      %v5259 = vsel %vm5255, %v5204, %v5206
      %v5260 = vsel %vm5255, %v5208, %v5210
      %v5261 = vsel %vm5255, %v5212, %v5214
      %v5262 = vsel %vm5255, %v5216, %v5218
      %v5263 = vsel %vm5255, %v5220, %v5222
      %v5264 = vsel %vm5255, %v5224, %v5226
      %v5265 = vsel %vm5255, %v5228, %v5230
      %v5266 = vsel %vm5255, %v5232, %v5234
      %v5267 = vsel %vm5255, %v5236, %v5238
      %v5268 = vsel %vm5255, %v5240, %v5242
      %v5269 = vsel %vm5255, %v5244, %v5246
      %v5270 = vsel %vm5255, %v5248, %v5250
      %v5271 = vsel %vm5255, %v5252, %v5254
      %v5290 = vsel %vm4890, %v4841, %v5029
      %v5293 = vsel %vm4890, %v4841, %v5033
      %v5297 = vsel %vm4890, %v4844, %v5037
      %v5301 = vsel %vm4890, %v4847, %v5041
      %v5305 = vsel %vm4890, %v4850, %v5045
      %v5309 = vsel %vm4890, %v4853, %v5049
      %v5313 = vsel %vm4890, %v4856, %v5053
      %v5317 = vsel %vm4890, %v4859, %v5057
      %v5321 = vsel %vm4890, %v4862, %v5061
      %v5325 = vsel %vm4890, %v4865, %v5065
      %v5329 = vsel %vm4890, %v4868, %v5069
      %v5333 = vsel %vm4890, %v4871, %v5073
      %v5337 = vsel %vm4890, %v4874, %v5077
      %v5341 = vsel %vm4890, %v4877, %v5081
      %v5345 = vsel %vm4890, %v4880, %v5085
      %v5349 = vsel %vm4890, %v4883, %v5089
      %v5353 = vsel %vm4925, %v5093, %v5111
      %v5357 = vsel %vm4925, %v5094, %v5115
      %v5361 = vsel %vm4925, %v5095, %v5119
      %v5365 = vsel %vm4925, %v5096, %v5123
      %v5369 = vsel %vm4925, %v5097, %v5127
      %v5373 = vsel %vm4925, %v5098, %v5131
      %v5377 = vsel %vm4925, %v5099, %v5135
      %v5381 = vsel %vm4925, %v5100, %v5139
      %v5385 = vsel %vm4925, %v5101, %v5143
      %v5389 = vsel %vm4925, %v5102, %v5147
      %v5393 = vsel %vm4925, %v5103, %v5151
      %v5397 = vsel %vm4925, %v5104, %v5155
      %v5401 = vsel %vm4925, %v5105, %v5159
      %v5405 = vsel %vm4925, %v5106, %v5163
      %v5409 = vsel %vm4925, %v5107, %v5167
      %v5413 = vsel %vm4925, %v5108, %v5171
      %v5417 = vsel %vm4960, %v5175, %v5192
      %v5421 = vsel %vm4960, %v5176, %v5196
      %v5425 = vsel %vm4960, %v5177, %v5200
      %v5429 = vsel %vm4960, %v5178, %v5204
      %v5433 = vsel %vm4960, %v5179, %v5208
      %v5437 = vsel %vm4960, %v5180, %v5212
      %v5441 = vsel %vm4960, %v5181, %v5216
      %v5445 = vsel %vm4960, %v5182, %v5220
      %v5449 = vsel %vm4960, %v5183, %v5224
      %v5453 = vsel %vm4960, %v5184, %v5228
      %v5457 = vsel %vm4960, %v5185, %v5232
      %v5461 = vsel %vm4960, %v5186, %v5236
      %v5465 = vsel %vm4960, %v5187, %v5240
      %v5469 = vsel %vm4960, %v5188, %v5244
      %v5473 = vsel %vm4960, %v5189, %v5248
      %v5477 = vsel %vm4960, %v5190, %v5252
      %v5480 = vlaneseq
      %v5481 = vshrl.u32 %v5480, 7
      %v5482 = vsub.s32 0, %v5481
      %v5483 = vrot.slane %v572, %v5482
      %v5585 = vunpack.c.l.b16 %v371
      %v5586 = vunpack.c.l.b16 %v372
      %v5587 = vunpack.c.l.b16 %v373
      %v5588 = vunpack.c.l.b16 %v374
      %v5589 = vunpack.c.l.b16 %v375
      %v5590 = vunpack.c.l.b16 %v376
      %v5591 = vunpack.c.l.b16 %v377
      %v5592 = vunpack.c.l.b16 %v378
      %v5593 = vunpack.c.l.b16 %v379
      %v5594 = vunpack.c.l.b16 %v380
      %v5595 = vunpack.c.l.b16 %v381
      %v5596 = vunpack.c.l.b16 %v382
      %v5597 = vunpack.c.l.b16 %v383
      %v5598 = vunpack.c.l.b16 %v384
      %v5599 = vunpack.c.l.b16 %v385
      %v5600 = vunpack.c.l.b16 %v386
      %v5601 = vunpack.c.l.b16 %v387
      %v5602 = vunpack.c.l.b16 %v388
      %v5603 = vunpack.c.l.b16 %v389
      %v5604 = vunpack.c.l.b16 %v390
      %v5605 = vunpack.c.l.b16 %v391
      %v5606 = vunpack.c.l.b16 %v392
      %v5607 = vunpack.c.l.b16 %v393
      %v5608 = vunpack.c.l.b16 %v394
      %v5609 = vunpack.c.l.b16 %v395
      %v5610 = vunpack.c.l.b16 %v396
      %v5611 = vunpack.c.l.b16 %v397
      %v5612 = vunpack.c.l.b16 %v398
      %v5613 = vunpack.c.l.b16 %v399
      %v5614 = vunpack.c.l.b16 %v400
      %v5615 = vunpack.c.l.b16 %v401
      %v5616 = vunpack.c.l.b16 %v402
      %v5617 = vunpack.c.l.b16 %v403
      %v5618 = vunpack.c.l.b16 %v404
      %v5619 = vunpack.c.l.b16 %v405
      %v5620 = vunpack.c.l.b16 %v406
      %v5621 = vunpack.c.l.b16 %v407
      %v5622 = vunpack.c.l.b16 %v408
      %v5623 = vunpack.c.l.b16 %v409
      %v5624 = vunpack.c.l.b16 %v410
      %v5625 = vunpack.c.l.b16 %v411
      %v5626 = vunpack.c.l.b16 %v412
      %v5627 = vunpack.c.l.b16 %v413
      %v5628 = vunpack.c.l.b16 %v414
      %v5629 = vunpack.c.l.b16 %v415
      %v5630 = vunpack.c.l.b16 %v416
      %v5631 = vunpack.c.l.b16 %v417
      %v5632 = vunpack.c.l.b16 %v418
      %v5633 = vunpack.c.l.b16 %v419
      %v5634 = vunpack.c.l.b16 %v420
      %v5635 = vunpack.c.l.b16 %v421
      %v5636 = vunpack.c.l.b16 %v422
      %v5637 = vunpack.c.l.b16 %v423
      %v5638 = vunpack.c.l.b16 %v424
      %v5639 = vunpack.c.l.b16 %v425
      %v5640 = vunpack.c.l.b16 %v426
      %v5641 = vunpack.c.l.b16 %v427
      %v5642 = vunpack.c.l.b16 %v428
      %v5643 = vunpack.c.l.b16 %v429
      %v5644 = vunpack.c.l.b16 %v430
      %v5645 = vunpack.c.l.b16 %v431
      %v5646 = vunpack.c.l.b16 %v432
      %v5647 = vunpack.c.l.b16 %v433
      %v5648 = vunpack.c.l.b16 %v434
      %v5649 = vunpack.c.l.b16 %v435
      %v5650 = vunpack.c.l.b16 %v436
      %v5651 = vunpack.c.l.b16 %v437
      %v5652 = vunpack.c.l.b16 %v438
      %v5653 = vunpack.c.l.b16 %v439
      %v5654 = vunpack.c.l.b16 %v440
      %v5655 = vunpack.c.l.b16 %v441
      %v5656 = vunpack.c.l.b16 %v442
      %v5657 = vunpack.c.l.b16 %v443
      %v5658 = vunpack.c.l.b16 %v444
      %v5659 = vunpack.c.l.b16 %v445
      %v5660 = vunpack.c.l.b16 %v446
      %v5661 = vunpack.c.l.b16 %v447
      %v5662 = vunpack.c.l.b16 %v448
      %v5663 = vunpack.c.l.b16 %v449
      %v5664 = vunpack.c.l.b16 %v450
      %v5665 = vunpack.c.l.b16 %v451
      %v5666 = vunpack.c.l.b16 %v452
      %v5667 = vunpack.c.l.b16 %v453
      %v5668 = vunpack.c.l.b16 %v454
      %v5669 = vunpack.c.l.b16 %v455
      %v5670 = vunpack.c.l.b16 %v456
      %v5671 = vunpack.c.l.b16 %v457
      %v5672 = vunpack.c.l.b16 %v458
      %v5673 = vunpack.c.l.b16 %v459
      %v5674 = vunpack.c.l.b16 %v460
      %v5675 = vunpack.c.l.b16 %v461
      %v5676 = vunpack.c.l.b16 %v462
      %v5677 = vunpack.c.l.b16 %v463
      %v5678 = vunpack.c.l.b16 %v464
      %v5679 = vunpack.c.l.b16 %v465
      %v5680 = vunpack.c.l.b16 %v466
      %v5681 = vunpack.c.l.b16 %v467
      %v5682 = vunpack.c.l.b16 %v468
      %v5683 = vunpack.c.l.b16 %v469
      %v5684 = vunpack.c.l.b16 %v470
      %v5685 = vpack.c.b16 %v5586, %v5585
      %v5686 = vpack.c.b16 %v5588, %v5587
      %v5687 = vpack.c.b16 %v5590, %v5589
      %v5688 = vpack.c.b16 %v5592, %v5591
      %v5689 = vpack.c.b16 %v5594, %v5593
      %v5690 = vpack.c.b16 %v5596, %v5595
      %v5691 = vpack.c.b16 %v5598, %v5597
      %v5692 = vpack.c.b16 %v5600, %v5599
      %v5693 = vpack.c.b16 %v5602, %v5601
      %v5694 = vpack.c.b16 %v5604, %v5603
      %v5695 = vpack.c.b16 %v5606, %v5605
      %v5696 = vpack.c.b16 %v5608, %v5607
      %v5697 = vpack.c.b16 %v5610, %v5609
      %v5698 = vpack.c.b16 %v5612, %v5611
      %v5699 = vpack.c.b16 %v5614, %v5613
      %v5700 = vpack.c.b16 %v5616, %v5615
      %v5701 = vpack.c.b16 %v5618, %v5617
      %v5702 = vpack.c.b16 %v5620, %v5619
      %v5703 = vpack.c.b16 %v5622, %v5621
      %v5704 = vpack.c.b16 %v5624, %v5623
      %v5705 = vpack.c.b16 %v5626, %v5625
      %v5706 = vpack.c.b16 %v5628, %v5627
      %v5707 = vpack.c.b16 %v5630, %v5629
      %v5708 = vpack.c.b16 %v5632, %v5631
      %v5709 = vpack.c.b16 %v5634, %v5633
      %v5710 = vpack.c.b16 %v5636, %v5635
      %v5711 = vpack.c.b16 %v5638, %v5637
      %v5712 = vpack.c.b16 %v5640, %v5639
      %v5713 = vpack.c.b16 %v5642, %v5641
      %v5714 = vpack.c.b16 %v5644, %v5643
      %v5715 = vpack.c.b16 %v5646, %v5645
      %v5716 = vpack.c.b16 %v5648, %v5647
      %v5717 = vpack.c.b16 %v5650, %v5649
      %v5718 = vpack.c.b16 %v5652, %v5651
      %v5719 = vpack.c.b16 %v5654, %v5653
      %v5720 = vpack.c.b16 %v5656, %v5655
      %v5721 = vpack.c.b16 %v5658, %v5657
      %v5722 = vpack.c.b16 %v5660, %v5659
      %v5723 = vpack.c.b16 %v5662, %v5661
      %v5724 = vpack.c.b16 %v5664, %v5663
      %v5725 = vpack.c.b16 %v5666, %v5665
      %v5726 = vpack.c.b16 %v5668, %v5667
      %v5727 = vpack.c.b16 %v5670, %v5669
      %v5728 = vpack.c.b16 %v5672, %v5671
      %v5729 = vpack.c.b16 %v5674, %v5673
      %v5730 = vpack.c.b16 %v5676, %v5675
      %v5731 = vpack.c.b16 %v5678, %v5677
      %v5732 = vpack.c.b16 %v5680, %v5679
      %v5733 = vpack.c.b16 %v5682, %v5681
      %v5734 = vpack.c.b16 %v5684, %v5683
      %v5785 = vsel %vm4890, %v4850, 0
      %v5787 = vsel %vm4890, %v4853, 0
      %v5789 = vsel %vm4890, %v4856, 0
      %v5791 = vsel %vm4890, %v4859, 0
      %v5793 = vsel %vm4890, %v4862, 0
      %v5795 = vsel %vm4890, %v4865, 0
      %v5797 = vsel %vm4890, %v4868, 0
      %v5799 = vsel %vm4890, %v4871, 0
      %v5801 = vsel %vm4890, %v4874, 0
      %v5803 = vsel %vm4890, %v4877, 0
      %v5805 = vsel %vm4890, %v4880, 0
      %v5807 = vsel %vm4890, %v4883, 0
      %v5810 = vsel %vm4890, %v4886, 0
      %v5813 = vsel %vm4890, %v4889, 0
      %v5815 = vsel %vm4890, %v4841, 0
      %5817 = vmatprep.subr.bf16.mxu0 0
      %5818 = vmatpush1.bf16.msra.mxu0 %v5685
      %5819 = vmatprep.subr.bf16.mxu0 0
      %5820 = vmatpush1.bf16.msra.mxu0 %v5686
      %5821 = vmatprep.subr.bf16.mxu0 0
      %5822 = vmatpush1.bf16.msra.mxu0 %v5687
      %5823 = vmatprep.subr.bf16.mxu0 0
      %5824 = vmatpush1.bf16.msra.mxu0 %v5688
      %5825 = vmatprep.subr.bf16.mxu0 0
      %5826 = vmatpush1.bf16.msra.mxu0 %v5689
      %5827 = vmatprep.subr.bf16.mxu0 0
      %5828 = vmatpush1.bf16.msra.mxu0 %v5690
      %5829 = vmatprep.subr.bf16.mxu0 0
      %5830 = vmatpush1.bf16.msra.mxu0 %v5691
      %5831 = vmatprep.subr.bf16.mxu0 0
      %5832 = vmatpush1.bf16.msra.mxu0 %v5692
      %5833 = vmatprep.subr.bf16.mxu0 0
      %5834 = vmatpush1.bf16.msra.mxu0 %v5693
      %5835 = vmatprep.subr.bf16.mxu0 0
      %5836 = vmatpush1.bf16.msra.mxu0 %v5694
      %5837 = vmatprep.subr.bf16.mxu0 0
      %5838 = vmatpush1.bf16.msra.mxu0 %v5695
      %5839 = vmatprep.subr.bf16.mxu0 0
      %5840 = vmatpush1.bf16.msra.mxu0 %v5696
      %5841 = vmatprep.subr.bf16.mxu0 0
      %5842 = vmatpush1.bf16.msra.mxu0 %v5697
      %5843 = vmatprep.subr.bf16.mxu0 0
      %5844 = vmatpush1.bf16.msra.mxu0 %v5698
      %5845 = vmatprep.subr.bf16.mxu0 0
      %5846 = vmatpush1.bf16.msra.mxu0 %v5699
      %5847 = vmatprep.subr.bf16.mxu0 0
      %5848 = vmatpush1.bf16.msra.mxu0 %v5700
      %5849 = vmatprep.mubr.bf16.mxu0 %v5290
      %5850 = vmatmul.mubr.bf16.gmra.mrb[0].mxu0 %v4962
      %v5851 = vpop.f32.mrb[0].mxu0
      %v5852 = vadd.f32 %v5483, %v5851
      %v5853 = vpop.f32.mrb[0].mxu0
      %v5854 = vpop.f32.mrb[0].mxu0
      %v5855 = vadd.f32 %v5483, %v5854
      %v5856 = vpop.f32.mrb[0].mxu0
      %5857 = vmatprep.mubr.bf16.mxu0 %v5293
      %5858 = vmatmul.mubr.bf16.gmra.mrb[0].mxu0 %v4962
      %v5859 = vpop.f32.mrb[0].mxu0
      %v5860 = vadd.f32 %v5483, %v5859
      %v5861 = vpop.f32.mrb[0].mxu0
      %v5862 = vpop.f32.mrb[0].mxu0
      %v5863 = vadd.f32 %v5483, %v5862
      %v5864 = vpop.f32.mrb[0].mxu0
      %5865 = vmatprep.mubr.bf16.mxu0 %v5297
      %5866 = vmatmul.mubr.bf16.gmra.mrb[0].mxu0 %v4965
      %v5867 = vpop.f32.mrb[0].mxu0
      %v5868 = vadd.f32 %v5483, %v5867
      %v5869 = vpop.f32.mrb[0].mxu0
      %v5870 = vpop.f32.mrb[0].mxu0
      %v5871 = vadd.f32 %v5483, %v5870
      %v5872 = vpop.f32.mrb[0].mxu0
      %5873 = vmatprep.mubr.bf16.mxu0 %v5301
      %5874 = vmatmul.mubr.bf16.gmra.mrb[0].mxu0 %v4968
      %v5875 = vpop.f32.mrb[0].mxu0
      %v5876 = vadd.f32 %v5483, %v5875
      %v5877 = vpop.f32.mrb[0].mxu0
      %v5878 = vpop.f32.mrb[0].mxu0
      %v5879 = vadd.f32 %v5483, %v5878
      %v5880 = vpop.f32.mrb[0].mxu0
      %5881 = vmatprep.mubr.bf16.mxu0 %v5305
      %5882 = vmatmul.mubr.bf16.gmra.mrb[0].mxu0 %v4971
      %v5883 = vpop.f32.mrb[0].mxu0
      %v5884 = vadd.f32 %v5483, %v5883
      %v5885 = vpop.f32.mrb[0].mxu0
      %v5886 = vpop.f32.mrb[0].mxu0
      %v5887 = vadd.f32 %v5483, %v5886
      %v5888 = vpop.f32.mrb[0].mxu0
      %5889 = vmatprep.mubr.bf16.mxu0 %v5309
      %5890 = vmatmul.mubr.bf16.gmra.mrb[0].mxu0 %v4974
      %v5891 = vpop.f32.mrb[0].mxu0
      %v5892 = vadd.f32 %v5483, %v5891
      %v5893 = vpop.f32.mrb[0].mxu0
      %v5894 = vpop.f32.mrb[0].mxu0
      %v5895 = vadd.f32 %v5483, %v5894
      %v5896 = vpop.f32.mrb[0].mxu0
      %5897 = vmatprep.mubr.bf16.mxu0 %v5313
      %5898 = vmatmul.mubr.bf16.gmra.mrb[0].mxu0 %v4977
      %v5899 = vpop.f32.mrb[0].mxu0
      %v5900 = vadd.f32 %v5483, %v5899
      %v5901 = vpop.f32.mrb[0].mxu0
      %v5902 = vpop.f32.mrb[0].mxu0
      %v5903 = vadd.f32 %v5483, %v5902
      %v5904 = vpop.f32.mrb[0].mxu0
      %5905 = vmatprep.mubr.bf16.mxu0 %v5317
      %5906 = vmatmul.mubr.bf16.gmra.mrb[0].mxu0 %v4980
      %v5907 = vpop.f32.mrb[0].mxu0
      %v5908 = vadd.f32 %v5483, %v5907
      %v5909 = vpop.f32.mrb[0].mxu0
      %v5910 = vpop.f32.mrb[0].mxu0
      %v5911 = vadd.f32 %v5483, %v5910
      %v5912 = vpop.f32.mrb[0].mxu0
      %5913 = vmatprep.mubr.bf16.mxu0 %v5321
      %5914 = vmatmul.mubr.bf16.gmra.mrb[0].mxu0 %v4983
      %v5915 = vpop.f32.mrb[0].mxu0
      %v5916 = vadd.f32 %v5483, %v5915
      %v5917 = vpop.f32.mrb[0].mxu0
      %v5918 = vpop.f32.mrb[0].mxu0
      %v5919 = vadd.f32 %v5483, %v5918
      %v5920 = vpop.f32.mrb[0].mxu0
      %5921 = vmatprep.mubr.bf16.mxu0 %v5325
      %5922 = vmatmul.mubr.bf16.gmra.mrb[0].mxu0 %v4986
      %v5923 = vpop.f32.mrb[0].mxu0
      %v5924 = vadd.f32 %v5483, %v5923
      %v5925 = vpop.f32.mrb[0].mxu0
      %v5926 = vpop.f32.mrb[0].mxu0
      %v5927 = vadd.f32 %v5483, %v5926
      %v5928 = vpop.f32.mrb[0].mxu0
      %5929 = vmatprep.mubr.bf16.mxu0 %v5329
      %5930 = vmatmul.mubr.bf16.gmra.mrb[0].mxu0 %v4989
      %v5931 = vpop.f32.mrb[0].mxu0
      %v5932 = vadd.f32 %v5483, %v5931
      %v5933 = vpop.f32.mrb[0].mxu0
      %v5934 = vpop.f32.mrb[0].mxu0
      %v5935 = vadd.f32 %v5483, %v5934
      %v5936 = vpop.f32.mrb[0].mxu0
      %5937 = vmatprep.mubr.bf16.mxu0 %v5333
      %5938 = vmatmul.mubr.bf16.gmra.mrb[0].mxu0 %v4992
      %v5939 = vpop.f32.mrb[0].mxu0
      %v5940 = vadd.f32 %v5483, %v5939
      %v5941 = vpop.f32.mrb[0].mxu0
      %v5942 = vpop.f32.mrb[0].mxu0
      %v5943 = vadd.f32 %v5483, %v5942
      %v5944 = vpop.f32.mrb[0].mxu0
      %5945 = vmatprep.mubr.bf16.mxu0 %v5337
      %5946 = vmatmul.mubr.bf16.gmra.mrb[0].mxu0 %v4995
      %v5947 = vpop.f32.mrb[0].mxu0
      %v5948 = vadd.f32 %v5483, %v5947
      %v5949 = vpop.f32.mrb[0].mxu0
      %v5950 = vpop.f32.mrb[0].mxu0
      %v5951 = vadd.f32 %v5483, %v5950
      %v5952 = vpop.f32.mrb[0].mxu0
      %5953 = vmatprep.mubr.bf16.mxu0 %v5341
      %5954 = vmatmul.mubr.bf16.gmra.mrb[0].mxu0 %v4998
      %v5955 = vpop.f32.mrb[0].mxu0
      %v5956 = vadd.f32 %v5483, %v5955
      %v5957 = vpop.f32.mrb[0].mxu0
      %v5958 = vpop.f32.mrb[0].mxu0
      %v5959 = vadd.f32 %v5483, %v5958
      %v5960 = vpop.f32.mrb[0].mxu0
      %5961 = vmatprep.mubr.bf16.mxu0 %v5345
      %5962 = vmatmul.mubr.bf16.gmra.mrb[0].mxu0 %v5001
      %v5963 = vpop.f32.mrb[0].mxu0
      %v5964 = vadd.f32 %v5483, %v5963
      %v5965 = vpop.f32.mrb[0].mxu0
      %v5966 = vpop.f32.mrb[0].mxu0
      %v5967 = vadd.f32 %v5483, %v5966
      %v5968 = vpop.f32.mrb[0].mxu0
      %5969 = vmatprep.mubr.bf16.mxu0 %v5349
      %5970 = vmatmul.mubr.bf16.gmra.mrb[0].mxu0 %v5004
      %v5971 = vpop.f32.mrb[0].mxu0
      %v5972 = vadd.f32 %v5483, %v5971
      %v5973 = vpop.f32.mrb[0].mxu0
      %v5974 = vpop.f32.mrb[0].mxu0
      %v5975 = vadd.f32 %v5483, %v5974
      %v5976 = vpop.f32.mrb[0].mxu0
      %5977 = vdwg.mxu0
      %5978 = vmatprep.subr.bf16.mxu0 0
      %5979 = vmatpush1.bf16.msra.mxu0 %v5701
      %5980 = vmatprep.subr.bf16.mxu0 0
      %5981 = vmatpush1.bf16.msra.mxu0 %v5702
      %5982 = vmatprep.subr.bf16.mxu0 0
      %5983 = vmatpush1.bf16.msra.mxu0 %v5703
      %5984 = vmatprep.subr.bf16.mxu0 0
      %5985 = vmatpush1.bf16.msra.mxu0 %v5704
      %5986 = vmatprep.subr.bf16.mxu0 0
      %5987 = vmatpush1.bf16.msra.mxu0 %v5705
      %5988 = vmatprep.subr.bf16.mxu0 0
      %5989 = vmatpush1.bf16.msra.mxu0 %v5706
      %5990 = vmatprep.subr.bf16.mxu0 0
      %5991 = vmatpush1.bf16.msra.mxu0 %v5707
      %5992 = vmatprep.subr.bf16.mxu0 0
      %5993 = vmatpush1.bf16.msra.mxu0 %v5708
      %5994 = vmatprep.subr.bf16.mxu0 0
      %5995 = vmatpush1.bf16.msra.mxu0 %v5709
      %5996 = vmatprep.subr.bf16.mxu0 0
      %5997 = vmatpush1.bf16.msra.mxu0 %v5710
      %5998 = vmatprep.subr.bf16.mxu0 0
      %5999 = vmatpush1.bf16.msra.mxu0 %v5711
      %6000 = vmatprep.subr.bf16.mxu0 0
      %6001 = vmatpush1.bf16.msra.mxu0 %v5712
      %6002 = vmatprep.subr.bf16.mxu0 0
      %6003 = vmatpush1.bf16.msra.mxu0 %v5713
      %6004 = vmatprep.subr.bf16.mxu0 0
      %6005 = vmatpush1.bf16.msra.mxu0 %v5714
      %6006 = vmatprep.subr.bf16.mxu0 0
      %6007 = vmatpush1.bf16.msra.mxu0 %v5715
      %6008 = vmatprep.subr.bf16.mxu0 0
      %6009 = vmatpush1.bf16.msra.mxu0 %v5716
      %6010 = vmatprep.mubr.bf16.mxu0 %v5417
      %6011 = vmatmul.mubr.bf16.gmra.mrb[0].mxu0 %v5353
      %v6012 = vpop.f32.mrb[0].mxu0
      %v6013 = vadd.f32 %v5852, %v6012
      %v6014 = vpop.f32.mrb[0].mxu0
      %v6015 = vpop.f32.mrb[0].mxu0
      %v6016 = vadd.f32 %v5855, %v6015
      %v6017 = vpop.f32.mrb[0].mxu0
      %6018 = vmatprep.mubr.bf16.mxu0 %v5421
      %6019 = vmatmul.mubr.bf16.gmra.mrb[0].mxu0 %v5357
      %v6020 = vpop.f32.mrb[0].mxu0
      %v6021 = vadd.f32 %v5860, %v6020
      %v6022 = vpop.f32.mrb[0].mxu0
      %v6023 = vpop.f32.mrb[0].mxu0
      %v6024 = vadd.f32 %v5863, %v6023
      %v6025 = vpop.f32.mrb[0].mxu0
      %6026 = vmatprep.mubr.bf16.mxu0 %v5425
      %6027 = vmatmul.mubr.bf16.gmra.mrb[0].mxu0 %v5361
      %v6028 = vpop.f32.mrb[0].mxu0
      %v6029 = vadd.f32 %v5868, %v6028
      %v6030 = vpop.f32.mrb[0].mxu0
      %v6031 = vpop.f32.mrb[0].mxu0
      %v6032 = vadd.f32 %v5871, %v6031
      %v6033 = vpop.f32.mrb[0].mxu0
      %6034 = vmatprep.mubr.bf16.mxu0 %v5429
      %6035 = vmatmul.mubr.bf16.gmra.mrb[0].mxu0 %v5365
      %v6036 = vpop.f32.mrb[0].mxu0
      %v6037 = vadd.f32 %v5876, %v6036
      %v6038 = vpop.f32.mrb[0].mxu0
      %v6039 = vpop.f32.mrb[0].mxu0
      %v6040 = vadd.f32 %v5879, %v6039
      %v6041 = vpop.f32.mrb[0].mxu0
      %6042 = vmatprep.mubr.bf16.mxu0 %v5433
      %6043 = vmatmul.mubr.bf16.gmra.mrb[0].mxu0 %v5369
      %v6044 = vpop.f32.mrb[0].mxu0
      %v6045 = vadd.f32 %v5884, %v6044
      %v6046 = vpop.f32.mrb[0].mxu0
      %v6047 = vpop.f32.mrb[0].mxu0
      %v6048 = vadd.f32 %v5887, %v6047
      %v6049 = vpop.f32.mrb[0].mxu0
      %6050 = vmatprep.mubr.bf16.mxu0 %v5437
      %6051 = vmatmul.mubr.bf16.gmra.mrb[0].mxu0 %v5373
      %v6052 = vpop.f32.mrb[0].mxu0
      %v6053 = vadd.f32 %v5892, %v6052
      %v6054 = vpop.f32.mrb[0].mxu0
      %v6055 = vpop.f32.mrb[0].mxu0
      %v6056 = vadd.f32 %v5895, %v6055
      %v6057 = vpop.f32.mrb[0].mxu0
      %6058 = vmatprep.mubr.bf16.mxu0 %v5441
      %6059 = vmatmul.mubr.bf16.gmra.mrb[0].mxu0 %v5377
      %v6060 = vpop.f32.mrb[0].mxu0
      %v6061 = vadd.f32 %v5900, %v6060
      %v6062 = vpop.f32.mrb[0].mxu0
      %v6063 = vpop.f32.mrb[0].mxu0
      %v6064 = vadd.f32 %v5903, %v6063
      %v6065 = vpop.f32.mrb[0].mxu0
      %6066 = vmatprep.mubr.bf16.mxu0 %v5445
      %6067 = vmatmul.mubr.bf16.gmra.mrb[0].mxu0 %v5381
      %v6068 = vpop.f32.mrb[0].mxu0
      %v6069 = vadd.f32 %v5908, %v6068
      %v6070 = vpop.f32.mrb[0].mxu0
      %v6071 = vpop.f32.mrb[0].mxu0
      %v6072 = vadd.f32 %v5911, %v6071
      %v6073 = vpop.f32.mrb[0].mxu0
      %6074 = vmatprep.mubr.bf16.mxu0 %v5449
      %6075 = vmatmul.mubr.bf16.gmra.mrb[0].mxu0 %v5385
      %v6076 = vpop.f32.mrb[0].mxu0
      %v6077 = vadd.f32 %v5916, %v6076
      %v6078 = vpop.f32.mrb[0].mxu0
      %v6079 = vpop.f32.mrb[0].mxu0
      %v6080 = vadd.f32 %v5919, %v6079
      %v6081 = vpop.f32.mrb[0].mxu0
      %6082 = vmatprep.mubr.bf16.mxu0 %v5453
      %6083 = vmatmul.mubr.bf16.gmra.mrb[0].mxu0 %v5389
      %v6084 = vpop.f32.mrb[0].mxu0
      %v6085 = vadd.f32 %v5924, %v6084
      %v6086 = vpop.f32.mrb[0].mxu0
      %v6087 = vpop.f32.mrb[0].mxu0
      %v6088 = vadd.f32 %v5927, %v6087
      %v6089 = vpop.f32.mrb[0].mxu0
      %6090 = vmatprep.mubr.bf16.mxu0 %v5457
      %6091 = vmatmul.mubr.bf16.gmra.mrb[0].mxu0 %v5393
      %v6092 = vpop.f32.mrb[0].mxu0
      %v6093 = vadd.f32 %v5932, %v6092
      %v6094 = vpop.f32.mrb[0].mxu0
      %v6095 = vpop.f32.mrb[0].mxu0
      %v6096 = vadd.f32 %v5935, %v6095
      %v6097 = vpop.f32.mrb[0].mxu0
      %6098 = vmatprep.mubr.bf16.mxu0 %v5461
      %6099 = vmatmul.mubr.bf16.gmra.mrb[0].mxu0 %v5397
      %v6100 = vpop.f32.mrb[0].mxu0
      %v6101 = vadd.f32 %v5940, %v6100
      %v6102 = vpop.f32.mrb[0].mxu0
      %v6103 = vpop.f32.mrb[0].mxu0
      %v6104 = vadd.f32 %v5943, %v6103
      %v6105 = vpop.f32.mrb[0].mxu0
      %6106 = vmatprep.mubr.bf16.mxu0 %v5465
      %6107 = vmatmul.mubr.bf16.gmra.mrb[0].mxu0 %v5401
      %v6108 = vpop.f32.mrb[0].mxu0
      %v6109 = vadd.f32 %v5948, %v6108
      %v6110 = vpop.f32.mrb[0].mxu0
      %v6111 = vpop.f32.mrb[0].mxu0
      %v6112 = vadd.f32 %v5951, %v6111
      %v6113 = vpop.f32.mrb[0].mxu0
      %6114 = vmatprep.mubr.bf16.mxu0 %v5469
      %6115 = vmatmul.mubr.bf16.gmra.mrb[0].mxu0 %v5405
      %v6116 = vpop.f32.mrb[0].mxu0
      %v6117 = vadd.f32 %v5956, %v6116
      %v6118 = vpop.f32.mrb[0].mxu0
      %v6119 = vpop.f32.mrb[0].mxu0
      %v6120 = vadd.f32 %v5959, %v6119
      %v6121 = vpop.f32.mrb[0].mxu0
      %6122 = vmatprep.mubr.bf16.mxu0 %v5473
      %6123 = vmatmul.mubr.bf16.gmra.mrb[0].mxu0 %v5409
      %v6124 = vpop.f32.mrb[0].mxu0
      %v6125 = vadd.f32 %v5964, %v6124
      %v6126 = vpop.f32.mrb[0].mxu0
      %v6127 = vpop.f32.mrb[0].mxu0
      %v6128 = vadd.f32 %v5967, %v6127
      %v6129 = vpop.f32.mrb[0].mxu0
      %6130 = vmatprep.mubr.bf16.mxu0 %v5477
      %6131 = vmatmul.mubr.bf16.gmra.mrb[0].mxu0 %v5413
      %v6132 = vpop.f32.mrb[0].mxu0
      %v6133 = vadd.f32 %v5972, %v6132
      %v6134 = vpop.f32.mrb[0].mxu0
      %v6135 = vpop.f32.mrb[0].mxu0
      %v6136 = vadd.f32 %v5975, %v6135
      %v6137 = vpop.f32.mrb[0].mxu0
      %6138 = vdwg.mxu0
      %6139 = vmatprep.subr.bf16.mxu0 0
      %6140 = vmatpush1.bf16.msra.mxu0 %v5717
      %6141 = vmatprep.subr.bf16.mxu0 0
      %6142 = vmatpush1.bf16.msra.mxu0 %v5718
      %6143 = vmatprep.subr.bf16.mxu0 0
      %6144 = vmatpush1.bf16.msra.mxu0 %v5719
      %6145 = vmatprep.subr.bf16.mxu0 0
      %6146 = vmatpush1.bf16.msra.mxu0 %v5720
      %6147 = vmatprep.subr.bf16.mxu0 0
      %6148 = vmatpush1.bf16.msra.mxu0 %v5721
      %6149 = vmatprep.subr.bf16.mxu0 0
      %6150 = vmatpush1.bf16.msra.mxu0 %v5722
      %6151 = vmatprep.subr.bf16.mxu0 0
      %6152 = vmatpush1.bf16.msra.mxu0 %v5723
      %6153 = vmatprep.subr.bf16.mxu0 0
      %6154 = vmatpush1.bf16.msra.mxu0 %v5724
      %6155 = vmatprep.subr.bf16.mxu0 0
      %6156 = vmatpush1.bf16.msra.mxu0 %v5725
      %6157 = vmatprep.subr.bf16.mxu0 0
      %6158 = vmatpush1.bf16.msra.mxu0 %v5726
      %6159 = vmatprep.subr.bf16.mxu0 0
      %6160 = vmatpush1.bf16.msra.mxu0 %v5727
      %6161 = vmatprep.subr.bf16.mxu0 0
      %6162 = vmatpush1.bf16.msra.mxu0 %v5728
      %6163 = vmatprep.subr.bf16.mxu0 0
      %6164 = vmatpush1.bf16.msra.mxu0 %v5729
      %6165 = vmatprep.subr.bf16.mxu0 0
      %6166 = vmatpush1.bf16.msra.mxu0 %v5730
      %6167 = vmatprep.subr.bf16.mxu0 0
      %6168 = vmatpush1.bf16.msra.mxu0 %v5731
      %6169 = vmatprep.subr.bf16.mxu0 0
      %6170 = vmatpush1.bf16.msra.mxu0 %v5732
      %6171 = vmatprep.mubr.bf16.mxu0 %v4971
      %6172 = vmatmul.mubr.bf16.gmra.mrb[0].mxu0 %v5256
      %v6173 = vpop.f32.mrb[0].mxu0
      %v6174 = vadd.f32 %v6013, %v6173
      %v6175 = vpop.f32.mrb[0].mxu0
      %v6176 = vpop.f32.mrb[0].mxu0
      %v6177 = vadd.f32 %v6016, %v6176
      %v6178 = vpop.f32.mrb[0].mxu0
      %6179 = vmatprep.mubr.bf16.mxu0 %v4974
      %6180 = vmatmul.mubr.bf16.gmra.mrb[0].mxu0 %v5257
      %v6181 = vpop.f32.mrb[0].mxu0
      %v6182 = vadd.f32 %v6021, %v6181
      %v6183 = vpop.f32.mrb[0].mxu0
      %v6184 = vpop.f32.mrb[0].mxu0
      %v6185 = vadd.f32 %v6024, %v6184
      %v6186 = vpop.f32.mrb[0].mxu0
      %6187 = vmatprep.mubr.bf16.mxu0 %v4977
      %6188 = vmatmul.mubr.bf16.gmra.mrb[0].mxu0 %v5258
      %v6189 = vpop.f32.mrb[0].mxu0
      %v6190 = vadd.f32 %v6029, %v6189
      %v6191 = vpop.f32.mrb[0].mxu0
      %v6192 = vpop.f32.mrb[0].mxu0
      %v6193 = vadd.f32 %v6032, %v6192
      %v6194 = vpop.f32.mrb[0].mxu0
      %6195 = vmatprep.mubr.bf16.mxu0 %v4980
      %6196 = vmatmul.mubr.bf16.gmra.mrb[0].mxu0 %v5259
      %v6197 = vpop.f32.mrb[0].mxu0
      %v6198 = vadd.f32 %v6037, %v6197
      %v6199 = vpop.f32.mrb[0].mxu0
      %v6200 = vpop.f32.mrb[0].mxu0
      %v6201 = vadd.f32 %v6040, %v6200
      %v6202 = vpop.f32.mrb[0].mxu0
      %6203 = vmatprep.mubr.bf16.mxu0 %v4983
      %6204 = vmatmul.mubr.bf16.gmra.mrb[0].mxu0 %v5260
      %v6205 = vpop.f32.mrb[0].mxu0
      %v6206 = vadd.f32 %v6045, %v6205
      %v6207 = vpop.f32.mrb[0].mxu0
      %v6208 = vpop.f32.mrb[0].mxu0
      %v6209 = vadd.f32 %v6048, %v6208
      %v6210 = vpop.f32.mrb[0].mxu0
      %6211 = vmatprep.mubr.bf16.mxu0 %v4986
      %6212 = vmatmul.mubr.bf16.gmra.mrb[0].mxu0 %v5261
      %v6213 = vpop.f32.mrb[0].mxu0
      %v6214 = vadd.f32 %v6053, %v6213
      %v6215 = vpop.f32.mrb[0].mxu0
      %v6216 = vpop.f32.mrb[0].mxu0
      %v6217 = vadd.f32 %v6056, %v6216
      %v6218 = vpop.f32.mrb[0].mxu0
      %6219 = vmatprep.mubr.bf16.mxu0 %v4989
      %6220 = vmatmul.mubr.bf16.gmra.mrb[0].mxu0 %v5262
      %v6221 = vpop.f32.mrb[0].mxu0
      %v6222 = vadd.f32 %v6061, %v6221
      %v6223 = vpop.f32.mrb[0].mxu0
      %v6224 = vpop.f32.mrb[0].mxu0
      %v6225 = vadd.f32 %v6064, %v6224
      %v6226 = vpop.f32.mrb[0].mxu0
      %6227 = vmatprep.mubr.bf16.mxu0 %v4992
      %6228 = vmatmul.mubr.bf16.gmra.mrb[0].mxu0 %v5263
      %v6229 = vpop.f32.mrb[0].mxu0
      %v6230 = vadd.f32 %v6069, %v6229
      %v6231 = vpop.f32.mrb[0].mxu0
      %v6232 = vpop.f32.mrb[0].mxu0
      %v6233 = vadd.f32 %v6072, %v6232
      %v6234 = vpop.f32.mrb[0].mxu0
      %6235 = vmatprep.mubr.bf16.mxu0 %v4995
      %6236 = vmatmul.mubr.bf16.gmra.mrb[0].mxu0 %v5264
      %v6237 = vpop.f32.mrb[0].mxu0
      %v6238 = vadd.f32 %v6077, %v6237
      %v6239 = vpop.f32.mrb[0].mxu0
      %v6240 = vpop.f32.mrb[0].mxu0
      %v6241 = vadd.f32 %v6080, %v6240
      %v6242 = vpop.f32.mrb[0].mxu0
      %6243 = vmatprep.mubr.bf16.mxu0 %v4998
      %6244 = vmatmul.mubr.bf16.gmra.mrb[0].mxu0 %v5265
      %v6245 = vpop.f32.mrb[0].mxu0
      %v6246 = vadd.f32 %v6085, %v6245
      %v6247 = vpop.f32.mrb[0].mxu0
      %v6248 = vpop.f32.mrb[0].mxu0
      %v6249 = vadd.f32 %v6088, %v6248
      %v6250 = vpop.f32.mrb[0].mxu0
      %6251 = vmatprep.mubr.bf16.mxu0 %v5001
      %6252 = vmatmul.mubr.bf16.gmra.mrb[0].mxu0 %v5266
      %v6253 = vpop.f32.mrb[0].mxu0
      %v6254 = vadd.f32 %v6093, %v6253
      %v6255 = vpop.f32.mrb[0].mxu0
      %v6256 = vpop.f32.mrb[0].mxu0
      %v6257 = vadd.f32 %v6096, %v6256
      %v6258 = vpop.f32.mrb[0].mxu0
      %6259 = vmatprep.mubr.bf16.mxu0 %v5004
      %6260 = vmatmul.mubr.bf16.gmra.mrb[0].mxu0 %v5267
      %v6261 = vpop.f32.mrb[0].mxu0
      %v6262 = vadd.f32 %v6101, %v6261
      %v6263 = vpop.f32.mrb[0].mxu0
      %v6264 = vpop.f32.mrb[0].mxu0
      %v6265 = vadd.f32 %v6104, %v6264
      %v6266 = vpop.f32.mrb[0].mxu0
      %6267 = vmatprep.mubr.bf16.mxu0 %v5007
      %6268 = vmatmul.mubr.bf16.gmra.mrb[0].mxu0 %v5268
      %v6269 = vpop.f32.mrb[0].mxu0
      %v6270 = vadd.f32 %v6109, %v6269
      %v6271 = vpop.f32.mrb[0].mxu0
      %v6272 = vpop.f32.mrb[0].mxu0
      %v6273 = vadd.f32 %v6112, %v6272
      %v6274 = vpop.f32.mrb[0].mxu0
      %6275 = vmatprep.mubr.bf16.mxu0 %v5010
      %6276 = vmatmul.mubr.bf16.gmra.mrb[0].mxu0 %v5269
      %v6277 = vpop.f32.mrb[0].mxu0
      %v6278 = vadd.f32 %v6117, %v6277
      %v6279 = vpop.f32.mrb[0].mxu0
      %v6280 = vpop.f32.mrb[0].mxu0
      %v6281 = vadd.f32 %v6120, %v6280
      %v6282 = vpop.f32.mrb[0].mxu0
      %6283 = vmatprep.mubr.bf16.mxu0 %v4962
      %6284 = vmatmul.mubr.bf16.gmra.mrb[0].mxu0 %v5270
      %v6285 = vpop.f32.mrb[0].mxu0
      %v6286 = vadd.f32 %v6125, %v6285
      %v6287 = vpop.f32.mrb[0].mxu0
      %v6288 = vpop.f32.mrb[0].mxu0
      %v6289 = vadd.f32 %v6128, %v6288
      %v6290 = vpop.f32.mrb[0].mxu0
      %6291 = vmatprep.mubr.bf16.mxu0 %v4962
      %6292 = vmatmul.mubr.bf16.gmra.mrb[0].mxu0 %v5271
      %v6293 = vpop.f32.mrb[0].mxu0
      %v6294 = vadd.f32 %v6133, %v6293
      %v6295 = vpop.f32.mrb[0].mxu0
      %v6296 = vpop.f32.mrb[0].mxu0
      %v6297 = vadd.f32 %v6136, %v6296
      %v6298 = vpop.f32.mrb[0].mxu0
      %6299 = vdwg.mxu0
      %6300 = vmatprep.subr.bf16.mxu0 0
      %6301 = vmatpush1.bf16.msra.mxu0 %v5733
      %6302 = vmatprep.subr.bf16.mxu0 0
      %6303 = vmatpush1.bf16.msra.mxu0 %v5734
      %6304 = vmatprep.subr.bf16.mxu0 0
      %6305 = vmatpush1.bf16.msra.mxu0 0
      %6306 = vmatprep.subr.bf16.mxu0 0
      %6307 = vmatpush1.bf16.msra.mxu0 0
      %6308 = vmatprep.subr.bf16.mxu0 0
      %6309 = vmatpush1.bf16.msra.mxu0 0
      %6310 = vmatprep.subr.bf16.mxu0 0
      %6311 = vmatpush1.bf16.msra.mxu0 0
      %6312 = vmatprep.subr.bf16.mxu0 0
      %6313 = vmatpush1.bf16.msra.mxu0 0
      %6314 = vmatprep.subr.bf16.mxu0 0
      %6315 = vmatpush1.bf16.msra.mxu0 0
      %6316 = vmatprep.subr.bf16.mxu0 0
      %6317 = vmatpush1.bf16.msra.mxu0 0
      %6318 = vmatprep.subr.bf16.mxu0 0
      %6319 = vmatpush1.bf16.msra.mxu0 0
      %6320 = vmatprep.subr.bf16.mxu0 0
      %6321 = vmatpush1.bf16.msra.mxu0 0
      %6322 = vmatprep.subr.bf16.mxu0 0
      %6323 = vmatpush1.bf16.msra.mxu0 0
      %6324 = vmatprep.subr.bf16.mxu0 0
      %6325 = vmatpush1.bf16.msra.mxu0 0
      %6326 = vmatprep.subr.bf16.mxu0 0
      %6327 = vmatpush1.bf16.msra.mxu0 0
      %6328 = vmatprep.subr.bf16.mxu0 0
      %6329 = vmatpush1.bf16.msra.mxu0 0
      %6330 = vmatprep.subr.bf16.mxu0 0
      %6331 = vmatpush1.bf16.msra.mxu0 0
      %6332 = vmatprep.mubr.bf16.mxu0 0
      %6333 = vmatmul.mubr.bf16.gmra.mrb[0].mxu0 %v5785
      %v6334 = vpop.f32.mrb[0].mxu0
      %v6335 = vadd.f32 %v6174, %v6334
      %v6336 = vpop.f32.mrb[0].mxu0
      %v6337 = vpop.f32.mrb[0].mxu0
      %v6338 = vadd.f32 %v6177, %v6337
      %v6339 = vpop.f32.mrb[0].mxu0
      %6340 = vmatprep.mubr.bf16.mxu0 0
      %6341 = vmatmul.mubr.bf16.gmra.mrb[0].mxu0 %v5787
      %v6342 = vpop.f32.mrb[0].mxu0
      %v6343 = vadd.f32 %v6182, %v6342
      %v6344 = vpop.f32.mrb[0].mxu0
      %v6345 = vpop.f32.mrb[0].mxu0
      %v6346 = vadd.f32 %v6185, %v6345
      %v6347 = vpop.f32.mrb[0].mxu0
      %6348 = vmatprep.mubr.bf16.mxu0 0
      %6349 = vmatmul.mubr.bf16.gmra.mrb[0].mxu0 %v5789
      %v6350 = vpop.f32.mrb[0].mxu0
      %v6351 = vadd.f32 %v6190, %v6350
      %v6352 = vpop.f32.mrb[0].mxu0
      %v6353 = vpop.f32.mrb[0].mxu0
      %v6354 = vadd.f32 %v6193, %v6353
      %v6355 = vpop.f32.mrb[0].mxu0
      %6356 = vmatprep.mubr.bf16.mxu0 0
      %6357 = vmatmul.mubr.bf16.gmra.mrb[0].mxu0 %v5791
      %v6358 = vpop.f32.mrb[0].mxu0
      %v6359 = vadd.f32 %v6198, %v6358
      %v6360 = vpop.f32.mrb[0].mxu0
      %v6361 = vpop.f32.mrb[0].mxu0
      %v6362 = vadd.f32 %v6201, %v6361
      %v6363 = vpop.f32.mrb[0].mxu0
      %6364 = vmatprep.mubr.bf16.mxu0 0
      %6365 = vmatmul.mubr.bf16.gmra.mrb[0].mxu0 %v5793
      %v6366 = vpop.f32.mrb[0].mxu0
      %v6367 = vadd.f32 %v6206, %v6366
      %v6368 = vpop.f32.mrb[0].mxu0
      %v6369 = vpop.f32.mrb[0].mxu0
      %v6370 = vadd.f32 %v6209, %v6369
      %v6371 = vpop.f32.mrb[0].mxu0
      %6372 = vmatprep.mubr.bf16.mxu0 0
      %6373 = vmatmul.mubr.bf16.gmra.mrb[0].mxu0 %v5795
      %v6374 = vpop.f32.mrb[0].mxu0
      %v6375 = vadd.f32 %v6214, %v6374
      %v6376 = vpop.f32.mrb[0].mxu0
      %v6377 = vpop.f32.mrb[0].mxu0
      %v6378 = vadd.f32 %v6217, %v6377
      %v6379 = vpop.f32.mrb[0].mxu0
      %6380 = vmatprep.mubr.bf16.mxu0 0
      %6381 = vmatmul.mubr.bf16.gmra.mrb[0].mxu0 %v5797
      %v6382 = vpop.f32.mrb[0].mxu0
      %v6383 = vadd.f32 %v6222, %v6382
      %v6384 = vpop.f32.mrb[0].mxu0
      %v6385 = vpop.f32.mrb[0].mxu0
      %v6386 = vadd.f32 %v6225, %v6385
      %v6387 = vpop.f32.mrb[0].mxu0
      %6388 = vmatprep.mubr.bf16.mxu0 0
      %6389 = vmatmul.mubr.bf16.gmra.mrb[0].mxu0 %v5799
      %v6390 = vpop.f32.mrb[0].mxu0
      %v6391 = vadd.f32 %v6230, %v6390
      %v6392 = vpop.f32.mrb[0].mxu0
      %v6393 = vpop.f32.mrb[0].mxu0
      %v6394 = vadd.f32 %v6233, %v6393
      %v6395 = vpop.f32.mrb[0].mxu0
      %6396 = vmatprep.mubr.bf16.mxu0 0
      %6397 = vmatmul.mubr.bf16.gmra.mrb[0].mxu0 %v5801
      %v6398 = vpop.f32.mrb[0].mxu0
      %v6399 = vadd.f32 %v6238, %v6398
      %v6400 = vpop.f32.mrb[0].mxu0
      %v6401 = vpop.f32.mrb[0].mxu0
      %v6402 = vadd.f32 %v6241, %v6401
      %v6403 = vpop.f32.mrb[0].mxu0
      %6404 = vmatprep.mubr.bf16.mxu0 0
      %6405 = vmatmul.mubr.bf16.gmra.mrb[0].mxu0 %v5803
      %v6406 = vpop.f32.mrb[0].mxu0
      %v6407 = vadd.f32 %v6246, %v6406
      %v6408 = vpop.f32.mrb[0].mxu0
      %v6409 = vpop.f32.mrb[0].mxu0
      %v6410 = vadd.f32 %v6249, %v6409
      %v6411 = vpop.f32.mrb[0].mxu0
      %6412 = vmatprep.mubr.bf16.mxu0 0
      %6413 = vmatmul.mubr.bf16.gmra.mrb[0].mxu0 %v5805
      %v6414 = vpop.f32.mrb[0].mxu0
      %v6415 = vadd.f32 %v6254, %v6414
      %v6416 = vpop.f32.mrb[0].mxu0
      %v6417 = vpop.f32.mrb[0].mxu0
      %v6418 = vadd.f32 %v6257, %v6417
      %v6419 = vpop.f32.mrb[0].mxu0
      %6420 = vmatprep.mubr.bf16.mxu0 0
      %6421 = vmatmul.mubr.bf16.gmra.mrb[0].mxu0 %v5807
      %v6422 = vpop.f32.mrb[0].mxu0
      %v6423 = vadd.f32 %v6262, %v6422
      %v6424 = vpop.f32.mrb[0].mxu0
      %v6425 = vpop.f32.mrb[0].mxu0
      %v6426 = vadd.f32 %v6265, %v6425
      %v6427 = vpop.f32.mrb[0].mxu0
      %6428 = vmatprep.mubr.bf16.mxu0 0
      %6429 = vmatmul.mubr.bf16.gmra.mrb[0].mxu0 %v5810
      %v6430 = vpop.f32.mrb[0].mxu0
      %v6431 = vadd.f32 %v6270, %v6430
      %v6432 = vpop.f32.mrb[0].mxu0
      %v6433 = vpop.f32.mrb[0].mxu0
      %v6434 = vadd.f32 %v6273, %v6433
      %v6435 = vpop.f32.mrb[0].mxu0
      %6436 = vmatprep.mubr.bf16.mxu0 0
      %6437 = vmatmul.mubr.bf16.gmra.mrb[0].mxu0 %v5813
      %v6438 = vpop.f32.mrb[0].mxu0
      %v6439 = vadd.f32 %v6278, %v6438
      %v6440 = vpop.f32.mrb[0].mxu0
      %v6441 = vpop.f32.mrb[0].mxu0
      %v6442 = vadd.f32 %v6281, %v6441
      %v6443 = vpop.f32.mrb[0].mxu0
      %6444 = vmatprep.mubr.bf16.mxu0 0
      %6445 = vmatmul.mubr.bf16.gmra.mrb[0].mxu0 %v5815
      %v6446 = vpop.f32.mrb[0].mxu0
      %v6447 = vadd.f32 %v6286, %v6446
      %v6448 = vpop.f32.mrb[0].mxu0
      %v6449 = vpop.f32.mrb[0].mxu0
      %v6450 = vadd.f32 %v6289, %v6449
      %v6451 = vpop.f32.mrb[0].mxu0
      %6452 = vmatprep.mubr.bf16.mxu0 0
      %6453 = vmatmul.mubr.bf16.gmra.mrb[0].mxu0 %v5815
      %v6454 = vpop.f32.mrb[0].mxu0
      %v6455 = vadd.f32 %v6294, %v6454
      %v6456 = vpop.f32.mrb[0].mxu0
      %v6457 = vpop.f32.mrb[0].mxu0
      %v6458 = vadd.f32 %v6297, %v6457
      %v6459 = vpop.f32.mrb[0].mxu0
      %6460 = vdwg.mxu0
      %v6461 = vmax.f32 %v6335, 0.0
      %v6462 = vmax.f32 %v6338, 0.0
      %v6463 = vmax.f32 %v6343, 0.0
      %v6464 = vmax.f32 %v6346, 0.0
      %v6465 = vmax.f32 %v6351, 0.0
      %v6466 = vmax.f32 %v6354, 0.0
      %v6467 = vmax.f32 %v6359, 0.0
      %v6468 = vmax.f32 %v6362, 0.0
      %v6469 = vmax.f32 %v6367, 0.0
      %v6470 = vmax.f32 %v6370, 0.0
      %v6471 = vmax.f32 %v6375, 0.0
      %v6472 = vmax.f32 %v6378, 0.0
      %v6473 = vmax.f32 %v6383, 0.0
      %v6474 = vmax.f32 %v6386, 0.0
      %v6475 = vmax.f32 %v6391, 0.0
      %v6476 = vmax.f32 %v6394, 0.0
      %v6477 = vmax.f32 %v6399, 0.0
      %v6478 = vmax.f32 %v6402, 0.0
      %v6479 = vmax.f32 %v6407, 0.0
      %v6480 = vmax.f32 %v6410, 0.0
      %v6481 = vmax.f32 %v6415, 0.0
      %v6482 = vmax.f32 %v6418, 0.0
      %v6483 = vmax.f32 %v6423, 0.0
      %v6484 = vmax.f32 %v6426, 0.0
      %v6485 = vmax.f32 %v6431, 0.0
      %v6486 = vmax.f32 %v6434, 0.0
      %v6487 = vmax.f32 %v6439, 0.0
      %v6488 = vmax.f32 %v6442, 0.0
      %v6489 = vmax.f32 %v6447, 0.0
      %v6490 = vmax.f32 %v6450, 0.0
      %v6491 = vmax.f32 %v6455, 0.0
      %v6492 = vmax.f32 %v6458, 0.0
      %v6525 = vrot.slane %v6461, 1
      %v6526 = vrot.slane %v6462, 1
      %v6527 = vsel %vm2201, %v6525, %v6526
      %v6528 = vrot.slane %v6463, 1
      %v6529 = vsel %vm2201, %v6526, %v6528
      %v6530 = vrot.slane %v6464, 1
      %v6531 = vsel %vm2201, %v6528, %v6530
      %v6532 = vrot.slane %v6465, 1
      %v6533 = vsel %vm2201, %v6530, %v6532
      %v6534 = vrot.slane %v6466, 1
      %v6535 = vsel %vm2201, %v6532, %v6534
      %v6536 = vrot.slane %v6467, 1
      %v6537 = vsel %vm2201, %v6534, %v6536
      %v6538 = vrot.slane %v6468, 1
      %v6539 = vsel %vm2201, %v6536, %v6538
      %v6540 = vrot.slane %v6469, 1
      %v6541 = vsel %vm2201, %v6538, %v6540
      %v6542 = vrot.slane %v6470, 1
      %v6543 = vsel %vm2201, %v6540, %v6542
      %v6544 = vrot.slane %v6471, 1
      %v6545 = vsel %vm2201, %v6542, %v6544
      %v6546 = vrot.slane %v6472, 1
      %v6547 = vsel %vm2201, %v6544, %v6546
      %v6548 = vrot.slane %v6473, 1
      %v6549 = vsel %vm2201, %v6546, %v6548
      %v6550 = vrot.slane %v6474, 1
      %v6551 = vsel %vm2201, %v6548, %v6550
      %v6552 = vrot.slane %v6475, 1
      %v6553 = vsel %vm2201, %v6550, %v6552
      %v6554 = vrot.slane %v6476, 1
      %v6555 = vsel %vm2201, %v6552, %v6554
      %v6556 = vrot.slane %v6477, 1
      %v6557 = vsel %vm2201, %v6554, %v6556
      %v6558 = vrot.slane %v6478, 1
      %v6559 = vsel %vm2201, %v6556, %v6558
      %v6560 = vrot.slane %v6479, 1
      %v6561 = vsel %vm2201, %v6558, %v6560
      %v6562 = vrot.slane %v6480, 1
      %v6563 = vsel %vm2201, %v6560, %v6562
      %v6564 = vrot.slane %v6481, 1
      %v6565 = vsel %vm2201, %v6562, %v6564
      %v6566 = vrot.slane %v6482, 1
      %v6567 = vsel %vm2201, %v6564, %v6566
      %v6568 = vrot.slane %v6483, 1
      %v6569 = vsel %vm2201, %v6566, %v6568
      %v6570 = vrot.slane %v6484, 1
      %v6571 = vsel %vm2201, %v6568, %v6570
      %v6572 = vrot.slane %v6485, 1
      %v6573 = vsel %vm2201, %v6570, %v6572
      %v6574 = vrot.slane %v6486, 1
      %v6575 = vsel %vm2201, %v6572, %v6574
      %v6576 = vrot.slane %v6487, 1
      %v6577 = vsel %vm2201, %v6574, %v6576
      %v6578 = vrot.slane %v6488, 1
      %v6579 = vsel %vm2201, %v6576, %v6578
      %v6580 = vrot.slane %v6489, 1
      %v6581 = vsel %vm2201, %v6578, %v6580
      %v6582 = vrot.slane %v6490, 1
      %v6583 = vsel %vm2201, %v6580, %v6582
      %v6584 = vrot.slane %v6491, 1
      %v6585 = vsel %vm2201, %v6582, %v6584
      %v6586 = vrot.slane %v6492, 1
      %v6587 = vsel %vm2201, %v6584, %v6586
      %v6620 = vmax.f32 %v6461, %v6527
      %v6621 = vmax.f32 %v6462, %v6529
      %v6622 = vmax.f32 %v6463, %v6531
      %v6623 = vmax.f32 %v6464, %v6533
      %v6624 = vmax.f32 %v6465, %v6535
      %v6625 = vmax.f32 %v6466, %v6537
      %v6626 = vmax.f32 %v6467, %v6539
      %v6627 = vmax.f32 %v6468, %v6541
      %v6628 = vmax.f32 %v6469, %v6543
      %v6629 = vmax.f32 %v6470, %v6545
      %v6630 = vmax.f32 %v6471, %v6547
      %v6631 = vmax.f32 %v6472, %v6549
      %v6632 = vmax.f32 %v6473, %v6551
      %v6633 = vmax.f32 %v6474, %v6553
      %v6634 = vmax.f32 %v6475, %v6555
      %v6635 = vmax.f32 %v6476, %v6557
      %v6636 = vmax.f32 %v6477, %v6559
      %v6637 = vmax.f32 %v6478, %v6561
      %v6638 = vmax.f32 %v6479, %v6563
      %v6639 = vmax.f32 %v6480, %v6565
      %v6640 = vmax.f32 %v6481, %v6567
      %v6641 = vmax.f32 %v6482, %v6569
      %v6642 = vmax.f32 %v6483, %v6571
      %v6643 = vmax.f32 %v6484, %v6573
      %v6644 = vmax.f32 %v6485, %v6575
      %v6645 = vmax.f32 %v6486, %v6577
      %v6646 = vmax.f32 %v6487, %v6579
      %v6647 = vmax.f32 %v6488, %v6581
      %v6648 = vmax.f32 %v6489, %v6583
      %v6649 = vmax.f32 %v6490, %v6585
      %v6650 = vmax.f32 %v6491, %v6587
      %v6651 = vmax.f32 %v6492, %v6586
      %v6652 = vmax.f32 %v6620, %v6622
      %v6653 = vmax.f32 %v6621, %v6623
      %v6654 = vmax.f32 %v6622, %v6624
      %v6655 = vmax.f32 %v6623, %v6625
      %v6656 = vmax.f32 %v6624, %v6626
      %v6657 = vmax.f32 %v6625, %v6627
      %v6658 = vmax.f32 %v6626, %v6628
      %v6659 = vmax.f32 %v6627, %v6629
      %v6660 = vmax.f32 %v6628, %v6630
      %v6661 = vmax.f32 %v6629, %v6631
      %v6662 = vmax.f32 %v6630, %v6632
      %v6663 = vmax.f32 %v6631, %v6633
      %v6664 = vmax.f32 %v6632, %v6634
      %v6665 = vmax.f32 %v6633, %v6635
      %v6666 = vmax.f32 %v6634, %v6636
      %v6667 = vmax.f32 %v6635, %v6637
      %v6668 = vmax.f32 %v6636, %v6638
      %v6669 = vmax.f32 %v6637, %v6639
      %v6670 = vmax.f32 %v6638, %v6640
      %v6671 = vmax.f32 %v6639, %v6641
      %v6672 = vmax.f32 %v6640, %v6642
      %v6673 = vmax.f32 %v6641, %v6643
      %v6674 = vmax.f32 %v6642, %v6644
      %v6675 = vmax.f32 %v6643, %v6645
      %v6676 = vmax.f32 %v6644, %v6646
      %v6677 = vmax.f32 %v6645, %v6647
      %v6678 = vmax.f32 %v6646, %v6648
      %v6679 = vmax.f32 %v6647, %v6649
      %v6680 = vmax.f32 %v6648, %v6650
      %v6681 = vmax.f32 %v6649, %v6651
      %v6682 = vpack.c.bf16 %v6653, %v6652
      %v6683 = vpack.c.bf16 %v6655, %v6654
      %v6684 = vpack.c.bf16 %v6657, %v6656
      %v6685 = vpack.c.bf16 %v6659, %v6658
      %v6686 = vpack.c.bf16 %v6661, %v6660
      %v6687 = vpack.c.bf16 %v6663, %v6662
      %v6688 = vpack.c.bf16 %v6665, %v6664
      %v6689 = vpack.c.bf16 %v6667, %v6666
      %v6690 = vpack.c.bf16 %v6669, %v6668
      %v6691 = vpack.c.bf16 %v6671, %v6670
      %v6692 = vpack.c.bf16 %v6673, %v6672
      %v6693 = vpack.c.bf16 %v6675, %v6674
      %v6694 = vpack.c.bf16 %v6677, %v6676
      %v6695 = vpack.c.bf16 %v6679, %v6678
      %v6696 = vpack.c.bf16 %v6681, %v6680
      %v6705 = vunpack.c.l.b16 %v702
      %v6706 = vunpack.c.h.b16 %v702
      %v6707 = vunpack.c.l.b16 %v703
      %v6708 = vunpack.c.h.b16 %v703
      %v6709 = vunpack.c.l.b16 %v704
      %v6710 = vunpack.c.h.b16 %v704
      %v6711 = vunpack.c.l.b16 %v705
      %v6712 = vunpack.c.h.b16 %v705
      %v6713 = vunpack.c.l.b16 %v706
      %v6714 = vunpack.c.h.b16 %v706
      %v6715 = vunpack.c.l.b16 %v707
      %v6716 = vunpack.c.h.b16 %v707
      %v6717 = vunpack.c.l.b16 %v708
      %v6718 = vunpack.c.h.b16 %v708
      %v6719 = vunpack.c.l.b16 %v709
      %v6720 = vunpack.c.h.b16 %v709
      %v6721 = vpack.c.b16 %v6707, %v6705
      %v6722 = vpack.c.b16 %v6708, %v6706
      %v6723 = vpack.c.b16 %v6711, %v6709
      %v6724 = vpack.c.b16 %v6712, %v6710
      %v6725 = vpack.c.b16 %v6715, %v6713
      %v6726 = vpack.c.b16 %v6716, %v6714
      %v6727 = vpack.c.b16 %v6719, %v6717
      %v6728 = vpack.c.b16 %v6720, %v6718
      %vm6733 = vcmask 908288
      %v6735 = vsel %vm6733, %v6722, 0
      %v6738 = vsel %vm6733, %v6724, 0
      %v6741 = vsel %vm6733, %v6726, 0
      %v6744 = vsel %vm6733, %v6728, 0
      %v6747 = vand.u32 %v6696, %v3574
      %6749 = vmatprep.subr.bf16.mxu0 0
      %6750 = vmatpush1.bf16.msra.mxu0 %v6682
      %6751 = vmatprep.subr.bf16.mxu0 0
      %6752 = vmatpush1.bf16.msra.mxu0 %v6683
      %6753 = vmatprep.subr.bf16.mxu0 0
      %6754 = vmatpush1.bf16.msra.mxu0 %v6684
      %6755 = vmatprep.subr.bf16.mxu0 0
      %6756 = vmatpush1.bf16.msra.mxu0 %v6685
      %6757 = vmatprep.subr.bf16.mxu0 0
      %6758 = vmatpush1.bf16.msra.mxu0 %v6686
      %6759 = vmatprep.subr.bf16.mxu0 0
      %6760 = vmatpush1.bf16.msra.mxu0 %v6687
      %6761 = vmatprep.subr.bf16.mxu0 0
      %6762 = vmatpush1.bf16.msra.mxu0 %v6688
      %6763 = vmatprep.subr.bf16.mxu0 0
      %6764 = vmatpush1.bf16.msra.mxu0 %v6689
      %6765 = vmatprep.subr.bf16.mxu0 0
      %6766 = vmatpush1.bf16.msra.mxu0 %v6690
      %6767 = vmatprep.subr.bf16.mxu0 0
      %6768 = vmatpush1.bf16.msra.mxu0 %v6691
      %6769 = vmatprep.subr.bf16.mxu0 0
      %6770 = vmatpush1.bf16.msra.mxu0 %v6692
      %6771 = vmatprep.subr.bf16.mxu0 0
      %6772 = vmatpush1.bf16.msra.mxu0 %v6693
      %6773 = vmatprep.subr.bf16.mxu0 0
      %6774 = vmatpush1.bf16.msra.mxu0 %v6694
      %6775 = vmatprep.subr.bf16.mxu0 0
      %6776 = vmatpush1.bf16.msra.mxu0 %v6695
      %6777 = vmatprep.subr.bf16.mxu0 0
      %6778 = vmatpush1.bf16.msra.mxu0 %v6747
      %6779 = vmatprep.subr.bf16.mxu0 0
      %6780 = vmatpush1.bf16.msra.mxu0 0
      %6781 = vmatprep.mubr.bf16.mxu0 %v6735
      %6782 = vmatmul.mubr.bf16.gmra.mrb[0].mxu0 %v6721
      %v6783 = vpop.f32.mrb[0].mxu0
      %v6784 = vadd.f32 0.0, %v6783
      %v6785 = vpop.f32.mrb[0].mxu0
      %v6786 = vpop.f32.mrb[0].mxu0
      %v6787 = vadd.f32 0.0, %v6786
      %v6788 = vpop.f32.mrb[0].mxu0
      %6789 = vmatprep.mubr.bf16.mxu0 %v6738
      %6790 = vmatmul.mubr.bf16.gmra.mrb[0].mxu0 %v6723
      %v6791 = vpop.f32.mrb[0].mxu0
      %v6792 = vadd.f32 0.0, %v6791
      %v6793 = vpop.f32.mrb[0].mxu0
      %v6794 = vpop.f32.mrb[0].mxu0
      %v6795 = vadd.f32 0.0, %v6794
      %v6796 = vpop.f32.mrb[0].mxu0
      %6797 = vmatprep.mubr.bf16.mxu0 %v6741
      %6798 = vmatmul.mubr.bf16.gmra.mrb[0].mxu0 %v6725
      %v6799 = vpop.f32.mrb[0].mxu0
      %v6800 = vadd.f32 0.0, %v6799
      %v6801 = vpop.f32.mrb[0].mxu0
      %v6802 = vpop.f32.mrb[0].mxu0
      %v6803 = vadd.f32 0.0, %v6802
      %v6804 = vpop.f32.mrb[0].mxu0
      %6805 = vmatprep.mubr.bf16.mxu0 %v6744
      %6806 = vmatmul.mubr.bf16.gmra.mrb[0].mxu0 %v6727
      %v6807 = vpop.f32.mrb[0].mxu0
      %v6808 = vadd.f32 0.0, %v6807
      %v6809 = vpop.f32.mrb[0].mxu0
      %v6810 = vpop.f32.mrb[0].mxu0
      %v6811 = vadd.f32 0.0, %v6810
      %v6812 = vpop.f32.mrb[0].mxu0
      %6813 = vdwg.mxu0
      %v6814 = vpack.c.bf16 %v6787, %v6784
      %v6815 = vpack.c.bf16 %v6795, %v6792
      %v6816 = vpack.c.bf16 %v6803, %v6800
      %v6817 = vpack.c.bf16 %v6811, %v6808
      %v6822 = vunpack.c.l.b16 %v6814
      %v6823 = vunpack.c.h.b16 %v6814
      %v6824 = vunpack.c.l.b16 %v6815
      %v6825 = vunpack.c.h.b16 %v6815
      %v6826 = vunpack.c.l.b16 %v6816
      %v6827 = vunpack.c.h.b16 %v6816
      %v6828 = vunpack.c.l.b16 %v6817
      %v6829 = vunpack.c.h.b16 %v6817
      %v6830 = vpack.c.b16 %v6822, %v6822
      %v6831 = vpack.c.b16 %v6823, %v6823
      %v6832 = vpack.c.b16 %v6824, %v6824
      %v6833 = vpack.c.b16 %v6825, %v6825
      %v6834 = vpack.c.b16 %v6826, %v6826
      %v6835 = vpack.c.b16 %v6827, %v6827
      %v6836 = vpack.c.b16 %v6828, %v6828
      %v6837 = vpack.c.b16 %v6829, %v6829
      %v6838 = vrot.slane %v6830, 7
      %v6839 = vrot.slane %v6831, 7
      %v6840 = vrot.slane %v6832, 7
      %v6841 = vrot.slane %v6833, 7
      %v6842 = vrot.slane %v6834, 7
      %v6843 = vrot.slane %v6835, 7
      %v6844 = vrot.slane %v6836, 7
      %v6845 = vrot.slane %v6837, 7
      %v6847 = vsel %vm4272, 0, %v6838
      %v6849 = vsel %vm4272, 0, %v6839
      %v6851 = vsel %vm4272, 0, %v6840
      %v6853 = vsel %vm4272, 0, %v6841
      %v6855 = vsel %vm4272, 0, %v6842
      %v6857 = vsel %vm4272, 0, %v6843
      %v6859 = vsel %vm4272, 0, %v6844
      %v6861 = vsel %vm4272, 0, %v6845
      %v6862 = vsel %vm1393, %v4275, 0
      %v6863 = vsel %vm1393, %v6847, 0
      %v6864 = vsel %vm1393, %v6849, 0
      %v6865 = vsel %vm1393, %v6851, 0
      %v6866 = vsel %vm1393, %v6853, 0
      %v6867 = vsel %vm1393, %v6855, 0
      %v6868 = vsel %vm1393, %v6857, 0
      %v6869 = vsel %vm1393, %v6859, 0
      %v6870 = vsel %vm1393, %v6861, 0
      %v6871 = vshrl.u32 %v6862, 16
      %v6873 = vshll.u32 %v6862, 16
      %v6875 = vrot.slane %v6873, 1
      %v6876 = vor.u32 %v6871, %v6875
      %v6877 = vshrl.u32 %v6863, 16
      %v6879 = vshll.u32 %v6863, 16
      %v6881 = vrot.slane %v6879, 1
      %v6882 = vor.u32 %v6877, %v6881
      %v6883 = vshrl.u32 %v6864, 16
      %v6885 = vshll.u32 %v6864, 16
      %v6887 = vrot.slane %v6885, 1
      %v6888 = vor.u32 %v6883, %v6887
      %v6889 = vshrl.u32 %v6865, 16
      %v6891 = vshll.u32 %v6865, 16
      %v6893 = vrot.slane %v6891, 1
      %v6894 = vor.u32 %v6889, %v6893
      %v6895 = vshrl.u32 %v6866, 16
      %v6897 = vshll.u32 %v6866, 16
      %v6899 = vrot.slane %v6897, 1
      %v6900 = vor.u32 %v6895, %v6899
      %v6901 = vshrl.u32 %v6867, 16
      %v6903 = vshll.u32 %v6867, 16
      %v6905 = vrot.slane %v6903, 1
      %v6906 = vor.u32 %v6901, %v6905
      %v6907 = vshrl.u32 %v6868, 16
      %v6909 = vshll.u32 %v6868, 16
      %v6911 = vrot.slane %v6909, 1
      %v6912 = vor.u32 %v6907, %v6911
      %v6913 = vshrl.u32 %v6869, 16
      %v6915 = vshll.u32 %v6869, 16
      %v6917 = vrot.slane %v6915, 1
      %v6918 = vor.u32 %v6913, %v6917
      %v6919 = vshrl.u32 %v6870, 16
      %v6921 = vshll.u32 %v6870, 16
      %v6923 = vrot.slane %v6921, 1
      %v6924 = vor.u32 %v6919, %v6923
      %6925 = vrot.lane.b32.xlu0 %v6876, 32
      %v6926 = vpop.permute.xlu0 %6925
      %6927 = vrot.lane.b32.xlu0 %v6882, 32
      %v6928 = vpop.permute.xlu0 %6927
      %6929 = vrot.lane.b32.xlu0 %v6888, 32
      %v6930 = vpop.permute.xlu0 %6929
      %6931 = vrot.lane.b32.xlu0 %v6894, 32
      %v6932 = vpop.permute.xlu0 %6931
      %6933 = vrot.lane.b32.xlu0 %v6900, 32
      %v6934 = vpop.permute.xlu0 %6933
      %6935 = vrot.lane.b32.xlu0 %v6906, 32
      %v6936 = vpop.permute.xlu0 %6935
      %6937 = vrot.lane.b32.xlu0 %v6912, 32
      %v6938 = vpop.permute.xlu0 %6937
      %6939 = vrot.lane.b32.xlu0 %v6918, 32
      %v6940 = vpop.permute.xlu0 %6939
      %6941 = vrot.lane.b32.xlu0 %v6924, 32
      %v6942 = vpop.permute.xlu0 %6941
      %v6952 = vrot.slane %v6862, 1
      %v6953 = vrot.slane %v6863, 1
      %v6954 = vrot.slane %v6864, 1
      %v6955 = vrot.slane %v6865, 1
      %v6956 = vrot.slane %v6866, 1
      %v6957 = vrot.slane %v6867, 1
      %v6958 = vrot.slane %v6868, 1
      %v6959 = vrot.slane %v6869, 1
      %v6960 = vrot.slane %v6870, 1
      %6961 = vrot.lane.b32.xlu0 %v6952, 64
      %v6962 = vpop.permute.xlu0 %6961
      %6963 = vrot.lane.b32.xlu0 %v6953, 64
      %v6964 = vpop.permute.xlu0 %6963
      %6965 = vrot.lane.b32.xlu0 %v6954, 64
      %v6966 = vpop.permute.xlu0 %6965
      %6967 = vrot.lane.b32.xlu0 %v6955, 64
      %v6968 = vpop.permute.xlu0 %6967
      %6969 = vrot.lane.b32.xlu0 %v6956, 64
      %v6970 = vpop.permute.xlu0 %6969
      %6971 = vrot.lane.b32.xlu0 %v6957, 64
      %v6972 = vpop.permute.xlu0 %6971
      %6973 = vrot.lane.b32.xlu0 %v6958, 64
      %v6974 = vpop.permute.xlu0 %6973
      %6975 = vrot.lane.b32.xlu0 %v6959, 64
      %v6976 = vpop.permute.xlu0 %6975
      %6977 = vrot.lane.b32.xlu0 %v6960, 64
      %v6978 = vpop.permute.xlu0 %6977
      %v6979 = vrot.slane %v6871, 1
      %v6980 = vrot.slane %v6873, 2
      %v6981 = vor.u32 %v6979, %v6980
      %v6982 = vrot.slane %v6877, 1
      %v6983 = vrot.slane %v6879, 2
      %v6984 = vor.u32 %v6982, %v6983
      %v6985 = vrot.slane %v6883, 1
      %v6986 = vrot.slane %v6885, 2
      %v6987 = vor.u32 %v6985, %v6986
      %v6988 = vrot.slane %v6889, 1
      %v6989 = vrot.slane %v6891, 2
      %v6990 = vor.u32 %v6988, %v6989
      %v6991 = vrot.slane %v6895, 1
      %v6992 = vrot.slane %v6897, 2
      %v6993 = vor.u32 %v6991, %v6992
      %v6994 = vrot.slane %v6901, 1
      %v6995 = vrot.slane %v6903, 2
      %v6996 = vor.u32 %v6994, %v6995
      %v6997 = vrot.slane %v6907, 1
      %v6998 = vrot.slane %v6909, 2
      %v6999 = vor.u32 %v6997, %v6998
      %v7000 = vrot.slane %v6913, 1
      %v7001 = vrot.slane %v6915, 2
      %v7002 = vor.u32 %v7000, %v7001
      %v7003 = vrot.slane %v6919, 1
      %v7004 = vrot.slane %v6921, 2
      %v7005 = vor.u32 %v7003, %v7004
      %7006 = vrot.lane.b32.xlu0 %v6981, 96
      %v7007 = vpop.permute.xlu0 %7006
      %7008 = vrot.lane.b32.xlu0 %v6984, 96
      %v7009 = vpop.permute.xlu0 %7008
      %7010 = vrot.lane.b32.xlu0 %v6987, 96
      %v7011 = vpop.permute.xlu0 %7010
      %7012 = vrot.lane.b32.xlu0 %v6990, 96
      %v7013 = vpop.permute.xlu0 %7012
      %7014 = vrot.lane.b32.xlu0 %v6993, 96
      %v7015 = vpop.permute.xlu0 %7014
      %7016 = vrot.lane.b32.xlu0 %v6996, 96
      %v7017 = vpop.permute.xlu0 %7016
      %7018 = vrot.lane.b32.xlu0 %v6999, 96
      %v7019 = vpop.permute.xlu0 %7018
      %7020 = vrot.lane.b32.xlu0 %v7002, 96
      %v7021 = vpop.permute.xlu0 %7020
      %7022 = vrot.lane.b32.xlu0 %v7005, 96
      %v7023 = vpop.permute.xlu0 %7022
      %v7024 = vrot.slane %v6862, 2
      %v7025 = vrot.slane %v6863, 2
      %v7026 = vrot.slane %v6864, 2
      %v7027 = vrot.slane %v6865, 2
      %v7028 = vrot.slane %v6866, 2
      %v7029 = vrot.slane %v6867, 2
      %v7030 = vrot.slane %v6868, 2
      %v7031 = vrot.slane %v6869, 2
      %v7032 = vrot.slane %v6870, 2
      %v7034 = vsel %vm4890, %v6862, %v6926
      %v7036 = vsel %vm4890, %v6863, %v6928
      %v7038 = vsel %vm4890, %v6864, %v6930
      %v7040 = vsel %vm4890, %v6865, %v6932
      %v7042 = vsel %vm4890, %v6866, %v6934
      %v7044 = vsel %vm4890, %v6867, %v6936
      %v7046 = vsel %vm4890, %v6868, %v6938
      %v7048 = vsel %vm4890, %v6869, %v6940
      %v7050 = vsel %vm4890, %v6870, %v6942
      %v7052 = vsel %vm4925, %v7034, %v6962
      %v7054 = vsel %vm4925, %v7036, %v6964
      %v7056 = vsel %vm4925, %v7038, %v6966
      %v7058 = vsel %vm4925, %v7040, %v6968
      %v7060 = vsel %vm4925, %v7042, %v6970
      %v7062 = vsel %vm4925, %v7044, %v6972
      %v7064 = vsel %vm4925, %v7046, %v6974
      %v7066 = vsel %vm4925, %v7048, %v6976
      %v7068 = vsel %vm4925, %v7050, %v6978
      %v7070 = vsel %vm4960, %v7052, %v7007
      %v7072 = vsel %vm4960, %v7054, %v7009
      %v7074 = vsel %vm4960, %v7056, %v7011
      %v7076 = vsel %vm4960, %v7058, %v7013
      %v7078 = vsel %vm4960, %v7060, %v7015
      %v7080 = vsel %vm4960, %v7062, %v7017
      %v7082 = vsel %vm4960, %v7064, %v7019
      %v7084 = vsel %vm4960, %v7066, %v7021
      %v7086 = vsel %vm4960, %v7068, %v7023
      %7095 = vrot.lane.b32.xlu0 %v7070, 32
      %v7096 = vpop.permute.xlu0 %7095
      %7097 = vrot.lane.b32.xlu0 %v7024, 32
      %v7098 = vpop.permute.xlu0 %7097
      %7099 = vrot.lane.b32.xlu0 %v7072, 32
      %v7100 = vpop.permute.xlu0 %7099
      %7101 = vrot.lane.b32.xlu0 %v7025, 32
      %v7102 = vpop.permute.xlu0 %7101
      %7103 = vrot.lane.b32.xlu0 %v7074, 32
      %v7104 = vpop.permute.xlu0 %7103
      %7105 = vrot.lane.b32.xlu0 %v7026, 32
      %v7106 = vpop.permute.xlu0 %7105
      %7107 = vrot.lane.b32.xlu0 %v7076, 32
      %v7108 = vpop.permute.xlu0 %7107
      %7109 = vrot.lane.b32.xlu0 %v7027, 32
      %v7110 = vpop.permute.xlu0 %7109
      %7111 = vrot.lane.b32.xlu0 %v7078, 32
      %v7112 = vpop.permute.xlu0 %7111
      %7113 = vrot.lane.b32.xlu0 %v7028, 32
      %v7114 = vpop.permute.xlu0 %7113
      %7115 = vrot.lane.b32.xlu0 %v7080, 32
      %v7116 = vpop.permute.xlu0 %7115
      %7117 = vrot.lane.b32.xlu0 %v7029, 32
      %v7118 = vpop.permute.xlu0 %7117
      %7119 = vrot.lane.b32.xlu0 %v7082, 32
      %v7120 = vpop.permute.xlu0 %7119
      %7121 = vrot.lane.b32.xlu0 %v7030, 32
      %v7122 = vpop.permute.xlu0 %7121
      %7123 = vrot.lane.b32.xlu0 %v7084, 32
      %v7124 = vpop.permute.xlu0 %7123
      %7125 = vrot.lane.b32.xlu0 %v7031, 32
      %v7126 = vpop.permute.xlu0 %7125
      %v7127 = vsel %vm5092, %v7096, %v7098
      %v7128 = vsel %vm5092, %v7100, %v7102
      %v7129 = vsel %vm5092, %v7104, %v7106
      %v7130 = vsel %vm5092, %v7108, %v7110
      %v7131 = vsel %vm5092, %v7112, %v7114
      %v7132 = vsel %vm5092, %v7116, %v7118
      %v7133 = vsel %vm5092, %v7120, %v7122
      %v7134 = vsel %vm5092, %v7124, %v7126
      %7136 = vrot.lane.b32.xlu0 %v7072, 64
      %v7137 = vpop.permute.xlu0 %7136
      %7138 = vrot.lane.b32.xlu0 %v7025, 64
      %v7139 = vpop.permute.xlu0 %7138
      %7140 = vrot.lane.b32.xlu0 %v7074, 64
      %v7141 = vpop.permute.xlu0 %7140
      %7142 = vrot.lane.b32.xlu0 %v7026, 64
      %v7143 = vpop.permute.xlu0 %7142
      %7144 = vrot.lane.b32.xlu0 %v7076, 64
      %v7145 = vpop.permute.xlu0 %7144
      %7146 = vrot.lane.b32.xlu0 %v7027, 64
      %v7147 = vpop.permute.xlu0 %7146
      %7148 = vrot.lane.b32.xlu0 %v7078, 64
      %v7149 = vpop.permute.xlu0 %7148
      %7150 = vrot.lane.b32.xlu0 %v7028, 64
      %v7151 = vpop.permute.xlu0 %7150
      %7152 = vrot.lane.b32.xlu0 %v7080, 64
      %v7153 = vpop.permute.xlu0 %7152
      %7154 = vrot.lane.b32.xlu0 %v7029, 64
      %v7155 = vpop.permute.xlu0 %7154
      %7156 = vrot.lane.b32.xlu0 %v7082, 64
      %v7157 = vpop.permute.xlu0 %7156
      %7158 = vrot.lane.b32.xlu0 %v7030, 64
      %v7159 = vpop.permute.xlu0 %7158
      %7160 = vrot.lane.b32.xlu0 %v7084, 64
      %v7161 = vpop.permute.xlu0 %7160
      %7162 = vrot.lane.b32.xlu0 %v7031, 64
      %v7163 = vpop.permute.xlu0 %7162
      %7164 = vrot.lane.b32.xlu0 %v7086, 64
      %v7165 = vpop.permute.xlu0 %7164
      %7166 = vrot.lane.b32.xlu0 %v7032, 64
      %v7167 = vpop.permute.xlu0 %7166
      %v7168 = vsel %vm5174, %v7137, %v7139
      %v7169 = vsel %vm5174, %v7141, %v7143
      %v7170 = vsel %vm5174, %v7145, %v7147
      %v7171 = vsel %vm5174, %v7149, %v7151
      %v7172 = vsel %vm5174, %v7153, %v7155
      %v7173 = vsel %vm5174, %v7157, %v7159
      %v7174 = vsel %vm5174, %v7161, %v7163
      %v7175 = vsel %vm5174, %v7165, %v7167
      %7176 = vrot.lane.b32.xlu0 %v7074, 96
      %v7177 = vpop.permute.xlu0 %7176
      %7178 = vrot.lane.b32.xlu0 %v7026, 96
      %v7179 = vpop.permute.xlu0 %7178
      %7180 = vrot.lane.b32.xlu0 %v7076, 96
      %v7181 = vpop.permute.xlu0 %7180
      %7182 = vrot.lane.b32.xlu0 %v7027, 96
      %v7183 = vpop.permute.xlu0 %7182
      %7184 = vrot.lane.b32.xlu0 %v7078, 96
      %v7185 = vpop.permute.xlu0 %7184
      %7186 = vrot.lane.b32.xlu0 %v7028, 96
      %v7187 = vpop.permute.xlu0 %7186
      %7188 = vrot.lane.b32.xlu0 %v7080, 96
      %v7189 = vpop.permute.xlu0 %7188
      %7190 = vrot.lane.b32.xlu0 %v7029, 96
      %v7191 = vpop.permute.xlu0 %7190
      %7192 = vrot.lane.b32.xlu0 %v7082, 96
      %v7193 = vpop.permute.xlu0 %7192
      %7194 = vrot.lane.b32.xlu0 %v7030, 96
      %v7195 = vpop.permute.xlu0 %7194
      %7196 = vrot.lane.b32.xlu0 %v7084, 96
      %v7197 = vpop.permute.xlu0 %7196
      %7198 = vrot.lane.b32.xlu0 %v7031, 96
      %v7199 = vpop.permute.xlu0 %7198
      %7200 = vrot.lane.b32.xlu0 %v7086, 96
      %v7201 = vpop.permute.xlu0 %7200
      %7202 = vrot.lane.b32.xlu0 %v7032, 96
      %v7203 = vpop.permute.xlu0 %7202
      %7204 = vrot.lane.b32.xlu0 %v7070, 96
      %v7205 = vpop.permute.xlu0 %7204
      %7206 = vrot.lane.b32.xlu0 %v7024, 96
      %v7207 = vpop.permute.xlu0 %7206
      %v7208 = vsel %vm5255, %v7177, %v7179
      %v7209 = vsel %vm5255, %v7181, %v7183
      %v7210 = vsel %vm5255, %v7185, %v7187
      %v7211 = vsel %vm5255, %v7189, %v7191
      %v7212 = vsel %vm5255, %v7193, %v7195
      %v7213 = vsel %vm5255, %v7197, %v7199
      %v7214 = vsel %vm5255, %v7201, %v7203
      %v7215 = vsel %vm5255, %v7205, %v7207
      %v7218 = vsel %vm4890, %v7024, %v7096
      %v7220 = vsel %vm4890, %v7024, %v7100
      %v7223 = vsel %vm4890, %v7025, %v7104
      %v7226 = vsel %vm4890, %v7026, %v7108
      %v7229 = vsel %vm4890, %v7027, %v7112
      %v7232 = vsel %vm4890, %v7028, %v7116
      %v7235 = vsel %vm4890, %v7029, %v7120
      %v7238 = vsel %vm4890, %v7030, %v7124
      %v7241 = vsel %vm4925, %v7127, %v7137
      %v7244 = vsel %vm4925, %v7128, %v7141
      %v7247 = vsel %vm4925, %v7129, %v7145
      %v7250 = vsel %vm4925, %v7130, %v7149
      %v7253 = vsel %vm4925, %v7131, %v7153
      %v7256 = vsel %vm4925, %v7132, %v7157
      %v7259 = vsel %vm4925, %v7133, %v7161
      %v7262 = vsel %vm4925, %v7134, %v7165
      %v7265 = vsel %vm4960, %v7168, %v7177
      %v7268 = vsel %vm4960, %v7169, %v7181
      %v7271 = vsel %vm4960, %v7170, %v7185
      %v7274 = vsel %vm4960, %v7171, %v7189
      %v7277 = vsel %vm4960, %v7172, %v7193
      %v7280 = vsel %vm4960, %v7173, %v7197
      %v7283 = vsel %vm4960, %v7174, %v7201
      %v7286 = vsel %vm4960, %v7175, %v7205
      %v7311 = vunpack.c.l.b16 %v7070
      %v7312 = vunpack.c.l.b16 %v7218
      %v7313 = vunpack.c.l.b16 %v7241
      %v7314 = vunpack.c.l.b16 %v7265
      %v7315 = vunpack.c.l.b16 %v7208
      %v7316 = vunpack.c.l.b16 %v7076
      %v7317 = vunpack.c.l.b16 %v7027
      %v7318 = vunpack.c.l.b16 %v7220
      %v7319 = vunpack.c.l.b16 %v7244
      %v7320 = vunpack.c.l.b16 %v7268
      %v7321 = vunpack.c.l.b16 %v7209
      %v7322 = vunpack.c.l.b16 %v7078
      %v7323 = vunpack.c.l.b16 %v7028
      %v7324 = vunpack.c.l.b16 %v7072
      %v7325 = vunpack.c.l.b16 %v7223
      %v7326 = vunpack.c.l.b16 %v7247
      %v7327 = vunpack.c.l.b16 %v7271
      %v7328 = vunpack.c.l.b16 %v7210
      %v7329 = vunpack.c.l.b16 %v7080
      %v7330 = vunpack.c.l.b16 %v7029
      %v7331 = vunpack.c.l.b16 %v7074
      %v7332 = vunpack.c.l.b16 %v7226
      %v7333 = vunpack.c.l.b16 %v7250
      %v7334 = vunpack.c.l.b16 %v7274
      %v7335 = vunpack.c.l.b16 %v7211
      %v7336 = vunpack.c.l.b16 %v7082
      %v7337 = vunpack.c.l.b16 %v7030
      %v7338 = vunpack.c.l.b16 %v7229
      %v7339 = vunpack.c.l.b16 %v7253
      %v7340 = vunpack.c.l.b16 %v7277
      %v7341 = vunpack.c.l.b16 %v7212
      %v7342 = vunpack.c.l.b16 %v7084
      %v7343 = vunpack.c.l.b16 %v7031
      %v7344 = vunpack.c.l.b16 %v7232
      %v7345 = vunpack.c.l.b16 %v7256
      %v7346 = vunpack.c.l.b16 %v7280
      %v7347 = vunpack.c.l.b16 %v7213
      %v7348 = vunpack.c.l.b16 %v7086
      %v7349 = vunpack.c.l.b16 %v7032
      %v7350 = vunpack.c.l.b16 %v7235
      %v7351 = vunpack.c.l.b16 %v7259
      %v7352 = vunpack.c.l.b16 %v7283
      %v7353 = vunpack.c.l.b16 %v7214
      %v7354 = vunpack.c.l.b16 %v7024
      %v7355 = vunpack.c.l.b16 %v7238
      %v7356 = vunpack.c.l.b16 %v7262
      %v7357 = vunpack.c.l.b16 %v7286
      %v7358 = vunpack.c.l.b16 %v7215
      %v7360 = vlaneseq
      %v7361 = vshrl.u32 %v7360, 7
      %v7362 = vsub.s32 0, %v7361
      %v7363 = vrot.slane %v573, %v7362
      %v7365 = vpack.c.b16 %v7311, %v7311
      %v7366 = vpack.c.b16 %v7318, %v7312
      %v7367 = vpack.c.b16 %v7319, %v7313
      %v7368 = vpack.c.b16 %v7320, %v7314
      %v7369 = vpack.c.b16 %v7321, %v7315
      %v7370 = vpack.c.b16 %v7322, %v7316
      %v7371 = vpack.c.b16 %v7323, %v7317
      %v7372 = vpack.c.b16 %v7331, %v7324
      %v7373 = vpack.c.b16 %v7332, %v7325
      %v7374 = vpack.c.b16 %v7333, %v7326
      %v7375 = vpack.c.b16 %v7334, %v7327
      %v7376 = vpack.c.b16 %v7335, %v7328
      %v7377 = vpack.c.b16 %v7336, %v7329
      %v7378 = vpack.c.b16 %v7337, %v7330
      %v7379 = vpack.c.b16 %v7344, %v7338
      %v7380 = vpack.c.b16 %v7345, %v7339
      %v7381 = vpack.c.b16 %v7346, %v7340
      %v7382 = vpack.c.b16 %v7347, %v7341
      %v7383 = vpack.c.b16 %v7348, %v7342
      %v7384 = vpack.c.b16 %v7349, %v7343
      %v7385 = vpack.c.b16 %v7355, %v7350
      %v7386 = vpack.c.b16 %v7356, %v7351
      %v7387 = vpack.c.b16 %v7357, %v7352
      %v7388 = vpack.c.b16 %v7358, %v7353
      %v7389 = vpack.c.b16 %v7354, %v7354
      %v7511 = vunpack.c.l.b16 %v471
      %v7512 = vunpack.c.l.b16 %v472
      %v7513 = vunpack.c.l.b16 %v473
      %v7514 = vunpack.c.l.b16 %v474
      %v7515 = vunpack.c.l.b16 %v475
      %v7516 = vunpack.c.l.b16 %v476
      %v7517 = vunpack.c.l.b16 %v477
      %v7518 = vunpack.c.l.b16 %v478
      %v7519 = vunpack.c.l.b16 %v479
      %v7520 = vunpack.c.l.b16 %v480
      %v7521 = vunpack.c.l.b16 %v481
      %v7522 = vunpack.c.l.b16 %v482
      %v7523 = vunpack.c.l.b16 %v483
      %v7524 = vunpack.c.l.b16 %v484
      %v7525 = vunpack.c.l.b16 %v485
      %v7526 = vunpack.c.l.b16 %v486
      %v7527 = vunpack.c.l.b16 %v487
      %v7528 = vunpack.c.l.b16 %v488
      %v7529 = vunpack.c.l.b16 %v489
      %v7530 = vunpack.c.l.b16 %v490
      %v7531 = vunpack.c.l.b16 %v491
      %v7532 = vunpack.c.l.b16 %v492
      %v7533 = vunpack.c.l.b16 %v493
      %v7534 = vunpack.c.l.b16 %v494
      %v7535 = vunpack.c.l.b16 %v495
      %v7536 = vunpack.c.l.b16 %v496
      %v7537 = vunpack.c.l.b16 %v497
      %v7538 = vunpack.c.l.b16 %v498
      %v7539 = vunpack.c.l.b16 %v499
      %v7540 = vunpack.c.l.b16 %v500
      %v7541 = vunpack.c.l.b16 %v501
      %v7542 = vunpack.c.l.b16 %v502
      %v7543 = vunpack.c.l.b16 %v503
      %v7544 = vunpack.c.l.b16 %v504
      %v7545 = vunpack.c.l.b16 %v505
      %v7546 = vunpack.c.l.b16 %v506
      %v7547 = vunpack.c.l.b16 %v507
      %v7548 = vunpack.c.l.b16 %v508
      %v7549 = vunpack.c.l.b16 %v509
      %v7550 = vunpack.c.l.b16 %v510
      %v7551 = vunpack.c.l.b16 %v511
      %v7552 = vunpack.c.l.b16 %v512
      %v7553 = vunpack.c.l.b16 %v513
      %v7554 = vunpack.c.l.b16 %v514
      %v7555 = vunpack.c.l.b16 %v515
      %v7556 = vunpack.c.l.b16 %v516
      %v7557 = vunpack.c.l.b16 %v517
      %v7558 = vunpack.c.l.b16 %v518
      %v7559 = vunpack.c.l.b16 %v519
      %v7560 = vunpack.c.l.b16 %v520
      %v7561 = vunpack.c.l.b16 %v521
      %v7562 = vunpack.c.l.b16 %v522
      %v7563 = vunpack.c.l.b16 %v523
      %v7564 = vunpack.c.l.b16 %v524
      %v7565 = vunpack.c.l.b16 %v525
      %v7566 = vunpack.c.l.b16 %v526
      %v7567 = vunpack.c.l.b16 %v527
      %v7568 = vunpack.c.l.b16 %v528
      %v7569 = vunpack.c.l.b16 %v529
      %v7570 = vunpack.c.l.b16 %v530
      %v7571 = vunpack.c.l.b16 %v531
      %v7572 = vunpack.c.l.b16 %v532
      %v7573 = vunpack.c.l.b16 %v533
      %v7574 = vunpack.c.l.b16 %v534
      %v7575 = vunpack.c.l.b16 %v535
      %v7576 = vunpack.c.l.b16 %v536
      %v7577 = vunpack.c.l.b16 %v537
      %v7578 = vunpack.c.l.b16 %v538
      %v7579 = vunpack.c.l.b16 %v539
      %v7580 = vunpack.c.l.b16 %v540
      %v7581 = vunpack.c.l.b16 %v541
      %v7582 = vunpack.c.l.b16 %v542
      %v7583 = vunpack.c.l.b16 %v543
      %v7584 = vunpack.c.l.b16 %v544
      %v7585 = vunpack.c.l.b16 %v545
      %v7586 = vunpack.c.l.b16 %v546
      %v7587 = vunpack.c.l.b16 %v547
      %v7588 = vunpack.c.l.b16 %v548
      %v7589 = vunpack.c.l.b16 %v549
      %v7590 = vunpack.c.l.b16 %v550
      %v7591 = vunpack.c.l.b16 %v551
      %v7592 = vunpack.c.l.b16 %v552
      %v7593 = vunpack.c.l.b16 %v553
      %v7594 = vunpack.c.l.b16 %v554
      %v7595 = vunpack.c.l.b16 %v555
      %v7596 = vunpack.c.l.b16 %v556
      %v7597 = vunpack.c.l.b16 %v557
      %v7598 = vunpack.c.l.b16 %v558
      %v7599 = vunpack.c.l.b16 %v559
      %v7600 = vunpack.c.l.b16 %v560
      %v7601 = vunpack.c.l.b16 %v561
      %v7602 = vunpack.c.l.b16 %v562
      %v7603 = vunpack.c.l.b16 %v563
      %v7604 = vunpack.c.l.b16 %v564
      %v7605 = vunpack.c.l.b16 %v565
      %v7606 = vunpack.c.l.b16 %v566
      %v7607 = vunpack.c.l.b16 %v567
      %v7608 = vunpack.c.l.b16 %v568
      %v7609 = vunpack.c.l.b16 %v569
      %v7610 = vunpack.c.l.b16 %v570
      %v7611 = vpack.c.b16 %v7512, %v7511
      %v7612 = vpack.c.b16 %v7514, %v7513
      %v7613 = vpack.c.b16 %v7516, %v7515
      %v7614 = vpack.c.b16 %v7518, %v7517
      %v7615 = vpack.c.b16 %v7520, %v7519
      %v7616 = vpack.c.b16 %v7522, %v7521
      %v7617 = vpack.c.b16 %v7524, %v7523
      %v7618 = vpack.c.b16 %v7526, %v7525
      %v7619 = vpack.c.b16 %v7528, %v7527
      %v7620 = vpack.c.b16 %v7530, %v7529
      %v7621 = vpack.c.b16 %v7532, %v7531
      %v7622 = vpack.c.b16 %v7534, %v7533
      %v7623 = vpack.c.b16 %v7536, %v7535
      %v7624 = vpack.c.b16 %v7538, %v7537
      %v7625 = vpack.c.b16 %v7540, %v7539
      %v7626 = vpack.c.b16 %v7542, %v7541
      %v7627 = vpack.c.b16 %v7544, %v7543
      %v7628 = vpack.c.b16 %v7546, %v7545
      %v7629 = vpack.c.b16 %v7548, %v7547
      %v7630 = vpack.c.b16 %v7550, %v7549
      %v7631 = vpack.c.b16 %v7552, %v7551
      %v7632 = vpack.c.b16 %v7554, %v7553
      %v7633 = vpack.c.b16 %v7556, %v7555
      %v7634 = vpack.c.b16 %v7558, %v7557
      %v7635 = vpack.c.b16 %v7560, %v7559
      %v7636 = vpack.c.b16 %v7562, %v7561
      %v7637 = vpack.c.b16 %v7564, %v7563
      %v7638 = vpack.c.b16 %v7566, %v7565
      %v7639 = vpack.c.b16 %v7568, %v7567
      %v7640 = vpack.c.b16 %v7570, %v7569
      %v7641 = vpack.c.b16 %v7572, %v7571
      %v7642 = vpack.c.b16 %v7574, %v7573
      %v7643 = vpack.c.b16 %v7576, %v7575
      %v7644 = vpack.c.b16 %v7578, %v7577
      %v7645 = vpack.c.b16 %v7580, %v7579
      %v7646 = vpack.c.b16 %v7582, %v7581
      %v7647 = vpack.c.b16 %v7584, %v7583
      %v7648 = vpack.c.b16 %v7586, %v7585
      %v7649 = vpack.c.b16 %v7588, %v7587
      %v7650 = vpack.c.b16 %v7590, %v7589
      %v7651 = vpack.c.b16 %v7592, %v7591
      %v7652 = vpack.c.b16 %v7594, %v7593
      %v7653 = vpack.c.b16 %v7596, %v7595
      %v7654 = vpack.c.b16 %v7598, %v7597
      %v7655 = vpack.c.b16 %v7600, %v7599
      %v7656 = vpack.c.b16 %v7602, %v7601
      %v7657 = vpack.c.b16 %v7604, %v7603
      %v7658 = vpack.c.b16 %v7606, %v7605
      %v7659 = vpack.c.b16 %v7608, %v7607
      %v7660 = vpack.c.b16 %v7610, %v7609
      %v7712 = vsel %vm4890, %v7371, 0
      %v7715 = vsel %vm4890, %v7378, 0
      %v7718 = vsel %vm4890, %v7384, 0
      %v7721 = vsel %vm4890, %v7389, 0
      %7723 = vmatprep.subr.bf16.mxu0 0
      %7724 = vmatpush1.bf16.msra.mxu0 %v7611
      %7725 = vmatprep.subr.bf16.mxu0 0
      %7726 = vmatpush1.bf16.msra.mxu0 %v7612
      %7727 = vmatprep.subr.bf16.mxu0 0
      %7728 = vmatpush1.bf16.msra.mxu0 %v7613
      %7729 = vmatprep.subr.bf16.mxu0 0
      %7730 = vmatpush1.bf16.msra.mxu0 %v7614
      %7731 = vmatprep.subr.bf16.mxu0 0
      %7732 = vmatpush1.bf16.msra.mxu0 %v7615
      %7733 = vmatprep.subr.bf16.mxu0 0
      %7734 = vmatpush1.bf16.msra.mxu0 %v7616
      %7735 = vmatprep.subr.bf16.mxu0 0
      %7736 = vmatpush1.bf16.msra.mxu0 %v7617
      %7737 = vmatprep.subr.bf16.mxu0 0
      %7738 = vmatpush1.bf16.msra.mxu0 %v7618
      %7739 = vmatprep.subr.bf16.mxu0 0
      %7740 = vmatpush1.bf16.msra.mxu0 %v7619
      %7741 = vmatprep.subr.bf16.mxu0 0
      %7742 = vmatpush1.bf16.msra.mxu0 %v7620
      %7743 = vmatprep.subr.bf16.mxu0 0
      %7744 = vmatpush1.bf16.msra.mxu0 %v7621
      %7745 = vmatprep.subr.bf16.mxu0 0
      %7746 = vmatpush1.bf16.msra.mxu0 %v7622
      %7747 = vmatprep.subr.bf16.mxu0 0
      %7748 = vmatpush1.bf16.msra.mxu0 %v7623
      %7749 = vmatprep.subr.bf16.mxu0 0
      %7750 = vmatpush1.bf16.msra.mxu0 %v7624
      %7751 = vmatprep.subr.bf16.mxu0 0
      %7752 = vmatpush1.bf16.msra.mxu0 %v7625
      %7753 = vmatprep.subr.bf16.mxu0 0
      %7754 = vmatpush1.bf16.msra.mxu0 %v7626
      %7755 = vmatprep.mubr.bf16.mxu0 %v7366
      %7756 = vmatmul.mubr.bf16.gmra.mrb[0].mxu0 %v7365
      %v7757 = vpop.f32.mrb[0].mxu0
      %v7758 = vadd.f32 %v7363, %v7757
      %v7759 = vpop.f32.mrb[0].mxu0
      %v7760 = vpop.f32.mrb[0].mxu0
      %v7761 = vadd.f32 %v7363, %v7760
      %v7762 = vpop.f32.mrb[0].mxu0
      %7763 = vmatprep.mubr.bf16.mxu0 %v7373
      %7764 = vmatmul.mubr.bf16.gmra.mrb[0].mxu0 %v7372
      %v7765 = vpop.f32.mrb[0].mxu0
      %v7766 = vadd.f32 %v7363, %v7765
      %v7767 = vpop.f32.mrb[0].mxu0
      %v7768 = vpop.f32.mrb[0].mxu0
      %v7769 = vadd.f32 %v7363, %v7768
      %v7770 = vpop.f32.mrb[0].mxu0
      %7771 = vmatprep.mubr.bf16.mxu0 %v7379
      %7772 = vmatmul.mubr.bf16.gmra.mrb[0].mxu0 %v7370
      %v7773 = vpop.f32.mrb[0].mxu0
      %v7774 = vadd.f32 %v7363, %v7773
      %v7775 = vpop.f32.mrb[0].mxu0
      %v7776 = vpop.f32.mrb[0].mxu0
      %v7777 = vadd.f32 %v7363, %v7776
      %v7778 = vpop.f32.mrb[0].mxu0
      %7779 = vmatprep.mubr.bf16.mxu0 %v7385
      %7780 = vmatmul.mubr.bf16.gmra.mrb[0].mxu0 %v7377
      %v7781 = vpop.f32.mrb[0].mxu0
      %v7782 = vadd.f32 %v7363, %v7781
      %v7783 = vpop.f32.mrb[0].mxu0
      %v7784 = vpop.f32.mrb[0].mxu0
      %v7785 = vadd.f32 %v7363, %v7784
      %v7786 = vpop.f32.mrb[0].mxu0
      %7787 = vdwg.mxu0
      %7788 = vmatprep.subr.bf16.mxu0 0
      %7789 = vmatpush1.bf16.msra.mxu0 %v7627
      %7790 = vmatprep.subr.bf16.mxu0 0
      %7791 = vmatpush1.bf16.msra.mxu0 %v7628
      %7792 = vmatprep.subr.bf16.mxu0 0
      %7793 = vmatpush1.bf16.msra.mxu0 %v7629
      %7794 = vmatprep.subr.bf16.mxu0 0
      %7795 = vmatpush1.bf16.msra.mxu0 %v7630
      %7796 = vmatprep.subr.bf16.mxu0 0
      %7797 = vmatpush1.bf16.msra.mxu0 %v7631
      %7798 = vmatprep.subr.bf16.mxu0 0
      %7799 = vmatpush1.bf16.msra.mxu0 %v7632
      %7800 = vmatprep.subr.bf16.mxu0 0
      %7801 = vmatpush1.bf16.msra.mxu0 %v7633
      %7802 = vmatprep.subr.bf16.mxu0 0
      %7803 = vmatpush1.bf16.msra.mxu0 %v7634
      %7804 = vmatprep.subr.bf16.mxu0 0
      %7805 = vmatpush1.bf16.msra.mxu0 %v7635
      %7806 = vmatprep.subr.bf16.mxu0 0
      %7807 = vmatpush1.bf16.msra.mxu0 %v7636
      %7808 = vmatprep.subr.bf16.mxu0 0
      %7809 = vmatpush1.bf16.msra.mxu0 %v7637
      %7810 = vmatprep.subr.bf16.mxu0 0
      %7811 = vmatpush1.bf16.msra.mxu0 %v7638
      %7812 = vmatprep.subr.bf16.mxu0 0
      %7813 = vmatpush1.bf16.msra.mxu0 %v7639
      %7814 = vmatprep.subr.bf16.mxu0 0
      %7815 = vmatpush1.bf16.msra.mxu0 %v7640
      %7816 = vmatprep.subr.bf16.mxu0 0
      %7817 = vmatpush1.bf16.msra.mxu0 %v7641
      %7818 = vmatprep.subr.bf16.mxu0 0
      %7819 = vmatpush1.bf16.msra.mxu0 %v7642
      %7820 = vmatprep.mubr.bf16.mxu0 %v7368
      %7821 = vmatmul.mubr.bf16.gmra.mrb[0].mxu0 %v7367
      %v7822 = vpop.f32.mrb[0].mxu0
      %v7823 = vadd.f32 %v7758, %v7822
      %v7824 = vpop.f32.mrb[0].mxu0
      %v7825 = vpop.f32.mrb[0].mxu0
      %v7826 = vadd.f32 %v7761, %v7825
      %v7827 = vpop.f32.mrb[0].mxu0
      %7828 = vmatprep.mubr.bf16.mxu0 %v7375
      %7829 = vmatmul.mubr.bf16.gmra.mrb[0].mxu0 %v7374
      %v7830 = vpop.f32.mrb[0].mxu0
      %v7831 = vadd.f32 %v7766, %v7830
      %v7832 = vpop.f32.mrb[0].mxu0
      %v7833 = vpop.f32.mrb[0].mxu0
      %v7834 = vadd.f32 %v7769, %v7833
      %v7835 = vpop.f32.mrb[0].mxu0
      %7836 = vmatprep.mubr.bf16.mxu0 %v7381
      %7837 = vmatmul.mubr.bf16.gmra.mrb[0].mxu0 %v7380
      %v7838 = vpop.f32.mrb[0].mxu0
      %v7839 = vadd.f32 %v7774, %v7838
      %v7840 = vpop.f32.mrb[0].mxu0
      %v7841 = vpop.f32.mrb[0].mxu0
      %v7842 = vadd.f32 %v7777, %v7841
      %v7843 = vpop.f32.mrb[0].mxu0
      %7844 = vmatprep.mubr.bf16.mxu0 %v7387
      %7845 = vmatmul.mubr.bf16.gmra.mrb[0].mxu0 %v7386
      %v7846 = vpop.f32.mrb[0].mxu0
      %v7847 = vadd.f32 %v7782, %v7846
      %v7848 = vpop.f32.mrb[0].mxu0
      %v7849 = vpop.f32.mrb[0].mxu0
      %v7850 = vadd.f32 %v7785, %v7849
      %v7851 = vpop.f32.mrb[0].mxu0
      %7852 = vdwg.mxu0
      %7853 = vmatprep.subr.bf16.mxu0 0
      %7854 = vmatpush1.bf16.msra.mxu0 %v7643
      %7855 = vmatprep.subr.bf16.mxu0 0
      %7856 = vmatpush1.bf16.msra.mxu0 %v7644
      %7857 = vmatprep.subr.bf16.mxu0 0
      %7858 = vmatpush1.bf16.msra.mxu0 %v7645
      %7859 = vmatprep.subr.bf16.mxu0 0
      %7860 = vmatpush1.bf16.msra.mxu0 %v7646
      %7861 = vmatprep.subr.bf16.mxu0 0
      %7862 = vmatpush1.bf16.msra.mxu0 %v7647
      %7863 = vmatprep.subr.bf16.mxu0 0
      %7864 = vmatpush1.bf16.msra.mxu0 %v7648
      %7865 = vmatprep.subr.bf16.mxu0 0
      %7866 = vmatpush1.bf16.msra.mxu0 %v7649
      %7867 = vmatprep.subr.bf16.mxu0 0
      %7868 = vmatpush1.bf16.msra.mxu0 %v7650
      %7869 = vmatprep.subr.bf16.mxu0 0
      %7870 = vmatpush1.bf16.msra.mxu0 %v7651
      %7871 = vmatprep.subr.bf16.mxu0 0
      %7872 = vmatpush1.bf16.msra.mxu0 %v7652
      %7873 = vmatprep.subr.bf16.mxu0 0
      %7874 = vmatpush1.bf16.msra.mxu0 %v7653
      %7875 = vmatprep.subr.bf16.mxu0 0
      %7876 = vmatpush1.bf16.msra.mxu0 %v7654
      %7877 = vmatprep.subr.bf16.mxu0 0
      %7878 = vmatpush1.bf16.msra.mxu0 %v7655
      %7879 = vmatprep.subr.bf16.mxu0 0
      %7880 = vmatpush1.bf16.msra.mxu0 %v7656
      %7881 = vmatprep.subr.bf16.mxu0 0
      %7882 = vmatpush1.bf16.msra.mxu0 %v7657
      %7883 = vmatprep.subr.bf16.mxu0 0
      %7884 = vmatpush1.bf16.msra.mxu0 %v7658
      %7885 = vmatprep.mubr.bf16.mxu0 %v7370
      %7886 = vmatmul.mubr.bf16.gmra.mrb[0].mxu0 %v7369
      %v7887 = vpop.f32.mrb[0].mxu0
      %v7888 = vadd.f32 %v7823, %v7887
      %v7889 = vpop.f32.mrb[0].mxu0
      %v7890 = vpop.f32.mrb[0].mxu0
      %v7891 = vadd.f32 %v7826, %v7890
      %v7892 = vpop.f32.mrb[0].mxu0
      %7893 = vmatprep.mubr.bf16.mxu0 %v7377
      %7894 = vmatmul.mubr.bf16.gmra.mrb[0].mxu0 %v7376
      %v7895 = vpop.f32.mrb[0].mxu0
      %v7896 = vadd.f32 %v7831, %v7895
      %v7897 = vpop.f32.mrb[0].mxu0
      %v7898 = vpop.f32.mrb[0].mxu0
      %v7899 = vadd.f32 %v7834, %v7898
      %v7900 = vpop.f32.mrb[0].mxu0
      %7901 = vmatprep.mubr.bf16.mxu0 %v7383
      %7902 = vmatmul.mubr.bf16.gmra.mrb[0].mxu0 %v7382
      %v7903 = vpop.f32.mrb[0].mxu0
      %v7904 = vadd.f32 %v7839, %v7903
      %v7905 = vpop.f32.mrb[0].mxu0
      %v7906 = vpop.f32.mrb[0].mxu0
      %v7907 = vadd.f32 %v7842, %v7906
      %v7908 = vpop.f32.mrb[0].mxu0
      %7909 = vmatprep.mubr.bf16.mxu0 %v7365
      %7910 = vmatmul.mubr.bf16.gmra.mrb[0].mxu0 %v7388
      %v7911 = vpop.f32.mrb[0].mxu0
      %v7912 = vadd.f32 %v7847, %v7911
      %v7913 = vpop.f32.mrb[0].mxu0
      %v7914 = vpop.f32.mrb[0].mxu0
      %v7915 = vadd.f32 %v7850, %v7914
      %v7916 = vpop.f32.mrb[0].mxu0
      %7917 = vdwg.mxu0
      %7918 = vmatprep.subr.bf16.mxu0 0
      %7919 = vmatpush1.bf16.msra.mxu0 %v7659
      %7920 = vmatprep.subr.bf16.mxu0 0
      %7921 = vmatpush1.bf16.msra.mxu0 %v7660
      %7922 = vmatprep.subr.bf16.mxu0 0
      %7923 = vmatpush1.bf16.msra.mxu0 0
      %7924 = vmatprep.subr.bf16.mxu0 0
      %7925 = vmatpush1.bf16.msra.mxu0 0
      %7926 = vmatprep.subr.bf16.mxu0 0
      %7927 = vmatpush1.bf16.msra.mxu0 0
      %7928 = vmatprep.subr.bf16.mxu0 0
      %7929 = vmatpush1.bf16.msra.mxu0 0
      %7930 = vmatprep.subr.bf16.mxu0 0
      %7931 = vmatpush1.bf16.msra.mxu0 0
      %7932 = vmatprep.subr.bf16.mxu0 0
      %7933 = vmatpush1.bf16.msra.mxu0 0
      %7934 = vmatprep.subr.bf16.mxu0 0
      %7935 = vmatpush1.bf16.msra.mxu0 0
      %7936 = vmatprep.subr.bf16.mxu0 0
      %7937 = vmatpush1.bf16.msra.mxu0 0
      %7938 = vmatprep.subr.bf16.mxu0 0
      %7939 = vmatpush1.bf16.msra.mxu0 0
      %7940 = vmatprep.subr.bf16.mxu0 0
      %7941 = vmatpush1.bf16.msra.mxu0 0
      %7942 = vmatprep.subr.bf16.mxu0 0
      %7943 = vmatpush1.bf16.msra.mxu0 0
      %7944 = vmatprep.subr.bf16.mxu0 0
      %7945 = vmatpush1.bf16.msra.mxu0 0
      %7946 = vmatprep.subr.bf16.mxu0 0
      %7947 = vmatpush1.bf16.msra.mxu0 0
      %7948 = vmatprep.subr.bf16.mxu0 0
      %7949 = vmatpush1.bf16.msra.mxu0 0
      %7950 = vmatprep.mubr.bf16.mxu0 0
      %7951 = vmatmul.mubr.bf16.gmra.mrb[0].mxu0 %v7712
      %v7952 = vpop.f32.mrb[0].mxu0
      %v7953 = vadd.f32 %v7888, %v7952
      %v7954 = vpop.f32.mrb[0].mxu0
      %v7955 = vpop.f32.mrb[0].mxu0
      %v7956 = vadd.f32 %v7891, %v7955
      %v7957 = vpop.f32.mrb[0].mxu0
      %7958 = vmatprep.mubr.bf16.mxu0 0
      %7959 = vmatmul.mubr.bf16.gmra.mrb[0].mxu0 %v7715
      %v7960 = vpop.f32.mrb[0].mxu0
      %v7961 = vadd.f32 %v7896, %v7960
      %v7962 = vpop.f32.mrb[0].mxu0
      %v7963 = vpop.f32.mrb[0].mxu0
      %v7964 = vadd.f32 %v7899, %v7963
      %v7965 = vpop.f32.mrb[0].mxu0
      %7966 = vmatprep.mubr.bf16.mxu0 0
      %7967 = vmatmul.mubr.bf16.gmra.mrb[0].mxu0 %v7718
      %v7968 = vpop.f32.mrb[0].mxu0
      %v7969 = vadd.f32 %v7904, %v7968
      %v7970 = vpop.f32.mrb[0].mxu0
      %v7971 = vpop.f32.mrb[0].mxu0
      %v7972 = vadd.f32 %v7907, %v7971
      %v7973 = vpop.f32.mrb[0].mxu0
      %7974 = vmatprep.mubr.bf16.mxu0 0
      %7975 = vmatmul.mubr.bf16.gmra.mrb[0].mxu0 %v7721
      %v7976 = vpop.f32.mrb[0].mxu0
      %v7977 = vadd.f32 %v7912, %v7976
      %v7978 = vpop.f32.mrb[0].mxu0
      %v7979 = vpop.f32.mrb[0].mxu0
      %v7980 = vadd.f32 %v7915, %v7979
      %v7981 = vpop.f32.mrb[0].mxu0
      %7982 = vdwg.mxu0
      %v7983 = vmax.f32 %v7953, 0.0
      %v7984 = vmax.f32 %v7956, 0.0
      %v7985 = vmax.f32 %v7961, 0.0
      %v7986 = vmax.f32 %v7964, 0.0
      %v7987 = vmax.f32 %v7969, 0.0
      %v7988 = vmax.f32 %v7972, 0.0
      %v7989 = vmax.f32 %v7977, 0.0
      %v7990 = vmax.f32 %v7980, 0.0
      %v7991 = vpack.c.bf16 %v7984, %v7983
      %v7992 = vpack.c.bf16 %v7986, %v7985
      %v7993 = vpack.c.bf16 %v7988, %v7987
      %v7994 = vpack.c.bf16 %v7990, %v7989
      %v8002 = vunpack.c.l.b16 %v710
      %v8003 = vunpack.c.l.b16 %v711
      %v8004 = vunpack.c.l.b16 %v712
      %v8005 = vunpack.c.l.b16 %v713
      %v8006 = vunpack.c.l.b16 %v714
      %v8007 = vunpack.c.l.b16 %v715
      %v8008 = vunpack.c.l.b16 %v716
      %v8009 = vpack.c.b16 %v8003, %v8002
      %v8010 = vpack.c.b16 %v8005, %v8004
      %v8011 = vpack.c.b16 %v8007, %v8006
      %v8012 = vpack.c.b16 %v8008, %v8008
      %v8014 = vsel %vm4925, %v8009, 0
      %v8017 = vsel %vm4925, %v8010, 0
      %v8020 = vsel %vm4925, %v8011, 0
      %v8023 = vsel %vm4925, %v8012, 0
      %8025 = vmatprep.subr.bf16.mxu0 0
      %8026 = vmatpush1.bf16.msra.mxu0 %v7991
      %8027 = vmatprep.subr.bf16.mxu0 0
      %8028 = vmatpush1.bf16.msra.mxu0 %v7992
      %8029 = vmatprep.subr.bf16.mxu0 0
      %8030 = vmatpush1.bf16.msra.mxu0 %v7993
      %8031 = vmatprep.subr.bf16.mxu0 0
      %8032 = vmatpush1.bf16.msra.mxu0 %v7994
      %8033 = vmatprep.subr.bf16.mxu0 0
      %8034 = vmatpush1.bf16.msra.mxu0 0
      %8035 = vmatprep.subr.bf16.mxu0 0
      %8036 = vmatpush1.bf16.msra.mxu0 0
      %8037 = vmatprep.subr.bf16.mxu0 0
      %8038 = vmatpush1.bf16.msra.mxu0 0
      %8039 = vmatprep.subr.bf16.mxu0 0
      %8040 = vmatpush1.bf16.msra.mxu0 0
      %8041 = vmatprep.subr.bf16.mxu0 0
      %8042 = vmatpush1.bf16.msra.mxu0 0
      %8043 = vmatprep.subr.bf16.mxu0 0
      %8044 = vmatpush1.bf16.msra.mxu0 0
      %8045 = vmatprep.subr.bf16.mxu0 0
      %8046 = vmatpush1.bf16.msra.mxu0 0
      %8047 = vmatprep.subr.bf16.mxu0 0
      %8048 = vmatpush1.bf16.msra.mxu0 0
      %8049 = vmatprep.subr.bf16.mxu0 0
      %8050 = vmatpush1.bf16.msra.mxu0 0
      %8051 = vmatprep.subr.bf16.mxu0 0
      %8052 = vmatpush1.bf16.msra.mxu0 0
      %8053 = vmatprep.subr.bf16.mxu0 0
      %8054 = vmatpush1.bf16.msra.mxu0 0
      %8055 = vmatprep.subr.bf16.mxu0 0
      %8056 = vmatpush1.bf16.msra.mxu0 0
      %8057 = vmatprep.mubr.bf16.mxu0 0
      %8058 = vmatmul.mubr.bf16.gmra.mrb[0].mxu0 %v8014
      %v8059 = vpop.f32.mrb[0].mxu0
      %v8060 = vadd.f32 0.0, %v8059
      %v8061 = vpop.f32.mrb[0].mxu0
      %v8062 = vpop.f32.mrb[0].mxu0
      %v8063 = vadd.f32 0.0, %v8062
      %v8064 = vpop.f32.mrb[0].mxu0
      %8065 = vmatprep.mubr.bf16.mxu0 0
      %8066 = vmatmul.mubr.bf16.gmra.mrb[0].mxu0 %v8017
      %v8067 = vpop.f32.mrb[0].mxu0
      %v8068 = vadd.f32 0.0, %v8067
      %v8069 = vpop.f32.mrb[0].mxu0
      %v8070 = vpop.f32.mrb[0].mxu0
      %v8071 = vadd.f32 0.0, %v8070
      %v8072 = vpop.f32.mrb[0].mxu0
      %8073 = vmatprep.mubr.bf16.mxu0 0
      %8074 = vmatmul.mubr.bf16.gmra.mrb[0].mxu0 %v8020
      %v8075 = vpop.f32.mrb[0].mxu0
      %v8076 = vadd.f32 0.0, %v8075
      %v8077 = vpop.f32.mrb[0].mxu0
      %v8078 = vpop.f32.mrb[0].mxu0
      %v8079 = vadd.f32 0.0, %v8078
      %v8080 = vpop.f32.mrb[0].mxu0
      %8081 = vmatprep.mubr.bf16.mxu0 0
      %8082 = vmatmul.mubr.bf16.gmra.mrb[0].mxu0 %v8023
      %v8083 = vpop.f32.mrb[0].mxu0
      %v8084 = vadd.f32 0.0, %v8083
      %v8085 = vpop.f32.mrb[0].mxu0
      %v8086 = vpop.f32.mrb[0].mxu0
      %v8087 = vpop.f32.mrb[0].mxu0
      %8088 = vdwg.mxu0
      %8089 = vst.msk [vmem:[%s359] sm:$0xff] %vm4890, %v8060
      %8090 = vst.msk [vmem:[%s359 + $0x8] sm:$0xff] %vm4890, %v8063
      %8091 = vst.msk [vmem:[%s359 + $0x10] sm:$0xff] %vm4890, %v8068
      %8092 = vst.msk [vmem:[%s359 + $0x18] sm:$0xff] %vm4890, %v8071
      %8093 = vst.msk [vmem:[%s359 + $0x20] sm:$0xff] %vm4890, %v8076
      %8094 = vst.msk [vmem:[%s359 + $0x28] sm:$0xff] %vm4890, %v8079
      %vm8095 = vcmask 253952
      %8096 = vst.msk [vmem:[%s359 + $0x30] sm:$0x1] %vm8095, %v8084
      %p8097 = scmp.lt.s32.totalorder %s21, 1
      %s8098 = scalar_select %p8097, %s21, 1
      %s8099 = smul.addr %s8098, 7
      %s8100 = smul.addr %s8099, 8
      %s8101 = scalar_lea.vmem %s10, %s8100
      // Predicated region
      $region61: #{rgb_encoder_forward.1} parent=59 // pred_check
        %p8102 = pneg %p254
      $region62: #{rgb_encoder_forward.1} parent=59 // pred_check_branch
        %8104 = sbr.rel (%p8102) target = $region64
      $region63: #{rgb_encoder_forward.1} parent=59 // pred_region
        _
      $region64: #{rgb_encoder_forward.1} parent=59 // pred_fallthru
        _
    $region60: #{rgb_encoder_forward.1} parent=5 // pred_fallthru
      _
    %p8105 = scmp.le.s32.totalorder 2, %s16
    // Predicated region
    $region65: #{rgb_encoder_forward.1} parent=5 // pred_check
      %p8106 = pneg %p8105
    $region66: #{rgb_encoder_forward.1} parent=5 // pred_check_branch
      %8108 = sbr.rel (%p8106) target = $region68
    $region67: #{rgb_encoder_forward.1} parent=5 // pred_region
      %s8109 = ssub.s32 %s16, 2
      // Predicated region
      $region69: #{rgb_encoder_forward.1} parent=67 // pred_check
        %p8110 = pneg %p260
      $region70: #{rgb_encoder_forward.1} parent=67 // pred_check_branch
        %8112 = sbr.rel (%p8110) target = $region72
      $region71: #{rgb_encoder_forward.1} parent=67 // pred_region
        %p8113 = scmp.lt.s32.totalorder %s22, 1
        %s8114 = scalar_select %p8113, %s22, 1
        %s8115 = smul.addr %s8114, 7
        %s8116 = smul.addr %s8115, 8
        %s8117 = scalar_lea.vmem %s10, %s8116
      $region72: #{rgb_encoder_forward.1} parent=67 // pred_fallthru
        _
    $region68: #{rgb_encoder_forward.1} parent=5 // pred_fallthru
      _
  $region6: #{rgb_encoder_forward.1} parent=0 // loop_footer
    %s20 = sadd.s32 1, %s16
  $region7: #{rgb_encoder_forward.1} parent=0 // loop_footer_branch
    %15 = sbr.rel target = $region3
  $region8: #{rgb_encoder_forward.1} parent=0 // loop_exit
    _

</llo_original>
